<compile_context>
chip_gen: v6e
topology: v6e:2x2x1
jax: 0.10.0
libtpu: 0.0.40
codegen_flags: <defaults>
</compile_context>

<pallas_src>
import jax
import jax.numpy as jnp
from jax.experimental import pallas as pl
from jax.experimental.pallas import tpu as pltpu


# ----------------------------------------------------------------------------
# Fused kernel: per-point MLP (3->64->128->1024, BN folded, ReLU) + max over
# points + FC head (1024->512->256->9 + identity) in the last tile's epilogue.
# Grid: (B, N // TN); point axis is the reduction ("arbitrary") axis.
# ----------------------------------------------------------------------------
def stn3d_kernel(x_ref,
                 w1_ref, b1_ref,    # conv1: (64, 3)    f32 , (64, 1)   f32
                 w2_ref, b2_ref,    # conv2: (128, 64)  bf16, (128, 1)  f32
                 w3_ref, b3_ref,    # conv3: (1024,128) bf16, (1024, 1) f32
                 w4_ref, b4_ref,    # fc1  : (1024,512) bf16, (1, 512)  f32
                 w5_ref, b5_ref,    # fc2  : (512, 256) bf16, (1, 256)  f32
                 w6_ref, b6_ref,    # fc3  : (256, 128) bf16, (1, 128)  f32 (bias+identity, padded 9->128)
                 o_ref,             # (1, 1, 128) f32
                 pool_ref):         # scratch: (1024, 128) f32 lane-parallel running max
    n = pl.program_id(1)

    @pl.when(n == 0)
    def _():
        pool_ref[...] = jnp.full(pool_ref.shape, -jnp.inf, dtype=pool_ref.dtype)

    # ---- per-point MLP on a (channels, tn) tile, point axis on lanes ----
    x3 = x_ref[0]                                       # (3, tn) f32, NCW slab
    w1 = w1_ref[...]                                    # (64, 3) f32

    # conv1 (3 -> 64): K=3 contraction as three VPU broadcast-FMAs (MXU-free).
    h = (w1[:, 0:1] * x3[0:1, :]
         + w1[:, 1:2] * x3[1:2, :]
         + w1[:, 2:3] * x3[2:3, :]
         + b1_ref[...])
    h = jnp.maximum(h, 0.0)                             # (64, tn) f32

    # conv2 (64 -> 128), conv3 (128 -> 1024): bf16 MXU matmuls, f32 accumulate.
    h = jnp.dot(w2_ref[...], h.astype(jnp.bfloat16),
                preferred_element_type=jnp.float32)
    h = jnp.maximum(h + b2_ref[...], 0.0)               # (128, tn)
    h = jnp.dot(w3_ref[...], h.astype(jnp.bfloat16),
                preferred_element_type=jnp.float32)
    h = jnp.maximum(h + b3_ref[...], 0.0)               # (1024, tn)

    # ---- lane-parallel partial max over points: pure VPU, no cross-lane work.
    tn = h.shape[1]
    m = h[:, 0:128]
    for j in range(1, tn // 128):                       # static 128-lane slices
        m = jnp.maximum(m, h[:, j * 128:(j + 1) * 128])
    pool_ref[...] = jnp.maximum(pool_ref[...], m)       # (1024, 128)

    # ---- FC head fused into the epilogue of the last point tile ----
    @pl.when(n == pl.num_programs(1) - 1)
    def _():
        # Single cross-lane reduction per batch: tile-aligned transpose (XLU,
        # once) + sublane max -> lane-dense (1, 1024) pooled row.
        pm_t = jnp.transpose(pool_ref[...])              # (128, 1024)
        p = jnp.max(pm_t, axis=0, keepdims=True)         # (1, 1024)
        f = jnp.dot(p.astype(jnp.bfloat16), w4_ref[...],
                    preferred_element_type=jnp.float32)
        f = jnp.maximum(f + b4_ref[...], 0.0)            # (1, 512)
        f = jnp.dot(f.astype(jnp.bfloat16), w5_ref[...],
                    preferred_element_type=jnp.float32)
        f = jnp.maximum(f + b5_ref[...], 0.0)            # (1, 256)
        f = jnp.dot(f.astype(jnp.bfloat16), w6_ref[...],
                    preferred_element_type=jnp.float32)
        o_ref[0] = f + b6_ref[...]                       # (1, 128); cols 9..127 stay 0


# ----------------------------------------------------------------------------
# Glue: BN folding, parameter construction, pallas_call wrapper.
# ----------------------------------------------------------------------------
def fold_bn(w, b, gamma, beta, mean, var, eps=1e-5):
    """Fold eval-mode BatchNorm into a preceding (in,out) matmul layer."""
    s = gamma / jnp.sqrt(var + eps)
    w_f = w * s[None, :]
    b_f = (b - mean) * s + beta
    return w_f.astype(jnp.float32), b_f.astype(jnp.float32)


def make_params(key):
    dims = [(3, 64), (64, 128), (128, 1024), (1024, 512), (512, 256), (256, 9)]
    params = {}
    keys = jax.random.split(key, 2 * len(dims) + 4 * 5)
    ki = 0
    for li, (cin, cout) in enumerate(dims):
        bound = 1.0 / jnp.sqrt(cin)
        params[f"w{li}"] = jax.random.uniform(
            keys[ki], (cin, cout), jnp.float32, -bound, bound); ki += 1
        params[f"b{li}"] = jax.random.uniform(
            keys[ki], (cout,), jnp.float32, -bound, bound); ki += 1
    # BatchNorm params for layers 0..4 (64,128,1024,512,256)
    for bi, c in enumerate([64, 128, 1024, 512, 256]):
        params[f"bn{bi}_g"] = 1.0 + 0.1 * jax.random.normal(keys[ki], (c,)); ki += 1
        params[f"bn{bi}_b"] = 0.1 * jax.random.normal(keys[ki], (c,)); ki += 1
        params[f"bn{bi}_m"] = 0.05 * jax.random.normal(keys[ki], (c,)); ki += 1
        params[f"bn{bi}_v"] = jnp.abs(1.0 + 0.1 * jax.random.normal(keys[ki], (c,))); ki += 1
    return params


def stn3d_forward(x_ncw, params, *, tn=1024):
    """x_ncw: (B, 3, N) float32, PyTorch NCW layout. Returns (B, 3, 3)."""
    B, C, N = x_ncw.shape
    assert C == 3
    tn = min(tn, N)
    assert N % tn == 0 and tn % 128 == 0, \
        "point tile must divide N and be lane-aligned (multiple of 128)"

    # Fold eval-mode BN into the five BN-followed layers.
    w0, b0 = fold_bn(params["w0"], params["b0"], params["bn0_g"],
                     params["bn0_b"], params["bn0_m"], params["bn0_v"])
    w1, b1 = fold_bn(params["w1"], params["b1"], params["bn1_g"],
                     params["bn1_b"], params["bn1_m"], params["bn1_v"])
    w2, b2 = fold_bn(params["w2"], params["b2"], params["bn2_g"],
                     params["bn2_b"], params["bn2_m"], params["bn2_v"])
    w3, b3 = fold_bn(params["w3"], params["b3"], params["bn3_g"],
                     params["bn3_b"], params["bn3_m"], params["bn3_v"])
    w4, b4 = fold_bn(params["w4"], params["b4"], params["bn4_g"],
                     params["bn4_b"], params["bn4_m"], params["bn4_v"])
    w5, b5 = params["w5"].astype(jnp.float32), params["b5"].astype(jnp.float32)

    # Kernel-side layouts:
    #   conv weights transposed to (out, in) -- activations are (channels, points);
    #   head weights kept untransposed (in, out) -- pooled vector is a (1,1024) row;
    #   conv biases as (out, 1) columns, head biases as (1, out) rows.
    w1t = w0.T.astype(jnp.float32);  b1c = b0.reshape(-1, 1)
    w2t = w1.T.astype(jnp.bfloat16); b2c = b1.reshape(-1, 1)
    w3t = w2.T.astype(jnp.bfloat16); b3c = b2.reshape(-1, 1)
    w4r = w3.astype(jnp.bfloat16);   b4r = b3.reshape(1, -1)    # (1024, 512), (1, 512)
    w5r = w4.astype(jnp.bfloat16);   b5r = b4.reshape(1, -1)    # (512, 256),  (1, 256)
    # fc3: pad 9 -> 128 output lanes (unmasked stores) and fold in the identity.
    iden9 = jnp.eye(3, dtype=jnp.float32).reshape(9)
    w6r = jnp.zeros((256, 128), jnp.float32).at[:, :9].set(w5).astype(jnp.bfloat16)
    b6r = jnp.zeros((1, 128), jnp.float32).at[0, :9].set(b5 + iden9)

    x = x_ncw.astype(jnp.float32)

    def const(shape):
        return pl.BlockSpec(shape, lambda b, n: (0, 0))

    out = pl.pallas_call(
        stn3d_kernel,
        out_shape=jax.ShapeDtypeStruct((B, 1, 128), jnp.float32),
        grid_spec=pltpu.PrefetchScalarGridSpec(
            num_scalar_prefetch=0,
            grid=(B, N // tn),
            in_specs=[
                pl.BlockSpec((1, 3, tn), lambda b, n: (b, 0, n)),  # NCW slab
                const((64, 3)), const((64, 1)),
                const((128, 64)), const((128, 1)),
                const((1024, 128)), const((1024, 1)),
                const((1024, 512)), const((1, 512)),
                const((512, 256)), const((1, 256)),
                const((256, 128)), const((1, 128)),
            ],
            out_specs=pl.BlockSpec((1, 1, 128), lambda b, n: (b, 0, 0)),
            scratch_shapes=[pltpu.VMEM((1024, 128), jnp.float32)],
        ),
        compiler_params=pltpu.CompilerParams(
            dimension_semantics=("parallel", "arbitrary"),
            vmem_limit_bytes=32 * 1024 * 1024),
    )(x, w1t, b1c, w2t, b2c, w3t, b3c, w4r, b4r, w5r, b5r, w6r, b6r)

    return out.reshape(B, 128)[:, :9].reshape(B, 3, 3)


if __name__ == "__main__":
    key = jax.random.PRNGKey(0)
    pkey, xkey = jax.random.split(key)
    params = make_params(pkey)

    B, N = 2, 2048
    x = jax.random.normal(xkey, (B, 3, N), dtype=jnp.float32)     # NCW like PyTorch

    fwd = jax.jit(stn3d_forward, static_argnames=("tn",))
    out = fwd(x, params)
    out = jax.block_until_ready(out)
    assert out.shape == (B, 3, 3)
    assert bool(jnp.all(jnp.isfinite(out)))
    print("KERNEL_OK")
</pallas_src>

<mosaic_0001>
module attributes {stable_mosaic.version = 11 : i64} {
  func.func @stn3d_kernel(%arg0: i32, %arg1: i32, %arg2: memref<1x3x1024xf32, #tpu.memory_space<vmem>>, %arg3: memref<64x3xf32, #tpu.memory_space<vmem>>, %arg4: memref<64x1xf32, #tpu.memory_space<vmem>>, %arg5: memref<128x64xbf16, #tpu.memory_space<vmem>>, %arg6: memref<128x1xf32, #tpu.memory_space<vmem>>, %arg7: memref<1024x128xbf16, #tpu.memory_space<vmem>>, %arg8: memref<1024x1xf32, #tpu.memory_space<vmem>>, %arg9: memref<1024x512xbf16, #tpu.memory_space<vmem>>, %arg10: memref<1x512xf32, #tpu.memory_space<vmem>>, %arg11: memref<512x256xbf16, #tpu.memory_space<vmem>>, %arg12: memref<1x256xf32, #tpu.memory_space<vmem>>, %arg13: memref<256x128xbf16, #tpu.memory_space<vmem>>, %arg14: memref<1x128xf32, #tpu.memory_space<vmem>>, %arg15: memref<1x1x128xf32, #tpu.memory_space<vmem>>, %arg16: memref<1024x128xf32, #tpu.memory_space<vmem>>) attributes {dimension_semantics = [#tpu.dimension_semantics<parallel>, #tpu.dimension_semantics<arbitrary>], iteration_bounds = array<i64: 2, 2>, scalar_prefetch = 0 : i64, scratch_operands = 1 : i64, tpu.core_type = #tpu.core_type<tc>, window_params = [{transform_indices = @transform_0, window_bounds = array<i64: 1, 3, 1024>}, {pipeline_mode = #tpu.pipeline_mode<synchronous>, transform_indices = @transform_1, window_bounds = array<i64: 64, 3>}, {pipeline_mode = #tpu.pipeline_mode<synchronous>, transform_indices = @transform_2, window_bounds = array<i64: 64, 1>}, {pipeline_mode = #tpu.pipeline_mode<synchronous>, transform_indices = @transform_3, window_bounds = array<i64: 128, 64>}, {pipeline_mode = #tpu.pipeline_mode<synchronous>, transform_indices = @transform_4, window_bounds = array<i64: 128, 1>}, {pipeline_mode = #tpu.pipeline_mode<synchronous>, transform_indices = @transform_5, window_bounds = array<i64: 1024, 128>}, {pipeline_mode = #tpu.pipeline_mode<synchronous>, transform_indices = @transform_6, window_bounds = array<i64: 1024, 1>}, {pipeline_mode = #tpu.pipeline_mode<synchronous>, transform_indices = @transform_7, window_bounds = array<i64: 1024, 512>}, {pipeline_mode = #tpu.pipeline_mode<synchronous>, transform_indices = @transform_8, window_bounds = array<i64: 1, 512>}, {pipeline_mode = #tpu.pipeline_mode<synchronous>, transform_indices = @transform_9, window_bounds = array<i64: 512, 256>}, {pipeline_mode = #tpu.pipeline_mode<synchronous>, transform_indices = @transform_10, window_bounds = array<i64: 1, 256>}, {pipeline_mode = #tpu.pipeline_mode<synchronous>, transform_indices = @transform_11, window_bounds = array<i64: 256, 128>}, {pipeline_mode = #tpu.pipeline_mode<synchronous>, transform_indices = @transform_12, window_bounds = array<i64: 1, 128>}, {transform_indices = @transform_13, window_bounds = array<i64: 1, 1, 128>}]} {
    %c0_i32 = arith.constant 0 : i32
    %0 = arith.cmpi eq, %arg1, %c0_i32 : i32
    %1 = arith.extui %0 : i1 to i32
    %c0_i32_0 = arith.constant 0 : i32
    %2 = arith.cmpi ne, %1, %c0_i32_0 : i32
    scf.if %2 {
      %cst_24 = arith.constant 0xFF800000 : f32
      %65 = vector.broadcast %cst_24 : f32 to vector<1024x128xf32>
      %c0_25 = arith.constant 0 : index
      %c0_26 = arith.constant 0 : index
      %66 = vector.load %arg16[%c0_25, %c0_26] : memref<1024x128xf32, #tpu.memory_space<vmem>>, vector<1024x128xf32>
      tpu.vector_store %arg16[%c0_25, %c0_26], %65 {strides = array<i32>} : memref<1024x128xf32, #tpu.memory_space<vmem>>, vector<1024x128xf32>,
    } else {
    }
    %c0 = arith.constant 0 : index
    %c0_1 = arith.constant 0 : index
    %c0_2 = arith.constant 0 : index
    %3 = vector.load %arg2[%c0, %c0_1, %c0_2] : memref<1x3x1024xf32, #tpu.memory_space<vmem>>, vector<1x3x1024xf32>
    %4 = vector.shape_cast %3 : vector<1x3x1024xf32> to vector<3x1024xf32>
    %c0_3 = arith.constant 0 : index
    %c0_4 = arith.constant 0 : index
    %5 = vector.load %arg3[%c0_3, %c0_4] : memref<64x3xf32, #tpu.memory_space<vmem>>, vector<64x3xf32>
    %6 = vector.extract_strided_slice %5 {offsets = [0, 0], sizes = [64, 1], strides = [1, 1]} : vector<64x3xf32> to vector<64x1xf32>
    %7 = vector.extract_strided_slice %4 {offsets = [0, 0], sizes = [1, 1024], strides = [1, 1]} : vector<3x1024xf32> to vector<1x1024xf32>
    %8 = vector.broadcast %6 : vector<64x1xf32> to vector<64x1024xf32>
    %9 = vector.broadcast %7 : vector<1x1024xf32> to vector<64x1024xf32>
    %10 = arith.mulf %8, %9 : vector<64x1024xf32>
    %11 = vector.extract_strided_slice %5 {offsets = [0, 1], sizes = [64, 1], strides = [1, 1]} : vector<64x3xf32> to vector<64x1xf32>
    %12 = vector.extract_strided_slice %4 {offsets = [1, 0], sizes = [1, 1024], strides = [1, 1]} : vector<3x1024xf32> to vector<1x1024xf32>
    %13 = vector.broadcast %11 : vector<64x1xf32> to vector<64x1024xf32>
    %14 = vector.broadcast %12 : vector<1x1024xf32> to vector<64x1024xf32>
    %15 = arith.mulf %13, %14 : vector<64x1024xf32>
    %16 = arith.addf %10, %15 : vector<64x1024xf32>
    %17 = vector.extract_strided_slice %5 {offsets = [0, 2], sizes = [64, 1], strides = [1, 1]} : vector<64x3xf32> to vector<64x1xf32>
    %18 = vector.extract_strided_slice %4 {offsets = [2, 0], sizes = [1, 1024], strides = [1, 1]} : vector<3x1024xf32> to vector<1x1024xf32>
    %19 = vector.broadcast %17 : vector<64x1xf32> to vector<64x1024xf32>
    %20 = vector.broadcast %18 : vector<1x1024xf32> to vector<64x1024xf32>
    %21 = arith.mulf %19, %20 : vector<64x1024xf32>
    %22 = arith.addf %16, %21 : vector<64x1024xf32>
    %c0_5 = arith.constant 0 : index
    %c0_6 = arith.constant 0 : index
    %23 = vector.load %arg4[%c0_5, %c0_6] : memref<64x1xf32, #tpu.memory_space<vmem>>, vector<64x1xf32>
    %24 = vector.broadcast %23 : vector<64x1xf32> to vector<64x1024xf32>
    %25 = arith.addf %22, %24 : vector<64x1024xf32>
    %cst = arith.constant 0.000000e+00 : f32
    %26 = vector.broadcast %cst : f32 to vector<64x1024xf32>
    %27 = arith.maximumf %25, %26 : vector<64x1024xf32>
    %c0_7 = arith.constant 0 : index
    %c0_8 = arith.constant 0 : index
    %28 = vector.load %arg5[%c0_7, %c0_8] : memref<128x64xbf16, #tpu.memory_space<vmem>>, vector<128x64xbf16>
    %29 = arith.truncf %27 : vector<64x1024xf32> to vector<64x1024xbf16>
    %cst_9 = arith.constant dense<0.000000e+00> : vector<128x1024xf32>
    %30 = tpu.matmul %28, %29, %cst_9 {dimension_numbers = #tpu.dot_dimension_numbers<[1], [0], [0], [1], [0, 0, 1, 1], [], []>} : vector<128x64xbf16>, vector<64x1024xbf16>, vector<128x1024xf32> -> vector<128x1024xf32>
    %c0_10 = arith.constant 0 : index
    %c0_11 = arith.constant 0 : index
    %31 = vector.load %arg6[%c0_10, %c0_11] : memref<128x1xf32, #tpu.memory_space<vmem>>, vector<128x1xf32>
    %32 = vector.broadcast %31 : vector<128x1xf32> to vector<128x1024xf32>
    %33 = arith.addf %30, %32 : vector<128x1024xf32>
    %cst_12 = arith.constant 0.000000e+00 : f32
    %34 = vector.broadcast %cst_12 : f32 to vector<128x1024xf32>
    %35 = arith.maximumf %33, %34 : vector<128x1024xf32>
    %c0_13 = arith.constant 0 : index
    %c0_14 = arith.constant 0 : index
    %36 = vector.load %arg7[%c0_13, %c0_14] : memref<1024x128xbf16, #tpu.memory_space<vmem>>, vector<1024x128xbf16>
    %37 = arith.truncf %35 : vector<128x1024xf32> to vector<128x1024xbf16>
    %cst_15 = arith.constant dense<0.000000e+00> : vector<1024x1024xf32>
    %38 = tpu.matmul %36, %37, %cst_15 {dimension_numbers = #tpu.dot_dimension_numbers<[1], [0], [0], [1], [0, 0, 1, 1], [], []>} : vector<1024x128xbf16>, vector<128x1024xbf16>, vector<1024x1024xf32> -> vector<1024x1024xf32>
    %c0_16 = arith.constant 0 : index
    %c0_17 = arith.constant 0 : index
    %39 = vector.load %arg8[%c0_16, %c0_17] : memref<1024x1xf32, #tpu.memory_space<vmem>>, vector<1024x1xf32>
    %40 = vector.broadcast %39 : vector<1024x1xf32> to vector<1024x1024xf32>
    %41 = arith.addf %38, %40 : vector<1024x1024xf32>
    %cst_18 = arith.constant 0.000000e+00 : f32
    %42 = vector.broadcast %cst_18 : f32 to vector<1024x1024xf32>
    %43 = arith.maximumf %41, %42 : vector<1024x1024xf32>
    %44 = vector.extract_strided_slice %43 {offsets = [0, 0], sizes = [1024, 128], strides = [1, 1]} : vector<1024x1024xf32> to vector<1024x128xf32>
    %45 = vector.extract_strided_slice %43 {offsets = [0, 128], sizes = [1024, 128], strides = [1, 1]} : vector<1024x1024xf32> to vector<1024x128xf32>
    %46 = arith.maximumf %44, %45 : vector<1024x128xf32>
    %47 = vector.extract_strided_slice %43 {offsets = [0, 256], sizes = [1024, 128], strides = [1, 1]} : vector<1024x1024xf32> to vector<1024x128xf32>
    %48 = arith.maximumf %46, %47 : vector<1024x128xf32>
    %49 = vector.extract_strided_slice %43 {offsets = [0, 384], sizes = [1024, 128], strides = [1, 1]} : vector<1024x1024xf32> to vector<1024x128xf32>
    %50 = arith.maximumf %48, %49 : vector<1024x128xf32>
    %51 = vector.extract_strided_slice %43 {offsets = [0, 512], sizes = [1024, 128], strides = [1, 1]} : vector<1024x1024xf32> to vector<1024x128xf32>
    %52 = arith.maximumf %50, %51 : vector<1024x128xf32>
    %53 = vector.extract_strided_slice %43 {offsets = [0, 640], sizes = [1024, 128], strides = [1, 1]} : vector<1024x1024xf32> to vector<1024x128xf32>
    %54 = arith.maximumf %52, %53 : vector<1024x128xf32>
    %55 = vector.extract_strided_slice %43 {offsets = [0, 768], sizes = [1024, 128], strides = [1, 1]} : vector<1024x1024xf32> to vector<1024x128xf32>
    %56 = arith.maximumf %54, %55 : vector<1024x128xf32>
    %57 = vector.extract_strided_slice %43 {offsets = [0, 896], sizes = [1024, 128], strides = [1, 1]} : vector<1024x1024xf32> to vector<1024x128xf32>
    %58 = arith.maximumf %56, %57 : vector<1024x128xf32>
    %c0_19 = arith.constant 0 : index
    %c0_20 = arith.constant 0 : index
    %59 = vector.load %arg16[%c0_19, %c0_20] : memref<1024x128xf32, #tpu.memory_space<vmem>>, vector<1024x128xf32>
    %60 = arith.maximumf %59, %58 : vector<1024x128xf32>
    %c0_21 = arith.constant 0 : index
    %c0_22 = arith.constant 0 : index
    %61 = vector.load %arg16[%c0_21, %c0_22] : memref<1024x128xf32, #tpu.memory_space<vmem>>, vector<1024x128xf32>
    tpu.vector_store %arg16[%c0_21, %c0_22], %60 {strides = array<i32>} : memref<1024x128xf32, #tpu.memory_space<vmem>>, vector<1024x128xf32>,
    %c1_i32 = arith.constant 1 : i32
    %62 = arith.cmpi eq, %arg1, %c1_i32 : i32
    %63 = arith.extui %62 : i1 to i32
    %c0_i32_23 = arith.constant 0 : i32
    %64 = arith.cmpi ne, %63, %c0_i32_23 : i32
    scf.if %64 {
      %c0_24 = arith.constant 0 : index
      %c0_25 = arith.constant 0 : index
      %65 = vector.load %arg16[%c0_24, %c0_25] : memref<1024x128xf32, #tpu.memory_space<vmem>>, vector<1024x128xf32>
      %66 = tpu.transpose %65, [1, 0] : vector<1024x128xf32> -> vector<128x1024xf32>
      %cst_26 = arith.constant dense<0xFF800000> : vector<1024xf32>
      %67 = vector.multi_reduction <maximumf>, %66, %cst_26 [0] : vector<128x1024xf32> to vector<1024xf32>
      %68 = vector.shape_cast %67 : vector<1024xf32> to vector<1x1024xf32>
      %69 = arith.truncf %68 : vector<1x1024xf32> to vector<1x1024xbf16>
      %c0_27 = arith.constant 0 : index
      %c0_28 = arith.constant 0 : index
      %70 = vector.load %arg9[%c0_27, %c0_28] : memref<1024x512xbf16, #tpu.memory_space<vmem>>, vector<1024x512xbf16>
      %cst_29 = arith.constant dense<0.000000e+00> : vector<1x512xf32>
      %71 = tpu.matmul %69, %70, %cst_29 {dimension_numbers = #tpu.dot_dimension_numbers<[1], [0], [0], [1], [0, 0, 1, 1], [], []>} : vector<1x1024xbf16>, vector<1024x512xbf16>, vector<1x512xf32> -> vector<1x512xf32>
      %c0_30 = arith.constant 0 : index
      %c0_31 = arith.constant 0 : index
      %72 = vector.load %arg10[%c0_30, %c0_31] : memref<1x512xf32, #tpu.memory_space<vmem>>, vector<1x512xf32>
      %73 = arith.addf %71, %72 : vector<1x512xf32>
      %cst_32 = arith.constant 0.000000e+00 : f32
      %74 = vector.broadcast %cst_32 : f32 to vector<1x512xf32>
      %75 = arith.maximumf %73, %74 : vector<1x512xf32>
      %76 = arith.truncf %75 : vector<1x512xf32> to vector<1x512xbf16>
      %c0_33 = arith.constant 0 : index
      %c0_34 = arith.constant 0 : index
      %77 = vector.load %arg11[%c0_33, %c0_34] : memref<512x256xbf16, #tpu.memory_space<vmem>>, vector<512x256xbf16>
      %cst_35 = arith.constant dense<0.000000e+00> : vector<1x256xf32>
      %78 = tpu.matmul %76, %77, %cst_35 {dimension_numbers = #tpu.dot_dimension_numbers<[1], [0], [0], [1], [0, 0, 1, 1], [], []>} : vector<1x512xbf16>, vector<512x256xbf16>, vector<1x256xf32> -> vector<1x256xf32>
      %c0_36 = arith.constant 0 : index
      %c0_37 = arith.constant 0 : index
      %79 = vector.load %arg12[%c0_36, %c0_37] : memref<1x256xf32, #tpu.memory_space<vmem>>, vector<1x256xf32>
      %80 = arith.addf %78, %79 : vector<1x256xf32>
      %cst_38 = arith.constant 0.000000e+00 : f32
      %81 = vector.broadcast %cst_38 : f32 to vector<1x256xf32>
      %82 = arith.maximumf %80, %81 : vector<1x256xf32>
      %83 = arith.truncf %82 : vector<1x256xf32> to vector<1x256xbf16>
      %c0_39 = arith.constant 0 : index
      %c0_40 = arith.constant 0 : index
      %84 = vector.load %arg13[%c0_39, %c0_40] : memref<256x128xbf16, #tpu.memory_space<vmem>>, vector<256x128xbf16>
      %cst_41 = arith.constant dense<0.000000e+00> : vector<1x128xf32>
      %85 = tpu.matmul %83, %84, %cst_41 {dimension_numbers = #tpu.dot_dimension_numbers<[1], [0], [0], [1], [0, 0, 1, 1], [], []>} : vector<1x256xbf16>, vector<256x128xbf16>, vector<1x128xf32> -> vector<1x128xf32>
      %c0_42 = arith.constant 0 : index
      %c0_43 = arith.constant 0 : index
      %86 = vector.load %arg14[%c0_42, %c0_43] : memref<1x128xf32, #tpu.memory_space<vmem>>, vector<1x128xf32>
      %87 = arith.addf %85, %86 : vector<1x128xf32>
      %c0_44 = arith.constant 0 : index
      %c0_45 = arith.constant 0 : index
      %c0_46 = arith.constant 0 : index
      %88 = vector.load %arg15[%c0_44, %c0_45, %c0_46] : memref<1x1x128xf32, #tpu.memory_space<vmem>>, vector<1x1x128xf32>
      %89 = vector.shape_cast %88 : vector<1x1x128xf32> to vector<1x128xf32>
      %90 = vector.shape_cast %87 : vector<1x128xf32> to vector<1x1x128xf32>
      tpu.vector_store %arg15[%c0_44, %c0_45, %c0_46], %90 {strides = array<i32>} : memref<1x1x128xf32, #tpu.memory_space<vmem>>, vector<1x1x128xf32>,
    } else {
    }
    return
  }
  func.func @transform_0(%arg0: i32, %arg1: i32) -> (i32, i32, i32) {
    %c0_i32 = arith.constant 0 : i32
    %c0_i32_0 = arith.constant 0 : i32
    return %arg0, %c0_i32, %arg1 : i32, i32, i32
  }
  func.func @transform_1(%arg0: i32, %arg1: i32) -> (i32, i32) {
    %c0_i32 = arith.constant 0 : i32
    %c0_i32_0 = arith.constant 0 : i32
    %c0_i32_1 = arith.constant 0 : i32
    return %c0_i32, %c0_i32_0 : i32, i32
  }
  func.func @transform_2(%arg0: i32, %arg1: i32) -> (i32, i32) {
    %c0_i32 = arith.constant 0 : i32
    %c0_i32_0 = arith.constant 0 : i32
    %c0_i32_1 = arith.constant 0 : i32
    return %c0_i32, %c0_i32_0 : i32, i32
  }
  func.func @transform_3(%arg0: i32, %arg1: i32) -> (i32, i32) {
    %c0_i32 = arith.constant 0 : i32
    %c0_i32_0 = arith.constant 0 : i32
    %c0_i32_1 = arith.constant 0 : i32
    return %c0_i32, %c0_i32_0 : i32, i32
  }
  func.func @transform_4(%arg0: i32, %arg1: i32) -> (i32, i32) {
    %c0_i32 = arith.constant 0 : i32
    %c0_i32_0 = arith.constant 0 : i32
    %c0_i32_1 = arith.constant 0 : i32
    return %c0_i32, %c0_i32_0 : i32, i32
  }
  func.func @transform_5(%arg0: i32, %arg1: i32) -> (i32, i32) {
    %c0_i32 = arith.constant 0 : i32
    %c0_i32_0 = arith.constant 0 : i32
    %c0_i32_1 = arith.constant 0 : i32
    return %c0_i32, %c0_i32_0 : i32, i32
  }
  func.func @transform_6(%arg0: i32, %arg1: i32) -> (i32, i32) {
    %c0_i32 = arith.constant 0 : i32
    %c0_i32_0 = arith.constant 0 : i32
    %c0_i32_1 = arith.constant 0 : i32
    return %c0_i32, %c0_i32_0 : i32, i32
  }
  func.func @transform_7(%arg0: i32, %arg1: i32) -> (i32, i32) {
    %c0_i32 = arith.constant 0 : i32
    %c0_i32_0 = arith.constant 0 : i32
    %c0_i32_1 = arith.constant 0 : i32
    return %c0_i32, %c0_i32_0 : i32, i32
  }
  func.func @transform_8(%arg0: i32, %arg1: i32) -> (i32, i32) {
    %c0_i32 = arith.constant 0 : i32
    %c0_i32_0 = arith.constant 0 : i32
    %c0_i32_1 = arith.constant 0 : i32
    return %c0_i32, %c0_i32_0 : i32, i32
  }
  func.func @transform_9(%arg0: i32, %arg1: i32) -> (i32, i32) {
    %c0_i32 = arith.constant 0 : i32
    %c0_i32_0 = arith.constant 0 : i32
    %c0_i32_1 = arith.constant 0 : i32
    return %c0_i32, %c0_i32_0 : i32, i32
  }
  func.func @transform_10(%arg0: i32, %arg1: i32) -> (i32, i32) {
    %c0_i32 = arith.constant 0 : i32
    %c0_i32_0 = arith.constant 0 : i32
    %c0_i32_1 = arith.constant 0 : i32
    return %c0_i32, %c0_i32_0 : i32, i32
  }
  func.func @transform_11(%arg0: i32, %arg1: i32) -> (i32, i32) {
    %c0_i32 = arith.constant 0 : i32
    %c0_i32_0 = arith.constant 0 : i32
    %c0_i32_1 = arith.constant 0 : i32
    return %c0_i32, %c0_i32_0 : i32, i32
  }
  func.func @transform_12(%arg0: i32, %arg1: i32) -> (i32, i32) {
    %c0_i32 = arith.constant 0 : i32
    %c0_i32_0 = arith.constant 0 : i32
    %c0_i32_1 = arith.constant 0 : i32
    return %c0_i32, %c0_i32_0 : i32, i32
  }
  func.func @transform_13(%arg0: i32, %arg1: i32) -> (i32, i32, i32) {
    %c0_i32 = arith.constant 0 : i32
    %c0_i32_0 = arith.constant 0 : i32
    %c0_i32_1 = arith.constant 0 : i32
    return %arg0, %c0_i32, %c0_i32_0 : i32, i32, i32
  }
}

</mosaic_0001>

<llo_original>
// kernel: stn3d_forward.1
$region0: #{stn3d_forward.1}
  #allocation0 [shape = 'u32[]', space=smem, size = 0x4, offset = 0x4, fixed_abs, tag = 'smem constant byte address 0x4 - core index']
  #allocation1 [shape = 'u32[144,128]{1,0:T(1,128)}', space=vmem, size = 0x12000, scoped, tag = 'internal scratch']
  #allocation2 [shape = 'f32[1024,128]{1,0:T(8,128)}', space=vmem, size = 0x80000, scoped, tag = 'scratch operand']
  %s0 = inlined_call_operand.vmem [shape: f32[2,3,2048], index: 0, kind: input, shape index: {}]
  %s1 = inlined_call_operand.vmem [shape: f32[64,3], index: 1, kind: input, shape index: {}]
  %s2 = inlined_call_operand.vmem [shape: f32[64,1], index: 2, kind: input, shape index: {}]
  %s3 = inlined_call_operand.vmem [shape: bf16[128,64], index: 3, kind: input, shape index: {}]
  %s4 = inlined_call_operand.vmem [shape: f32[128,1], index: 4, kind: input, shape index: {}]
  %s5 = inlined_call_operand.vmem [shape: bf16[1024,128], index: 5, kind: input, shape index: {}]
  %s6 = inlined_call_operand.vmem [shape: f32[1024,1], index: 6, kind: input, shape index: {}]
  %s7 = inlined_call_operand.vmem [shape: bf16[1024,512], index: 7, kind: input, shape index: {}]
  %s8 = inlined_call_operand.vmem [shape: f32[1,512], index: 8, kind: input, shape index: {}]
  %s9 = inlined_call_operand.vmem [shape: bf16[512,256], index: 9, kind: input, shape index: {}]
  %s10 = inlined_call_operand.vmem [shape: f32[1,256], index: 10, kind: input, shape index: {}]
  %s11 = inlined_call_operand.vmem [shape: bf16[256,128], index: 11, kind: input, shape index: {}]
  %s12 = inlined_call_operand.vmem [shape: f32[1,128], index: 12, kind: input, shape index: {}]
  %s13 = inlined_call_operand.vmem [shape: f32[2,1,128], index: 13, kind: output, shape index: {}]
  %s14 = sld [smem:[#allocation0]]
  $region93: #{stn3d_forward.1} parent=0
    _
  %s16 = ssub.s32 1, %s14
  %s17 = scalar_select 0, %s16, %s14
  loop: start=0, step=1, limit=6
  $region2: #{stn3d_forward.1} parent=0 // loop_pre_header
    _
  $region3: #{stn3d_forward.1} parent=0 // loop_header
    %s19 = sphi 0, %s23
    %p20 = scmp.ge.s32.totalorder %s19, 6
    %s26 = sphi 0, %s38
    %s27 = sphi 0, %s34
    %s28 = sphi 0, %s26
    %s29 = sphi 0, %s27
    %s30 = sphi 0, %s28
    %s31 = sphi 0, %s29
    %s43 = sphi 0, %s45
    %s46 = sphi 0, %s43
    %s47 = sphi 0, %s46
    %s63 = sphi 0, %s47
    %s67 = sphi 0, %s67
    %s69 = sphi 0, %s67
    %s70 = sphi 0, %s69
    %s84 = sphi 0, %s70
    %s88 = sphi 0, %s88
    %s90 = sphi 0, %s88
    %s91 = sphi 0, %s90
    %s105 = sphi 0, %s91
    %s109 = sphi 0, %s109
    %s111 = sphi 0, %s109
    %s112 = sphi 0, %s111
    %s126 = sphi 0, %s112
    %s130 = sphi 0, %s130
    %s132 = sphi 0, %s130
    %s133 = sphi 0, %s132
    %s147 = sphi 0, %s133
    %s151 = sphi 0, %s151
    %s153 = sphi 0, %s151
    %s154 = sphi 0, %s153
    %s168 = sphi 0, %s154
    %s172 = sphi 0, %s172
    %s174 = sphi 0, %s172
    %s175 = sphi 0, %s174
    %s189 = sphi 0, %s175
    %s193 = sphi 0, %s193
    %s195 = sphi 0, %s193
    %s196 = sphi 0, %s195
    %s210 = sphi 0, %s196
    %s214 = sphi 0, %s214
    %s216 = sphi 0, %s214
    %s217 = sphi 0, %s216
    %s231 = sphi 0, %s217
    %s235 = sphi 0, %s235
    %s237 = sphi 0, %s235
    %s238 = sphi 0, %s237
    %s252 = sphi 0, %s238
    %s256 = sphi 0, %s256
    %s258 = sphi 0, %s256
    %s259 = sphi 0, %s258
    %s273 = sphi 0, %s259
    %s277 = sphi 0, %s277
    %s279 = sphi 0, %s277
    %s280 = sphi 0, %s279
    %s294 = sphi 0, %s280
    %s298 = sphi 0, %s298
    %s300 = sphi 0, %s298
    %s301 = sphi 0, %s300
    %s315 = sphi 0, %s301
    %s321 = sphi 0, %s323
    %s324 = sphi 0, %s321
    %s325 = sphi 0, %s324
    %s341 = sphi 0, %s325
  $region4: #{stn3d_forward.1} parent=0 // loop_header_branch
    %22 = sbr.rel (%p20) target = $region8
  $region5: #{stn3d_forward.1} parent=0 // loop_body
    %s24 = ssub.s32 %s19, 1
    %s25 = ssub.s32 %s19, 2
    %s32 = sadd.s32 1, %s27
    %p33 = scmp.ge.s32.totalorder %s32, 2
    %s34 = scalar_select %p33, 0, %s32
    %s35 = sadd.s32 1, %s26
    %s36 = scalar_select %p33, %s35, %s26
    %p37 = scmp.ge.s32.totalorder %s36, 2
    %s38 = scalar_select %p37, 0, %s36
    %s39 = ssub.s32 %s26, %s38
    %s40 = ssub.s32 %s27, %s34
    %s41 = sor.u32 %s39, %s40
    %p42 = scmp.eq.s32.totalorder %s41, 0
    %s44 = sadd.s32 %s43, 1
    %s45 = scalar_select %p42, %s43, %s44
    %p48 = pneg %p42
    %p49 = scmp.eq.s32.totalorder %s19, 3
    %p50 = por %p48, %p49
    %p51 = scmp.ne.s32.totalorder %s43, %s46
    %p52 = scmp.eq.s32.totalorder %s19, 0
    %p53 = por %p51, %p52
    %p54 = scmp.ne.s32.totalorder %s43, %s46
    %p55 = scmp.eq.s32.totalorder %s24, 3
    %p56 = por %p54, %p55
    %p57 = scmp.ne.s32.totalorder %s46, %s47
    %p58 = scmp.eq.s32.totalorder %s24, 0
    %p59 = por %p57, %p58
    %p60 = scmp.ne.s32.totalorder %s46, %s47
    %p61 = scmp.eq.s32.totalorder %s25, 3
    %p62 = por %p60, %p61
    %p64 = scmp.ne.s32.totalorder %s47, %s63
    %p65 = scmp.eq.s32.totalorder %s25, 0
    %p66 = por %p64, %p65
    %s68 = sadd.s32 %s67, 1
    %p71 = scmp.eq.s32.totalorder %s19, 3
    %p72 = scmp.ne.s32.totalorder %s67, %s69
    %p73 = scmp.eq.s32.totalorder %s19, 0
    %p74 = por %p72, %p73
    %p75 = scmp.ne.s32.totalorder %s67, %s69
    %p76 = scmp.eq.s32.totalorder %s24, 3
    %p77 = por %p75, %p76
    %p78 = scmp.ne.s32.totalorder %s69, %s70
    %p79 = scmp.eq.s32.totalorder %s24, 0
    %p80 = por %p78, %p79
    %p81 = scmp.ne.s32.totalorder %s69, %s70
    %p82 = scmp.eq.s32.totalorder %s25, 3
    %p83 = por %p81, %p82
    %p85 = scmp.ne.s32.totalorder %s70, %s84
    %p86 = scmp.eq.s32.totalorder %s25, 0
    %p87 = por %p85, %p86
    %s89 = sadd.s32 %s88, 1
    %p92 = scmp.eq.s32.totalorder %s19, 3
    %p93 = scmp.ne.s32.totalorder %s88, %s90
    %p94 = scmp.eq.s32.totalorder %s19, 0
    %p95 = por %p93, %p94
    %p96 = scmp.ne.s32.totalorder %s88, %s90
    %p97 = scmp.eq.s32.totalorder %s24, 3
    %p98 = por %p96, %p97
    %p99 = scmp.ne.s32.totalorder %s90, %s91
    %p100 = scmp.eq.s32.totalorder %s24, 0
    %p101 = por %p99, %p100
    %p102 = scmp.ne.s32.totalorder %s90, %s91
    %p103 = scmp.eq.s32.totalorder %s25, 3
    %p104 = por %p102, %p103
    %p106 = scmp.ne.s32.totalorder %s91, %s105
    %p107 = scmp.eq.s32.totalorder %s25, 0
    %p108 = por %p106, %p107
    %s110 = sadd.s32 %s109, 1
    %p113 = scmp.eq.s32.totalorder %s19, 3
    %p114 = scmp.ne.s32.totalorder %s109, %s111
    %p115 = scmp.eq.s32.totalorder %s19, 0
    %p116 = por %p114, %p115
    %p117 = scmp.ne.s32.totalorder %s109, %s111
    %p118 = scmp.eq.s32.totalorder %s24, 3
    %p119 = por %p117, %p118
    %p120 = scmp.ne.s32.totalorder %s111, %s112
    %p121 = scmp.eq.s32.totalorder %s24, 0
    %p122 = por %p120, %p121
    %p123 = scmp.ne.s32.totalorder %s111, %s112
    %p124 = scmp.eq.s32.totalorder %s25, 3
    %p125 = por %p123, %p124
    %p127 = scmp.ne.s32.totalorder %s112, %s126
    %p128 = scmp.eq.s32.totalorder %s25, 0
    %p129 = por %p127, %p128
    %s131 = sadd.s32 %s130, 1
    %p134 = scmp.eq.s32.totalorder %s19, 3
    %p135 = scmp.ne.s32.totalorder %s130, %s132
    %p136 = scmp.eq.s32.totalorder %s19, 0
    %p137 = por %p135, %p136
    %p138 = scmp.ne.s32.totalorder %s130, %s132
    %p139 = scmp.eq.s32.totalorder %s24, 3
    %p140 = por %p138, %p139
    %p141 = scmp.ne.s32.totalorder %s132, %s133
    %p142 = scmp.eq.s32.totalorder %s24, 0
    %p143 = por %p141, %p142
    %p144 = scmp.ne.s32.totalorder %s132, %s133
    %p145 = scmp.eq.s32.totalorder %s25, 3
    %p146 = por %p144, %p145
    %p148 = scmp.ne.s32.totalorder %s133, %s147
    %p149 = scmp.eq.s32.totalorder %s25, 0
    %p150 = por %p148, %p149
    %s152 = sadd.s32 %s151, 1
    %p155 = scmp.eq.s32.totalorder %s19, 3
    %p156 = scmp.ne.s32.totalorder %s151, %s153
    %p157 = scmp.eq.s32.totalorder %s19, 0
    %p158 = por %p156, %p157
    %p159 = scmp.ne.s32.totalorder %s151, %s153
    %p160 = scmp.eq.s32.totalorder %s24, 3
    %p161 = por %p159, %p160
    %p162 = scmp.ne.s32.totalorder %s153, %s154
    %p163 = scmp.eq.s32.totalorder %s24, 0
    %p164 = por %p162, %p163
    %p165 = scmp.ne.s32.totalorder %s153, %s154
    %p166 = scmp.eq.s32.totalorder %s25, 3
    %p167 = por %p165, %p166
    %p169 = scmp.ne.s32.totalorder %s154, %s168
    %p170 = scmp.eq.s32.totalorder %s25, 0
    %p171 = por %p169, %p170
    %s173 = sadd.s32 %s172, 1
    %p176 = scmp.eq.s32.totalorder %s19, 3
    %p177 = scmp.ne.s32.totalorder %s172, %s174
    %p178 = scmp.eq.s32.totalorder %s19, 0
    %p179 = por %p177, %p178
    %p180 = scmp.ne.s32.totalorder %s172, %s174
    %p181 = scmp.eq.s32.totalorder %s24, 3
    %p182 = por %p180, %p181
    %p183 = scmp.ne.s32.totalorder %s174, %s175
    %p184 = scmp.eq.s32.totalorder %s24, 0
    %p185 = por %p183, %p184
    %p186 = scmp.ne.s32.totalorder %s174, %s175
    %p187 = scmp.eq.s32.totalorder %s25, 3
    %p188 = por %p186, %p187
    %p190 = scmp.ne.s32.totalorder %s175, %s189
    %p191 = scmp.eq.s32.totalorder %s25, 0
    %p192 = por %p190, %p191
    %s194 = sadd.s32 %s193, 1
    %p197 = scmp.eq.s32.totalorder %s19, 3
    %p198 = scmp.ne.s32.totalorder %s193, %s195
    %p199 = scmp.eq.s32.totalorder %s19, 0
    %p200 = por %p198, %p199
    %p201 = scmp.ne.s32.totalorder %s193, %s195
    %p202 = scmp.eq.s32.totalorder %s24, 3
    %p203 = por %p201, %p202
    %p204 = scmp.ne.s32.totalorder %s195, %s196
    %p205 = scmp.eq.s32.totalorder %s24, 0
    %p206 = por %p204, %p205
    %p207 = scmp.ne.s32.totalorder %s195, %s196
    %p208 = scmp.eq.s32.totalorder %s25, 3
    %p209 = por %p207, %p208
    %p211 = scmp.ne.s32.totalorder %s196, %s210
    %p212 = scmp.eq.s32.totalorder %s25, 0
    %p213 = por %p211, %p212
    %s215 = sadd.s32 %s214, 1
    %p218 = scmp.eq.s32.totalorder %s19, 3
    %p219 = scmp.ne.s32.totalorder %s214, %s216
    %p220 = scmp.eq.s32.totalorder %s19, 0
    %p221 = por %p219, %p220
    %p222 = scmp.ne.s32.totalorder %s214, %s216
    %p223 = scmp.eq.s32.totalorder %s24, 3
    %p224 = por %p222, %p223
    %p225 = scmp.ne.s32.totalorder %s216, %s217
    %p226 = scmp.eq.s32.totalorder %s24, 0
    %p227 = por %p225, %p226
    %p228 = scmp.ne.s32.totalorder %s216, %s217
    %p229 = scmp.eq.s32.totalorder %s25, 3
    %p230 = por %p228, %p229
    %p232 = scmp.ne.s32.totalorder %s217, %s231
    %p233 = scmp.eq.s32.totalorder %s25, 0
    %p234 = por %p232, %p233
    %s236 = sadd.s32 %s235, 1
    %p239 = scmp.eq.s32.totalorder %s19, 3
    %p240 = scmp.ne.s32.totalorder %s235, %s237
    %p241 = scmp.eq.s32.totalorder %s19, 0
    %p242 = por %p240, %p241
    %p243 = scmp.ne.s32.totalorder %s235, %s237
    %p244 = scmp.eq.s32.totalorder %s24, 3
    %p245 = por %p243, %p244
    %p246 = scmp.ne.s32.totalorder %s237, %s238
    %p247 = scmp.eq.s32.totalorder %s24, 0
    %p248 = por %p246, %p247
    %p249 = scmp.ne.s32.totalorder %s237, %s238
    %p250 = scmp.eq.s32.totalorder %s25, 3
    %p251 = por %p249, %p250
    %p253 = scmp.ne.s32.totalorder %s238, %s252
    %p254 = scmp.eq.s32.totalorder %s25, 0
    %p255 = por %p253, %p254
    %s257 = sadd.s32 %s256, 1
    %p260 = scmp.eq.s32.totalorder %s19, 3
    %p261 = scmp.ne.s32.totalorder %s256, %s258
    %p262 = scmp.eq.s32.totalorder %s19, 0
    %p263 = por %p261, %p262
    %p264 = scmp.ne.s32.totalorder %s256, %s258
    %p265 = scmp.eq.s32.totalorder %s24, 3
    %p266 = por %p264, %p265
    %p267 = scmp.ne.s32.totalorder %s258, %s259
    %p268 = scmp.eq.s32.totalorder %s24, 0
    %p269 = por %p267, %p268
    %p270 = scmp.ne.s32.totalorder %s258, %s259
    %p271 = scmp.eq.s32.totalorder %s25, 3
    %p272 = por %p270, %p271
    %p274 = scmp.ne.s32.totalorder %s259, %s273
    %p275 = scmp.eq.s32.totalorder %s25, 0
    %p276 = por %p274, %p275
    %s278 = sadd.s32 %s277, 1
    %p281 = scmp.eq.s32.totalorder %s19, 3
    %p282 = scmp.ne.s32.totalorder %s277, %s279
    %p283 = scmp.eq.s32.totalorder %s19, 0
    %p284 = por %p282, %p283
    %p285 = scmp.ne.s32.totalorder %s277, %s279
    %p286 = scmp.eq.s32.totalorder %s24, 3
    %p287 = por %p285, %p286
    %p288 = scmp.ne.s32.totalorder %s279, %s280
    %p289 = scmp.eq.s32.totalorder %s24, 0
    %p290 = por %p288, %p289
    %p291 = scmp.ne.s32.totalorder %s279, %s280
    %p292 = scmp.eq.s32.totalorder %s25, 3
    %p293 = por %p291, %p292
    %p295 = scmp.ne.s32.totalorder %s280, %s294
    %p296 = scmp.eq.s32.totalorder %s25, 0
    %p297 = por %p295, %p296
    %s299 = sadd.s32 %s298, 1
    %p302 = scmp.eq.s32.totalorder %s19, 3
    %p303 = scmp.ne.s32.totalorder %s298, %s300
    %p304 = scmp.eq.s32.totalorder %s19, 0
    %p305 = por %p303, %p304
    %p306 = scmp.ne.s32.totalorder %s298, %s300
    %p307 = scmp.eq.s32.totalorder %s24, 3
    %p308 = por %p306, %p307
    %p309 = scmp.ne.s32.totalorder %s300, %s301
    %p310 = scmp.eq.s32.totalorder %s24, 0
    %p311 = por %p309, %p310
    %p312 = scmp.ne.s32.totalorder %s300, %s301
    %p313 = scmp.eq.s32.totalorder %s25, 3
    %p314 = por %p312, %p313
    %p316 = scmp.ne.s32.totalorder %s301, %s315
    %p317 = scmp.eq.s32.totalorder %s25, 0
    %p318 = por %p316, %p317
    %s319 = ssub.s32 %s26, %s38
    %p320 = scmp.eq.s32.totalorder %s319, 0
    %s322 = sadd.s32 %s321, 1
    %s323 = scalar_select %p320, %s321, %s322
    %p326 = pneg %p320
    %p327 = scmp.eq.s32.totalorder %s19, 3
    %p328 = por %p326, %p327
    %p329 = scmp.ne.s32.totalorder %s321, %s324
    %p330 = scmp.eq.s32.totalorder %s19, 0
    %p331 = por %p329, %p330
    %p332 = scmp.ne.s32.totalorder %s321, %s324
    %p333 = scmp.eq.s32.totalorder %s24, 3
    %p334 = por %p332, %p333
    %p335 = scmp.ne.s32.totalorder %s324, %s325
    %p336 = scmp.eq.s32.totalorder %s24, 0
    %p337 = por %p335, %p336
    %p338 = scmp.ne.s32.totalorder %s324, %s325
    %p339 = scmp.eq.s32.totalorder %s25, 3
    %p340 = por %p338, %p339
    %p342 = scmp.ne.s32.totalorder %s325, %s341
    %p343 = scmp.eq.s32.totalorder %s25, 0
    %p344 = por %p342, %p343
    %p345 = scmp.le.s32.totalorder 1, %s19
    %p346 = scmp.lt.s32.totalorder %s19, 5
    %p347 = pnand %p345, %p346
    %p348 = pneg %p347
    // Predicated region
    $region9: #{stn3d_forward.1} parent=5 // pred_check
      _
    $region10: #{stn3d_forward.1} parent=5 // pred_check_branch
      %350 = sbr.rel (%p347) target = $region12
    $region11: #{stn3d_forward.1} parent=5 // pred_region
      %s351 = ssub.s32 %s19, 1
      // Predicated region
      $region13: #{stn3d_forward.1} parent=11 // pred_check
        %p352 = pneg %p80
      $region14: #{stn3d_forward.1} parent=11 // pred_check_branch
        %354 = sbr.rel (%p352) target = $region16
      $region15: #{stn3d_forward.1} parent=11 // pred_region
        _
      $region16: #{stn3d_forward.1} parent=11 // pred_fallthru
        _
      // Predicated region
      $region17: #{stn3d_forward.1} parent=11 // pred_check
        %p355 = pneg %p101
      $region18: #{stn3d_forward.1} parent=11 // pred_check_branch
        %357 = sbr.rel (%p355) target = $region20
      $region19: #{stn3d_forward.1} parent=11 // pred_region
        _
      $region20: #{stn3d_forward.1} parent=11 // pred_fallthru
        _
      // Predicated region
      $region21: #{stn3d_forward.1} parent=11 // pred_check
        %p358 = pneg %p122
      $region22: #{stn3d_forward.1} parent=11 // pred_check_branch
        %360 = sbr.rel (%p358) target = $region24
      $region23: #{stn3d_forward.1} parent=11 // pred_region
        _
      $region24: #{stn3d_forward.1} parent=11 // pred_fallthru
        _
      // Predicated region
      $region25: #{stn3d_forward.1} parent=11 // pred_check
        %p361 = pneg %p143
      $region26: #{stn3d_forward.1} parent=11 // pred_check_branch
        %363 = sbr.rel (%p361) target = $region28
      $region27: #{stn3d_forward.1} parent=11 // pred_region
        _
      $region28: #{stn3d_forward.1} parent=11 // pred_fallthru
        _
      // Predicated region
      $region29: #{stn3d_forward.1} parent=11 // pred_check
        %p364 = pneg %p164
      $region30: #{stn3d_forward.1} parent=11 // pred_check_branch
        %366 = sbr.rel (%p364) target = $region32
      $region31: #{stn3d_forward.1} parent=11 // pred_region
        _
      $region32: #{stn3d_forward.1} parent=11 // pred_fallthru
        _
      // Predicated region
      $region33: #{stn3d_forward.1} parent=11 // pred_check
        %p367 = pneg %p185
      $region34: #{stn3d_forward.1} parent=11 // pred_check_branch
        %369 = sbr.rel (%p367) target = $region36
      $region35: #{stn3d_forward.1} parent=11 // pred_region
        _
      $region36: #{stn3d_forward.1} parent=11 // pred_fallthru
        _
      // Predicated region
      $region37: #{stn3d_forward.1} parent=11 // pred_check
        %p370 = pneg %p206
      $region38: #{stn3d_forward.1} parent=11 // pred_check_branch
        %372 = sbr.rel (%p370) target = $region40
      $region39: #{stn3d_forward.1} parent=11 // pred_region
        _
      $region40: #{stn3d_forward.1} parent=11 // pred_fallthru
        _
      // Predicated region
      $region41: #{stn3d_forward.1} parent=11 // pred_check
        %p373 = pneg %p227
      $region42: #{stn3d_forward.1} parent=11 // pred_check_branch
        %375 = sbr.rel (%p373) target = $region44
      $region43: #{stn3d_forward.1} parent=11 // pred_region
        _
      $region44: #{stn3d_forward.1} parent=11 // pred_fallthru
        _
      // Predicated region
      $region45: #{stn3d_forward.1} parent=11 // pred_check
        %p376 = pneg %p248
      $region46: #{stn3d_forward.1} parent=11 // pred_check_branch
        %378 = sbr.rel (%p376) target = $region48
      $region47: #{stn3d_forward.1} parent=11 // pred_region
        _
      $region48: #{stn3d_forward.1} parent=11 // pred_fallthru
        _
      // Predicated region
      $region49: #{stn3d_forward.1} parent=11 // pred_check
        %p379 = pneg %p269
      $region50: #{stn3d_forward.1} parent=11 // pred_check_branch
        %381 = sbr.rel (%p379) target = $region52
      $region51: #{stn3d_forward.1} parent=11 // pred_region
        _
      $region52: #{stn3d_forward.1} parent=11 // pred_fallthru
        _
      // Predicated region
      $region53: #{stn3d_forward.1} parent=11 // pred_check
        %p382 = pneg %p290
      $region54: #{stn3d_forward.1} parent=11 // pred_check_branch
        %384 = sbr.rel (%p382) target = $region56
      $region55: #{stn3d_forward.1} parent=11 // pred_region
        _
      $region56: #{stn3d_forward.1} parent=11 // pred_fallthru
        _
      // Predicated region
      $region57: #{stn3d_forward.1} parent=11 // pred_check
        %p385 = pneg %p311
      $region58: #{stn3d_forward.1} parent=11 // pred_check_branch
        %387 = sbr.rel (%p385) target = $region60
      $region59: #{stn3d_forward.1} parent=11 // pred_region
        _
      $region60: #{stn3d_forward.1} parent=11 // pred_fallthru
        _
    $region12: #{stn3d_forward.1} parent=5 // pred_fallthru
      _
    %p388 = scmp.lt.s32.totalorder %s19, 4
    // Predicated region
    $region61: #{stn3d_forward.1} parent=5 // pred_check
      %p389 = pneg %p388
    $region62: #{stn3d_forward.1} parent=5 // pred_check_branch
      %391 = sbr.rel (%p389) target = $region64
    $region63: #{stn3d_forward.1} parent=5 // pred_region
      // Predicated region
      $region65: #{stn3d_forward.1} parent=63 // pred_check
        %p392 = pneg %p53
      $region66: #{stn3d_forward.1} parent=63 // pred_check_branch
        %394 = sbr.rel (%p392) target = $region68
      $region67: #{stn3d_forward.1} parent=63 // pred_region
        %s395 = smul.u32 8, %s27
        %p396 = scmp.lt.s32.totalorder %s26, 1
        %s397 = scalar_select %p396, %s26, 1
        %p398 = scmp.lt.s32.totalorder %s395, 15
        %s399 = scalar_select %p398, %s395, 15
        %s400 = smul.addr %s397, 16
        %s401 = sadd.s32 %s399, %s400
        %s402 = smul.addr %s401, 4
        %s403 = scalar_lea.vmem %s0, %s402
        %s404 = smul.u32 8, %s27
      $region68: #{stn3d_forward.1} parent=63 // pred_fallthru
        _
    $region64: #{stn3d_forward.1} parent=5 // pred_fallthru
      _
    %p405 = scmp.le.s32.totalorder 1, %s19
    %p406 = scmp.lt.s32.totalorder %s19, 5
    %p407 = pnand %p405, %p406
    %p408 = pneg %p407
    // Predicated region
    $region69: #{stn3d_forward.1} parent=5 // pred_check
      _
    $region70: #{stn3d_forward.1} parent=5 // pred_check_branch
      %410 = sbr.rel (%p407) target = $region72
    $region71: #{stn3d_forward.1} parent=5 // pred_region
      %s411 = ssub.s32 %s19, 1
      %s412 = smul.u32 8, %s29
      %p413 = scmp.lt.s32.totalorder %s28, 1
      %s414 = scalar_select %p413, %s28, 1
      %p415 = scmp.lt.s32.totalorder %s412, 15
      %s416 = scalar_select %p415, %s412, 15
      %s417 = smul.addr %s414, 16
      %s418 = sadd.s32 %s416, %s417
      %s419 = smul.addr %s418, 4
      %s420 = scalar_lea.vmem %s0, %s419
      %p421 = pneg %p59
      %p422 = pneg %p56
      %p423 = pneg %p80
      %p424 = pneg %p77
      %p425 = pneg %p101
      %p426 = pneg %p98
      %p427 = pneg %p122
      %p428 = pneg %p119
      %p429 = pneg %p143
      %p430 = pneg %p140
      %p431 = pneg %p164
      %p432 = pneg %p161
      %p433 = pneg %p185
      %p434 = pneg %p182
      %p435 = pneg %p206
      %p436 = pneg %p203
      %p437 = pneg %p227
      %p438 = pneg %p224
      %p439 = pneg %p248
      %p440 = pneg %p245
      %p441 = pneg %p269
      %p442 = pneg %p266
      %p443 = pneg %p290
      %p444 = pneg %p287
      %p445 = pneg %p311
      %p446 = pneg %p308
      %p447 = pneg %p337
      %p448 = pneg %p334
      %p449 = scmp.lt.s32.totalorder %s28, 1
      %s450 = scalar_select %p449, %s28, 1
      %s451 = scalar_lea.vmem %s13, %s450
      %s452 = smul.u32 8, %s29
      %p453 = scmp.lt.s32.totalorder %s28, 1
      %s454 = scalar_select %p453, %s28, 1
      %p455 = scmp.lt.s32.totalorder %s452, 15
      %s456 = scalar_select %p455, %s452, 15
      %s457 = smul.addr %s454, 16
      %s458 = sadd.s32 %s456, %s457
      %s459 = smul.addr %s458, 4
      %s460 = scalar_lea.vmem %s0, %s459
      %s461 = smul.u32 8, %s29
      %p462 = scmp.lt.s32.totalorder %s28, 1
      %s463 = scalar_select %p462, %s28, 1
      %s464 = scalar_lea.vmem %s13, %s463
      %p466 = scmp.eq.s32.totalorder %s29, 0
      // Predicated region
      $region73: #{stn3d_forward.1} parent=71 // pred_check
        %p467 = pneg %p466
      $region74: #{stn3d_forward.1} parent=71 // pred_check_branch
        %469 = sbr.rel (%p467) target = $region76
      $region75: #{stn3d_forward.1} parent=71 // pred_region
        %470 = vst [vmem:[#allocation2] sm:$0xff] -inf
        %471 = vst [vmem:[#allocation2 + $0x8] sm:$0xff] -inf
        %472 = vst [vmem:[#allocation2 + $0x10] sm:$0xff] -inf
        %473 = vst [vmem:[#allocation2 + $0x18] sm:$0xff] -inf
        %474 = vst [vmem:[#allocation2 + $0x20] sm:$0xff] -inf
        %475 = vst [vmem:[#allocation2 + $0x28] sm:$0xff] -inf
        %476 = vst [vmem:[#allocation2 + $0x30] sm:$0xff] -inf
        %477 = vst [vmem:[#allocation2 + $0x38] sm:$0xff] -inf
        %478 = vst [vmem:[#allocation2 + $0x40] sm:$0xff] -inf
        %479 = vst [vmem:[#allocation2 + $0x48] sm:$0xff] -inf
        %480 = vst [vmem:[#allocation2 + $0x50] sm:$0xff] -inf
        %481 = vst [vmem:[#allocation2 + $0x58] sm:$0xff] -inf
        %482 = vst [vmem:[#allocation2 + $0x60] sm:$0xff] -inf
        %483 = vst [vmem:[#allocation2 + $0x68] sm:$0xff] -inf
        %484 = vst [vmem:[#allocation2 + $0x70] sm:$0xff] -inf
        %485 = vst [vmem:[#allocation2 + $0x78] sm:$0xff] -inf
        %486 = vst [vmem:[#allocation2 + $0x80] sm:$0xff] -inf
        %487 = vst [vmem:[#allocation2 + $0x88] sm:$0xff] -inf
        %488 = vst [vmem:[#allocation2 + $0x90] sm:$0xff] -inf
        %489 = vst [vmem:[#allocation2 + $0x98] sm:$0xff] -inf
        %490 = vst [vmem:[#allocation2 + $0xa0] sm:$0xff] -inf
        %491 = vst [vmem:[#allocation2 + $0xa8] sm:$0xff] -inf
        %492 = vst [vmem:[#allocation2 + $0xb0] sm:$0xff] -inf
        %493 = vst [vmem:[#allocation2 + $0xb8] sm:$0xff] -inf
        %494 = vst [vmem:[#allocation2 + $0xc0] sm:$0xff] -inf
        %495 = vst [vmem:[#allocation2 + $0xc8] sm:$0xff] -inf
        %496 = vst [vmem:[#allocation2 + $0xd0] sm:$0xff] -inf
        %497 = vst [vmem:[#allocation2 + $0xd8] sm:$0xff] -inf
        %498 = vst [vmem:[#allocation2 + $0xe0] sm:$0xff] -inf
        %499 = vst [vmem:[#allocation2 + $0xe8] sm:$0xff] -inf
        %500 = vst [vmem:[#allocation2 + $0xf0] sm:$0xff] -inf
        %501 = vst [vmem:[#allocation2 + $0xf8] sm:$0xff] -inf
        %502 = vst [vmem:[#allocation2 + $0x100] sm:$0xff] -inf
        %503 = vst [vmem:[#allocation2 + $0x108] sm:$0xff] -inf
        %504 = vst [vmem:[#allocation2 + $0x110] sm:$0xff] -inf
        %505 = vst [vmem:[#allocation2 + $0x118] sm:$0xff] -inf
        %506 = vst [vmem:[#allocation2 + $0x120] sm:$0xff] -inf
        %507 = vst [vmem:[#allocation2 + $0x128] sm:$0xff] -inf
        %508 = vst [vmem:[#allocation2 + $0x130] sm:$0xff] -inf
        %509 = vst [vmem:[#allocation2 + $0x138] sm:$0xff] -inf
        %510 = vst [vmem:[#allocation2 + $0x140] sm:$0xff] -inf
        %511 = vst [vmem:[#allocation2 + $0x148] sm:$0xff] -inf
        %512 = vst [vmem:[#allocation2 + $0x150] sm:$0xff] -inf
        %513 = vst [vmem:[#allocation2 + $0x158] sm:$0xff] -inf
        %514 = vst [vmem:[#allocation2 + $0x160] sm:$0xff] -inf
        %515 = vst [vmem:[#allocation2 + $0x168] sm:$0xff] -inf
        %516 = vst [vmem:[#allocation2 + $0x170] sm:$0xff] -inf
        %517 = vst [vmem:[#allocation2 + $0x178] sm:$0xff] -inf
        %518 = vst [vmem:[#allocation2 + $0x180] sm:$0xff] -inf
        %519 = vst [vmem:[#allocation2 + $0x188] sm:$0xff] -inf
        %520 = vst [vmem:[#allocation2 + $0x190] sm:$0xff] -inf
        %521 = vst [vmem:[#allocation2 + $0x198] sm:$0xff] -inf
        %522 = vst [vmem:[#allocation2 + $0x1a0] sm:$0xff] -inf
        %523 = vst [vmem:[#allocation2 + $0x1a8] sm:$0xff] -inf
        %524 = vst [vmem:[#allocation2 + $0x1b0] sm:$0xff] -inf
        %525 = vst [vmem:[#allocation2 + $0x1b8] sm:$0xff] -inf
        %526 = vst [vmem:[#allocation2 + $0x1c0] sm:$0xff] -inf
        %527 = vst [vmem:[#allocation2 + $0x1c8] sm:$0xff] -inf
        %528 = vst [vmem:[#allocation2 + $0x1d0] sm:$0xff] -inf
        %529 = vst [vmem:[#allocation2 + $0x1d8] sm:$0xff] -inf
        %530 = vst [vmem:[#allocation2 + $0x1e0] sm:$0xff] -inf
        %531 = vst [vmem:[#allocation2 + $0x1e8] sm:$0xff] -inf
        %532 = vst [vmem:[#allocation2 + $0x1f0] sm:$0xff] -inf
        %533 = vst [vmem:[#allocation2 + $0x1f8] sm:$0xff] -inf
        %534 = vst [vmem:[#allocation2 + $0x200] sm:$0xff] -inf
        %535 = vst [vmem:[#allocation2 + $0x208] sm:$0xff] -inf
        %536 = vst [vmem:[#allocation2 + $0x210] sm:$0xff] -inf
        %537 = vst [vmem:[#allocation2 + $0x218] sm:$0xff] -inf
        %538 = vst [vmem:[#allocation2 + $0x220] sm:$0xff] -inf
        %539 = vst [vmem:[#allocation2 + $0x228] sm:$0xff] -inf
        %540 = vst [vmem:[#allocation2 + $0x230] sm:$0xff] -inf
        %541 = vst [vmem:[#allocation2 + $0x238] sm:$0xff] -inf
        %542 = vst [vmem:[#allocation2 + $0x240] sm:$0xff] -inf
        %543 = vst [vmem:[#allocation2 + $0x248] sm:$0xff] -inf
        %544 = vst [vmem:[#allocation2 + $0x250] sm:$0xff] -inf
        %545 = vst [vmem:[#allocation2 + $0x258] sm:$0xff] -inf
        %546 = vst [vmem:[#allocation2 + $0x260] sm:$0xff] -inf
        %547 = vst [vmem:[#allocation2 + $0x268] sm:$0xff] -inf
        %548 = vst [vmem:[#allocation2 + $0x270] sm:$0xff] -inf
        %549 = vst [vmem:[#allocation2 + $0x278] sm:$0xff] -inf
        %550 = vst [vmem:[#allocation2 + $0x280] sm:$0xff] -inf
        %551 = vst [vmem:[#allocation2 + $0x288] sm:$0xff] -inf
        %552 = vst [vmem:[#allocation2 + $0x290] sm:$0xff] -inf
        %553 = vst [vmem:[#allocation2 + $0x298] sm:$0xff] -inf
        %554 = vst [vmem:[#allocation2 + $0x2a0] sm:$0xff] -inf
        %555 = vst [vmem:[#allocation2 + $0x2a8] sm:$0xff] -inf
        %556 = vst [vmem:[#allocation2 + $0x2b0] sm:$0xff] -inf
        %557 = vst [vmem:[#allocation2 + $0x2b8] sm:$0xff] -inf
        %558 = vst [vmem:[#allocation2 + $0x2c0] sm:$0xff] -inf
        %559 = vst [vmem:[#allocation2 + $0x2c8] sm:$0xff] -inf
        %560 = vst [vmem:[#allocation2 + $0x2d0] sm:$0xff] -inf
        %561 = vst [vmem:[#allocation2 + $0x2d8] sm:$0xff] -inf
        %562 = vst [vmem:[#allocation2 + $0x2e0] sm:$0xff] -inf
        %563 = vst [vmem:[#allocation2 + $0x2e8] sm:$0xff] -inf
        %564 = vst [vmem:[#allocation2 + $0x2f0] sm:$0xff] -inf
        %565 = vst [vmem:[#allocation2 + $0x2f8] sm:$0xff] -inf
        %566 = vst [vmem:[#allocation2 + $0x300] sm:$0xff] -inf
        %567 = vst [vmem:[#allocation2 + $0x308] sm:$0xff] -inf
        %568 = vst [vmem:[#allocation2 + $0x310] sm:$0xff] -inf
        %569 = vst [vmem:[#allocation2 + $0x318] sm:$0xff] -inf
        %570 = vst [vmem:[#allocation2 + $0x320] sm:$0xff] -inf
        %571 = vst [vmem:[#allocation2 + $0x328] sm:$0xff] -inf
        %572 = vst [vmem:[#allocation2 + $0x330] sm:$0xff] -inf
        %573 = vst [vmem:[#allocation2 + $0x338] sm:$0xff] -inf
        %574 = vst [vmem:[#allocation2 + $0x340] sm:$0xff] -inf
        %575 = vst [vmem:[#allocation2 + $0x348] sm:$0xff] -inf
        %576 = vst [vmem:[#allocation2 + $0x350] sm:$0xff] -inf
        %577 = vst [vmem:[#allocation2 + $0x358] sm:$0xff] -inf
        %578 = vst [vmem:[#allocation2 + $0x360] sm:$0xff] -inf
        %579 = vst [vmem:[#allocation2 + $0x368] sm:$0xff] -inf
        %580 = vst [vmem:[#allocation2 + $0x370] sm:$0xff] -inf
        %581 = vst [vmem:[#allocation2 + $0x378] sm:$0xff] -inf
        %582 = vst [vmem:[#allocation2 + $0x380] sm:$0xff] -inf
        %583 = vst [vmem:[#allocation2 + $0x388] sm:$0xff] -inf
        %584 = vst [vmem:[#allocation2 + $0x390] sm:$0xff] -inf
        %585 = vst [vmem:[#allocation2 + $0x398] sm:$0xff] -inf
        %586 = vst [vmem:[#allocation2 + $0x3a0] sm:$0xff] -inf
        %587 = vst [vmem:[#allocation2 + $0x3a8] sm:$0xff] -inf
        %588 = vst [vmem:[#allocation2 + $0x3b0] sm:$0xff] -inf
        %589 = vst [vmem:[#allocation2 + $0x3b8] sm:$0xff] -inf
        %590 = vst [vmem:[#allocation2 + $0x3c0] sm:$0xff] -inf
        %591 = vst [vmem:[#allocation2 + $0x3c8] sm:$0xff] -inf
        %592 = vst [vmem:[#allocation2 + $0x3d0] sm:$0xff] -inf
        %593 = vst [vmem:[#allocation2 + $0x3d8] sm:$0xff] -inf
        %594 = vst [vmem:[#allocation2 + $0x3e0] sm:$0xff] -inf
        %595 = vst [vmem:[#allocation2 + $0x3e8] sm:$0xff] -inf
        %596 = vst [vmem:[#allocation2 + $0x3f0] sm:$0xff] -inf
        %597 = vst [vmem:[#allocation2 + $0x3f8] sm:$0xff] -inf
      $region76: #{stn3d_forward.1} parent=71 // pred_fallthru
        _
      %v598 = vld [vmem:[%s460] sm:$0x77]
      %v599 = vld [vmem:[%s460 + $0x8] sm:$0x77]
      %v600 = vld [vmem:[%s460 + $0x10] sm:$0x77]
      %v601 = vld [vmem:[%s460 + $0x18] sm:$0x77]
      %v602 = vld [vmem:[%s1] sm:$0xff]
      %v603 = vld [vmem:[%s1 + $0x8] sm:$0xff]
      %v604 = vld [vmem:[%s1 + $0x10] sm:$0xff]
      %v605 = vld [vmem:[%s1 + $0x18] sm:$0xff]
      %v606 = vld [vmem:[%s1 + $0x20] sm:$0xff]
      %v607 = vld [vmem:[%s1 + $0x28] sm:$0xff]
      %v608 = vld [vmem:[%s1 + $0x30] sm:$0xff]
      %v609 = vld [vmem:[%s1 + $0x38] sm:$0xff]
      %611 = vset.pattern.permute.xlu0 0
      %612 = vperm.xlu0 %611, %v602
      %v613 = vpop.permute.xlu0 %612
      %616 = vset.pattern.permute.xlu0 0
      %617 = vperm.xlu0 %616, %v603
      %v618 = vpop.permute.xlu0 %617
      %621 = vset.pattern.permute.xlu0 0
      %622 = vperm.xlu0 %621, %v604
      %v623 = vpop.permute.xlu0 %622
      %626 = vset.pattern.permute.xlu0 0
      %627 = vperm.xlu0 %626, %v605
      %v628 = vpop.permute.xlu0 %627
      %631 = vset.pattern.permute.xlu0 0
      %632 = vperm.xlu0 %631, %v606
      %v633 = vpop.permute.xlu0 %632
      %636 = vset.pattern.permute.xlu0 0
      %637 = vperm.xlu0 %636, %v607
      %v638 = vpop.permute.xlu0 %637
      %641 = vset.pattern.permute.xlu0 0
      %642 = vperm.xlu0 %641, %v608
      %v643 = vpop.permute.xlu0 %642
      %646 = vset.pattern.permute.xlu0 0
      %647 = vperm.xlu0 %646, %v609
      %v648 = vpop.permute.xlu0 %647
      %v654 = vlaneseq
      %v655 = vshrl.u32 %v654, 7
      %v656 = vsub.s32 0, %v655
      %v657 = vrot.slane %v598, %v656
      %v658 = vlaneseq
      %v659 = vshrl.u32 %v658, 7
      %v660 = vsub.s32 4, %v659
      %v661 = vrot.slane %v598, %v660
      %v662 = vlaneseq
      %v663 = vshrl.u32 %v662, 7
      %v664 = vsub.s32 0, %v663
      %v665 = vrot.slane %v599, %v664
      %v666 = vlaneseq
      %v667 = vshrl.u32 %v666, 7
      %v668 = vsub.s32 4, %v667
      %v669 = vrot.slane %v599, %v668
      %v670 = vlaneseq
      %v671 = vshrl.u32 %v670, 7
      %v672 = vsub.s32 0, %v671
      %v673 = vrot.slane %v600, %v672
      %v674 = vlaneseq
      %v675 = vshrl.u32 %v674, 7
      %v676 = vsub.s32 4, %v675
      %v677 = vrot.slane %v600, %v676
      %v678 = vlaneseq
      %v679 = vshrl.u32 %v678, 7
      %v680 = vsub.s32 0, %v679
      %v681 = vrot.slane %v601, %v680
      %v682 = vlaneseq
      %v683 = vshrl.u32 %v682, 7
      %v684 = vsub.s32 4, %v683
      %v685 = vrot.slane %v601, %v684
      %v694 = vlaneseq
      %v695 = vshrl.u32 %v694, 7
      %v696 = vsub.s32 0, %v695
      %v697 = vrot.slane %v657, %v696
      %v698 = vlaneseq
      %v699 = vshrl.u32 %v698, 7
      %v700 = vsub.s32 0, %v699
      %v701 = vrot.slane %v661, %v700
      %v702 = vlaneseq
      %v703 = vshrl.u32 %v702, 7
      %v704 = vsub.s32 0, %v703
      %v705 = vrot.slane %v665, %v704
      %v706 = vlaneseq
      %v707 = vshrl.u32 %v706, 7
      %v708 = vsub.s32 0, %v707
      %v709 = vrot.slane %v669, %v708
      %v710 = vlaneseq
      %v711 = vshrl.u32 %v710, 7
      %v712 = vsub.s32 0, %v711
      %v713 = vrot.slane %v673, %v712
      %v714 = vlaneseq
      %v715 = vshrl.u32 %v714, 7
      %v716 = vsub.s32 0, %v715
      %v717 = vrot.slane %v677, %v716
      %v718 = vlaneseq
      %v719 = vshrl.u32 %v718, 7
      %v720 = vsub.s32 0, %v719
      %v721 = vrot.slane %v681, %v720
      %v722 = vlaneseq
      %v723 = vshrl.u32 %v722, 7
      %v724 = vsub.s32 0, %v723
      %v725 = vrot.slane %v685, %v724
      %v726 = vmul.f32 %v613, %v697
      %v727 = vmul.f32 %v613, %v701
      %v728 = vmul.f32 %v613, %v705
      %v729 = vmul.f32 %v613, %v709
      %v730 = vmul.f32 %v613, %v713
      %v731 = vmul.f32 %v613, %v717
      %v732 = vmul.f32 %v613, %v721
      %v733 = vmul.f32 %v613, %v725
      %v734 = vmul.f32 %v618, %v697
      %v735 = vmul.f32 %v618, %v701
      %v736 = vmul.f32 %v618, %v705
      %v737 = vmul.f32 %v618, %v709
      %v738 = vmul.f32 %v618, %v713
      %v739 = vmul.f32 %v618, %v717
      %v740 = vmul.f32 %v618, %v721
      %v741 = vmul.f32 %v618, %v725
      %v742 = vmul.f32 %v623, %v697
      %v743 = vmul.f32 %v623, %v701
      %v744 = vmul.f32 %v623, %v705
      %v745 = vmul.f32 %v623, %v709
      %v746 = vmul.f32 %v623, %v713
      %v747 = vmul.f32 %v623, %v717
      %v748 = vmul.f32 %v623, %v721
      %v749 = vmul.f32 %v623, %v725
      %v750 = vmul.f32 %v628, %v697
      %v751 = vmul.f32 %v628, %v701
      %v752 = vmul.f32 %v628, %v705
      %v753 = vmul.f32 %v628, %v709
      %v754 = vmul.f32 %v628, %v713
      %v755 = vmul.f32 %v628, %v717
      %v756 = vmul.f32 %v628, %v721
      %v757 = vmul.f32 %v628, %v725
      %v758 = vmul.f32 %v633, %v697
      %v759 = vmul.f32 %v633, %v701
      %v760 = vmul.f32 %v633, %v705
      %v761 = vmul.f32 %v633, %v709
      %v762 = vmul.f32 %v633, %v713
      %v763 = vmul.f32 %v633, %v717
      %v764 = vmul.f32 %v633, %v721
      %v765 = vmul.f32 %v633, %v725
      %v766 = vmul.f32 %v638, %v697
      %v767 = vmul.f32 %v638, %v701
      %v768 = vmul.f32 %v638, %v705
      %v769 = vmul.f32 %v638, %v709
      %v770 = vmul.f32 %v638, %v713
      %v771 = vmul.f32 %v638, %v717
      %v772 = vmul.f32 %v638, %v721
      %v773 = vmul.f32 %v638, %v725
      %v774 = vmul.f32 %v643, %v697
      %v775 = vmul.f32 %v643, %v701
      %v776 = vmul.f32 %v643, %v705
      %v777 = vmul.f32 %v643, %v709
      %v778 = vmul.f32 %v643, %v713
      %v779 = vmul.f32 %v643, %v717
      %v780 = vmul.f32 %v643, %v721
      %v781 = vmul.f32 %v643, %v725
      %v782 = vmul.f32 %v648, %v697
      %v783 = vmul.f32 %v648, %v701
      %v784 = vmul.f32 %v648, %v705
      %v785 = vmul.f32 %v648, %v709
      %v786 = vmul.f32 %v648, %v713
      %v787 = vmul.f32 %v648, %v717
      %v788 = vmul.f32 %v648, %v721
      %v789 = vmul.f32 %v648, %v725
      %790 = vset.pattern.permute.xlu0 1
      %791 = vperm.xlu0 %790, %v602
      %v792 = vpop.permute.xlu0 %791
      %794 = vset.pattern.permute.xlu0 1
      %795 = vperm.xlu0 %794, %v603
      %v796 = vpop.permute.xlu0 %795
      %798 = vset.pattern.permute.xlu0 1
      %799 = vperm.xlu0 %798, %v604
      %v800 = vpop.permute.xlu0 %799
      %802 = vset.pattern.permute.xlu0 1
      %803 = vperm.xlu0 %802, %v605
      %v804 = vpop.permute.xlu0 %803
      %806 = vset.pattern.permute.xlu0 1
      %807 = vperm.xlu0 %806, %v606
      %v808 = vpop.permute.xlu0 %807
      %810 = vset.pattern.permute.xlu0 1
      %811 = vperm.xlu0 %810, %v607
      %v812 = vpop.permute.xlu0 %811
      %814 = vset.pattern.permute.xlu0 1
      %815 = vperm.xlu0 %814, %v608
      %v816 = vpop.permute.xlu0 %815
      %818 = vset.pattern.permute.xlu0 1
      %819 = vperm.xlu0 %818, %v609
      %v820 = vpop.permute.xlu0 %819
      %v822 = vlaneseq
      %v823 = vshrl.u32 %v822, 7
      %v824 = vsub.s32 1, %v823
      %v825 = vrot.slane %v598, %v824
      %v826 = vlaneseq
      %v827 = vshrl.u32 %v826, 7
      %v828 = vsub.s32 5, %v827
      %v829 = vrot.slane %v598, %v828
      %v830 = vlaneseq
      %v831 = vshrl.u32 %v830, 7
      %v832 = vsub.s32 1, %v831
      %v833 = vrot.slane %v599, %v832
      %v834 = vlaneseq
      %v835 = vshrl.u32 %v834, 7
      %v836 = vsub.s32 5, %v835
      %v837 = vrot.slane %v599, %v836
      %v838 = vlaneseq
      %v839 = vshrl.u32 %v838, 7
      %v840 = vsub.s32 1, %v839
      %v841 = vrot.slane %v600, %v840
      %v842 = vlaneseq
      %v843 = vshrl.u32 %v842, 7
      %v844 = vsub.s32 5, %v843
      %v845 = vrot.slane %v600, %v844
      %v846 = vlaneseq
      %v847 = vshrl.u32 %v846, 7
      %v848 = vsub.s32 1, %v847
      %v849 = vrot.slane %v601, %v848
      %v850 = vlaneseq
      %v851 = vshrl.u32 %v850, 7
      %v852 = vsub.s32 5, %v851
      %v853 = vrot.slane %v601, %v852
      %v862 = vlaneseq
      %v863 = vshrl.u32 %v862, 7
      %v864 = vsub.s32 1, %v863
      %v865 = vrot.slane %v825, %v864
      %v866 = vlaneseq
      %v867 = vshrl.u32 %v866, 7
      %v868 = vsub.s32 1, %v867
      %v869 = vrot.slane %v829, %v868
      %v870 = vlaneseq
      %v871 = vshrl.u32 %v870, 7
      %v872 = vsub.s32 1, %v871
      %v873 = vrot.slane %v833, %v872
      %v874 = vlaneseq
      %v875 = vshrl.u32 %v874, 7
      %v876 = vsub.s32 1, %v875
      %v877 = vrot.slane %v837, %v876
      %v878 = vlaneseq
      %v879 = vshrl.u32 %v878, 7
      %v880 = vsub.s32 1, %v879
      %v881 = vrot.slane %v841, %v880
      %v882 = vlaneseq
      %v883 = vshrl.u32 %v882, 7
      %v884 = vsub.s32 1, %v883
      %v885 = vrot.slane %v845, %v884
      %v886 = vlaneseq
      %v887 = vshrl.u32 %v886, 7
      %v888 = vsub.s32 1, %v887
      %v889 = vrot.slane %v849, %v888
      %v890 = vlaneseq
      %v891 = vshrl.u32 %v890, 7
      %v892 = vsub.s32 1, %v891
      %v893 = vrot.slane %v853, %v892
      %v894 = vmul.f32 %v792, %v865
      %v895 = vmul.f32 %v792, %v869
      %v896 = vmul.f32 %v792, %v873
      %v897 = vmul.f32 %v792, %v877
      %v898 = vmul.f32 %v792, %v881
      %v899 = vmul.f32 %v792, %v885
      %v900 = vmul.f32 %v792, %v889
      %v901 = vmul.f32 %v792, %v893
      %v902 = vmul.f32 %v796, %v865
      %v903 = vmul.f32 %v796, %v869
      %v904 = vmul.f32 %v796, %v873
      %v905 = vmul.f32 %v796, %v877
      %v906 = vmul.f32 %v796, %v881
      %v907 = vmul.f32 %v796, %v885
      %v908 = vmul.f32 %v796, %v889
      %v909 = vmul.f32 %v796, %v893
      %v910 = vmul.f32 %v800, %v865
      %v911 = vmul.f32 %v800, %v869
      %v912 = vmul.f32 %v800, %v873
      %v913 = vmul.f32 %v800, %v877
      %v914 = vmul.f32 %v800, %v881
      %v915 = vmul.f32 %v800, %v885
      %v916 = vmul.f32 %v800, %v889
      %v917 = vmul.f32 %v800, %v893
      %v918 = vmul.f32 %v804, %v865
      %v919 = vmul.f32 %v804, %v869
      %v920 = vmul.f32 %v804, %v873
      %v921 = vmul.f32 %v804, %v877
      %v922 = vmul.f32 %v804, %v881
      %v923 = vmul.f32 %v804, %v885
      %v924 = vmul.f32 %v804, %v889
      %v925 = vmul.f32 %v804, %v893
      %v926 = vmul.f32 %v808, %v865
      %v927 = vmul.f32 %v808, %v869
      %v928 = vmul.f32 %v808, %v873
      %v929 = vmul.f32 %v808, %v877
      %v930 = vmul.f32 %v808, %v881
      %v931 = vmul.f32 %v808, %v885
      %v932 = vmul.f32 %v808, %v889
      %v933 = vmul.f32 %v808, %v893
      %v934 = vmul.f32 %v812, %v865
      %v935 = vmul.f32 %v812, %v869
      %v936 = vmul.f32 %v812, %v873
      %v937 = vmul.f32 %v812, %v877
      %v938 = vmul.f32 %v812, %v881
      %v939 = vmul.f32 %v812, %v885
      %v940 = vmul.f32 %v812, %v889
      %v941 = vmul.f32 %v812, %v893
      %v942 = vmul.f32 %v816, %v865
      %v943 = vmul.f32 %v816, %v869
      %v944 = vmul.f32 %v816, %v873
      %v945 = vmul.f32 %v816, %v877
      %v946 = vmul.f32 %v816, %v881
      %v947 = vmul.f32 %v816, %v885
      %v948 = vmul.f32 %v816, %v889
      %v949 = vmul.f32 %v816, %v893
      %v950 = vmul.f32 %v820, %v865
      %v951 = vmul.f32 %v820, %v869
      %v952 = vmul.f32 %v820, %v873
      %v953 = vmul.f32 %v820, %v877
      %v954 = vmul.f32 %v820, %v881
      %v955 = vmul.f32 %v820, %v885
      %v956 = vmul.f32 %v820, %v889
      %v957 = vmul.f32 %v820, %v893
      %v958 = vadd.f32 %v726, %v894
      %v959 = vadd.f32 %v727, %v895
      %v960 = vadd.f32 %v728, %v896
      %v961 = vadd.f32 %v729, %v897
      %v962 = vadd.f32 %v730, %v898
      %v963 = vadd.f32 %v731, %v899
      %v964 = vadd.f32 %v732, %v900
      %v965 = vadd.f32 %v733, %v901
      %v966 = vadd.f32 %v734, %v902
      %v967 = vadd.f32 %v735, %v903
      %v968 = vadd.f32 %v736, %v904
      %v969 = vadd.f32 %v737, %v905
      %v970 = vadd.f32 %v738, %v906
      %v971 = vadd.f32 %v739, %v907
      %v972 = vadd.f32 %v740, %v908
      %v973 = vadd.f32 %v741, %v909
      %v974 = vadd.f32 %v742, %v910
      %v975 = vadd.f32 %v743, %v911
      %v976 = vadd.f32 %v744, %v912
      %v977 = vadd.f32 %v745, %v913
      %v978 = vadd.f32 %v746, %v914
      %v979 = vadd.f32 %v747, %v915
      %v980 = vadd.f32 %v748, %v916
      %v981 = vadd.f32 %v749, %v917
      %v982 = vadd.f32 %v750, %v918
      %v983 = vadd.f32 %v751, %v919
      %v984 = vadd.f32 %v752, %v920
      %v985 = vadd.f32 %v753, %v921
      %v986 = vadd.f32 %v754, %v922
      %v987 = vadd.f32 %v755, %v923
      %v988 = vadd.f32 %v756, %v924
      %v989 = vadd.f32 %v757, %v925
      %v990 = vadd.f32 %v758, %v926
      %v991 = vadd.f32 %v759, %v927
      %v992 = vadd.f32 %v760, %v928
      %v993 = vadd.f32 %v761, %v929
      %v994 = vadd.f32 %v762, %v930
      %v995 = vadd.f32 %v763, %v931
      %v996 = vadd.f32 %v764, %v932
      %v997 = vadd.f32 %v765, %v933
      %v998 = vadd.f32 %v766, %v934
      %v999 = vadd.f32 %v767, %v935
      %v1000 = vadd.f32 %v768, %v936
      %v1001 = vadd.f32 %v769, %v937
      %v1002 = vadd.f32 %v770, %v938
      %v1003 = vadd.f32 %v771, %v939
      %v1004 = vadd.f32 %v772, %v940
      %v1005 = vadd.f32 %v773, %v941
      %v1006 = vadd.f32 %v774, %v942
      %v1007 = vadd.f32 %v775, %v943
      %v1008 = vadd.f32 %v776, %v944
      %v1009 = vadd.f32 %v777, %v945
      %v1010 = vadd.f32 %v778, %v946
      %v1011 = vadd.f32 %v779, %v947
      %v1012 = vadd.f32 %v780, %v948
      %v1013 = vadd.f32 %v781, %v949
      %v1014 = vadd.f32 %v782, %v950
      %v1015 = vadd.f32 %v783, %v951
      %v1016 = vadd.f32 %v784, %v952
      %v1017 = vadd.f32 %v785, %v953
      %v1018 = vadd.f32 %v786, %v954
      %v1019 = vadd.f32 %v787, %v955
      %v1020 = vadd.f32 %v788, %v956
      %v1021 = vadd.f32 %v789, %v957
      %1022 = vset.pattern.permute.xlu0 2
      %1023 = vperm.xlu0 %1022, %v602
      %v1024 = vpop.permute.xlu0 %1023
      %1026 = vset.pattern.permute.xlu0 2
      %1027 = vperm.xlu0 %1026, %v603
      %v1028 = vpop.permute.xlu0 %1027
      %1030 = vset.pattern.permute.xlu0 2
      %1031 = vperm.xlu0 %1030, %v604
      %v1032 = vpop.permute.xlu0 %1031
      %1034 = vset.pattern.permute.xlu0 2
      %1035 = vperm.xlu0 %1034, %v605
      %v1036 = vpop.permute.xlu0 %1035
      %1038 = vset.pattern.permute.xlu0 2
      %1039 = vperm.xlu0 %1038, %v606
      %v1040 = vpop.permute.xlu0 %1039
      %1042 = vset.pattern.permute.xlu0 2
      %1043 = vperm.xlu0 %1042, %v607
      %v1044 = vpop.permute.xlu0 %1043
      %1046 = vset.pattern.permute.xlu0 2
      %1047 = vperm.xlu0 %1046, %v608
      %v1048 = vpop.permute.xlu0 %1047
      %1050 = vset.pattern.permute.xlu0 2
      %1051 = vperm.xlu0 %1050, %v609
      %v1052 = vpop.permute.xlu0 %1051
      %v1054 = vlaneseq
      %v1055 = vshrl.u32 %v1054, 7
      %v1056 = vsub.s32 2, %v1055
      %v1057 = vrot.slane %v598, %v1056
      %v1058 = vlaneseq
      %v1059 = vshrl.u32 %v1058, 7
      %v1060 = vsub.s32 6, %v1059
      %v1061 = vrot.slane %v598, %v1060
      %v1062 = vlaneseq
      %v1063 = vshrl.u32 %v1062, 7
      %v1064 = vsub.s32 2, %v1063
      %v1065 = vrot.slane %v599, %v1064
      %v1066 = vlaneseq
      %v1067 = vshrl.u32 %v1066, 7
      %v1068 = vsub.s32 6, %v1067
      %v1069 = vrot.slane %v599, %v1068
      %v1070 = vlaneseq
      %v1071 = vshrl.u32 %v1070, 7
      %v1072 = vsub.s32 2, %v1071
      %v1073 = vrot.slane %v600, %v1072
      %v1074 = vlaneseq
      %v1075 = vshrl.u32 %v1074, 7
      %v1076 = vsub.s32 6, %v1075
      %v1077 = vrot.slane %v600, %v1076
      %v1078 = vlaneseq
      %v1079 = vshrl.u32 %v1078, 7
      %v1080 = vsub.s32 2, %v1079
      %v1081 = vrot.slane %v601, %v1080
      %v1082 = vlaneseq
      %v1083 = vshrl.u32 %v1082, 7
      %v1084 = vsub.s32 6, %v1083
      %v1085 = vrot.slane %v601, %v1084
      %v1094 = vlaneseq
      %v1095 = vshrl.u32 %v1094, 7
      %v1096 = vsub.s32 2, %v1095
      %v1097 = vrot.slane %v1057, %v1096
      %v1098 = vlaneseq
      %v1099 = vshrl.u32 %v1098, 7
      %v1100 = vsub.s32 2, %v1099
      %v1101 = vrot.slane %v1061, %v1100
      %v1102 = vlaneseq
      %v1103 = vshrl.u32 %v1102, 7
      %v1104 = vsub.s32 2, %v1103
      %v1105 = vrot.slane %v1065, %v1104
      %v1106 = vlaneseq
      %v1107 = vshrl.u32 %v1106, 7
      %v1108 = vsub.s32 2, %v1107
      %v1109 = vrot.slane %v1069, %v1108
      %v1110 = vlaneseq
      %v1111 = vshrl.u32 %v1110, 7
      %v1112 = vsub.s32 2, %v1111
      %v1113 = vrot.slane %v1073, %v1112
      %v1114 = vlaneseq
      %v1115 = vshrl.u32 %v1114, 7
      %v1116 = vsub.s32 2, %v1115
      %v1117 = vrot.slane %v1077, %v1116
      %v1118 = vlaneseq
      %v1119 = vshrl.u32 %v1118, 7
      %v1120 = vsub.s32 2, %v1119
      %v1121 = vrot.slane %v1081, %v1120
      %v1122 = vlaneseq
      %v1123 = vshrl.u32 %v1122, 7
      %v1124 = vsub.s32 2, %v1123
      %v1125 = vrot.slane %v1085, %v1124
      %v1126 = vmul.f32 %v1024, %v1097
      %v1127 = vmul.f32 %v1024, %v1101
      %v1128 = vmul.f32 %v1024, %v1105
      %v1129 = vmul.f32 %v1024, %v1109
      %v1130 = vmul.f32 %v1024, %v1113
      %v1131 = vmul.f32 %v1024, %v1117
      %v1132 = vmul.f32 %v1024, %v1121
      %v1133 = vmul.f32 %v1024, %v1125
      %v1134 = vmul.f32 %v1028, %v1097
      %v1135 = vmul.f32 %v1028, %v1101
      %v1136 = vmul.f32 %v1028, %v1105
      %v1137 = vmul.f32 %v1028, %v1109
      %v1138 = vmul.f32 %v1028, %v1113
      %v1139 = vmul.f32 %v1028, %v1117
      %v1140 = vmul.f32 %v1028, %v1121
      %v1141 = vmul.f32 %v1028, %v1125
      %v1142 = vmul.f32 %v1032, %v1097
      %v1143 = vmul.f32 %v1032, %v1101
      %v1144 = vmul.f32 %v1032, %v1105
      %v1145 = vmul.f32 %v1032, %v1109
      %v1146 = vmul.f32 %v1032, %v1113
      %v1147 = vmul.f32 %v1032, %v1117
      %v1148 = vmul.f32 %v1032, %v1121
      %v1149 = vmul.f32 %v1032, %v1125
      %v1150 = vmul.f32 %v1036, %v1097
      %v1151 = vmul.f32 %v1036, %v1101
      %v1152 = vmul.f32 %v1036, %v1105
      %v1153 = vmul.f32 %v1036, %v1109
      %v1154 = vmul.f32 %v1036, %v1113
      %v1155 = vmul.f32 %v1036, %v1117
      %v1156 = vmul.f32 %v1036, %v1121
      %v1157 = vmul.f32 %v1036, %v1125
      %v1158 = vmul.f32 %v1040, %v1097
      %v1159 = vmul.f32 %v1040, %v1101
      %v1160 = vmul.f32 %v1040, %v1105
      %v1161 = vmul.f32 %v1040, %v1109
      %v1162 = vmul.f32 %v1040, %v1113
      %v1163 = vmul.f32 %v1040, %v1117
      %v1164 = vmul.f32 %v1040, %v1121
      %v1165 = vmul.f32 %v1040, %v1125
      %v1166 = vmul.f32 %v1044, %v1097
      %v1167 = vmul.f32 %v1044, %v1101
      %v1168 = vmul.f32 %v1044, %v1105
      %v1169 = vmul.f32 %v1044, %v1109
      %v1170 = vmul.f32 %v1044, %v1113
      %v1171 = vmul.f32 %v1044, %v1117
      %v1172 = vmul.f32 %v1044, %v1121
      %v1173 = vmul.f32 %v1044, %v1125
      %v1174 = vmul.f32 %v1048, %v1097
      %v1175 = vmul.f32 %v1048, %v1101
      %v1176 = vmul.f32 %v1048, %v1105
      %v1177 = vmul.f32 %v1048, %v1109
      %v1178 = vmul.f32 %v1048, %v1113
      %v1179 = vmul.f32 %v1048, %v1117
      %v1180 = vmul.f32 %v1048, %v1121
      %v1181 = vmul.f32 %v1048, %v1125
      %v1182 = vmul.f32 %v1052, %v1097
      %v1183 = vmul.f32 %v1052, %v1101
      %v1184 = vmul.f32 %v1052, %v1105
      %v1185 = vmul.f32 %v1052, %v1109
      %v1186 = vmul.f32 %v1052, %v1113
      %v1187 = vmul.f32 %v1052, %v1117
      %v1188 = vmul.f32 %v1052, %v1121
      %v1189 = vmul.f32 %v1052, %v1125
      %v1190 = vadd.f32 %v958, %v1126
      %v1191 = vadd.f32 %v959, %v1127
      %v1192 = vadd.f32 %v960, %v1128
      %v1193 = vadd.f32 %v961, %v1129
      %v1194 = vadd.f32 %v962, %v1130
      %v1195 = vadd.f32 %v963, %v1131
      %v1196 = vadd.f32 %v964, %v1132
      %v1197 = vadd.f32 %v965, %v1133
      %v1198 = vadd.f32 %v966, %v1134
      %v1199 = vadd.f32 %v967, %v1135
      %v1200 = vadd.f32 %v968, %v1136
      %v1201 = vadd.f32 %v969, %v1137
      %v1202 = vadd.f32 %v970, %v1138
      %v1203 = vadd.f32 %v971, %v1139
      %v1204 = vadd.f32 %v972, %v1140
      %v1205 = vadd.f32 %v973, %v1141
      %v1206 = vadd.f32 %v974, %v1142
      %v1207 = vadd.f32 %v975, %v1143
      %v1208 = vadd.f32 %v976, %v1144
      %v1209 = vadd.f32 %v977, %v1145
      %v1210 = vadd.f32 %v978, %v1146
      %v1211 = vadd.f32 %v979, %v1147
      %v1212 = vadd.f32 %v980, %v1148
      %v1213 = vadd.f32 %v981, %v1149
      %v1214 = vadd.f32 %v982, %v1150
      %v1215 = vadd.f32 %v983, %v1151
      %v1216 = vadd.f32 %v984, %v1152
      %v1217 = vadd.f32 %v985, %v1153
      %v1218 = vadd.f32 %v986, %v1154
      %v1219 = vadd.f32 %v987, %v1155
      %v1220 = vadd.f32 %v988, %v1156
      %v1221 = vadd.f32 %v989, %v1157
      %v1222 = vadd.f32 %v990, %v1158
      %v1223 = vadd.f32 %v991, %v1159
      %v1224 = vadd.f32 %v992, %v1160
      %v1225 = vadd.f32 %v993, %v1161
      %v1226 = vadd.f32 %v994, %v1162
      %v1227 = vadd.f32 %v995, %v1163
      %v1228 = vadd.f32 %v996, %v1164
      %v1229 = vadd.f32 %v997, %v1165
      %v1230 = vadd.f32 %v998, %v1166
      %v1231 = vadd.f32 %v999, %v1167
      %v1232 = vadd.f32 %v1000, %v1168
      %v1233 = vadd.f32 %v1001, %v1169
      %v1234 = vadd.f32 %v1002, %v1170
      %v1235 = vadd.f32 %v1003, %v1171
      %v1236 = vadd.f32 %v1004, %v1172
      %v1237 = vadd.f32 %v1005, %v1173
      %v1238 = vadd.f32 %v1006, %v1174
      %v1239 = vadd.f32 %v1007, %v1175
      %v1240 = vadd.f32 %v1008, %v1176
      %v1241 = vadd.f32 %v1009, %v1177
      %v1242 = vadd.f32 %v1010, %v1178
      %v1243 = vadd.f32 %v1011, %v1179
      %v1244 = vadd.f32 %v1012, %v1180
      %v1245 = vadd.f32 %v1013, %v1181
      %v1246 = vadd.f32 %v1014, %v1182
      %v1247 = vadd.f32 %v1015, %v1183
      %v1248 = vadd.f32 %v1016, %v1184
      %v1249 = vadd.f32 %v1017, %v1185
      %v1250 = vadd.f32 %v1018, %v1186
      %v1251 = vadd.f32 %v1019, %v1187
      %v1252 = vadd.f32 %v1020, %v1188
      %v1253 = vadd.f32 %v1021, %v1189
      %v1254 = vld [vmem:[%s2] sm:$0xff]
      %v1255 = vld [vmem:[%s2 + $0x8] sm:$0xff]
      %v1256 = vld [vmem:[%s2 + $0x10] sm:$0xff]
      %v1257 = vld [vmem:[%s2 + $0x18] sm:$0xff]
      %v1258 = vld [vmem:[%s2 + $0x20] sm:$0xff]
      %v1259 = vld [vmem:[%s2 + $0x28] sm:$0xff]
      %v1260 = vld [vmem:[%s2 + $0x30] sm:$0xff]
      %v1261 = vld [vmem:[%s2 + $0x38] sm:$0xff]
      %1263 = vset.pattern.permute.xlu0 0
      %1264 = vperm.xlu0 %1263, %v1254
      %v1265 = vpop.permute.xlu0 %1264
      %1268 = vset.pattern.permute.xlu0 0
      %1269 = vperm.xlu0 %1268, %v1255
      %v1270 = vpop.permute.xlu0 %1269
      %1273 = vset.pattern.permute.xlu0 0
      %1274 = vperm.xlu0 %1273, %v1256
      %v1275 = vpop.permute.xlu0 %1274
      %1278 = vset.pattern.permute.xlu0 0
      %1279 = vperm.xlu0 %1278, %v1257
      %v1280 = vpop.permute.xlu0 %1279
      %1283 = vset.pattern.permute.xlu0 0
      %1284 = vperm.xlu0 %1283, %v1258
      %v1285 = vpop.permute.xlu0 %1284
      %1288 = vset.pattern.permute.xlu0 0
      %1289 = vperm.xlu0 %1288, %v1259
      %v1290 = vpop.permute.xlu0 %1289
      %1293 = vset.pattern.permute.xlu0 0
      %1294 = vperm.xlu0 %1293, %v1260
      %v1295 = vpop.permute.xlu0 %1294
      %1298 = vset.pattern.permute.xlu0 0
      %1299 = vperm.xlu0 %1298, %v1261
      %v1300 = vpop.permute.xlu0 %1299
      %v1302 = vadd.f32 %v1190, %v1265
      %v1303 = vadd.f32 %v1191, %v1265
      %v1304 = vadd.f32 %v1192, %v1265
      %v1305 = vadd.f32 %v1193, %v1265
      %v1306 = vadd.f32 %v1194, %v1265
      %v1307 = vadd.f32 %v1195, %v1265
      %v1308 = vadd.f32 %v1196, %v1265
      %v1309 = vadd.f32 %v1197, %v1265
      %v1310 = vadd.f32 %v1198, %v1270
      %v1311 = vadd.f32 %v1199, %v1270
      %v1312 = vadd.f32 %v1200, %v1270
      %v1313 = vadd.f32 %v1201, %v1270
      %v1314 = vadd.f32 %v1202, %v1270
      %v1315 = vadd.f32 %v1203, %v1270
      %v1316 = vadd.f32 %v1204, %v1270
      %v1317 = vadd.f32 %v1205, %v1270
      %v1318 = vadd.f32 %v1206, %v1275
      %v1319 = vadd.f32 %v1207, %v1275
      %v1320 = vadd.f32 %v1208, %v1275
      %v1321 = vadd.f32 %v1209, %v1275
      %v1322 = vadd.f32 %v1210, %v1275
      %v1323 = vadd.f32 %v1211, %v1275
      %v1324 = vadd.f32 %v1212, %v1275
      %v1325 = vadd.f32 %v1213, %v1275
      %v1326 = vadd.f32 %v1214, %v1280
      %v1327 = vadd.f32 %v1215, %v1280
      %v1328 = vadd.f32 %v1216, %v1280
      %v1329 = vadd.f32 %v1217, %v1280
      %v1330 = vadd.f32 %v1218, %v1280
      %v1331 = vadd.f32 %v1219, %v1280
      %v1332 = vadd.f32 %v1220, %v1280
      %v1333 = vadd.f32 %v1221, %v1280
      %v1334 = vadd.f32 %v1222, %v1285
      %v1335 = vadd.f32 %v1223, %v1285
      %v1336 = vadd.f32 %v1224, %v1285
      %v1337 = vadd.f32 %v1225, %v1285
      %v1338 = vadd.f32 %v1226, %v1285
      %v1339 = vadd.f32 %v1227, %v1285
      %v1340 = vadd.f32 %v1228, %v1285
      %v1341 = vadd.f32 %v1229, %v1285
      %v1342 = vadd.f32 %v1230, %v1290
      %v1343 = vadd.f32 %v1231, %v1290
      %v1344 = vadd.f32 %v1232, %v1290
      %v1345 = vadd.f32 %v1233, %v1290
      %v1346 = vadd.f32 %v1234, %v1290
      %v1347 = vadd.f32 %v1235, %v1290
      %v1348 = vadd.f32 %v1236, %v1290
      %v1349 = vadd.f32 %v1237, %v1290
      %v1350 = vadd.f32 %v1238, %v1295
      %v1351 = vadd.f32 %v1239, %v1295
      %v1352 = vadd.f32 %v1240, %v1295
      %v1353 = vadd.f32 %v1241, %v1295
      %v1354 = vadd.f32 %v1242, %v1295
      %v1355 = vadd.f32 %v1243, %v1295
      %v1356 = vadd.f32 %v1244, %v1295
      %v1357 = vadd.f32 %v1245, %v1295
      %v1358 = vadd.f32 %v1246, %v1300
      %v1359 = vadd.f32 %v1247, %v1300
      %v1360 = vadd.f32 %v1248, %v1300
      %v1361 = vadd.f32 %v1249, %v1300
      %v1362 = vadd.f32 %v1250, %v1300
      %v1363 = vadd.f32 %v1251, %v1300
      %v1364 = vadd.f32 %v1252, %v1300
      %v1365 = vadd.f32 %v1253, %v1300
      %v1366 = vmax.f32 %v1302, 0.0
      %v1367 = vmax.f32 %v1303, 0.0
      %v1368 = vmax.f32 %v1304, 0.0
      %v1369 = vmax.f32 %v1305, 0.0
      %v1370 = vmax.f32 %v1306, 0.0
      %v1371 = vmax.f32 %v1307, 0.0
      %v1372 = vmax.f32 %v1308, 0.0
      %v1373 = vmax.f32 %v1309, 0.0
      %v1374 = vmax.f32 %v1310, 0.0
      %v1375 = vmax.f32 %v1311, 0.0
      %v1376 = vmax.f32 %v1312, 0.0
      %v1377 = vmax.f32 %v1313, 0.0
      %v1378 = vmax.f32 %v1314, 0.0
      %v1379 = vmax.f32 %v1315, 0.0
      %v1380 = vmax.f32 %v1316, 0.0
      %v1381 = vmax.f32 %v1317, 0.0
      %v1382 = vmax.f32 %v1318, 0.0
      %v1383 = vmax.f32 %v1319, 0.0
      %v1384 = vmax.f32 %v1320, 0.0
      %v1385 = vmax.f32 %v1321, 0.0
      %v1386 = vmax.f32 %v1322, 0.0
      %v1387 = vmax.f32 %v1323, 0.0
      %v1388 = vmax.f32 %v1324, 0.0
      %v1389 = vmax.f32 %v1325, 0.0
      %v1390 = vmax.f32 %v1326, 0.0
      %v1391 = vmax.f32 %v1327, 0.0
      %v1392 = vmax.f32 %v1328, 0.0
      %v1393 = vmax.f32 %v1329, 0.0
      %v1394 = vmax.f32 %v1330, 0.0
      %v1395 = vmax.f32 %v1331, 0.0
      %v1396 = vmax.f32 %v1332, 0.0
      %v1397 = vmax.f32 %v1333, 0.0
      %v1398 = vmax.f32 %v1334, 0.0
      %v1399 = vmax.f32 %v1335, 0.0
      %v1400 = vmax.f32 %v1336, 0.0
      %v1401 = vmax.f32 %v1337, 0.0
      %v1402 = vmax.f32 %v1338, 0.0
      %v1403 = vmax.f32 %v1339, 0.0
      %v1404 = vmax.f32 %v1340, 0.0
      %v1405 = vmax.f32 %v1341, 0.0
      %v1406 = vmax.f32 %v1342, 0.0
      %v1407 = vmax.f32 %v1343, 0.0
      %v1408 = vmax.f32 %v1344, 0.0
      %v1409 = vmax.f32 %v1345, 0.0
      %v1410 = vmax.f32 %v1346, 0.0
      %v1411 = vmax.f32 %v1347, 0.0
      %v1412 = vmax.f32 %v1348, 0.0
      %v1413 = vmax.f32 %v1349, 0.0
      %v1414 = vmax.f32 %v1350, 0.0
      %v1415 = vmax.f32 %v1351, 0.0
      %v1416 = vmax.f32 %v1352, 0.0
      %v1417 = vmax.f32 %v1353, 0.0
      %v1418 = vmax.f32 %v1354, 0.0
      %v1419 = vmax.f32 %v1355, 0.0
      %v1420 = vmax.f32 %v1356, 0.0
      %v1421 = vmax.f32 %v1357, 0.0
      %v1422 = vmax.f32 %v1358, 0.0
      %v1423 = vmax.f32 %v1359, 0.0
      %v1424 = vmax.f32 %v1360, 0.0
      %v1425 = vmax.f32 %v1361, 0.0
      %v1426 = vmax.f32 %v1362, 0.0
      %v1427 = vmax.f32 %v1363, 0.0
      %v1428 = vmax.f32 %v1364, 0.0
      %v1429 = vmax.f32 %v1365, 0.0
      %v1430 = vld [vmem:[%s3] sm:$0xf]
      %v1431 = vld [vmem:[%s3 + $0x4] sm:$0xf]
      %v1432 = vld [vmem:[%s3 + $0x8] sm:$0xf]
      %v1433 = vld [vmem:[%s3 + $0xc] sm:$0xf]
      %v1434 = vld [vmem:[%s3 + $0x10] sm:$0xf]
      %v1435 = vld [vmem:[%s3 + $0x14] sm:$0xf]
      %v1436 = vld [vmem:[%s3 + $0x18] sm:$0xf]
      %v1437 = vld [vmem:[%s3 + $0x1c] sm:$0xf]
      %v1438 = vld [vmem:[%s3 + $0x20] sm:$0xf]
      %v1439 = vld [vmem:[%s3 + $0x24] sm:$0xf]
      %v1440 = vld [vmem:[%s3 + $0x28] sm:$0xf]
      %v1441 = vld [vmem:[%s3 + $0x2c] sm:$0xf]
      %v1442 = vld [vmem:[%s3 + $0x30] sm:$0xf]
      %v1443 = vld [vmem:[%s3 + $0x34] sm:$0xf]
      %v1444 = vld [vmem:[%s3 + $0x38] sm:$0xf]
      %v1445 = vld [vmem:[%s3 + $0x3c] sm:$0xf]
      %v1446 = vpack.c.bf16 %v1374, %v1366
      %v1447 = vpack.c.bf16 %v1375, %v1367
      %v1448 = vpack.c.bf16 %v1376, %v1368
      %v1449 = vpack.c.bf16 %v1377, %v1369
      %v1450 = vpack.c.bf16 %v1378, %v1370
      %v1451 = vpack.c.bf16 %v1379, %v1371
      %v1452 = vpack.c.bf16 %v1380, %v1372
      %v1453 = vpack.c.bf16 %v1381, %v1373
      %v1454 = vpack.c.bf16 %v1390, %v1382
      %v1455 = vpack.c.bf16 %v1391, %v1383
      %v1456 = vpack.c.bf16 %v1392, %v1384
      %v1457 = vpack.c.bf16 %v1393, %v1385
      %v1458 = vpack.c.bf16 %v1394, %v1386
      %v1459 = vpack.c.bf16 %v1395, %v1387
      %v1460 = vpack.c.bf16 %v1396, %v1388
      %v1461 = vpack.c.bf16 %v1397, %v1389
      %v1462 = vpack.c.bf16 %v1406, %v1398
      %v1463 = vpack.c.bf16 %v1407, %v1399
      %v1464 = vpack.c.bf16 %v1408, %v1400
      %v1465 = vpack.c.bf16 %v1409, %v1401
      %v1466 = vpack.c.bf16 %v1410, %v1402
      %v1467 = vpack.c.bf16 %v1411, %v1403
      %v1468 = vpack.c.bf16 %v1412, %v1404
      %v1469 = vpack.c.bf16 %v1413, %v1405
      %v1470 = vpack.c.bf16 %v1422, %v1414
      %v1471 = vpack.c.bf16 %v1423, %v1415
      %v1472 = vpack.c.bf16 %v1424, %v1416
      %v1473 = vpack.c.bf16 %v1425, %v1417
      %v1474 = vpack.c.bf16 %v1426, %v1418
      %v1475 = vpack.c.bf16 %v1427, %v1419
      %v1476 = vpack.c.bf16 %v1428, %v1420
      %v1477 = vpack.c.bf16 %v1429, %v1421
      %v1478 = vld [vmem:[%s4] sm:$0xff]
      %v1479 = vld [vmem:[%s4 + $0x8] sm:$0xff]
      %v1480 = vld [vmem:[%s4 + $0x10] sm:$0xff]
      %v1481 = vld [vmem:[%s4 + $0x18] sm:$0xff]
      %v1482 = vld [vmem:[%s4 + $0x20] sm:$0xff]
      %v1483 = vld [vmem:[%s4 + $0x28] sm:$0xff]
      %v1484 = vld [vmem:[%s4 + $0x30] sm:$0xff]
      %v1485 = vld [vmem:[%s4 + $0x38] sm:$0xff]
      %v1486 = vld [vmem:[%s4 + $0x40] sm:$0xff]
      %v1487 = vld [vmem:[%s4 + $0x48] sm:$0xff]
      %v1488 = vld [vmem:[%s4 + $0x50] sm:$0xff]
      %v1489 = vld [vmem:[%s4 + $0x58] sm:$0xff]
      %v1490 = vld [vmem:[%s4 + $0x60] sm:$0xff]
      %v1491 = vld [vmem:[%s4 + $0x68] sm:$0xff]
      %v1492 = vld [vmem:[%s4 + $0x70] sm:$0xff]
      %v1493 = vld [vmem:[%s4 + $0x78] sm:$0xff]
      %1495 = vset.pattern.permute.xlu0 0
      %1496 = vperm.xlu0 %1495, %v1478
      %v1497 = vpop.permute.xlu0 %1496
      %1500 = vset.pattern.permute.xlu0 0
      %1501 = vperm.xlu0 %1500, %v1479
      %v1502 = vpop.permute.xlu0 %1501
      %1505 = vset.pattern.permute.xlu0 0
      %1506 = vperm.xlu0 %1505, %v1480
      %v1507 = vpop.permute.xlu0 %1506
      %1510 = vset.pattern.permute.xlu0 0
      %1511 = vperm.xlu0 %1510, %v1481
      %v1512 = vpop.permute.xlu0 %1511
      %1515 = vset.pattern.permute.xlu0 0
      %1516 = vperm.xlu0 %1515, %v1482
      %v1517 = vpop.permute.xlu0 %1516
      %1520 = vset.pattern.permute.xlu0 0
      %1521 = vperm.xlu0 %1520, %v1483
      %v1522 = vpop.permute.xlu0 %1521
      %1525 = vset.pattern.permute.xlu0 0
      %1526 = vperm.xlu0 %1525, %v1484
      %v1527 = vpop.permute.xlu0 %1526
      %1530 = vset.pattern.permute.xlu0 0
      %1531 = vperm.xlu0 %1530, %v1485
      %v1532 = vpop.permute.xlu0 %1531
      %1535 = vset.pattern.permute.xlu0 0
      %1536 = vperm.xlu0 %1535, %v1486
      %v1537 = vpop.permute.xlu0 %1536
      %1540 = vset.pattern.permute.xlu0 0
      %1541 = vperm.xlu0 %1540, %v1487
      %v1542 = vpop.permute.xlu0 %1541
      %1545 = vset.pattern.permute.xlu0 0
      %1546 = vperm.xlu0 %1545, %v1488
      %v1547 = vpop.permute.xlu0 %1546
      %1550 = vset.pattern.permute.xlu0 0
      %1551 = vperm.xlu0 %1550, %v1489
      %v1552 = vpop.permute.xlu0 %1551
      %1555 = vset.pattern.permute.xlu0 0
      %1556 = vperm.xlu0 %1555, %v1490
      %v1557 = vpop.permute.xlu0 %1556
      %1560 = vset.pattern.permute.xlu0 0
      %1561 = vperm.xlu0 %1560, %v1491
      %v1562 = vpop.permute.xlu0 %1561
      %1565 = vset.pattern.permute.xlu0 0
      %1566 = vperm.xlu0 %1565, %v1492
      %v1567 = vpop.permute.xlu0 %1566
      %1570 = vset.pattern.permute.xlu0 0
      %1571 = vperm.xlu0 %1570, %v1493
      %v1572 = vpop.permute.xlu0 %1571
      %v1590 = vunpack.c.l.b16 %v1430
      %v1591 = vunpack.c.l.b16 %v1431
      %v1592 = vunpack.c.l.b16 %v1432
      %v1593 = vunpack.c.l.b16 %v1433
      %v1594 = vunpack.c.l.b16 %v1434
      %v1595 = vunpack.c.l.b16 %v1435
      %v1596 = vunpack.c.l.b16 %v1436
      %v1597 = vunpack.c.l.b16 %v1437
      %v1598 = vunpack.c.l.b16 %v1438
      %v1599 = vunpack.c.l.b16 %v1439
      %v1600 = vunpack.c.l.b16 %v1440
      %v1601 = vunpack.c.l.b16 %v1441
      %v1602 = vunpack.c.l.b16 %v1442
      %v1603 = vunpack.c.l.b16 %v1443
      %v1604 = vunpack.c.l.b16 %v1444
      %v1605 = vunpack.c.l.b16 %v1445
      %v1606 = vpack.c.b16 %v1591, %v1590
      %v1607 = vpack.c.b16 %v1593, %v1592
      %v1608 = vpack.c.b16 %v1595, %v1594
      %v1609 = vpack.c.b16 %v1597, %v1596
      %v1610 = vpack.c.b16 %v1599, %v1598
      %v1611 = vpack.c.b16 %v1601, %v1600
      %v1612 = vpack.c.b16 %v1603, %v1602
      %v1613 = vpack.c.b16 %v1605, %v1604
      %vm1614 = vcmask 523264
      %v1616 = vsel %vm1614, %v1606, 0
      %v1619 = vsel %vm1614, %v1607, 0
      %v1622 = vsel %vm1614, %v1608, 0
      %v1625 = vsel %vm1614, %v1609, 0
      %v1628 = vsel %vm1614, %v1610, 0
      %v1631 = vsel %vm1614, %v1611, 0
      %v1634 = vsel %vm1614, %v1612, 0
      %v1637 = vsel %vm1614, %v1613, 0
      %1639 = vmatprep.subr.bf16.mxu0 0
      %1640 = vmatpush1.bf16.msra.mxu0 0
      %1641 = vmatprep.subr.bf16.mxu0 0
      %1642 = vmatpush1.bf16.msra.mxu0 0
      %1643 = vmatprep.subr.bf16.mxu0 0
      %1644 = vmatpush1.bf16.msra.mxu0 0
      %1645 = vmatprep.subr.bf16.mxu0 0
      %1646 = vmatpush1.bf16.msra.mxu0 0
      %1647 = vmatprep.subr.bf16.mxu0 %v1471
      %1648 = vmatpush1.bf16.msra.mxu0 %v1470
      %1649 = vmatprep.subr.bf16.mxu0 %v1463
      %1650 = vmatpush1.bf16.msra.mxu0 %v1462
      %1651 = vmatprep.subr.bf16.mxu0 %v1455
      %1652 = vmatpush1.bf16.msra.mxu0 %v1454
      %1653 = vmatprep.subr.bf16.mxu0 %v1447
      %1654 = vmatpush1.bf16.msra.mxu0 %v1446
      %1655 = vmatprep.subr.bf16.mxu0 0
      %1656 = vmatpush2.bf16.msra.mxu0 0
      %1657 = vmatprep.subr.bf16.mxu0 0
      %1658 = vmatpush2.bf16.msra.mxu0 0
      %1659 = vmatprep.subr.bf16.mxu0 0
      %1660 = vmatpush2.bf16.msra.mxu0 0
      %1661 = vmatprep.subr.bf16.mxu0 0
      %1662 = vmatpush2.bf16.msra.mxu0 0
      %1663 = vmatprep.subr.bf16.mxu0 0
      %1664 = vmatpush2.bf16.msra.mxu0 0
      %1665 = vmatprep.subr.bf16.mxu0 0
      %1666 = vmatpush2.bf16.msra.mxu0 0
      %1667 = vmatprep.subr.bf16.mxu0 0
      %1668 = vmatpush2.bf16.msra.mxu0 0
      %1669 = vmatprep.subr.bf16.mxu0 0
      %1670 = vmatpush2.bf16.msra.mxu0 0
      %1671 = vmatprep.mubr.bf16.mxu0 0
      %1672 = vmatmul.mubr.bf16.gmra.mxu0 %v1616
      %v1673 = vpop.f32.mrf.mxu0
      %v1674 = vadd.f32 %v1497, %v1673
      %v1675 = vpop.f32.mrf.mxu0
      %v1676 = vadd.f32 %v1497, %v1675
      %v1677 = vpop.f32.mrf.mxu0
      %v1678 = vadd.f32 %v1502, %v1677
      %v1679 = vpop.f32.mrf.mxu0
      %v1680 = vadd.f32 %v1502, %v1679
      %1681 = vmatprep.mubr.bf16.mxu0 0
      %1682 = vmatmul.mubr.bf16.gmra.mxu0 %v1619
      %v1683 = vpop.f32.mrf.mxu0
      %v1684 = vadd.f32 %v1507, %v1683
      %v1685 = vpop.f32.mrf.mxu0
      %v1686 = vadd.f32 %v1507, %v1685
      %v1687 = vpop.f32.mrf.mxu0
      %v1688 = vadd.f32 %v1512, %v1687
      %v1689 = vpop.f32.mrf.mxu0
      %v1690 = vadd.f32 %v1512, %v1689
      %1691 = vmatprep.mubr.bf16.mxu0 0
      %1692 = vmatmul.mubr.bf16.gmra.mxu0 %v1622
      %v1693 = vpop.f32.mrf.mxu0
      %v1694 = vadd.f32 %v1517, %v1693
      %v1695 = vpop.f32.mrf.mxu0
      %v1696 = vadd.f32 %v1517, %v1695
      %v1697 = vpop.f32.mrf.mxu0
      %v1698 = vadd.f32 %v1522, %v1697
      %v1699 = vpop.f32.mrf.mxu0
      %v1700 = vadd.f32 %v1522, %v1699
      %1701 = vmatprep.mubr.bf16.mxu0 0
      %1702 = vmatmul.mubr.bf16.gmra.mxu0 %v1625
      %v1703 = vpop.f32.mrf.mxu0
      %v1704 = vadd.f32 %v1527, %v1703
      %v1705 = vpop.f32.mrf.mxu0
      %v1706 = vadd.f32 %v1527, %v1705
      %v1707 = vpop.f32.mrf.mxu0
      %v1708 = vadd.f32 %v1532, %v1707
      %v1709 = vpop.f32.mrf.mxu0
      %v1710 = vadd.f32 %v1532, %v1709
      %1711 = vmatprep.mubr.bf16.mxu0 0
      %1712 = vmatmul.mubr.bf16.gmra.mxu0 %v1628
      %v1713 = vpop.f32.mrf.mxu0
      %v1714 = vadd.f32 %v1537, %v1713
      %v1715 = vpop.f32.mrf.mxu0
      %v1716 = vadd.f32 %v1537, %v1715
      %v1717 = vpop.f32.mrf.mxu0
      %v1718 = vadd.f32 %v1542, %v1717
      %v1719 = vpop.f32.mrf.mxu0
      %v1720 = vadd.f32 %v1542, %v1719
      %1721 = vmatprep.mubr.bf16.mxu0 0
      %1722 = vmatmul.mubr.bf16.gmra.mxu0 %v1631
      %v1723 = vpop.f32.mrf.mxu0
      %v1724 = vadd.f32 %v1547, %v1723
      %v1725 = vpop.f32.mrf.mxu0
      %v1726 = vadd.f32 %v1547, %v1725
      %v1727 = vpop.f32.mrf.mxu0
      %v1728 = vadd.f32 %v1552, %v1727
      %v1729 = vpop.f32.mrf.mxu0
      %v1730 = vadd.f32 %v1552, %v1729
      %1731 = vmatprep.mubr.bf16.mxu0 0
      %1732 = vmatmul.mubr.bf16.gmra.mxu0 %v1634
      %v1733 = vpop.f32.mrf.mxu0
      %v1734 = vadd.f32 %v1557, %v1733
      %v1735 = vpop.f32.mrf.mxu0
      %v1736 = vadd.f32 %v1557, %v1735
      %v1737 = vpop.f32.mrf.mxu0
      %v1738 = vadd.f32 %v1562, %v1737
      %v1739 = vpop.f32.mrf.mxu0
      %v1740 = vadd.f32 %v1562, %v1739
      %1741 = vmatprep.mubr.bf16.mxu0 0
      %1742 = vmatmul.mubr.bf16.gmra.mxu0 %v1637
      %v1743 = vpop.f32.mrf.mxu0
      %v1744 = vadd.f32 %v1567, %v1743
      %v1745 = vpop.f32.mrf.mxu0
      %v1746 = vadd.f32 %v1567, %v1745
      %v1747 = vpop.f32.mrf.mxu0
      %v1748 = vadd.f32 %v1572, %v1747
      %v1749 = vpop.f32.mrf.mxu0
      %v1750 = vadd.f32 %v1572, %v1749
      %1751 = vdwg.mxu0
      %1752 = vmatprep.subr.bf16.mxu0 0
      %1753 = vmatpush1.bf16.msra.mxu0 0
      %1754 = vmatprep.subr.bf16.mxu0 0
      %1755 = vmatpush1.bf16.msra.mxu0 0
      %1756 = vmatprep.subr.bf16.mxu0 0
      %1757 = vmatpush1.bf16.msra.mxu0 0
      %1758 = vmatprep.subr.bf16.mxu0 0
      %1759 = vmatpush1.bf16.msra.mxu0 0
      %1760 = vmatprep.subr.bf16.mxu0 %v1473
      %1761 = vmatpush1.bf16.msra.mxu0 %v1472
      %1762 = vmatprep.subr.bf16.mxu0 %v1465
      %1763 = vmatpush1.bf16.msra.mxu0 %v1464
      %1764 = vmatprep.subr.bf16.mxu0 %v1457
      %1765 = vmatpush1.bf16.msra.mxu0 %v1456
      %1766 = vmatprep.subr.bf16.mxu0 %v1449
      %1767 = vmatpush1.bf16.msra.mxu0 %v1448
      %1768 = vmatprep.subr.bf16.mxu0 0
      %1769 = vmatpush2.bf16.msra.mxu0 0
      %1770 = vmatprep.subr.bf16.mxu0 0
      %1771 = vmatpush2.bf16.msra.mxu0 0
      %1772 = vmatprep.subr.bf16.mxu0 0
      %1773 = vmatpush2.bf16.msra.mxu0 0
      %1774 = vmatprep.subr.bf16.mxu0 0
      %1775 = vmatpush2.bf16.msra.mxu0 0
      %1776 = vmatprep.subr.bf16.mxu0 0
      %1777 = vmatpush2.bf16.msra.mxu0 0
      %1778 = vmatprep.subr.bf16.mxu0 0
      %1779 = vmatpush2.bf16.msra.mxu0 0
      %1780 = vmatprep.subr.bf16.mxu0 0
      %1781 = vmatpush2.bf16.msra.mxu0 0
      %1782 = vmatprep.subr.bf16.mxu0 0
      %1783 = vmatpush2.bf16.msra.mxu0 0
      %1784 = vmatprep.mubr.bf16.mxu0 0
      %1785 = vmatmul.mubr.bf16.gmra.mxu0 %v1616
      %v1786 = vpop.f32.mrf.mxu0
      %v1787 = vadd.f32 %v1497, %v1786
      %v1788 = vpop.f32.mrf.mxu0
      %v1789 = vadd.f32 %v1497, %v1788
      %v1790 = vpop.f32.mrf.mxu0
      %v1791 = vadd.f32 %v1502, %v1790
      %v1792 = vpop.f32.mrf.mxu0
      %v1793 = vadd.f32 %v1502, %v1792
      %1794 = vmatprep.mubr.bf16.mxu0 0
      %1795 = vmatmul.mubr.bf16.gmra.mxu0 %v1619
      %v1796 = vpop.f32.mrf.mxu0
      %v1797 = vadd.f32 %v1507, %v1796
      %v1798 = vpop.f32.mrf.mxu0
      %v1799 = vadd.f32 %v1507, %v1798
      %v1800 = vpop.f32.mrf.mxu0
      %v1801 = vadd.f32 %v1512, %v1800
      %v1802 = vpop.f32.mrf.mxu0
      %v1803 = vadd.f32 %v1512, %v1802
      %1804 = vmatprep.mubr.bf16.mxu0 0
      %1805 = vmatmul.mubr.bf16.gmra.mxu0 %v1622
      %v1806 = vpop.f32.mrf.mxu0
      %v1807 = vadd.f32 %v1517, %v1806
      %v1808 = vpop.f32.mrf.mxu0
      %v1809 = vadd.f32 %v1517, %v1808
      %v1810 = vpop.f32.mrf.mxu0
      %v1811 = vadd.f32 %v1522, %v1810
      %v1812 = vpop.f32.mrf.mxu0
      %v1813 = vadd.f32 %v1522, %v1812
      %1814 = vmatprep.mubr.bf16.mxu0 0
      %1815 = vmatmul.mubr.bf16.gmra.mxu0 %v1625
      %v1816 = vpop.f32.mrf.mxu0
      %v1817 = vadd.f32 %v1527, %v1816
      %v1818 = vpop.f32.mrf.mxu0
      %v1819 = vadd.f32 %v1527, %v1818
      %v1820 = vpop.f32.mrf.mxu0
      %v1821 = vadd.f32 %v1532, %v1820
      %v1822 = vpop.f32.mrf.mxu0
      %v1823 = vadd.f32 %v1532, %v1822
      %1824 = vmatprep.mubr.bf16.mxu0 0
      %1825 = vmatmul.mubr.bf16.gmra.mxu0 %v1628
      %v1826 = vpop.f32.mrf.mxu0
      %v1827 = vadd.f32 %v1537, %v1826
      %v1828 = vpop.f32.mrf.mxu0
      %v1829 = vadd.f32 %v1537, %v1828
      %v1830 = vpop.f32.mrf.mxu0
      %v1831 = vadd.f32 %v1542, %v1830
      %v1832 = vpop.f32.mrf.mxu0
      %v1833 = vadd.f32 %v1542, %v1832
      %1834 = vmatprep.mubr.bf16.mxu0 0
      %1835 = vmatmul.mubr.bf16.gmra.mxu0 %v1631
      %v1836 = vpop.f32.mrf.mxu0
      %v1837 = vadd.f32 %v1547, %v1836
      %v1838 = vpop.f32.mrf.mxu0
      %v1839 = vadd.f32 %v1547, %v1838
      %v1840 = vpop.f32.mrf.mxu0
      %v1841 = vadd.f32 %v1552, %v1840
      %v1842 = vpop.f32.mrf.mxu0
      %v1843 = vadd.f32 %v1552, %v1842
      %1844 = vmatprep.mubr.bf16.mxu0 0
      %1845 = vmatmul.mubr.bf16.gmra.mxu0 %v1634
      %v1846 = vpop.f32.mrf.mxu0
      %v1847 = vadd.f32 %v1557, %v1846
      %v1848 = vpop.f32.mrf.mxu0
      %v1849 = vadd.f32 %v1557, %v1848
      %v1850 = vpop.f32.mrf.mxu0
      %v1851 = vadd.f32 %v1562, %v1850
      %v1852 = vpop.f32.mrf.mxu0
      %v1853 = vadd.f32 %v1562, %v1852
      %1854 = vmatprep.mubr.bf16.mxu0 0
      %1855 = vmatmul.mubr.bf16.gmra.mxu0 %v1637
      %v1856 = vpop.f32.mrf.mxu0
      %v1857 = vadd.f32 %v1567, %v1856
      %v1858 = vpop.f32.mrf.mxu0
      %v1859 = vadd.f32 %v1567, %v1858
      %v1860 = vpop.f32.mrf.mxu0
      %v1861 = vadd.f32 %v1572, %v1860
      %v1862 = vpop.f32.mrf.mxu0
      %v1863 = vadd.f32 %v1572, %v1862
      %1864 = vdwg.mxu0
      %1865 = vmatprep.subr.bf16.mxu0 0
      %1866 = vmatpush1.bf16.msra.mxu0 0
      %1867 = vmatprep.subr.bf16.mxu0 0
      %1868 = vmatpush1.bf16.msra.mxu0 0
      %1869 = vmatprep.subr.bf16.mxu0 0
      %1870 = vmatpush1.bf16.msra.mxu0 0
      %1871 = vmatprep.subr.bf16.mxu0 0
      %1872 = vmatpush1.bf16.msra.mxu0 0
      %1873 = vmatprep.subr.bf16.mxu0 %v1475
      %1874 = vmatpush1.bf16.msra.mxu0 %v1474
      %1875 = vmatprep.subr.bf16.mxu0 %v1467
      %1876 = vmatpush1.bf16.msra.mxu0 %v1466
      %1877 = vmatprep.subr.bf16.mxu0 %v1459
      %1878 = vmatpush1.bf16.msra.mxu0 %v1458
      %1879 = vmatprep.subr.bf16.mxu0 %v1451
      %1880 = vmatpush1.bf16.msra.mxu0 %v1450
      %1881 = vmatprep.subr.bf16.mxu0 0
      %1882 = vmatpush2.bf16.msra.mxu0 0
      %1883 = vmatprep.subr.bf16.mxu0 0
      %1884 = vmatpush2.bf16.msra.mxu0 0
      %1885 = vmatprep.subr.bf16.mxu0 0
      %1886 = vmatpush2.bf16.msra.mxu0 0
      %1887 = vmatprep.subr.bf16.mxu0 0
      %1888 = vmatpush2.bf16.msra.mxu0 0
      %1889 = vmatprep.subr.bf16.mxu0 0
      %1890 = vmatpush2.bf16.msra.mxu0 0
      %1891 = vmatprep.subr.bf16.mxu0 0
      %1892 = vmatpush2.bf16.msra.mxu0 0
      %1893 = vmatprep.subr.bf16.mxu0 0
      %1894 = vmatpush2.bf16.msra.mxu0 0
      %1895 = vmatprep.subr.bf16.mxu0 0
      %1896 = vmatpush2.bf16.msra.mxu0 0
      %1897 = vmatprep.mubr.bf16.mxu0 0
      %1898 = vmatmul.mubr.bf16.gmra.mxu0 %v1616
      %v1899 = vpop.f32.mrf.mxu0
      %v1900 = vadd.f32 %v1497, %v1899
      %v1901 = vpop.f32.mrf.mxu0
      %v1902 = vadd.f32 %v1497, %v1901
      %v1903 = vpop.f32.mrf.mxu0
      %v1904 = vadd.f32 %v1502, %v1903
      %v1905 = vpop.f32.mrf.mxu0
      %v1906 = vadd.f32 %v1502, %v1905
      %1907 = vmatprep.mubr.bf16.mxu0 0
      %1908 = vmatmul.mubr.bf16.gmra.mxu0 %v1619
      %v1909 = vpop.f32.mrf.mxu0
      %v1910 = vadd.f32 %v1507, %v1909
      %v1911 = vpop.f32.mrf.mxu0
      %v1912 = vadd.f32 %v1507, %v1911
      %v1913 = vpop.f32.mrf.mxu0
      %v1914 = vadd.f32 %v1512, %v1913
      %v1915 = vpop.f32.mrf.mxu0
      %v1916 = vadd.f32 %v1512, %v1915
      %1917 = vmatprep.mubr.bf16.mxu0 0
      %1918 = vmatmul.mubr.bf16.gmra.mxu0 %v1622
      %v1919 = vpop.f32.mrf.mxu0
      %v1920 = vadd.f32 %v1517, %v1919
      %v1921 = vpop.f32.mrf.mxu0
      %v1922 = vadd.f32 %v1517, %v1921
      %v1923 = vpop.f32.mrf.mxu0
      %v1924 = vadd.f32 %v1522, %v1923
      %v1925 = vpop.f32.mrf.mxu0
      %v1926 = vadd.f32 %v1522, %v1925
      %1927 = vmatprep.mubr.bf16.mxu0 0
      %1928 = vmatmul.mubr.bf16.gmra.mxu0 %v1625
      %v1929 = vpop.f32.mrf.mxu0
      %v1930 = vadd.f32 %v1527, %v1929
      %v1931 = vpop.f32.mrf.mxu0
      %v1932 = vadd.f32 %v1527, %v1931
      %v1933 = vpop.f32.mrf.mxu0
      %v1934 = vadd.f32 %v1532, %v1933
      %v1935 = vpop.f32.mrf.mxu0
      %v1936 = vadd.f32 %v1532, %v1935
      %1937 = vmatprep.mubr.bf16.mxu0 0
      %1938 = vmatmul.mubr.bf16.gmra.mxu0 %v1628
      %v1939 = vpop.f32.mrf.mxu0
      %v1940 = vadd.f32 %v1537, %v1939
      %v1941 = vpop.f32.mrf.mxu0
      %v1942 = vadd.f32 %v1537, %v1941
      %v1943 = vpop.f32.mrf.mxu0
      %v1944 = vadd.f32 %v1542, %v1943
      %v1945 = vpop.f32.mrf.mxu0
      %v1946 = vadd.f32 %v1542, %v1945
      %1947 = vmatprep.mubr.bf16.mxu0 0
      %1948 = vmatmul.mubr.bf16.gmra.mxu0 %v1631
      %v1949 = vpop.f32.mrf.mxu0
      %v1950 = vadd.f32 %v1547, %v1949
      %v1951 = vpop.f32.mrf.mxu0
      %v1952 = vadd.f32 %v1547, %v1951
      %v1953 = vpop.f32.mrf.mxu0
      %v1954 = vadd.f32 %v1552, %v1953
      %v1955 = vpop.f32.mrf.mxu0
      %v1956 = vadd.f32 %v1552, %v1955
      %1957 = vmatprep.mubr.bf16.mxu0 0
      %1958 = vmatmul.mubr.bf16.gmra.mxu0 %v1634
      %v1959 = vpop.f32.mrf.mxu0
      %v1960 = vadd.f32 %v1557, %v1959
      %v1961 = vpop.f32.mrf.mxu0
      %v1962 = vadd.f32 %v1557, %v1961
      %v1963 = vpop.f32.mrf.mxu0
      %v1964 = vadd.f32 %v1562, %v1963
      %v1965 = vpop.f32.mrf.mxu0
      %v1966 = vadd.f32 %v1562, %v1965
      %1967 = vmatprep.mubr.bf16.mxu0 0
      %1968 = vmatmul.mubr.bf16.gmra.mxu0 %v1637
      %v1969 = vpop.f32.mrf.mxu0
      %v1970 = vadd.f32 %v1567, %v1969
      %v1971 = vpop.f32.mrf.mxu0
      %v1972 = vadd.f32 %v1567, %v1971
      %v1973 = vpop.f32.mrf.mxu0
      %v1974 = vadd.f32 %v1572, %v1973
      %v1975 = vpop.f32.mrf.mxu0
      %v1976 = vadd.f32 %v1572, %v1975
      %1977 = vdwg.mxu0
      %1978 = vmatprep.subr.bf16.mxu0 0
      %1979 = vmatpush1.bf16.msra.mxu0 0
      %1980 = vmatprep.subr.bf16.mxu0 0
      %1981 = vmatpush1.bf16.msra.mxu0 0
      %1982 = vmatprep.subr.bf16.mxu0 0
      %1983 = vmatpush1.bf16.msra.mxu0 0
      %1984 = vmatprep.subr.bf16.mxu0 0
      %1985 = vmatpush1.bf16.msra.mxu0 0
      %1986 = vmatprep.subr.bf16.mxu0 %v1477
      %1987 = vmatpush1.bf16.msra.mxu0 %v1476
      %1988 = vmatprep.subr.bf16.mxu0 %v1469
      %1989 = vmatpush1.bf16.msra.mxu0 %v1468
      %1990 = vmatprep.subr.bf16.mxu0 %v1461
      %1991 = vmatpush1.bf16.msra.mxu0 %v1460
      %1992 = vmatprep.subr.bf16.mxu0 %v1453
      %1993 = vmatpush1.bf16.msra.mxu0 %v1452
      %1994 = vmatprep.subr.bf16.mxu0 0
      %1995 = vmatpush2.bf16.msra.mxu0 0
      %1996 = vmatprep.subr.bf16.mxu0 0
      %1997 = vmatpush2.bf16.msra.mxu0 0
      %1998 = vmatprep.subr.bf16.mxu0 0
      %1999 = vmatpush2.bf16.msra.mxu0 0
      %2000 = vmatprep.subr.bf16.mxu0 0
      %2001 = vmatpush2.bf16.msra.mxu0 0
      %2002 = vmatprep.subr.bf16.mxu0 0
      %2003 = vmatpush2.bf16.msra.mxu0 0
      %2004 = vmatprep.subr.bf16.mxu0 0
      %2005 = vmatpush2.bf16.msra.mxu0 0
      %2006 = vmatprep.subr.bf16.mxu0 0
      %2007 = vmatpush2.bf16.msra.mxu0 0
      %2008 = vmatprep.subr.bf16.mxu0 0
      %2009 = vmatpush2.bf16.msra.mxu0 0
      %2010 = vmatprep.mubr.bf16.mxu0 0
      %2011 = vmatmul.mubr.bf16.gmra.mxu0 %v1616
      %v2012 = vpop.f32.mrf.mxu0
      %v2013 = vadd.f32 %v1497, %v2012
      %v2014 = vpop.f32.mrf.mxu0
      %v2015 = vadd.f32 %v1497, %v2014
      %v2016 = vpop.f32.mrf.mxu0
      %v2017 = vadd.f32 %v1502, %v2016
      %v2018 = vpop.f32.mrf.mxu0
      %v2019 = vadd.f32 %v1502, %v2018
      %2020 = vmatprep.mubr.bf16.mxu0 0
      %2021 = vmatmul.mubr.bf16.gmra.mxu0 %v1619
      %v2022 = vpop.f32.mrf.mxu0
      %v2023 = vadd.f32 %v1507, %v2022
      %v2024 = vpop.f32.mrf.mxu0
      %v2025 = vadd.f32 %v1507, %v2024
      %v2026 = vpop.f32.mrf.mxu0
      %v2027 = vadd.f32 %v1512, %v2026
      %v2028 = vpop.f32.mrf.mxu0
      %v2029 = vadd.f32 %v1512, %v2028
      %2030 = vmatprep.mubr.bf16.mxu0 0
      %2031 = vmatmul.mubr.bf16.gmra.mxu0 %v1622
      %v2032 = vpop.f32.mrf.mxu0
      %v2033 = vadd.f32 %v1517, %v2032
      %v2034 = vpop.f32.mrf.mxu0
      %v2035 = vadd.f32 %v1517, %v2034
      %v2036 = vpop.f32.mrf.mxu0
      %v2037 = vadd.f32 %v1522, %v2036
      %v2038 = vpop.f32.mrf.mxu0
      %v2039 = vadd.f32 %v1522, %v2038
      %2040 = vmatprep.mubr.bf16.mxu0 0
      %2041 = vmatmul.mubr.bf16.gmra.mxu0 %v1625
      %v2042 = vpop.f32.mrf.mxu0
      %v2043 = vadd.f32 %v1527, %v2042
      %v2044 = vpop.f32.mrf.mxu0
      %v2045 = vadd.f32 %v1527, %v2044
      %v2046 = vpop.f32.mrf.mxu0
      %v2047 = vadd.f32 %v1532, %v2046
      %v2048 = vpop.f32.mrf.mxu0
      %v2049 = vadd.f32 %v1532, %v2048
      %2050 = vmatprep.mubr.bf16.mxu0 0
      %2051 = vmatmul.mubr.bf16.gmra.mxu0 %v1628
      %v2052 = vpop.f32.mrf.mxu0
      %v2053 = vadd.f32 %v1537, %v2052
      %v2054 = vpop.f32.mrf.mxu0
      %v2055 = vadd.f32 %v1537, %v2054
      %v2056 = vpop.f32.mrf.mxu0
      %v2057 = vadd.f32 %v1542, %v2056
      %v2058 = vpop.f32.mrf.mxu0
      %v2059 = vadd.f32 %v1542, %v2058
      %2060 = vmatprep.mubr.bf16.mxu0 0
      %2061 = vmatmul.mubr.bf16.gmra.mxu0 %v1631
      %v2062 = vpop.f32.mrf.mxu0
      %v2063 = vadd.f32 %v1547, %v2062
      %v2064 = vpop.f32.mrf.mxu0
      %v2065 = vadd.f32 %v1547, %v2064
      %v2066 = vpop.f32.mrf.mxu0
      %v2067 = vadd.f32 %v1552, %v2066
      %v2068 = vpop.f32.mrf.mxu0
      %v2069 = vadd.f32 %v1552, %v2068
      %2070 = vmatprep.mubr.bf16.mxu0 0
      %2071 = vmatmul.mubr.bf16.gmra.mxu0 %v1634
      %v2072 = vpop.f32.mrf.mxu0
      %v2073 = vadd.f32 %v1557, %v2072
      %v2074 = vpop.f32.mrf.mxu0
      %v2075 = vadd.f32 %v1557, %v2074
      %v2076 = vpop.f32.mrf.mxu0
      %v2077 = vadd.f32 %v1562, %v2076
      %v2078 = vpop.f32.mrf.mxu0
      %v2079 = vadd.f32 %v1562, %v2078
      %2080 = vmatprep.mubr.bf16.mxu0 0
      %2081 = vmatmul.mubr.bf16.gmra.mxu0 %v1637
      %v2082 = vpop.f32.mrf.mxu0
      %v2083 = vadd.f32 %v1567, %v2082
      %v2084 = vpop.f32.mrf.mxu0
      %v2085 = vadd.f32 %v1567, %v2084
      %v2086 = vpop.f32.mrf.mxu0
      %v2087 = vadd.f32 %v1572, %v2086
      %v2088 = vpop.f32.mrf.mxu0
      %v2089 = vadd.f32 %v1572, %v2088
      %2090 = vdwg.mxu0
      %v2091 = vmax.f32 %v1674, 0.0
      %v2092 = vmax.f32 %v1676, 0.0
      %v2093 = vmax.f32 %v1787, 0.0
      %v2094 = vmax.f32 %v1789, 0.0
      %v2095 = vmax.f32 %v1900, 0.0
      %v2096 = vmax.f32 %v1902, 0.0
      %v2097 = vmax.f32 %v2013, 0.0
      %v2098 = vmax.f32 %v2015, 0.0
      %v2099 = vmax.f32 %v1678, 0.0
      %v2100 = vmax.f32 %v1680, 0.0
      %v2101 = vmax.f32 %v1791, 0.0
      %v2102 = vmax.f32 %v1793, 0.0
      %v2103 = vmax.f32 %v1904, 0.0
      %v2104 = vmax.f32 %v1906, 0.0
      %v2105 = vmax.f32 %v2017, 0.0
      %v2106 = vmax.f32 %v2019, 0.0
      %v2107 = vmax.f32 %v1684, 0.0
      %v2108 = vmax.f32 %v1686, 0.0
      %v2109 = vmax.f32 %v1797, 0.0
      %v2110 = vmax.f32 %v1799, 0.0
      %v2111 = vmax.f32 %v1910, 0.0
      %v2112 = vmax.f32 %v1912, 0.0
      %v2113 = vmax.f32 %v2023, 0.0
      %v2114 = vmax.f32 %v2025, 0.0
      %v2115 = vmax.f32 %v1688, 0.0
      %v2116 = vmax.f32 %v1690, 0.0
      %v2117 = vmax.f32 %v1801, 0.0
      %v2118 = vmax.f32 %v1803, 0.0
      %v2119 = vmax.f32 %v1914, 0.0
      %v2120 = vmax.f32 %v1916, 0.0
      %v2121 = vmax.f32 %v2027, 0.0
      %v2122 = vmax.f32 %v2029, 0.0
      %v2123 = vmax.f32 %v1694, 0.0
      %v2124 = vmax.f32 %v1696, 0.0
      %v2125 = vmax.f32 %v1807, 0.0
      %v2126 = vmax.f32 %v1809, 0.0
      %v2127 = vmax.f32 %v1920, 0.0
      %v2128 = vmax.f32 %v1922, 0.0
      %v2129 = vmax.f32 %v2033, 0.0
      %v2130 = vmax.f32 %v2035, 0.0
      %v2131 = vmax.f32 %v1698, 0.0
      %v2132 = vmax.f32 %v1700, 0.0
      %v2133 = vmax.f32 %v1811, 0.0
      %v2134 = vmax.f32 %v1813, 0.0
      %v2135 = vmax.f32 %v1924, 0.0
      %v2136 = vmax.f32 %v1926, 0.0
      %v2137 = vmax.f32 %v2037, 0.0
      %v2138 = vmax.f32 %v2039, 0.0
      %v2139 = vmax.f32 %v1704, 0.0
      %v2140 = vmax.f32 %v1706, 0.0
      %v2141 = vmax.f32 %v1817, 0.0
      %v2142 = vmax.f32 %v1819, 0.0
      %v2143 = vmax.f32 %v1930, 0.0
      %v2144 = vmax.f32 %v1932, 0.0
      %v2145 = vmax.f32 %v2043, 0.0
      %v2146 = vmax.f32 %v2045, 0.0
      %v2147 = vmax.f32 %v1708, 0.0
      %v2148 = vmax.f32 %v1710, 0.0
      %v2149 = vmax.f32 %v1821, 0.0
      %v2150 = vmax.f32 %v1823, 0.0
      %v2151 = vmax.f32 %v1934, 0.0
      %v2152 = vmax.f32 %v1936, 0.0
      %v2153 = vmax.f32 %v2047, 0.0
      %v2154 = vmax.f32 %v2049, 0.0
      %v2155 = vmax.f32 %v1714, 0.0
      %v2156 = vmax.f32 %v1716, 0.0
      %v2157 = vmax.f32 %v1827, 0.0
      %v2158 = vmax.f32 %v1829, 0.0
      %v2159 = vmax.f32 %v1940, 0.0
      %v2160 = vmax.f32 %v1942, 0.0
      %v2161 = vmax.f32 %v2053, 0.0
      %v2162 = vmax.f32 %v2055, 0.0
      %v2163 = vmax.f32 %v1718, 0.0
      %v2164 = vmax.f32 %v1720, 0.0
      %v2165 = vmax.f32 %v1831, 0.0
      %v2166 = vmax.f32 %v1833, 0.0
      %v2167 = vmax.f32 %v1944, 0.0
      %v2168 = vmax.f32 %v1946, 0.0
      %v2169 = vmax.f32 %v2057, 0.0
      %v2170 = vmax.f32 %v2059, 0.0
      %v2171 = vmax.f32 %v1724, 0.0
      %v2172 = vmax.f32 %v1726, 0.0
      %v2173 = vmax.f32 %v1837, 0.0
      %v2174 = vmax.f32 %v1839, 0.0
      %v2175 = vmax.f32 %v1950, 0.0
      %v2176 = vmax.f32 %v1952, 0.0
      %v2177 = vmax.f32 %v2063, 0.0
      %v2178 = vmax.f32 %v2065, 0.0
      %v2179 = vmax.f32 %v1728, 0.0
      %v2180 = vmax.f32 %v1730, 0.0
      %v2181 = vmax.f32 %v1841, 0.0
      %v2182 = vmax.f32 %v1843, 0.0
      %v2183 = vmax.f32 %v1954, 0.0
      %v2184 = vmax.f32 %v1956, 0.0
      %v2185 = vmax.f32 %v2067, 0.0
      %v2186 = vmax.f32 %v2069, 0.0
      %v2187 = vmax.f32 %v1734, 0.0
      %v2188 = vmax.f32 %v1736, 0.0
      %v2189 = vmax.f32 %v1847, 0.0
      %v2190 = vmax.f32 %v1849, 0.0
      %v2191 = vmax.f32 %v1960, 0.0
      %v2192 = vmax.f32 %v1962, 0.0
      %v2193 = vmax.f32 %v2073, 0.0
      %v2194 = vmax.f32 %v2075, 0.0
      %v2195 = vmax.f32 %v1738, 0.0
      %v2196 = vmax.f32 %v1740, 0.0
      %v2197 = vmax.f32 %v1851, 0.0
      %v2198 = vmax.f32 %v1853, 0.0
      %v2199 = vmax.f32 %v1964, 0.0
      %v2200 = vmax.f32 %v1966, 0.0
      %v2201 = vmax.f32 %v2077, 0.0
      %v2202 = vmax.f32 %v2079, 0.0
      %v2203 = vmax.f32 %v1744, 0.0
      %v2204 = vmax.f32 %v1746, 0.0
      %v2205 = vmax.f32 %v1857, 0.0
      %v2206 = vmax.f32 %v1859, 0.0
      %v2207 = vmax.f32 %v1970, 0.0
      %v2208 = vmax.f32 %v1972, 0.0
      %v2209 = vmax.f32 %v2083, 0.0
      %v2210 = vmax.f32 %v2085, 0.0
      %v2211 = vmax.f32 %v1748, 0.0
      %v2212 = vmax.f32 %v1750, 0.0
      %v2213 = vmax.f32 %v1861, 0.0
      %v2214 = vmax.f32 %v1863, 0.0
      %v2215 = vmax.f32 %v1974, 0.0
      %v2216 = vmax.f32 %v1976, 0.0
      %v2217 = vmax.f32 %v2087, 0.0
      %v2218 = vmax.f32 %v2089, 0.0
      %v2219 = vld [vmem:[%s5] sm:$0xf]
      %v2220 = vld [vmem:[%s5 + $0x4] sm:$0xf]
      %v2221 = vld [vmem:[%s5 + $0x8] sm:$0xf]
      %v2222 = vld [vmem:[%s5 + $0xc] sm:$0xf]
      %v2223 = vld [vmem:[%s5 + $0x10] sm:$0xf]
      %v2224 = vld [vmem:[%s5 + $0x14] sm:$0xf]
      %v2225 = vld [vmem:[%s5 + $0x18] sm:$0xf]
      %v2226 = vld [vmem:[%s5 + $0x1c] sm:$0xf]
      %v2227 = vld [vmem:[%s5 + $0x20] sm:$0xf]
      %v2228 = vld [vmem:[%s5 + $0x24] sm:$0xf]
      %v2229 = vld [vmem:[%s5 + $0x28] sm:$0xf]
      %v2230 = vld [vmem:[%s5 + $0x2c] sm:$0xf]
      %v2231 = vld [vmem:[%s5 + $0x30] sm:$0xf]
      %v2232 = vld [vmem:[%s5 + $0x34] sm:$0xf]
      %v2233 = vld [vmem:[%s5 + $0x38] sm:$0xf]
      %v2234 = vld [vmem:[%s5 + $0x3c] sm:$0xf]
      %v2235 = vld [vmem:[%s5 + $0x40] sm:$0xf]
      %v2236 = vld [vmem:[%s5 + $0x44] sm:$0xf]
      %v2237 = vld [vmem:[%s5 + $0x48] sm:$0xf]
      %v2238 = vld [vmem:[%s5 + $0x4c] sm:$0xf]
      %v2239 = vld [vmem:[%s5 + $0x50] sm:$0xf]
      %v2240 = vld [vmem:[%s5 + $0x54] sm:$0xf]
      %v2241 = vld [vmem:[%s5 + $0x58] sm:$0xf]
      %v2242 = vld [vmem:[%s5 + $0x5c] sm:$0xf]
      %v2243 = vld [vmem:[%s5 + $0x60] sm:$0xf]
      %v2244 = vld [vmem:[%s5 + $0x64] sm:$0xf]
      %v2245 = vld [vmem:[%s5 + $0x68] sm:$0xf]
      %v2246 = vld [vmem:[%s5 + $0x6c] sm:$0xf]
      %v2247 = vld [vmem:[%s5 + $0x70] sm:$0xf]
      %v2248 = vld [vmem:[%s5 + $0x74] sm:$0xf]
      %v2249 = vld [vmem:[%s5 + $0x78] sm:$0xf]
      %v2250 = vld [vmem:[%s5 + $0x7c] sm:$0xf]
      %v2251 = vld [vmem:[%s5 + $0x80] sm:$0xf]
      %v2252 = vld [vmem:[%s5 + $0x84] sm:$0xf]
      %v2253 = vld [vmem:[%s5 + $0x88] sm:$0xf]
      %v2254 = vld [vmem:[%s5 + $0x8c] sm:$0xf]
      %v2255 = vld [vmem:[%s5 + $0x90] sm:$0xf]
      %v2256 = vld [vmem:[%s5 + $0x94] sm:$0xf]
      %v2257 = vld [vmem:[%s5 + $0x98] sm:$0xf]
      %v2258 = vld [vmem:[%s5 + $0x9c] sm:$0xf]
      %v2259 = vld [vmem:[%s5 + $0xa0] sm:$0xf]
      %v2260 = vld [vmem:[%s5 + $0xa4] sm:$0xf]
      %v2261 = vld [vmem:[%s5 + $0xa8] sm:$0xf]
      %v2262 = vld [vmem:[%s5 + $0xac] sm:$0xf]
      %v2263 = vld [vmem:[%s5 + $0xb0] sm:$0xf]
      %v2264 = vld [vmem:[%s5 + $0xb4] sm:$0xf]
      %v2265 = vld [vmem:[%s5 + $0xb8] sm:$0xf]
      %v2266 = vld [vmem:[%s5 + $0xbc] sm:$0xf]
      %v2267 = vld [vmem:[%s5 + $0xc0] sm:$0xf]
      %v2268 = vld [vmem:[%s5 + $0xc4] sm:$0xf]
      %v2269 = vld [vmem:[%s5 + $0xc8] sm:$0xf]
      %v2270 = vld [vmem:[%s5 + $0xcc] sm:$0xf]
      %v2271 = vld [vmem:[%s5 + $0xd0] sm:$0xf]
      %v2272 = vld [vmem:[%s5 + $0xd4] sm:$0xf]
      %v2273 = vld [vmem:[%s5 + $0xd8] sm:$0xf]
      %v2274 = vld [vmem:[%s5 + $0xdc] sm:$0xf]
      %v2275 = vld [vmem:[%s5 + $0xe0] sm:$0xf]
      %v2276 = vld [vmem:[%s5 + $0xe4] sm:$0xf]
      %v2277 = vld [vmem:[%s5 + $0xe8] sm:$0xf]
      %v2278 = vld [vmem:[%s5 + $0xec] sm:$0xf]
      %v2279 = vld [vmem:[%s5 + $0xf0] sm:$0xf]
      %v2280 = vld [vmem:[%s5 + $0xf4] sm:$0xf]
      %v2281 = vld [vmem:[%s5 + $0xf8] sm:$0xf]
      %v2282 = vld [vmem:[%s5 + $0xfc] sm:$0xf]
      %v2283 = vld [vmem:[%s5 + $0x100] sm:$0xf]
      %v2284 = vld [vmem:[%s5 + $0x104] sm:$0xf]
      %v2285 = vld [vmem:[%s5 + $0x108] sm:$0xf]
      %v2286 = vld [vmem:[%s5 + $0x10c] sm:$0xf]
      %v2287 = vld [vmem:[%s5 + $0x110] sm:$0xf]
      %v2288 = vld [vmem:[%s5 + $0x114] sm:$0xf]
      %v2289 = vld [vmem:[%s5 + $0x118] sm:$0xf]
      %v2290 = vld [vmem:[%s5 + $0x11c] sm:$0xf]
      %v2291 = vld [vmem:[%s5 + $0x120] sm:$0xf]
      %v2292 = vld [vmem:[%s5 + $0x124] sm:$0xf]
      %v2293 = vld [vmem:[%s5 + $0x128] sm:$0xf]
      %v2294 = vld [vmem:[%s5 + $0x12c] sm:$0xf]
      %v2295 = vld [vmem:[%s5 + $0x130] sm:$0xf]
      %v2296 = vld [vmem:[%s5 + $0x134] sm:$0xf]
      %v2297 = vld [vmem:[%s5 + $0x138] sm:$0xf]
      %v2298 = vld [vmem:[%s5 + $0x13c] sm:$0xf]
      %v2299 = vld [vmem:[%s5 + $0x140] sm:$0xf]
      %v2300 = vld [vmem:[%s5 + $0x144] sm:$0xf]
      %v2301 = vld [vmem:[%s5 + $0x148] sm:$0xf]
      %v2302 = vld [vmem:[%s5 + $0x14c] sm:$0xf]
      %v2303 = vld [vmem:[%s5 + $0x150] sm:$0xf]
      %v2304 = vld [vmem:[%s5 + $0x154] sm:$0xf]
      %v2305 = vld [vmem:[%s5 + $0x158] sm:$0xf]
      %v2306 = vld [vmem:[%s5 + $0x15c] sm:$0xf]
      %v2307 = vld [vmem:[%s5 + $0x160] sm:$0xf]
      %v2308 = vld [vmem:[%s5 + $0x164] sm:$0xf]
      %v2309 = vld [vmem:[%s5 + $0x168] sm:$0xf]
      %v2310 = vld [vmem:[%s5 + $0x16c] sm:$0xf]
      %v2311 = vld [vmem:[%s5 + $0x170] sm:$0xf]
      %v2312 = vld [vmem:[%s5 + $0x174] sm:$0xf]
      %v2313 = vld [vmem:[%s5 + $0x178] sm:$0xf]
      %v2314 = vld [vmem:[%s5 + $0x17c] sm:$0xf]
      %v2315 = vld [vmem:[%s5 + $0x180] sm:$0xf]
      %v2316 = vld [vmem:[%s5 + $0x184] sm:$0xf]
      %v2317 = vld [vmem:[%s5 + $0x188] sm:$0xf]
      %v2318 = vld [vmem:[%s5 + $0x18c] sm:$0xf]
      %v2319 = vld [vmem:[%s5 + $0x190] sm:$0xf]
      %v2320 = vld [vmem:[%s5 + $0x194] sm:$0xf]
      %v2321 = vld [vmem:[%s5 + $0x198] sm:$0xf]
      %v2322 = vld [vmem:[%s5 + $0x19c] sm:$0xf]
      %v2323 = vld [vmem:[%s5 + $0x1a0] sm:$0xf]
      %v2324 = vld [vmem:[%s5 + $0x1a4] sm:$0xf]
      %v2325 = vld [vmem:[%s5 + $0x1a8] sm:$0xf]
      %v2326 = vld [vmem:[%s5 + $0x1ac] sm:$0xf]
      %v2327 = vld [vmem:[%s5 + $0x1b0] sm:$0xf]
      %v2328 = vld [vmem:[%s5 + $0x1b4] sm:$0xf]
      %v2329 = vld [vmem:[%s5 + $0x1b8] sm:$0xf]
      %v2330 = vld [vmem:[%s5 + $0x1bc] sm:$0xf]
      %v2331 = vld [vmem:[%s5 + $0x1c0] sm:$0xf]
      %v2332 = vld [vmem:[%s5 + $0x1c4] sm:$0xf]
      %v2333 = vld [vmem:[%s5 + $0x1c8] sm:$0xf]
      %v2334 = vld [vmem:[%s5 + $0x1cc] sm:$0xf]
      %v2335 = vld [vmem:[%s5 + $0x1d0] sm:$0xf]
      %v2336 = vld [vmem:[%s5 + $0x1d4] sm:$0xf]
      %v2337 = vld [vmem:[%s5 + $0x1d8] sm:$0xf]
      %v2338 = vld [vmem:[%s5 + $0x1dc] sm:$0xf]
      %v2339 = vld [vmem:[%s5 + $0x1e0] sm:$0xf]
      %v2340 = vld [vmem:[%s5 + $0x1e4] sm:$0xf]
      %v2341 = vld [vmem:[%s5 + $0x1e8] sm:$0xf]
      %v2342 = vld [vmem:[%s5 + $0x1ec] sm:$0xf]
      %v2343 = vld [vmem:[%s5 + $0x1f0] sm:$0xf]
      %v2344 = vld [vmem:[%s5 + $0x1f4] sm:$0xf]
      %v2345 = vld [vmem:[%s5 + $0x1f8] sm:$0xf]
      %v2346 = vld [vmem:[%s5 + $0x1fc] sm:$0xf]
      %v2347 = vpack.c.bf16 %v2099, %v2091
      %v2348 = vpack.c.bf16 %v2100, %v2092
      %v2349 = vpack.c.bf16 %v2101, %v2093
      %v2350 = vpack.c.bf16 %v2102, %v2094
      %v2351 = vpack.c.bf16 %v2103, %v2095
      %v2352 = vpack.c.bf16 %v2104, %v2096
      %v2353 = vpack.c.bf16 %v2105, %v2097
      %v2354 = vpack.c.bf16 %v2106, %v2098
      %v2355 = vpack.c.bf16 %v2115, %v2107
      %v2356 = vpack.c.bf16 %v2116, %v2108
      %v2357 = vpack.c.bf16 %v2117, %v2109
      %v2358 = vpack.c.bf16 %v2118, %v2110
      %v2359 = vpack.c.bf16 %v2119, %v2111
      %v2360 = vpack.c.bf16 %v2120, %v2112
      %v2361 = vpack.c.bf16 %v2121, %v2113
      %v2362 = vpack.c.bf16 %v2122, %v2114
      %v2363 = vpack.c.bf16 %v2131, %v2123
      %v2364 = vpack.c.bf16 %v2132, %v2124
      %v2365 = vpack.c.bf16 %v2133, %v2125
      %v2366 = vpack.c.bf16 %v2134, %v2126
      %v2367 = vpack.c.bf16 %v2135, %v2127
      %v2368 = vpack.c.bf16 %v2136, %v2128
      %v2369 = vpack.c.bf16 %v2137, %v2129
      %v2370 = vpack.c.bf16 %v2138, %v2130
      %v2371 = vpack.c.bf16 %v2147, %v2139
      %v2372 = vpack.c.bf16 %v2148, %v2140
      %v2373 = vpack.c.bf16 %v2149, %v2141
      %v2374 = vpack.c.bf16 %v2150, %v2142
      %v2375 = vpack.c.bf16 %v2151, %v2143
      %v2376 = vpack.c.bf16 %v2152, %v2144
      %v2377 = vpack.c.bf16 %v2153, %v2145
      %v2378 = vpack.c.bf16 %v2154, %v2146
      %v2379 = vpack.c.bf16 %v2163, %v2155
      %v2380 = vpack.c.bf16 %v2164, %v2156
      %v2381 = vpack.c.bf16 %v2165, %v2157
      %v2382 = vpack.c.bf16 %v2166, %v2158
      %v2383 = vpack.c.bf16 %v2167, %v2159
      %v2384 = vpack.c.bf16 %v2168, %v2160
      %v2385 = vpack.c.bf16 %v2169, %v2161
      %v2386 = vpack.c.bf16 %v2170, %v2162
      %v2387 = vpack.c.bf16 %v2179, %v2171
      %v2388 = vpack.c.bf16 %v2180, %v2172
      %v2389 = vpack.c.bf16 %v2181, %v2173
      %v2390 = vpack.c.bf16 %v2182, %v2174
      %v2391 = vpack.c.bf16 %v2183, %v2175
      %v2392 = vpack.c.bf16 %v2184, %v2176
      %v2393 = vpack.c.bf16 %v2185, %v2177
      %v2394 = vpack.c.bf16 %v2186, %v2178
      %v2395 = vpack.c.bf16 %v2195, %v2187
      %v2396 = vpack.c.bf16 %v2196, %v2188
      %v2397 = vpack.c.bf16 %v2197, %v2189
      %v2398 = vpack.c.bf16 %v2198, %v2190
      %v2399 = vpack.c.bf16 %v2199, %v2191
      %v2400 = vpack.c.bf16 %v2200, %v2192
      %v2401 = vpack.c.bf16 %v2201, %v2193
      %v2402 = vpack.c.bf16 %v2202, %v2194
      %v2403 = vpack.c.bf16 %v2211, %v2203
      %v2404 = vpack.c.bf16 %v2212, %v2204
      %v2405 = vpack.c.bf16 %v2213, %v2205
      %v2406 = vpack.c.bf16 %v2214, %v2206
      %v2407 = vpack.c.bf16 %v2215, %v2207
      %v2408 = vpack.c.bf16 %v2216, %v2208
      %v2409 = vpack.c.bf16 %v2217, %v2209
      %v2410 = vpack.c.bf16 %v2218, %v2210
      %v2411 = vld [vmem:[%s6] sm:$0xff]
      %v2412 = vld [vmem:[%s6 + $0x8] sm:$0xff]
      %v2413 = vld [vmem:[%s6 + $0x10] sm:$0xff]
      %v2414 = vld [vmem:[%s6 + $0x18] sm:$0xff]
      %v2415 = vld [vmem:[%s6 + $0x20] sm:$0xff]
      %v2416 = vld [vmem:[%s6 + $0x28] sm:$0xff]
      %v2417 = vld [vmem:[%s6 + $0x30] sm:$0xff]
      %v2418 = vld [vmem:[%s6 + $0x38] sm:$0xff]
      %v2419 = vld [vmem:[%s6 + $0x40] sm:$0xff]
      %v2420 = vld [vmem:[%s6 + $0x48] sm:$0xff]
      %v2421 = vld [vmem:[%s6 + $0x50] sm:$0xff]
      %v2422 = vld [vmem:[%s6 + $0x58] sm:$0xff]
      %v2423 = vld [vmem:[%s6 + $0x60] sm:$0xff]
      %v2424 = vld [vmem:[%s6 + $0x68] sm:$0xff]
      %v2425 = vld [vmem:[%s6 + $0x70] sm:$0xff]
      %v2426 = vld [vmem:[%s6 + $0x78] sm:$0xff]
      %v2427 = vld [vmem:[%s6 + $0x80] sm:$0xff]
      %v2428 = vld [vmem:[%s6 + $0x88] sm:$0xff]
      %v2429 = vld [vmem:[%s6 + $0x90] sm:$0xff]
      %v2430 = vld [vmem:[%s6 + $0x98] sm:$0xff]
      %v2431 = vld [vmem:[%s6 + $0xa0] sm:$0xff]
      %v2432 = vld [vmem:[%s6 + $0xa8] sm:$0xff]
      %v2433 = vld [vmem:[%s6 + $0xb0] sm:$0xff]
      %v2434 = vld [vmem:[%s6 + $0xb8] sm:$0xff]
      %v2435 = vld [vmem:[%s6 + $0xc0] sm:$0xff]
      %v2436 = vld [vmem:[%s6 + $0xc8] sm:$0xff]
      %v2437 = vld [vmem:[%s6 + $0xd0] sm:$0xff]
      %v2438 = vld [vmem:[%s6 + $0xd8] sm:$0xff]
      %v2439 = vld [vmem:[%s6 + $0xe0] sm:$0xff]
      %v2440 = vld [vmem:[%s6 + $0xe8] sm:$0xff]
      %v2441 = vld [vmem:[%s6 + $0xf0] sm:$0xff]
      %v2442 = vld [vmem:[%s6 + $0xf8] sm:$0xff]
      %v2443 = vld [vmem:[%s6 + $0x100] sm:$0xff]
      %v2444 = vld [vmem:[%s6 + $0x108] sm:$0xff]
      %v2445 = vld [vmem:[%s6 + $0x110] sm:$0xff]
      %v2446 = vld [vmem:[%s6 + $0x118] sm:$0xff]
      %v2447 = vld [vmem:[%s6 + $0x120] sm:$0xff]
      %v2448 = vld [vmem:[%s6 + $0x128] sm:$0xff]
      %v2449 = vld [vmem:[%s6 + $0x130] sm:$0xff]
      %v2450 = vld [vmem:[%s6 + $0x138] sm:$0xff]
      %v2451 = vld [vmem:[%s6 + $0x140] sm:$0xff]
      %v2452 = vld [vmem:[%s6 + $0x148] sm:$0xff]
      %v2453 = vld [vmem:[%s6 + $0x150] sm:$0xff]
      %v2454 = vld [vmem:[%s6 + $0x158] sm:$0xff]
      %v2455 = vld [vmem:[%s6 + $0x160] sm:$0xff]
      %v2456 = vld [vmem:[%s6 + $0x168] sm:$0xff]
      %v2457 = vld [vmem:[%s6 + $0x170] sm:$0xff]
      %v2458 = vld [vmem:[%s6 + $0x178] sm:$0xff]
      %v2459 = vld [vmem:[%s6 + $0x180] sm:$0xff]
      %v2460 = vld [vmem:[%s6 + $0x188] sm:$0xff]
      %v2461 = vld [vmem:[%s6 + $0x190] sm:$0xff]
      %v2462 = vld [vmem:[%s6 + $0x198] sm:$0xff]
      %v2463 = vld [vmem:[%s6 + $0x1a0] sm:$0xff]
      %v2464 = vld [vmem:[%s6 + $0x1a8] sm:$0xff]
      %v2465 = vld [vmem:[%s6 + $0x1b0] sm:$0xff]
      %v2466 = vld [vmem:[%s6 + $0x1b8] sm:$0xff]
      %v2467 = vld [vmem:[%s6 + $0x1c0] sm:$0xff]
      %v2468 = vld [vmem:[%s6 + $0x1c8] sm:$0xff]
      %v2469 = vld [vmem:[%s6 + $0x1d0] sm:$0xff]
      %v2470 = vld [vmem:[%s6 + $0x1d8] sm:$0xff]
      %v2471 = vld [vmem:[%s6 + $0x1e0] sm:$0xff]
      %v2472 = vld [vmem:[%s6 + $0x1e8] sm:$0xff]
      %v2473 = vld [vmem:[%s6 + $0x1f0] sm:$0xff]
      %v2474 = vld [vmem:[%s6 + $0x1f8] sm:$0xff]
      %v2475 = vld [vmem:[%s6 + $0x200] sm:$0xff]
      %v2476 = vld [vmem:[%s6 + $0x208] sm:$0xff]
      %v2477 = vld [vmem:[%s6 + $0x210] sm:$0xff]
      %v2478 = vld [vmem:[%s6 + $0x218] sm:$0xff]
      %v2479 = vld [vmem:[%s6 + $0x220] sm:$0xff]
      %v2480 = vld [vmem:[%s6 + $0x228] sm:$0xff]
      %v2481 = vld [vmem:[%s6 + $0x230] sm:$0xff]
      %v2482 = vld [vmem:[%s6 + $0x238] sm:$0xff]
      %v2483 = vld [vmem:[%s6 + $0x240] sm:$0xff]
      %v2484 = vld [vmem:[%s6 + $0x248] sm:$0xff]
      %v2485 = vld [vmem:[%s6 + $0x250] sm:$0xff]
      %v2486 = vld [vmem:[%s6 + $0x258] sm:$0xff]
      %v2487 = vld [vmem:[%s6 + $0x260] sm:$0xff]
      %v2488 = vld [vmem:[%s6 + $0x268] sm:$0xff]
      %v2489 = vld [vmem:[%s6 + $0x270] sm:$0xff]
      %v2490 = vld [vmem:[%s6 + $0x278] sm:$0xff]
      %v2491 = vld [vmem:[%s6 + $0x280] sm:$0xff]
      %v2492 = vld [vmem:[%s6 + $0x288] sm:$0xff]
      %v2493 = vld [vmem:[%s6 + $0x290] sm:$0xff]
      %v2494 = vld [vmem:[%s6 + $0x298] sm:$0xff]
      %v2495 = vld [vmem:[%s6 + $0x2a0] sm:$0xff]
      %v2496 = vld [vmem:[%s6 + $0x2a8] sm:$0xff]
      %v2497 = vld [vmem:[%s6 + $0x2b0] sm:$0xff]
      %v2498 = vld [vmem:[%s6 + $0x2b8] sm:$0xff]
      %v2499 = vld [vmem:[%s6 + $0x2c0] sm:$0xff]
      %v2500 = vld [vmem:[%s6 + $0x2c8] sm:$0xff]
      %v2501 = vld [vmem:[%s6 + $0x2d0] sm:$0xff]
      %v2502 = vld [vmem:[%s6 + $0x2d8] sm:$0xff]
      %v2503 = vld [vmem:[%s6 + $0x2e0] sm:$0xff]
      %v2504 = vld [vmem:[%s6 + $0x2e8] sm:$0xff]
      %v2505 = vld [vmem:[%s6 + $0x2f0] sm:$0xff]
      %v2506 = vld [vmem:[%s6 + $0x2f8] sm:$0xff]
      %v2507 = vld [vmem:[%s6 + $0x300] sm:$0xff]
      %v2508 = vld [vmem:[%s6 + $0x308] sm:$0xff]
      %v2509 = vld [vmem:[%s6 + $0x310] sm:$0xff]
      %v2510 = vld [vmem:[%s6 + $0x318] sm:$0xff]
      %v2511 = vld [vmem:[%s6 + $0x320] sm:$0xff]
      %v2512 = vld [vmem:[%s6 + $0x328] sm:$0xff]
      %v2513 = vld [vmem:[%s6 + $0x330] sm:$0xff]
      %v2514 = vld [vmem:[%s6 + $0x338] sm:$0xff]
      %v2515 = vld [vmem:[%s6 + $0x340] sm:$0xff]
      %v2516 = vld [vmem:[%s6 + $0x348] sm:$0xff]
      %v2517 = vld [vmem:[%s6 + $0x350] sm:$0xff]
      %v2518 = vld [vmem:[%s6 + $0x358] sm:$0xff]
      %v2519 = vld [vmem:[%s6 + $0x360] sm:$0xff]
      %v2520 = vld [vmem:[%s6 + $0x368] sm:$0xff]
      %v2521 = vld [vmem:[%s6 + $0x370] sm:$0xff]
      %v2522 = vld [vmem:[%s6 + $0x378] sm:$0xff]
      %v2523 = vld [vmem:[%s6 + $0x380] sm:$0xff]
      %v2524 = vld [vmem:[%s6 + $0x388] sm:$0xff]
      %v2525 = vld [vmem:[%s6 + $0x390] sm:$0xff]
      %v2526 = vld [vmem:[%s6 + $0x398] sm:$0xff]
      %v2527 = vld [vmem:[%s6 + $0x3a0] sm:$0xff]
      %v2528 = vld [vmem:[%s6 + $0x3a8] sm:$0xff]
      %v2529 = vld [vmem:[%s6 + $0x3b0] sm:$0xff]
      %v2530 = vld [vmem:[%s6 + $0x3b8] sm:$0xff]
      %v2531 = vld [vmem:[%s6 + $0x3c0] sm:$0xff]
      %v2532 = vld [vmem:[%s6 + $0x3c8] sm:$0xff]
      %v2533 = vld [vmem:[%s6 + $0x3d0] sm:$0xff]
      %v2534 = vld [vmem:[%s6 + $0x3d8] sm:$0xff]
      %v2535 = vld [vmem:[%s6 + $0x3e0] sm:$0xff]
      %v2536 = vld [vmem:[%s6 + $0x3e8] sm:$0xff]
      %v2537 = vld [vmem:[%s6 + $0x3f0] sm:$0xff]
      %v2538 = vld [vmem:[%s6 + $0x3f8] sm:$0xff]
      %2540 = vset.pattern.permute.xlu0 0
      %2541 = vperm.xlu0 %2540, %v2411
      %v2542 = vpop.permute.xlu0 %2541
      %2545 = vset.pattern.permute.xlu0 0
      %2546 = vperm.xlu0 %2545, %v2412
      %v2547 = vpop.permute.xlu0 %2546
      %2550 = vset.pattern.permute.xlu0 0
      %2551 = vperm.xlu0 %2550, %v2413
      %v2552 = vpop.permute.xlu0 %2551
      %2555 = vset.pattern.permute.xlu0 0
      %2556 = vperm.xlu0 %2555, %v2414
      %v2557 = vpop.permute.xlu0 %2556
      %2560 = vset.pattern.permute.xlu0 0
      %2561 = vperm.xlu0 %2560, %v2415
      %v2562 = vpop.permute.xlu0 %2561
      %2565 = vset.pattern.permute.xlu0 0
      %2566 = vperm.xlu0 %2565, %v2416
      %v2567 = vpop.permute.xlu0 %2566
      %2570 = vset.pattern.permute.xlu0 0
      %2571 = vperm.xlu0 %2570, %v2417
      %v2572 = vpop.permute.xlu0 %2571
      %2575 = vset.pattern.permute.xlu0 0
      %2576 = vperm.xlu0 %2575, %v2418
      %v2577 = vpop.permute.xlu0 %2576
      %2580 = vset.pattern.permute.xlu0 0
      %2581 = vperm.xlu0 %2580, %v2419
      %v2582 = vpop.permute.xlu0 %2581
      %2585 = vset.pattern.permute.xlu0 0
      %2586 = vperm.xlu0 %2585, %v2420
      %v2587 = vpop.permute.xlu0 %2586
      %2590 = vset.pattern.permute.xlu0 0
      %2591 = vperm.xlu0 %2590, %v2421
      %v2592 = vpop.permute.xlu0 %2591
      %2595 = vset.pattern.permute.xlu0 0
      %2596 = vperm.xlu0 %2595, %v2422
      %v2597 = vpop.permute.xlu0 %2596
      %2600 = vset.pattern.permute.xlu0 0
      %2601 = vperm.xlu0 %2600, %v2423
      %v2602 = vpop.permute.xlu0 %2601
      %2605 = vset.pattern.permute.xlu0 0
      %2606 = vperm.xlu0 %2605, %v2424
      %v2607 = vpop.permute.xlu0 %2606
      %2610 = vset.pattern.permute.xlu0 0
      %2611 = vperm.xlu0 %2610, %v2425
      %v2612 = vpop.permute.xlu0 %2611
      %2615 = vset.pattern.permute.xlu0 0
      %2616 = vperm.xlu0 %2615, %v2426
      %v2617 = vpop.permute.xlu0 %2616
      %2620 = vset.pattern.permute.xlu0 0
      %2621 = vperm.xlu0 %2620, %v2427
      %v2622 = vpop.permute.xlu0 %2621
      %2625 = vset.pattern.permute.xlu0 0
      %2626 = vperm.xlu0 %2625, %v2428
      %v2627 = vpop.permute.xlu0 %2626
      %2630 = vset.pattern.permute.xlu0 0
      %2631 = vperm.xlu0 %2630, %v2429
      %v2632 = vpop.permute.xlu0 %2631
      %2635 = vset.pattern.permute.xlu0 0
      %2636 = vperm.xlu0 %2635, %v2430
      %v2637 = vpop.permute.xlu0 %2636
      %2640 = vset.pattern.permute.xlu0 0
      %2641 = vperm.xlu0 %2640, %v2431
      %v2642 = vpop.permute.xlu0 %2641
      %2645 = vset.pattern.permute.xlu0 0
      %2646 = vperm.xlu0 %2645, %v2432
      %v2647 = vpop.permute.xlu0 %2646
      %2650 = vset.pattern.permute.xlu0 0
      %2651 = vperm.xlu0 %2650, %v2433
      %v2652 = vpop.permute.xlu0 %2651
      %2655 = vset.pattern.permute.xlu0 0
      %2656 = vperm.xlu0 %2655, %v2434
      %v2657 = vpop.permute.xlu0 %2656
      %2660 = vset.pattern.permute.xlu0 0
      %2661 = vperm.xlu0 %2660, %v2435
      %v2662 = vpop.permute.xlu0 %2661
      %2665 = vset.pattern.permute.xlu0 0
      %2666 = vperm.xlu0 %2665, %v2436
      %v2667 = vpop.permute.xlu0 %2666
      %2670 = vset.pattern.permute.xlu0 0
      %2671 = vperm.xlu0 %2670, %v2437
      %v2672 = vpop.permute.xlu0 %2671
      %2675 = vset.pattern.permute.xlu0 0
      %2676 = vperm.xlu0 %2675, %v2438
      %v2677 = vpop.permute.xlu0 %2676
      %2680 = vset.pattern.permute.xlu0 0
      %2681 = vperm.xlu0 %2680, %v2439
      %v2682 = vpop.permute.xlu0 %2681
      %2685 = vset.pattern.permute.xlu0 0
      %2686 = vperm.xlu0 %2685, %v2440
      %v2687 = vpop.permute.xlu0 %2686
      %2690 = vset.pattern.permute.xlu0 0
      %2691 = vperm.xlu0 %2690, %v2441
      %v2692 = vpop.permute.xlu0 %2691
      %2695 = vset.pattern.permute.xlu0 0
      %2696 = vperm.xlu0 %2695, %v2442
      %v2697 = vpop.permute.xlu0 %2696
      %2700 = vset.pattern.permute.xlu0 0
      %2701 = vperm.xlu0 %2700, %v2443
      %v2702 = vpop.permute.xlu0 %2701
      %2705 = vset.pattern.permute.xlu0 0
      %2706 = vperm.xlu0 %2705, %v2444
      %v2707 = vpop.permute.xlu0 %2706
      %2710 = vset.pattern.permute.xlu0 0
      %2711 = vperm.xlu0 %2710, %v2445
      %v2712 = vpop.permute.xlu0 %2711
      %2715 = vset.pattern.permute.xlu0 0
      %2716 = vperm.xlu0 %2715, %v2446
      %v2717 = vpop.permute.xlu0 %2716
      %2720 = vset.pattern.permute.xlu0 0
      %2721 = vperm.xlu0 %2720, %v2447
      %v2722 = vpop.permute.xlu0 %2721
      %2725 = vset.pattern.permute.xlu0 0
      %2726 = vperm.xlu0 %2725, %v2448
      %v2727 = vpop.permute.xlu0 %2726
      %2730 = vset.pattern.permute.xlu0 0
      %2731 = vperm.xlu0 %2730, %v2449
      %v2732 = vpop.permute.xlu0 %2731
      %2735 = vset.pattern.permute.xlu0 0
      %2736 = vperm.xlu0 %2735, %v2450
      %v2737 = vpop.permute.xlu0 %2736
      %2740 = vset.pattern.permute.xlu0 0
      %2741 = vperm.xlu0 %2740, %v2451
      %v2742 = vpop.permute.xlu0 %2741
      %2745 = vset.pattern.permute.xlu0 0
      %2746 = vperm.xlu0 %2745, %v2452
      %v2747 = vpop.permute.xlu0 %2746
      %2750 = vset.pattern.permute.xlu0 0
      %2751 = vperm.xlu0 %2750, %v2453
      %v2752 = vpop.permute.xlu0 %2751
      %2755 = vset.pattern.permute.xlu0 0
      %2756 = vperm.xlu0 %2755, %v2454
      %v2757 = vpop.permute.xlu0 %2756
      %2760 = vset.pattern.permute.xlu0 0
      %2761 = vperm.xlu0 %2760, %v2455
      %v2762 = vpop.permute.xlu0 %2761
      %2765 = vset.pattern.permute.xlu0 0
      %2766 = vperm.xlu0 %2765, %v2456
      %v2767 = vpop.permute.xlu0 %2766
      %2770 = vset.pattern.permute.xlu0 0
      %2771 = vperm.xlu0 %2770, %v2457
      %v2772 = vpop.permute.xlu0 %2771
      %2775 = vset.pattern.permute.xlu0 0
      %2776 = vperm.xlu0 %2775, %v2458
      %v2777 = vpop.permute.xlu0 %2776
      %2780 = vset.pattern.permute.xlu0 0
      %2781 = vperm.xlu0 %2780, %v2459
      %v2782 = vpop.permute.xlu0 %2781
      %2785 = vset.pattern.permute.xlu0 0
      %2786 = vperm.xlu0 %2785, %v2460
      %v2787 = vpop.permute.xlu0 %2786
      %2790 = vset.pattern.permute.xlu0 0
      %2791 = vperm.xlu0 %2790, %v2461
      %v2792 = vpop.permute.xlu0 %2791
      %2795 = vset.pattern.permute.xlu0 0
      %2796 = vperm.xlu0 %2795, %v2462
      %v2797 = vpop.permute.xlu0 %2796
      %2800 = vset.pattern.permute.xlu0 0
      %2801 = vperm.xlu0 %2800, %v2463
      %v2802 = vpop.permute.xlu0 %2801
      %2805 = vset.pattern.permute.xlu0 0
      %2806 = vperm.xlu0 %2805, %v2464
      %v2807 = vpop.permute.xlu0 %2806
      %2810 = vset.pattern.permute.xlu0 0
      %2811 = vperm.xlu0 %2810, %v2465
      %v2812 = vpop.permute.xlu0 %2811
      %2815 = vset.pattern.permute.xlu0 0
      %2816 = vperm.xlu0 %2815, %v2466
      %v2817 = vpop.permute.xlu0 %2816
      %2820 = vset.pattern.permute.xlu0 0
      %2821 = vperm.xlu0 %2820, %v2467
      %v2822 = vpop.permute.xlu0 %2821
      %2825 = vset.pattern.permute.xlu0 0
      %2826 = vperm.xlu0 %2825, %v2468
      %v2827 = vpop.permute.xlu0 %2826
      %2830 = vset.pattern.permute.xlu0 0
      %2831 = vperm.xlu0 %2830, %v2469
      %v2832 = vpop.permute.xlu0 %2831
      %2835 = vset.pattern.permute.xlu0 0
      %2836 = vperm.xlu0 %2835, %v2470
      %v2837 = vpop.permute.xlu0 %2836
      %2840 = vset.pattern.permute.xlu0 0
      %2841 = vperm.xlu0 %2840, %v2471
      %v2842 = vpop.permute.xlu0 %2841
      %2845 = vset.pattern.permute.xlu0 0
      %2846 = vperm.xlu0 %2845, %v2472
      %v2847 = vpop.permute.xlu0 %2846
      %2850 = vset.pattern.permute.xlu0 0
      %2851 = vperm.xlu0 %2850, %v2473
      %v2852 = vpop.permute.xlu0 %2851
      %2855 = vset.pattern.permute.xlu0 0
      %2856 = vperm.xlu0 %2855, %v2474
      %v2857 = vpop.permute.xlu0 %2856
      %2860 = vset.pattern.permute.xlu0 0
      %2861 = vperm.xlu0 %2860, %v2475
      %v2862 = vpop.permute.xlu0 %2861
      %2865 = vset.pattern.permute.xlu0 0
      %2866 = vperm.xlu0 %2865, %v2476
      %v2867 = vpop.permute.xlu0 %2866
      %2870 = vset.pattern.permute.xlu0 0
      %2871 = vperm.xlu0 %2870, %v2477
      %v2872 = vpop.permute.xlu0 %2871
      %2875 = vset.pattern.permute.xlu0 0
      %2876 = vperm.xlu0 %2875, %v2478
      %v2877 = vpop.permute.xlu0 %2876
      %2880 = vset.pattern.permute.xlu0 0
      %2881 = vperm.xlu0 %2880, %v2479
      %v2882 = vpop.permute.xlu0 %2881
      %2885 = vset.pattern.permute.xlu0 0
      %2886 = vperm.xlu0 %2885, %v2480
      %v2887 = vpop.permute.xlu0 %2886
      %2890 = vset.pattern.permute.xlu0 0
      %2891 = vperm.xlu0 %2890, %v2481
      %v2892 = vpop.permute.xlu0 %2891
      %2895 = vset.pattern.permute.xlu0 0
      %2896 = vperm.xlu0 %2895, %v2482
      %v2897 = vpop.permute.xlu0 %2896
      %2900 = vset.pattern.permute.xlu0 0
      %2901 = vperm.xlu0 %2900, %v2483
      %v2902 = vpop.permute.xlu0 %2901
      %2905 = vset.pattern.permute.xlu0 0
      %2906 = vperm.xlu0 %2905, %v2484
      %v2907 = vpop.permute.xlu0 %2906
      %2910 = vset.pattern.permute.xlu0 0
      %2911 = vperm.xlu0 %2910, %v2485
      %v2912 = vpop.permute.xlu0 %2911
      %2915 = vset.pattern.permute.xlu0 0
      %2916 = vperm.xlu0 %2915, %v2486
      %v2917 = vpop.permute.xlu0 %2916
      %2920 = vset.pattern.permute.xlu0 0
      %2921 = vperm.xlu0 %2920, %v2487
      %v2922 = vpop.permute.xlu0 %2921
      %2925 = vset.pattern.permute.xlu0 0
      %2926 = vperm.xlu0 %2925, %v2488
      %v2927 = vpop.permute.xlu0 %2926
      %2930 = vset.pattern.permute.xlu0 0
      %2931 = vperm.xlu0 %2930, %v2489
      %v2932 = vpop.permute.xlu0 %2931
      %2935 = vset.pattern.permute.xlu0 0
      %2936 = vperm.xlu0 %2935, %v2490
      %v2937 = vpop.permute.xlu0 %2936
      %2940 = vset.pattern.permute.xlu0 0
      %2941 = vperm.xlu0 %2940, %v2491
      %v2942 = vpop.permute.xlu0 %2941
      %2945 = vset.pattern.permute.xlu0 0
      %2946 = vperm.xlu0 %2945, %v2492
      %v2947 = vpop.permute.xlu0 %2946
      %2950 = vset.pattern.permute.xlu0 0
      %2951 = vperm.xlu0 %2950, %v2493
      %v2952 = vpop.permute.xlu0 %2951
      %2955 = vset.pattern.permute.xlu0 0
      %2956 = vperm.xlu0 %2955, %v2494
      %v2957 = vpop.permute.xlu0 %2956
      %2960 = vset.pattern.permute.xlu0 0
      %2961 = vperm.xlu0 %2960, %v2495
      %v2962 = vpop.permute.xlu0 %2961
      %2965 = vset.pattern.permute.xlu0 0
      %2966 = vperm.xlu0 %2965, %v2496
      %v2967 = vpop.permute.xlu0 %2966
      %2970 = vset.pattern.permute.xlu0 0
      %2971 = vperm.xlu0 %2970, %v2497
      %v2972 = vpop.permute.xlu0 %2971
      %2975 = vset.pattern.permute.xlu0 0
      %2976 = vperm.xlu0 %2975, %v2498
      %v2977 = vpop.permute.xlu0 %2976
      %2980 = vset.pattern.permute.xlu0 0
      %2981 = vperm.xlu0 %2980, %v2499
      %v2982 = vpop.permute.xlu0 %2981
      %2985 = vset.pattern.permute.xlu0 0
      %2986 = vperm.xlu0 %2985, %v2500
      %v2987 = vpop.permute.xlu0 %2986
      %2990 = vset.pattern.permute.xlu0 0
      %2991 = vperm.xlu0 %2990, %v2501
      %v2992 = vpop.permute.xlu0 %2991
      %2995 = vset.pattern.permute.xlu0 0
      %2996 = vperm.xlu0 %2995, %v2502
      %v2997 = vpop.permute.xlu0 %2996
      %3000 = vset.pattern.permute.xlu0 0
      %3001 = vperm.xlu0 %3000, %v2503
      %v3002 = vpop.permute.xlu0 %3001
      %3005 = vset.pattern.permute.xlu0 0
      %3006 = vperm.xlu0 %3005, %v2504
      %v3007 = vpop.permute.xlu0 %3006
      %3010 = vset.pattern.permute.xlu0 0
      %3011 = vperm.xlu0 %3010, %v2505
      %v3012 = vpop.permute.xlu0 %3011
      %3015 = vset.pattern.permute.xlu0 0
      %3016 = vperm.xlu0 %3015, %v2506
      %v3017 = vpop.permute.xlu0 %3016
      %3020 = vset.pattern.permute.xlu0 0
      %3021 = vperm.xlu0 %3020, %v2507
      %v3022 = vpop.permute.xlu0 %3021
      %3025 = vset.pattern.permute.xlu0 0
      %3026 = vperm.xlu0 %3025, %v2508
      %v3027 = vpop.permute.xlu0 %3026
      %3030 = vset.pattern.permute.xlu0 0
      %3031 = vperm.xlu0 %3030, %v2509
      %v3032 = vpop.permute.xlu0 %3031
      %3035 = vset.pattern.permute.xlu0 0
      %3036 = vperm.xlu0 %3035, %v2510
      %v3037 = vpop.permute.xlu0 %3036
      %3040 = vset.pattern.permute.xlu0 0
      %3041 = vperm.xlu0 %3040, %v2511
      %v3042 = vpop.permute.xlu0 %3041
      %3045 = vset.pattern.permute.xlu0 0
      %3046 = vperm.xlu0 %3045, %v2512
      %v3047 = vpop.permute.xlu0 %3046
      %3050 = vset.pattern.permute.xlu0 0
      %3051 = vperm.xlu0 %3050, %v2513
      %v3052 = vpop.permute.xlu0 %3051
      %3055 = vset.pattern.permute.xlu0 0
      %3056 = vperm.xlu0 %3055, %v2514
      %v3057 = vpop.permute.xlu0 %3056
      %3060 = vset.pattern.permute.xlu0 0
      %3061 = vperm.xlu0 %3060, %v2515
      %v3062 = vpop.permute.xlu0 %3061
      %3065 = vset.pattern.permute.xlu0 0
      %3066 = vperm.xlu0 %3065, %v2516
      %v3067 = vpop.permute.xlu0 %3066
      %3070 = vset.pattern.permute.xlu0 0
      %3071 = vperm.xlu0 %3070, %v2517
      %v3072 = vpop.permute.xlu0 %3071
      %3075 = vset.pattern.permute.xlu0 0
      %3076 = vperm.xlu0 %3075, %v2518
      %v3077 = vpop.permute.xlu0 %3076
      %3080 = vset.pattern.permute.xlu0 0
      %3081 = vperm.xlu0 %3080, %v2519
      %v3082 = vpop.permute.xlu0 %3081
      %3085 = vset.pattern.permute.xlu0 0
      %3086 = vperm.xlu0 %3085, %v2520
      %v3087 = vpop.permute.xlu0 %3086
      %3090 = vset.pattern.permute.xlu0 0
      %3091 = vperm.xlu0 %3090, %v2521
      %v3092 = vpop.permute.xlu0 %3091
      %3095 = vset.pattern.permute.xlu0 0
      %3096 = vperm.xlu0 %3095, %v2522
      %v3097 = vpop.permute.xlu0 %3096
      %3100 = vset.pattern.permute.xlu0 0
      %3101 = vperm.xlu0 %3100, %v2523
      %v3102 = vpop.permute.xlu0 %3101
      %3105 = vset.pattern.permute.xlu0 0
      %3106 = vperm.xlu0 %3105, %v2524
      %v3107 = vpop.permute.xlu0 %3106
      %3110 = vset.pattern.permute.xlu0 0
      %3111 = vperm.xlu0 %3110, %v2525
      %v3112 = vpop.permute.xlu0 %3111
      %3115 = vset.pattern.permute.xlu0 0
      %3116 = vperm.xlu0 %3115, %v2526
      %v3117 = vpop.permute.xlu0 %3116
      %3120 = vset.pattern.permute.xlu0 0
      %3121 = vperm.xlu0 %3120, %v2527
      %v3122 = vpop.permute.xlu0 %3121
      %3125 = vset.pattern.permute.xlu0 0
      %3126 = vperm.xlu0 %3125, %v2528
      %v3127 = vpop.permute.xlu0 %3126
      %3130 = vset.pattern.permute.xlu0 0
      %3131 = vperm.xlu0 %3130, %v2529
      %v3132 = vpop.permute.xlu0 %3131
      %3135 = vset.pattern.permute.xlu0 0
      %3136 = vperm.xlu0 %3135, %v2530
      %v3137 = vpop.permute.xlu0 %3136
      %3140 = vset.pattern.permute.xlu0 0
      %3141 = vperm.xlu0 %3140, %v2531
      %v3142 = vpop.permute.xlu0 %3141
      %3145 = vset.pattern.permute.xlu0 0
      %3146 = vperm.xlu0 %3145, %v2532
      %v3147 = vpop.permute.xlu0 %3146
      %3150 = vset.pattern.permute.xlu0 0
      %3151 = vperm.xlu0 %3150, %v2533
      %v3152 = vpop.permute.xlu0 %3151
      %3155 = vset.pattern.permute.xlu0 0
      %3156 = vperm.xlu0 %3155, %v2534
      %v3157 = vpop.permute.xlu0 %3156
      %3160 = vset.pattern.permute.xlu0 0
      %3161 = vperm.xlu0 %3160, %v2535
      %v3162 = vpop.permute.xlu0 %3161
      %3165 = vset.pattern.permute.xlu0 0
      %3166 = vperm.xlu0 %3165, %v2536
      %v3167 = vpop.permute.xlu0 %3166
      %3170 = vset.pattern.permute.xlu0 0
      %3171 = vperm.xlu0 %3170, %v2537
      %v3172 = vpop.permute.xlu0 %3171
      %3175 = vset.pattern.permute.xlu0 0
      %3176 = vperm.xlu0 %3175, %v2538
      %v3177 = vpop.permute.xlu0 %3176
      %v3307 = vunpack.c.l.b16 %v2219
      %v3308 = vunpack.c.l.b16 %v2220
      %v3309 = vunpack.c.l.b16 %v2221
      %v3310 = vunpack.c.l.b16 %v2222
      %v3311 = vunpack.c.l.b16 %v2223
      %v3312 = vunpack.c.l.b16 %v2224
      %v3313 = vunpack.c.l.b16 %v2225
      %v3314 = vunpack.c.l.b16 %v2226
      %v3315 = vunpack.c.l.b16 %v2227
      %v3316 = vunpack.c.l.b16 %v2228
      %v3317 = vunpack.c.l.b16 %v2229
      %v3318 = vunpack.c.l.b16 %v2230
      %v3319 = vunpack.c.l.b16 %v2231
      %v3320 = vunpack.c.l.b16 %v2232
      %v3321 = vunpack.c.l.b16 %v2233
      %v3322 = vunpack.c.l.b16 %v2234
      %v3323 = vunpack.c.l.b16 %v2235
      %v3324 = vunpack.c.l.b16 %v2236
      %v3325 = vunpack.c.l.b16 %v2237
      %v3326 = vunpack.c.l.b16 %v2238
      %v3327 = vunpack.c.l.b16 %v2239
      %v3328 = vunpack.c.l.b16 %v2240
      %v3329 = vunpack.c.l.b16 %v2241
      %v3330 = vunpack.c.l.b16 %v2242
      %v3331 = vunpack.c.l.b16 %v2243
      %v3332 = vunpack.c.l.b16 %v2244
      %v3333 = vunpack.c.l.b16 %v2245
      %v3334 = vunpack.c.l.b16 %v2246
      %v3335 = vunpack.c.l.b16 %v2247
      %v3336 = vunpack.c.l.b16 %v2248
      %v3337 = vunpack.c.l.b16 %v2249
      %v3338 = vunpack.c.l.b16 %v2250
      %v3339 = vunpack.c.l.b16 %v2251
      %v3340 = vunpack.c.l.b16 %v2252
      %v3341 = vunpack.c.l.b16 %v2253
      %v3342 = vunpack.c.l.b16 %v2254
      %v3343 = vunpack.c.l.b16 %v2255
      %v3344 = vunpack.c.l.b16 %v2256
      %v3345 = vunpack.c.l.b16 %v2257
      %v3346 = vunpack.c.l.b16 %v2258
      %v3347 = vunpack.c.l.b16 %v2259
      %v3348 = vunpack.c.l.b16 %v2260
      %v3349 = vunpack.c.l.b16 %v2261
      %v3350 = vunpack.c.l.b16 %v2262
      %v3351 = vunpack.c.l.b16 %v2263
      %v3352 = vunpack.c.l.b16 %v2264
      %v3353 = vunpack.c.l.b16 %v2265
      %v3354 = vunpack.c.l.b16 %v2266
      %v3355 = vunpack.c.l.b16 %v2267
      %v3356 = vunpack.c.l.b16 %v2268
      %v3357 = vunpack.c.l.b16 %v2269
      %v3358 = vunpack.c.l.b16 %v2270
      %v3359 = vunpack.c.l.b16 %v2271
      %v3360 = vunpack.c.l.b16 %v2272
      %v3361 = vunpack.c.l.b16 %v2273
      %v3362 = vunpack.c.l.b16 %v2274
      %v3363 = vunpack.c.l.b16 %v2275
      %v3364 = vunpack.c.l.b16 %v2276
      %v3365 = vunpack.c.l.b16 %v2277
      %v3366 = vunpack.c.l.b16 %v2278
      %v3367 = vunpack.c.l.b16 %v2279
      %v3368 = vunpack.c.l.b16 %v2280
      %v3369 = vunpack.c.l.b16 %v2281
      %v3370 = vunpack.c.l.b16 %v2282
      %v3371 = vunpack.c.l.b16 %v2283
      %v3372 = vunpack.c.l.b16 %v2284
      %v3373 = vunpack.c.l.b16 %v2285
      %v3374 = vunpack.c.l.b16 %v2286
      %v3375 = vunpack.c.l.b16 %v2287
      %v3376 = vunpack.c.l.b16 %v2288
      %v3377 = vunpack.c.l.b16 %v2289
      %v3378 = vunpack.c.l.b16 %v2290
      %v3379 = vunpack.c.l.b16 %v2291
      %v3380 = vunpack.c.l.b16 %v2292
      %v3381 = vunpack.c.l.b16 %v2293
      %v3382 = vunpack.c.l.b16 %v2294
      %v3383 = vunpack.c.l.b16 %v2295
      %v3384 = vunpack.c.l.b16 %v2296
      %v3385 = vunpack.c.l.b16 %v2297
      %v3386 = vunpack.c.l.b16 %v2298
      %v3387 = vunpack.c.l.b16 %v2299
      %v3388 = vunpack.c.l.b16 %v2300
      %v3389 = vunpack.c.l.b16 %v2301
      %v3390 = vunpack.c.l.b16 %v2302
      %v3391 = vunpack.c.l.b16 %v2303
      %v3392 = vunpack.c.l.b16 %v2304
      %v3393 = vunpack.c.l.b16 %v2305
      %v3394 = vunpack.c.l.b16 %v2306
      %v3395 = vunpack.c.l.b16 %v2307
      %v3396 = vunpack.c.l.b16 %v2308
      %v3397 = vunpack.c.l.b16 %v2309
      %v3398 = vunpack.c.l.b16 %v2310
      %v3399 = vunpack.c.l.b16 %v2311
      %v3400 = vunpack.c.l.b16 %v2312
      %v3401 = vunpack.c.l.b16 %v2313
      %v3402 = vunpack.c.l.b16 %v2314
      %v3403 = vunpack.c.l.b16 %v2315
      %v3404 = vunpack.c.l.b16 %v2316
      %v3405 = vunpack.c.l.b16 %v2317
      %v3406 = vunpack.c.l.b16 %v2318
      %v3407 = vunpack.c.l.b16 %v2319
      %v3408 = vunpack.c.l.b16 %v2320
      %v3409 = vunpack.c.l.b16 %v2321
      %v3410 = vunpack.c.l.b16 %v2322
      %v3411 = vunpack.c.l.b16 %v2323
      %v3412 = vunpack.c.l.b16 %v2324
      %v3413 = vunpack.c.l.b16 %v2325
      %v3414 = vunpack.c.l.b16 %v2326
      %v3415 = vunpack.c.l.b16 %v2327
      %v3416 = vunpack.c.l.b16 %v2328
      %v3417 = vunpack.c.l.b16 %v2329
      %v3418 = vunpack.c.l.b16 %v2330
      %v3419 = vunpack.c.l.b16 %v2331
      %v3420 = vunpack.c.l.b16 %v2332
      %v3421 = vunpack.c.l.b16 %v2333
      %v3422 = vunpack.c.l.b16 %v2334
      %v3423 = vunpack.c.l.b16 %v2335
      %v3424 = vunpack.c.l.b16 %v2336
      %v3425 = vunpack.c.l.b16 %v2337
      %v3426 = vunpack.c.l.b16 %v2338
      %v3427 = vunpack.c.l.b16 %v2339
      %v3428 = vunpack.c.l.b16 %v2340
      %v3429 = vunpack.c.l.b16 %v2341
      %v3430 = vunpack.c.l.b16 %v2342
      %v3431 = vunpack.c.l.b16 %v2343
      %v3432 = vunpack.c.l.b16 %v2344
      %v3433 = vunpack.c.l.b16 %v2345
      %v3434 = vunpack.c.l.b16 %v2346
      %v3435 = vpack.c.b16 %v3308, %v3307
      %v3436 = vpack.c.b16 %v3310, %v3309
      %v3437 = vpack.c.b16 %v3312, %v3311
      %v3438 = vpack.c.b16 %v3314, %v3313
      %v3439 = vpack.c.b16 %v3316, %v3315
      %v3440 = vpack.c.b16 %v3318, %v3317
      %v3441 = vpack.c.b16 %v3320, %v3319
      %v3442 = vpack.c.b16 %v3322, %v3321
      %v3443 = vpack.c.b16 %v3324, %v3323
      %v3444 = vpack.c.b16 %v3326, %v3325
      %v3445 = vpack.c.b16 %v3328, %v3327
      %v3446 = vpack.c.b16 %v3330, %v3329
      %v3447 = vpack.c.b16 %v3332, %v3331
      %v3448 = vpack.c.b16 %v3334, %v3333
      %v3449 = vpack.c.b16 %v3336, %v3335
      %v3450 = vpack.c.b16 %v3338, %v3337
      %v3451 = vpack.c.b16 %v3340, %v3339
      %v3452 = vpack.c.b16 %v3342, %v3341
      %v3453 = vpack.c.b16 %v3344, %v3343
      %v3454 = vpack.c.b16 %v3346, %v3345
      %v3455 = vpack.c.b16 %v3348, %v3347
      %v3456 = vpack.c.b16 %v3350, %v3349
      %v3457 = vpack.c.b16 %v3352, %v3351
      %v3458 = vpack.c.b16 %v3354, %v3353
      %v3459 = vpack.c.b16 %v3356, %v3355
      %v3460 = vpack.c.b16 %v3358, %v3357
      %v3461 = vpack.c.b16 %v3360, %v3359
      %v3462 = vpack.c.b16 %v3362, %v3361
      %v3463 = vpack.c.b16 %v3364, %v3363
      %v3464 = vpack.c.b16 %v3366, %v3365
      %v3465 = vpack.c.b16 %v3368, %v3367
      %v3466 = vpack.c.b16 %v3370, %v3369
      %v3467 = vpack.c.b16 %v3372, %v3371
      %v3468 = vpack.c.b16 %v3374, %v3373
      %v3469 = vpack.c.b16 %v3376, %v3375
      %v3470 = vpack.c.b16 %v3378, %v3377
      %v3471 = vpack.c.b16 %v3380, %v3379
      %v3472 = vpack.c.b16 %v3382, %v3381
      %v3473 = vpack.c.b16 %v3384, %v3383
      %v3474 = vpack.c.b16 %v3386, %v3385
      %v3475 = vpack.c.b16 %v3388, %v3387
      %v3476 = vpack.c.b16 %v3390, %v3389
      %v3477 = vpack.c.b16 %v3392, %v3391
      %v3478 = vpack.c.b16 %v3394, %v3393
      %v3479 = vpack.c.b16 %v3396, %v3395
      %v3480 = vpack.c.b16 %v3398, %v3397
      %v3481 = vpack.c.b16 %v3400, %v3399
      %v3482 = vpack.c.b16 %v3402, %v3401
      %v3483 = vpack.c.b16 %v3404, %v3403
      %v3484 = vpack.c.b16 %v3406, %v3405
      %v3485 = vpack.c.b16 %v3408, %v3407
      %v3486 = vpack.c.b16 %v3410, %v3409
      %v3487 = vpack.c.b16 %v3412, %v3411
      %v3488 = vpack.c.b16 %v3414, %v3413
      %v3489 = vpack.c.b16 %v3416, %v3415
      %v3490 = vpack.c.b16 %v3418, %v3417
      %v3491 = vpack.c.b16 %v3420, %v3419
      %v3492 = vpack.c.b16 %v3422, %v3421
      %v3493 = vpack.c.b16 %v3424, %v3423
      %v3494 = vpack.c.b16 %v3426, %v3425
      %v3495 = vpack.c.b16 %v3428, %v3427
      %v3496 = vpack.c.b16 %v3430, %v3429
      %v3497 = vpack.c.b16 %v3432, %v3431
      %v3498 = vpack.c.b16 %v3434, %v3433
      %3563 = vmatprep.subr.bf16.mxu0 %v2404
      %3564 = vmatpush1.bf16.msra.mxu0 %v2403
      %3565 = vmatprep.subr.bf16.mxu0 %v2396
      %3566 = vmatpush1.bf16.msra.mxu0 %v2395
      %3567 = vmatprep.subr.bf16.mxu0 %v2388
      %3568 = vmatpush1.bf16.msra.mxu0 %v2387
      %3569 = vmatprep.subr.bf16.mxu0 %v2380
      %3570 = vmatpush1.bf16.msra.mxu0 %v2379
      %3571 = vmatprep.subr.bf16.mxu0 %v2372
      %3572 = vmatpush1.bf16.msra.mxu0 %v2371
      %3573 = vmatprep.subr.bf16.mxu0 %v2364
      %3574 = vmatpush1.bf16.msra.mxu0 %v2363
      %3575 = vmatprep.subr.bf16.mxu0 %v2356
      %3576 = vmatpush1.bf16.msra.mxu0 %v2355
      %3577 = vmatprep.subr.bf16.mxu0 %v2348
      %3578 = vmatpush1.bf16.msra.mxu0 %v2347
      %3579 = vmatprep.subr.bf16.mxu0 0
      %3580 = vmatpush2.bf16.msra.mxu0 0
      %3581 = vmatprep.subr.bf16.mxu0 0
      %3582 = vmatpush2.bf16.msra.mxu0 0
      %3583 = vmatprep.subr.bf16.mxu0 0
      %3584 = vmatpush2.bf16.msra.mxu0 0
      %3585 = vmatprep.subr.bf16.mxu0 0
      %3586 = vmatpush2.bf16.msra.mxu0 0
      %3587 = vmatprep.subr.bf16.mxu0 0
      %3588 = vmatpush2.bf16.msra.mxu0 0
      %3589 = vmatprep.subr.bf16.mxu0 0
      %3590 = vmatpush2.bf16.msra.mxu0 0
      %3591 = vmatprep.subr.bf16.mxu0 0
      %3592 = vmatpush2.bf16.msra.mxu0 0
      %3593 = vmatprep.subr.bf16.mxu0 0
      %3594 = vmatpush2.bf16.msra.mxu0 0
      %3595 = vmatprep.mubr.bf16.mxu0 0
      %3596 = vmatmul.mubr.bf16.gmra.mxu0 %v3435
      %v3597 = vpop.f32.mrf.mxu0
      %v3598 = vadd.f32 %v2542, %v3597
      %v3599 = vpop.f32.mrf.mxu0
      %v3600 = vadd.f32 %v2542, %v3599
      %v3601 = vpop.f32.mrf.mxu0
      %v3602 = vadd.f32 %v2547, %v3601
      %v3603 = vpop.f32.mrf.mxu0
      %v3604 = vadd.f32 %v2547, %v3603
      %3605 = vmatprep.mubr.bf16.mxu0 0
      %3606 = vmatmul.mubr.bf16.gmra.mxu0 %v3436
      %v3607 = vpop.f32.mrf.mxu0
      %v3608 = vadd.f32 %v2552, %v3607
      %v3609 = vpop.f32.mrf.mxu0
      %v3610 = vadd.f32 %v2552, %v3609
      %v3611 = vpop.f32.mrf.mxu0
      %v3612 = vadd.f32 %v2557, %v3611
      %v3613 = vpop.f32.mrf.mxu0
      %v3614 = vadd.f32 %v2557, %v3613
      %3615 = vmatprep.mubr.bf16.mxu0 0
      %3616 = vmatmul.mubr.bf16.gmra.mxu0 %v3437
      %v3617 = vpop.f32.mrf.mxu0
      %v3618 = vadd.f32 %v2562, %v3617
      %v3619 = vpop.f32.mrf.mxu0
      %v3620 = vadd.f32 %v2562, %v3619
      %v3621 = vpop.f32.mrf.mxu0
      %v3622 = vadd.f32 %v2567, %v3621
      %v3623 = vpop.f32.mrf.mxu0
      %v3624 = vadd.f32 %v2567, %v3623
      %3625 = vmatprep.mubr.bf16.mxu0 0
      %3626 = vmatmul.mubr.bf16.gmra.mxu0 %v3438
      %v3627 = vpop.f32.mrf.mxu0
      %v3628 = vadd.f32 %v2572, %v3627
      %v3629 = vpop.f32.mrf.mxu0
      %v3630 = vadd.f32 %v2572, %v3629
      %v3631 = vpop.f32.mrf.mxu0
      %v3632 = vadd.f32 %v2577, %v3631
      %v3633 = vpop.f32.mrf.mxu0
      %v3634 = vadd.f32 %v2577, %v3633
      %3635 = vmatprep.mubr.bf16.mxu0 0
      %3636 = vmatmul.mubr.bf16.gmra.mxu0 %v3439
      %v3637 = vpop.f32.mrf.mxu0
      %v3638 = vadd.f32 %v2582, %v3637
      %v3639 = vpop.f32.mrf.mxu0
      %v3640 = vadd.f32 %v2582, %v3639
      %v3641 = vpop.f32.mrf.mxu0
      %v3642 = vadd.f32 %v2587, %v3641
      %v3643 = vpop.f32.mrf.mxu0
      %v3644 = vadd.f32 %v2587, %v3643
      %3645 = vmatprep.mubr.bf16.mxu0 0
      %3646 = vmatmul.mubr.bf16.gmra.mxu0 %v3440
      %v3647 = vpop.f32.mrf.mxu0
      %v3648 = vadd.f32 %v2592, %v3647
      %v3649 = vpop.f32.mrf.mxu0
      %v3650 = vadd.f32 %v2592, %v3649
      %v3651 = vpop.f32.mrf.mxu0
      %v3652 = vadd.f32 %v2597, %v3651
      %v3653 = vpop.f32.mrf.mxu0
      %v3654 = vadd.f32 %v2597, %v3653
      %3655 = vmatprep.mubr.bf16.mxu0 0
      %3656 = vmatmul.mubr.bf16.gmra.mxu0 %v3441
      %v3657 = vpop.f32.mrf.mxu0
      %v3658 = vadd.f32 %v2602, %v3657
      %v3659 = vpop.f32.mrf.mxu0
      %v3660 = vadd.f32 %v2602, %v3659
      %v3661 = vpop.f32.mrf.mxu0
      %v3662 = vadd.f32 %v2607, %v3661
      %v3663 = vpop.f32.mrf.mxu0
      %v3664 = vadd.f32 %v2607, %v3663
      %3665 = vmatprep.mubr.bf16.mxu0 0
      %3666 = vmatmul.mubr.bf16.gmra.mxu0 %v3442
      %v3667 = vpop.f32.mrf.mxu0
      %v3668 = vadd.f32 %v2612, %v3667
      %v3669 = vpop.f32.mrf.mxu0
      %v3670 = vadd.f32 %v2612, %v3669
      %v3671 = vpop.f32.mrf.mxu0
      %v3672 = vadd.f32 %v2617, %v3671
      %v3673 = vpop.f32.mrf.mxu0
      %v3674 = vadd.f32 %v2617, %v3673
      %3675 = vmatprep.mubr.bf16.mxu0 0
      %3676 = vmatmul.mubr.bf16.gmra.mxu0 %v3443
      %v3677 = vpop.f32.mrf.mxu0
      %v3678 = vadd.f32 %v2622, %v3677
      %v3679 = vpop.f32.mrf.mxu0
      %v3680 = vadd.f32 %v2622, %v3679
      %v3681 = vpop.f32.mrf.mxu0
      %v3682 = vadd.f32 %v2627, %v3681
      %v3683 = vpop.f32.mrf.mxu0
      %v3684 = vadd.f32 %v2627, %v3683
      %3685 = vmatprep.mubr.bf16.mxu0 0
      %3686 = vmatmul.mubr.bf16.gmra.mxu0 %v3444
      %v3687 = vpop.f32.mrf.mxu0
      %v3688 = vadd.f32 %v2632, %v3687
      %v3689 = vpop.f32.mrf.mxu0
      %v3690 = vadd.f32 %v2632, %v3689
      %v3691 = vpop.f32.mrf.mxu0
      %v3692 = vadd.f32 %v2637, %v3691
      %v3693 = vpop.f32.mrf.mxu0
      %v3694 = vadd.f32 %v2637, %v3693
      %3695 = vmatprep.mubr.bf16.mxu0 0
      %3696 = vmatmul.mubr.bf16.gmra.mxu0 %v3445
      %v3697 = vpop.f32.mrf.mxu0
      %v3698 = vadd.f32 %v2642, %v3697
      %v3699 = vpop.f32.mrf.mxu0
      %v3700 = vadd.f32 %v2642, %v3699
      %v3701 = vpop.f32.mrf.mxu0
      %v3702 = vadd.f32 %v2647, %v3701
      %v3703 = vpop.f32.mrf.mxu0
      %v3704 = vadd.f32 %v2647, %v3703
      %3705 = vmatprep.mubr.bf16.mxu0 0
      %3706 = vmatmul.mubr.bf16.gmra.mxu0 %v3446
      %v3707 = vpop.f32.mrf.mxu0
      %v3708 = vadd.f32 %v2652, %v3707
      %v3709 = vpop.f32.mrf.mxu0
      %v3710 = vadd.f32 %v2652, %v3709
      %v3711 = vpop.f32.mrf.mxu0
      %v3712 = vadd.f32 %v2657, %v3711
      %v3713 = vpop.f32.mrf.mxu0
      %v3714 = vadd.f32 %v2657, %v3713
      %3715 = vmatprep.mubr.bf16.mxu0 0
      %3716 = vmatmul.mubr.bf16.gmra.mxu0 %v3447
      %v3717 = vpop.f32.mrf.mxu0
      %v3718 = vadd.f32 %v2662, %v3717
      %v3719 = vpop.f32.mrf.mxu0
      %v3720 = vadd.f32 %v2662, %v3719
      %v3721 = vpop.f32.mrf.mxu0
      %v3722 = vadd.f32 %v2667, %v3721
      %v3723 = vpop.f32.mrf.mxu0
      %v3724 = vadd.f32 %v2667, %v3723
      %3725 = vmatprep.mubr.bf16.mxu0 0
      %3726 = vmatmul.mubr.bf16.gmra.mxu0 %v3448
      %v3727 = vpop.f32.mrf.mxu0
      %v3728 = vadd.f32 %v2672, %v3727
      %v3729 = vpop.f32.mrf.mxu0
      %v3730 = vadd.f32 %v2672, %v3729
      %v3731 = vpop.f32.mrf.mxu0
      %v3732 = vadd.f32 %v2677, %v3731
      %v3733 = vpop.f32.mrf.mxu0
      %v3734 = vadd.f32 %v2677, %v3733
      %3735 = vmatprep.mubr.bf16.mxu0 0
      %3736 = vmatmul.mubr.bf16.gmra.mxu0 %v3449
      %v3737 = vpop.f32.mrf.mxu0
      %v3738 = vadd.f32 %v2682, %v3737
      %v3739 = vpop.f32.mrf.mxu0
      %v3740 = vadd.f32 %v2682, %v3739
      %v3741 = vpop.f32.mrf.mxu0
      %v3742 = vadd.f32 %v2687, %v3741
      %v3743 = vpop.f32.mrf.mxu0
      %v3744 = vadd.f32 %v2687, %v3743
      %3745 = vmatprep.mubr.bf16.mxu0 0
      %3746 = vmatmul.mubr.bf16.gmra.mxu0 %v3450
      %v3747 = vpop.f32.mrf.mxu0
      %v3748 = vadd.f32 %v2692, %v3747
      %v3749 = vpop.f32.mrf.mxu0
      %v3750 = vadd.f32 %v2692, %v3749
      %v3751 = vpop.f32.mrf.mxu0
      %v3752 = vadd.f32 %v2697, %v3751
      %v3753 = vpop.f32.mrf.mxu0
      %v3754 = vadd.f32 %v2697, %v3753
      %3755 = vmatprep.mubr.bf16.mxu0 0
      %3756 = vmatmul.mubr.bf16.gmra.mxu0 %v3451
      %v3757 = vpop.f32.mrf.mxu0
      %v3758 = vadd.f32 %v2702, %v3757
      %v3759 = vpop.f32.mrf.mxu0
      %v3760 = vadd.f32 %v2702, %v3759
      %v3761 = vpop.f32.mrf.mxu0
      %v3762 = vadd.f32 %v2707, %v3761
      %v3763 = vpop.f32.mrf.mxu0
      %v3764 = vadd.f32 %v2707, %v3763
      %3765 = vmatprep.mubr.bf16.mxu0 0
      %3766 = vmatmul.mubr.bf16.gmra.mxu0 %v3452
      %v3767 = vpop.f32.mrf.mxu0
      %v3768 = vadd.f32 %v2712, %v3767
      %v3769 = vpop.f32.mrf.mxu0
      %v3770 = vadd.f32 %v2712, %v3769
      %v3771 = vpop.f32.mrf.mxu0
      %v3772 = vadd.f32 %v2717, %v3771
      %v3773 = vpop.f32.mrf.mxu0
      %v3774 = vadd.f32 %v2717, %v3773
      %3775 = vmatprep.mubr.bf16.mxu0 0
      %3776 = vmatmul.mubr.bf16.gmra.mxu0 %v3453
      %v3777 = vpop.f32.mrf.mxu0
      %v3778 = vadd.f32 %v2722, %v3777
      %v3779 = vpop.f32.mrf.mxu0
      %v3780 = vadd.f32 %v2722, %v3779
      %v3781 = vpop.f32.mrf.mxu0
      %v3782 = vadd.f32 %v2727, %v3781
      %v3783 = vpop.f32.mrf.mxu0
      %v3784 = vadd.f32 %v2727, %v3783
      %3785 = vmatprep.mubr.bf16.mxu0 0
      %3786 = vmatmul.mubr.bf16.gmra.mxu0 %v3454
      %v3787 = vpop.f32.mrf.mxu0
      %v3788 = vadd.f32 %v2732, %v3787
      %v3789 = vpop.f32.mrf.mxu0
      %v3790 = vadd.f32 %v2732, %v3789
      %v3791 = vpop.f32.mrf.mxu0
      %v3792 = vadd.f32 %v2737, %v3791
      %v3793 = vpop.f32.mrf.mxu0
      %v3794 = vadd.f32 %v2737, %v3793
      %3795 = vmatprep.mubr.bf16.mxu0 0
      %3796 = vmatmul.mubr.bf16.gmra.mxu0 %v3455
      %v3797 = vpop.f32.mrf.mxu0
      %v3798 = vadd.f32 %v2742, %v3797
      %v3799 = vpop.f32.mrf.mxu0
      %v3800 = vadd.f32 %v2742, %v3799
      %v3801 = vpop.f32.mrf.mxu0
      %v3802 = vadd.f32 %v2747, %v3801
      %v3803 = vpop.f32.mrf.mxu0
      %v3804 = vadd.f32 %v2747, %v3803
      %3805 = vmatprep.mubr.bf16.mxu0 0
      %3806 = vmatmul.mubr.bf16.gmra.mxu0 %v3456
      %v3807 = vpop.f32.mrf.mxu0
      %v3808 = vadd.f32 %v2752, %v3807
      %v3809 = vpop.f32.mrf.mxu0
      %v3810 = vadd.f32 %v2752, %v3809
      %v3811 = vpop.f32.mrf.mxu0
      %v3812 = vadd.f32 %v2757, %v3811
      %v3813 = vpop.f32.mrf.mxu0
      %v3814 = vadd.f32 %v2757, %v3813
      %3815 = vmatprep.mubr.bf16.mxu0 0
      %3816 = vmatmul.mubr.bf16.gmra.mxu0 %v3457
      %v3817 = vpop.f32.mrf.mxu0
      %v3818 = vadd.f32 %v2762, %v3817
      %v3819 = vpop.f32.mrf.mxu0
      %v3820 = vadd.f32 %v2762, %v3819
      %v3821 = vpop.f32.mrf.mxu0
      %v3822 = vadd.f32 %v2767, %v3821
      %v3823 = vpop.f32.mrf.mxu0
      %v3824 = vadd.f32 %v2767, %v3823
      %3825 = vmatprep.mubr.bf16.mxu0 0
      %3826 = vmatmul.mubr.bf16.gmra.mxu0 %v3458
      %v3827 = vpop.f32.mrf.mxu0
      %v3828 = vadd.f32 %v2772, %v3827
      %v3829 = vpop.f32.mrf.mxu0
      %v3830 = vadd.f32 %v2772, %v3829
      %v3831 = vpop.f32.mrf.mxu0
      %v3832 = vadd.f32 %v2777, %v3831
      %v3833 = vpop.f32.mrf.mxu0
      %v3834 = vadd.f32 %v2777, %v3833
      %3835 = vmatprep.mubr.bf16.mxu0 0
      %3836 = vmatmul.mubr.bf16.gmra.mxu0 %v3459
      %v3837 = vpop.f32.mrf.mxu0
      %v3838 = vadd.f32 %v2782, %v3837
      %v3839 = vpop.f32.mrf.mxu0
      %v3840 = vadd.f32 %v2782, %v3839
      %v3841 = vpop.f32.mrf.mxu0
      %v3842 = vadd.f32 %v2787, %v3841
      %v3843 = vpop.f32.mrf.mxu0
      %v3844 = vadd.f32 %v2787, %v3843
      %3845 = vmatprep.mubr.bf16.mxu0 0
      %3846 = vmatmul.mubr.bf16.gmra.mxu0 %v3460
      %v3847 = vpop.f32.mrf.mxu0
      %v3848 = vadd.f32 %v2792, %v3847
      %v3849 = vpop.f32.mrf.mxu0
      %v3850 = vadd.f32 %v2792, %v3849
      %v3851 = vpop.f32.mrf.mxu0
      %v3852 = vadd.f32 %v2797, %v3851
      %v3853 = vpop.f32.mrf.mxu0
      %v3854 = vadd.f32 %v2797, %v3853
      %3855 = vmatprep.mubr.bf16.mxu0 0
      %3856 = vmatmul.mubr.bf16.gmra.mxu0 %v3461
      %v3857 = vpop.f32.mrf.mxu0
      %v3858 = vadd.f32 %v2802, %v3857
      %v3859 = vpop.f32.mrf.mxu0
      %v3860 = vadd.f32 %v2802, %v3859
      %v3861 = vpop.f32.mrf.mxu0
      %v3862 = vadd.f32 %v2807, %v3861
      %v3863 = vpop.f32.mrf.mxu0
      %v3864 = vadd.f32 %v2807, %v3863
      %3865 = vmatprep.mubr.bf16.mxu0 0
      %3866 = vmatmul.mubr.bf16.gmra.mxu0 %v3462
      %v3867 = vpop.f32.mrf.mxu0
      %v3868 = vadd.f32 %v2812, %v3867
      %v3869 = vpop.f32.mrf.mxu0
      %v3870 = vadd.f32 %v2812, %v3869
      %v3871 = vpop.f32.mrf.mxu0
      %v3872 = vadd.f32 %v2817, %v3871
      %v3873 = vpop.f32.mrf.mxu0
      %v3874 = vadd.f32 %v2817, %v3873
      %3875 = vmatprep.mubr.bf16.mxu0 0
      %3876 = vmatmul.mubr.bf16.gmra.mxu0 %v3463
      %v3877 = vpop.f32.mrf.mxu0
      %v3878 = vadd.f32 %v2822, %v3877
      %v3879 = vpop.f32.mrf.mxu0
      %v3880 = vadd.f32 %v2822, %v3879
      %v3881 = vpop.f32.mrf.mxu0
      %v3882 = vadd.f32 %v2827, %v3881
      %v3883 = vpop.f32.mrf.mxu0
      %v3884 = vadd.f32 %v2827, %v3883
      %3885 = vmatprep.mubr.bf16.mxu0 0
      %3886 = vmatmul.mubr.bf16.gmra.mxu0 %v3464
      %v3887 = vpop.f32.mrf.mxu0
      %v3888 = vadd.f32 %v2832, %v3887
      %v3889 = vpop.f32.mrf.mxu0
      %v3890 = vadd.f32 %v2832, %v3889
      %v3891 = vpop.f32.mrf.mxu0
      %v3892 = vadd.f32 %v2837, %v3891
      %v3893 = vpop.f32.mrf.mxu0
      %v3894 = vadd.f32 %v2837, %v3893
      %3895 = vmatprep.mubr.bf16.mxu0 0
      %3896 = vmatmul.mubr.bf16.gmra.mxu0 %v3465
      %v3897 = vpop.f32.mrf.mxu0
      %v3898 = vadd.f32 %v2842, %v3897
      %v3899 = vpop.f32.mrf.mxu0
      %v3900 = vadd.f32 %v2842, %v3899
      %v3901 = vpop.f32.mrf.mxu0
      %v3902 = vadd.f32 %v2847, %v3901
      %v3903 = vpop.f32.mrf.mxu0
      %v3904 = vadd.f32 %v2847, %v3903
      %3905 = vmatprep.mubr.bf16.mxu0 0
      %3906 = vmatmul.mubr.bf16.gmra.mxu0 %v3466
      %v3907 = vpop.f32.mrf.mxu0
      %v3908 = vadd.f32 %v2852, %v3907
      %v3909 = vpop.f32.mrf.mxu0
      %v3910 = vadd.f32 %v2852, %v3909
      %v3911 = vpop.f32.mrf.mxu0
      %v3912 = vadd.f32 %v2857, %v3911
      %v3913 = vpop.f32.mrf.mxu0
      %v3914 = vadd.f32 %v2857, %v3913
      %3915 = vmatprep.mubr.bf16.mxu0 0
      %3916 = vmatmul.mubr.bf16.gmra.mxu0 %v3467
      %v3917 = vpop.f32.mrf.mxu0
      %v3918 = vadd.f32 %v2862, %v3917
      %v3919 = vpop.f32.mrf.mxu0
      %v3920 = vadd.f32 %v2862, %v3919
      %v3921 = vpop.f32.mrf.mxu0
      %v3922 = vadd.f32 %v2867, %v3921
      %v3923 = vpop.f32.mrf.mxu0
      %v3924 = vadd.f32 %v2867, %v3923
      %3925 = vmatprep.mubr.bf16.mxu0 0
      %3926 = vmatmul.mubr.bf16.gmra.mxu0 %v3468
      %v3927 = vpop.f32.mrf.mxu0
      %v3928 = vadd.f32 %v2872, %v3927
      %v3929 = vpop.f32.mrf.mxu0
      %v3930 = vadd.f32 %v2872, %v3929
      %v3931 = vpop.f32.mrf.mxu0
      %v3932 = vadd.f32 %v2877, %v3931
      %v3933 = vpop.f32.mrf.mxu0
      %v3934 = vadd.f32 %v2877, %v3933
      %3935 = vmatprep.mubr.bf16.mxu0 0
      %3936 = vmatmul.mubr.bf16.gmra.mxu0 %v3469
      %v3937 = vpop.f32.mrf.mxu0
      %v3938 = vadd.f32 %v2882, %v3937
      %v3939 = vpop.f32.mrf.mxu0
      %v3940 = vadd.f32 %v2882, %v3939
      %v3941 = vpop.f32.mrf.mxu0
      %v3942 = vadd.f32 %v2887, %v3941
      %v3943 = vpop.f32.mrf.mxu0
      %v3944 = vadd.f32 %v2887, %v3943
      %3945 = vmatprep.mubr.bf16.mxu0 0
      %3946 = vmatmul.mubr.bf16.gmra.mxu0 %v3470
      %v3947 = vpop.f32.mrf.mxu0
      %v3948 = vadd.f32 %v2892, %v3947
      %v3949 = vpop.f32.mrf.mxu0
      %v3950 = vadd.f32 %v2892, %v3949
      %v3951 = vpop.f32.mrf.mxu0
      %v3952 = vadd.f32 %v2897, %v3951
      %v3953 = vpop.f32.mrf.mxu0
      %v3954 = vadd.f32 %v2897, %v3953
      %3955 = vmatprep.mubr.bf16.mxu0 0
      %3956 = vmatmul.mubr.bf16.gmra.mxu0 %v3471
      %v3957 = vpop.f32.mrf.mxu0
      %v3958 = vadd.f32 %v2902, %v3957
      %v3959 = vpop.f32.mrf.mxu0
      %v3960 = vadd.f32 %v2902, %v3959
      %v3961 = vpop.f32.mrf.mxu0
      %v3962 = vadd.f32 %v2907, %v3961
      %v3963 = vpop.f32.mrf.mxu0
      %v3964 = vadd.f32 %v2907, %v3963
      %3965 = vmatprep.mubr.bf16.mxu0 0
      %3966 = vmatmul.mubr.bf16.gmra.mxu0 %v3472
      %v3967 = vpop.f32.mrf.mxu0
      %v3968 = vadd.f32 %v2912, %v3967
      %v3969 = vpop.f32.mrf.mxu0
      %v3970 = vadd.f32 %v2912, %v3969
      %v3971 = vpop.f32.mrf.mxu0
      %v3972 = vadd.f32 %v2917, %v3971
      %v3973 = vpop.f32.mrf.mxu0
      %v3974 = vadd.f32 %v2917, %v3973
      %3975 = vmatprep.mubr.bf16.mxu0 0
      %3976 = vmatmul.mubr.bf16.gmra.mxu0 %v3473
      %v3977 = vpop.f32.mrf.mxu0
      %v3978 = vadd.f32 %v2922, %v3977
      %v3979 = vpop.f32.mrf.mxu0
      %v3980 = vadd.f32 %v2922, %v3979
      %v3981 = vpop.f32.mrf.mxu0
      %v3982 = vadd.f32 %v2927, %v3981
      %v3983 = vpop.f32.mrf.mxu0
      %v3984 = vadd.f32 %v2927, %v3983
      %3985 = vmatprep.mubr.bf16.mxu0 0
      %3986 = vmatmul.mubr.bf16.gmra.mxu0 %v3474
      %v3987 = vpop.f32.mrf.mxu0
      %v3988 = vadd.f32 %v2932, %v3987
      %v3989 = vpop.f32.mrf.mxu0
      %v3990 = vadd.f32 %v2932, %v3989
      %v3991 = vpop.f32.mrf.mxu0
      %v3992 = vadd.f32 %v2937, %v3991
      %v3993 = vpop.f32.mrf.mxu0
      %v3994 = vadd.f32 %v2937, %v3993
      %3995 = vmatprep.mubr.bf16.mxu0 0
      %3996 = vmatmul.mubr.bf16.gmra.mxu0 %v3475
      %v3997 = vpop.f32.mrf.mxu0
      %v3998 = vadd.f32 %v2942, %v3997
      %v3999 = vpop.f32.mrf.mxu0
      %v4000 = vadd.f32 %v2942, %v3999
      %v4001 = vpop.f32.mrf.mxu0
      %v4002 = vadd.f32 %v2947, %v4001
      %v4003 = vpop.f32.mrf.mxu0
      %v4004 = vadd.f32 %v2947, %v4003
      %4005 = vmatprep.mubr.bf16.mxu0 0
      %4006 = vmatmul.mubr.bf16.gmra.mxu0 %v3476
      %v4007 = vpop.f32.mrf.mxu0
      %v4008 = vadd.f32 %v2952, %v4007
      %v4009 = vpop.f32.mrf.mxu0
      %v4010 = vadd.f32 %v2952, %v4009
      %v4011 = vpop.f32.mrf.mxu0
      %v4012 = vadd.f32 %v2957, %v4011
      %v4013 = vpop.f32.mrf.mxu0
      %v4014 = vadd.f32 %v2957, %v4013
      %4015 = vmatprep.mubr.bf16.mxu0 0
      %4016 = vmatmul.mubr.bf16.gmra.mxu0 %v3477
      %v4017 = vpop.f32.mrf.mxu0
      %v4018 = vadd.f32 %v2962, %v4017
      %v4019 = vpop.f32.mrf.mxu0
      %v4020 = vadd.f32 %v2962, %v4019
      %v4021 = vpop.f32.mrf.mxu0
      %v4022 = vadd.f32 %v2967, %v4021
      %v4023 = vpop.f32.mrf.mxu0
      %v4024 = vadd.f32 %v2967, %v4023
      %4025 = vmatprep.mubr.bf16.mxu0 0
      %4026 = vmatmul.mubr.bf16.gmra.mxu0 %v3478
      %v4027 = vpop.f32.mrf.mxu0
      %v4028 = vadd.f32 %v2972, %v4027
      %v4029 = vpop.f32.mrf.mxu0
      %v4030 = vadd.f32 %v2972, %v4029
      %v4031 = vpop.f32.mrf.mxu0
      %v4032 = vadd.f32 %v2977, %v4031
      %v4033 = vpop.f32.mrf.mxu0
      %v4034 = vadd.f32 %v2977, %v4033
      %4035 = vmatprep.mubr.bf16.mxu0 0
      %4036 = vmatmul.mubr.bf16.gmra.mxu0 %v3479
      %v4037 = vpop.f32.mrf.mxu0
      %v4038 = vadd.f32 %v2982, %v4037
      %v4039 = vpop.f32.mrf.mxu0
      %v4040 = vadd.f32 %v2982, %v4039
      %v4041 = vpop.f32.mrf.mxu0
      %v4042 = vadd.f32 %v2987, %v4041
      %v4043 = vpop.f32.mrf.mxu0
      %v4044 = vadd.f32 %v2987, %v4043
      %4045 = vmatprep.mubr.bf16.mxu0 0
      %4046 = vmatmul.mubr.bf16.gmra.mxu0 %v3480
      %v4047 = vpop.f32.mrf.mxu0
      %v4048 = vadd.f32 %v2992, %v4047
      %v4049 = vpop.f32.mrf.mxu0
      %v4050 = vadd.f32 %v2992, %v4049
      %v4051 = vpop.f32.mrf.mxu0
      %v4052 = vadd.f32 %v2997, %v4051
      %v4053 = vpop.f32.mrf.mxu0
      %v4054 = vadd.f32 %v2997, %v4053
      %4055 = vmatprep.mubr.bf16.mxu0 0
      %4056 = vmatmul.mubr.bf16.gmra.mxu0 %v3481
      %v4057 = vpop.f32.mrf.mxu0
      %v4058 = vadd.f32 %v3002, %v4057
      %v4059 = vpop.f32.mrf.mxu0
      %v4060 = vadd.f32 %v3002, %v4059
      %v4061 = vpop.f32.mrf.mxu0
      %v4062 = vadd.f32 %v3007, %v4061
      %v4063 = vpop.f32.mrf.mxu0
      %v4064 = vadd.f32 %v3007, %v4063
      %4065 = vmatprep.mubr.bf16.mxu0 0
      %4066 = vmatmul.mubr.bf16.gmra.mxu0 %v3482
      %v4067 = vpop.f32.mrf.mxu0
      %v4068 = vadd.f32 %v3012, %v4067
      %v4069 = vpop.f32.mrf.mxu0
      %v4070 = vadd.f32 %v3012, %v4069
      %v4071 = vpop.f32.mrf.mxu0
      %v4072 = vadd.f32 %v3017, %v4071
      %v4073 = vpop.f32.mrf.mxu0
      %v4074 = vadd.f32 %v3017, %v4073
      %4075 = vmatprep.mubr.bf16.mxu0 0
      %4076 = vmatmul.mubr.bf16.gmra.mxu0 %v3483
      %v4077 = vpop.f32.mrf.mxu0
      %v4078 = vadd.f32 %v3022, %v4077
      %v4079 = vpop.f32.mrf.mxu0
      %v4080 = vadd.f32 %v3022, %v4079
      %v4081 = vpop.f32.mrf.mxu0
      %v4082 = vadd.f32 %v3027, %v4081
      %v4083 = vpop.f32.mrf.mxu0
      %v4084 = vadd.f32 %v3027, %v4083
      %4085 = vmatprep.mubr.bf16.mxu0 0
      %4086 = vmatmul.mubr.bf16.gmra.mxu0 %v3484
      %v4087 = vpop.f32.mrf.mxu0
      %v4088 = vadd.f32 %v3032, %v4087
      %v4089 = vpop.f32.mrf.mxu0
      %v4090 = vadd.f32 %v3032, %v4089
      %v4091 = vpop.f32.mrf.mxu0
      %v4092 = vadd.f32 %v3037, %v4091
      %v4093 = vpop.f32.mrf.mxu0
      %v4094 = vadd.f32 %v3037, %v4093
      %4095 = vmatprep.mubr.bf16.mxu0 0
      %4096 = vmatmul.mubr.bf16.gmra.mxu0 %v3485
      %v4097 = vpop.f32.mrf.mxu0
      %v4098 = vadd.f32 %v3042, %v4097
      %v4099 = vpop.f32.mrf.mxu0
      %v4100 = vadd.f32 %v3042, %v4099
      %v4101 = vpop.f32.mrf.mxu0
      %v4102 = vadd.f32 %v3047, %v4101
      %v4103 = vpop.f32.mrf.mxu0
      %v4104 = vadd.f32 %v3047, %v4103
      %4105 = vmatprep.mubr.bf16.mxu0 0
      %4106 = vmatmul.mubr.bf16.gmra.mxu0 %v3486
      %v4107 = vpop.f32.mrf.mxu0
      %v4108 = vadd.f32 %v3052, %v4107
      %v4109 = vpop.f32.mrf.mxu0
      %v4110 = vadd.f32 %v3052, %v4109
      %v4111 = vpop.f32.mrf.mxu0
      %v4112 = vadd.f32 %v3057, %v4111
      %v4113 = vpop.f32.mrf.mxu0
      %v4114 = vadd.f32 %v3057, %v4113
      %4115 = vmatprep.mubr.bf16.mxu0 0
      %4116 = vmatmul.mubr.bf16.gmra.mxu0 %v3487
      %v4117 = vpop.f32.mrf.mxu0
      %v4118 = vadd.f32 %v3062, %v4117
      %v4119 = vpop.f32.mrf.mxu0
      %v4120 = vadd.f32 %v3062, %v4119
      %v4121 = vpop.f32.mrf.mxu0
      %v4122 = vadd.f32 %v3067, %v4121
      %v4123 = vpop.f32.mrf.mxu0
      %v4124 = vadd.f32 %v3067, %v4123
      %4125 = vmatprep.mubr.bf16.mxu0 0
      %4126 = vmatmul.mubr.bf16.gmra.mxu0 %v3488
      %v4127 = vpop.f32.mrf.mxu0
      %v4128 = vadd.f32 %v3072, %v4127
      %v4129 = vpop.f32.mrf.mxu0
      %v4130 = vadd.f32 %v3072, %v4129
      %v4131 = vpop.f32.mrf.mxu0
      %v4132 = vadd.f32 %v3077, %v4131
      %v4133 = vpop.f32.mrf.mxu0
      %v4134 = vadd.f32 %v3077, %v4133
      %4135 = vmatprep.mubr.bf16.mxu0 0
      %4136 = vmatmul.mubr.bf16.gmra.mxu0 %v3489
      %v4137 = vpop.f32.mrf.mxu0
      %v4138 = vadd.f32 %v3082, %v4137
      %v4139 = vpop.f32.mrf.mxu0
      %v4140 = vadd.f32 %v3082, %v4139
      %v4141 = vpop.f32.mrf.mxu0
      %v4142 = vadd.f32 %v3087, %v4141
      %v4143 = vpop.f32.mrf.mxu0
      %v4144 = vadd.f32 %v3087, %v4143
      %4145 = vmatprep.mubr.bf16.mxu0 0
      %4146 = vmatmul.mubr.bf16.gmra.mxu0 %v3490
      %v4147 = vpop.f32.mrf.mxu0
      %v4148 = vadd.f32 %v3092, %v4147
      %v4149 = vpop.f32.mrf.mxu0
      %v4150 = vadd.f32 %v3092, %v4149
      %v4151 = vpop.f32.mrf.mxu0
      %v4152 = vadd.f32 %v3097, %v4151
      %v4153 = vpop.f32.mrf.mxu0
      %v4154 = vadd.f32 %v3097, %v4153
      %4155 = vmatprep.mubr.bf16.mxu0 0
      %4156 = vmatmul.mubr.bf16.gmra.mxu0 %v3491
      %v4157 = vpop.f32.mrf.mxu0
      %v4158 = vadd.f32 %v3102, %v4157
      %v4159 = vpop.f32.mrf.mxu0
      %v4160 = vadd.f32 %v3102, %v4159
      %v4161 = vpop.f32.mrf.mxu0
      %v4162 = vadd.f32 %v3107, %v4161
      %v4163 = vpop.f32.mrf.mxu0
      %v4164 = vadd.f32 %v3107, %v4163
      %4165 = vmatprep.mubr.bf16.mxu0 0
      %4166 = vmatmul.mubr.bf16.gmra.mxu0 %v3492
      %v4167 = vpop.f32.mrf.mxu0
      %v4168 = vadd.f32 %v3112, %v4167
      %v4169 = vpop.f32.mrf.mxu0
      %v4170 = vadd.f32 %v3112, %v4169
      %v4171 = vpop.f32.mrf.mxu0
      %v4172 = vadd.f32 %v3117, %v4171
      %v4173 = vpop.f32.mrf.mxu0
      %v4174 = vadd.f32 %v3117, %v4173
      %4175 = vmatprep.mubr.bf16.mxu0 0
      %4176 = vmatmul.mubr.bf16.gmra.mxu0 %v3493
      %v4177 = vpop.f32.mrf.mxu0
      %v4178 = vadd.f32 %v3122, %v4177
      %v4179 = vpop.f32.mrf.mxu0
      %v4180 = vadd.f32 %v3122, %v4179
      %v4181 = vpop.f32.mrf.mxu0
      %v4182 = vadd.f32 %v3127, %v4181
      %v4183 = vpop.f32.mrf.mxu0
      %v4184 = vadd.f32 %v3127, %v4183
      %4185 = vmatprep.mubr.bf16.mxu0 0
      %4186 = vmatmul.mubr.bf16.gmra.mxu0 %v3494
      %v4187 = vpop.f32.mrf.mxu0
      %v4188 = vadd.f32 %v3132, %v4187
      %v4189 = vpop.f32.mrf.mxu0
      %v4190 = vadd.f32 %v3132, %v4189
      %v4191 = vpop.f32.mrf.mxu0
      %v4192 = vadd.f32 %v3137, %v4191
      %v4193 = vpop.f32.mrf.mxu0
      %v4194 = vadd.f32 %v3137, %v4193
      %4195 = vmatprep.mubr.bf16.mxu0 0
      %4196 = vmatmul.mubr.bf16.gmra.mxu0 %v3495
      %v4197 = vpop.f32.mrf.mxu0
      %v4198 = vadd.f32 %v3142, %v4197
      %v4199 = vpop.f32.mrf.mxu0
      %v4200 = vadd.f32 %v3142, %v4199
      %v4201 = vpop.f32.mrf.mxu0
      %v4202 = vadd.f32 %v3147, %v4201
      %v4203 = vpop.f32.mrf.mxu0
      %v4204 = vadd.f32 %v3147, %v4203
      %4205 = vmatprep.mubr.bf16.mxu0 0
      %4206 = vmatmul.mubr.bf16.gmra.mxu0 %v3496
      %v4207 = vpop.f32.mrf.mxu0
      %v4208 = vadd.f32 %v3152, %v4207
      %v4209 = vpop.f32.mrf.mxu0
      %v4210 = vadd.f32 %v3152, %v4209
      %v4211 = vpop.f32.mrf.mxu0
      %v4212 = vadd.f32 %v3157, %v4211
      %v4213 = vpop.f32.mrf.mxu0
      %v4214 = vadd.f32 %v3157, %v4213
      %4215 = vmatprep.mubr.bf16.mxu0 0
      %4216 = vmatmul.mubr.bf16.gmra.mxu0 %v3497
      %v4217 = vpop.f32.mrf.mxu0
      %v4218 = vadd.f32 %v3162, %v4217
      %v4219 = vpop.f32.mrf.mxu0
      %v4220 = vadd.f32 %v3162, %v4219
      %v4221 = vpop.f32.mrf.mxu0
      %v4222 = vadd.f32 %v3167, %v4221
      %v4223 = vpop.f32.mrf.mxu0
      %v4224 = vadd.f32 %v3167, %v4223
      %4225 = vmatprep.mubr.bf16.mxu0 0
      %4226 = vmatmul.mubr.bf16.gmra.mxu0 %v3498
      %v4227 = vpop.f32.mrf.mxu0
      %v4228 = vadd.f32 %v3172, %v4227
      %v4229 = vpop.f32.mrf.mxu0
      %v4230 = vadd.f32 %v3172, %v4229
      %v4231 = vpop.f32.mrf.mxu0
      %v4232 = vadd.f32 %v3177, %v4231
      %v4233 = vpop.f32.mrf.mxu0
      %v4234 = vadd.f32 %v3177, %v4233
      %4235 = vdwg.mxu0
      %4236 = vmatprep.subr.bf16.mxu0 %v2406
      %4237 = vmatpush1.bf16.msra.mxu0 %v2405
      %4238 = vmatprep.subr.bf16.mxu0 %v2398
      %4239 = vmatpush1.bf16.msra.mxu0 %v2397
      %4240 = vmatprep.subr.bf16.mxu0 %v2390
      %4241 = vmatpush1.bf16.msra.mxu0 %v2389
      %4242 = vmatprep.subr.bf16.mxu0 %v2382
      %4243 = vmatpush1.bf16.msra.mxu0 %v2381
      %4244 = vmatprep.subr.bf16.mxu0 %v2374
      %4245 = vmatpush1.bf16.msra.mxu0 %v2373
      %4246 = vmatprep.subr.bf16.mxu0 %v2366
      %4247 = vmatpush1.bf16.msra.mxu0 %v2365
      %4248 = vmatprep.subr.bf16.mxu0 %v2358
      %4249 = vmatpush1.bf16.msra.mxu0 %v2357
      %4250 = vmatprep.subr.bf16.mxu0 %v2350
      %4251 = vmatpush1.bf16.msra.mxu0 %v2349
      %4252 = vmatprep.subr.bf16.mxu0 0
      %4253 = vmatpush2.bf16.msra.mxu0 0
      %4254 = vmatprep.subr.bf16.mxu0 0
      %4255 = vmatpush2.bf16.msra.mxu0 0
      %4256 = vmatprep.subr.bf16.mxu0 0
      %4257 = vmatpush2.bf16.msra.mxu0 0
      %4258 = vmatprep.subr.bf16.mxu0 0
      %4259 = vmatpush2.bf16.msra.mxu0 0
      %4260 = vmatprep.subr.bf16.mxu0 0
      %4261 = vmatpush2.bf16.msra.mxu0 0
      %4262 = vmatprep.subr.bf16.mxu0 0
      %4263 = vmatpush2.bf16.msra.mxu0 0
      %4264 = vmatprep.subr.bf16.mxu0 0
      %4265 = vmatpush2.bf16.msra.mxu0 0
      %4266 = vmatprep.subr.bf16.mxu0 0
      %4267 = vmatpush2.bf16.msra.mxu0 0
      %4268 = vmatprep.mubr.bf16.mxu0 0
      %4269 = vmatmul.mubr.bf16.gmra.mxu0 %v3435
      %v4270 = vpop.f32.mrf.mxu0
      %v4271 = vadd.f32 %v2542, %v4270
      %v4272 = vpop.f32.mrf.mxu0
      %v4273 = vadd.f32 %v2542, %v4272
      %v4274 = vpop.f32.mrf.mxu0
      %v4275 = vadd.f32 %v2547, %v4274
      %v4276 = vpop.f32.mrf.mxu0
      %v4277 = vadd.f32 %v2547, %v4276
      %4278 = vmatprep.mubr.bf16.mxu0 0
      %4279 = vmatmul.mubr.bf16.gmra.mxu0 %v3436
      %v4280 = vpop.f32.mrf.mxu0
      %v4281 = vadd.f32 %v2552, %v4280
      %v4282 = vpop.f32.mrf.mxu0
      %v4283 = vadd.f32 %v2552, %v4282
      %v4284 = vpop.f32.mrf.mxu0
      %v4285 = vadd.f32 %v2557, %v4284
      %v4286 = vpop.f32.mrf.mxu0
      %v4287 = vadd.f32 %v2557, %v4286
      %4288 = vmatprep.mubr.bf16.mxu0 0
      %4289 = vmatmul.mubr.bf16.gmra.mxu0 %v3437
      %v4290 = vpop.f32.mrf.mxu0
      %v4291 = vadd.f32 %v2562, %v4290
      %v4292 = vpop.f32.mrf.mxu0
      %v4293 = vadd.f32 %v2562, %v4292
      %v4294 = vpop.f32.mrf.mxu0
      %v4295 = vadd.f32 %v2567, %v4294
      %v4296 = vpop.f32.mrf.mxu0
      %v4297 = vadd.f32 %v2567, %v4296
      %4298 = vmatprep.mubr.bf16.mxu0 0
      %4299 = vmatmul.mubr.bf16.gmra.mxu0 %v3438
      %v4300 = vpop.f32.mrf.mxu0
      %v4301 = vadd.f32 %v2572, %v4300
      %v4302 = vpop.f32.mrf.mxu0
      %v4303 = vadd.f32 %v2572, %v4302
      %v4304 = vpop.f32.mrf.mxu0
      %v4305 = vadd.f32 %v2577, %v4304
      %v4306 = vpop.f32.mrf.mxu0
      %v4307 = vadd.f32 %v2577, %v4306
      %4308 = vmatprep.mubr.bf16.mxu0 0
      %4309 = vmatmul.mubr.bf16.gmra.mxu0 %v3439
      %v4310 = vpop.f32.mrf.mxu0
      %v4311 = vadd.f32 %v2582, %v4310
      %v4312 = vpop.f32.mrf.mxu0
      %v4313 = vadd.f32 %v2582, %v4312
      %v4314 = vpop.f32.mrf.mxu0
      %v4315 = vadd.f32 %v2587, %v4314
      %v4316 = vpop.f32.mrf.mxu0
      %v4317 = vadd.f32 %v2587, %v4316
      %4318 = vmatprep.mubr.bf16.mxu0 0
      %4319 = vmatmul.mubr.bf16.gmra.mxu0 %v3440
      %v4320 = vpop.f32.mrf.mxu0
      %v4321 = vadd.f32 %v2592, %v4320
      %v4322 = vpop.f32.mrf.mxu0
      %v4323 = vadd.f32 %v2592, %v4322
      %v4324 = vpop.f32.mrf.mxu0
      %v4325 = vadd.f32 %v2597, %v4324
      %v4326 = vpop.f32.mrf.mxu0
      %v4327 = vadd.f32 %v2597, %v4326
      %4328 = vmatprep.mubr.bf16.mxu0 0
      %4329 = vmatmul.mubr.bf16.gmra.mxu0 %v3441
      %v4330 = vpop.f32.mrf.mxu0
      %v4331 = vadd.f32 %v2602, %v4330
      %v4332 = vpop.f32.mrf.mxu0
      %v4333 = vadd.f32 %v2602, %v4332
      %v4334 = vpop.f32.mrf.mxu0
      %v4335 = vadd.f32 %v2607, %v4334
      %v4336 = vpop.f32.mrf.mxu0
      %v4337 = vadd.f32 %v2607, %v4336
      %4338 = vmatprep.mubr.bf16.mxu0 0
      %4339 = vmatmul.mubr.bf16.gmra.mxu0 %v3442
      %v4340 = vpop.f32.mrf.mxu0
      %v4341 = vadd.f32 %v2612, %v4340
      %v4342 = vpop.f32.mrf.mxu0
      %v4343 = vadd.f32 %v2612, %v4342
      %v4344 = vpop.f32.mrf.mxu0
      %v4345 = vadd.f32 %v2617, %v4344
      %v4346 = vpop.f32.mrf.mxu0
      %v4347 = vadd.f32 %v2617, %v4346
      %4348 = vmatprep.mubr.bf16.mxu0 0
      %4349 = vmatmul.mubr.bf16.gmra.mxu0 %v3443
      %v4350 = vpop.f32.mrf.mxu0
      %v4351 = vadd.f32 %v2622, %v4350
      %v4352 = vpop.f32.mrf.mxu0
      %v4353 = vadd.f32 %v2622, %v4352
      %v4354 = vpop.f32.mrf.mxu0
      %v4355 = vadd.f32 %v2627, %v4354
      %v4356 = vpop.f32.mrf.mxu0
      %v4357 = vadd.f32 %v2627, %v4356
      %4358 = vmatprep.mubr.bf16.mxu0 0
      %4359 = vmatmul.mubr.bf16.gmra.mxu0 %v3444
      %v4360 = vpop.f32.mrf.mxu0
      %v4361 = vadd.f32 %v2632, %v4360
      %v4362 = vpop.f32.mrf.mxu0
      %v4363 = vadd.f32 %v2632, %v4362
      %v4364 = vpop.f32.mrf.mxu0
      %v4365 = vadd.f32 %v2637, %v4364
      %v4366 = vpop.f32.mrf.mxu0
      %v4367 = vadd.f32 %v2637, %v4366
      %4368 = vmatprep.mubr.bf16.mxu0 0
      %4369 = vmatmul.mubr.bf16.gmra.mxu0 %v3445
      %v4370 = vpop.f32.mrf.mxu0
      %v4371 = vadd.f32 %v2642, %v4370
      %v4372 = vpop.f32.mrf.mxu0
      %v4373 = vadd.f32 %v2642, %v4372
      %v4374 = vpop.f32.mrf.mxu0
      %v4375 = vadd.f32 %v2647, %v4374
      %v4376 = vpop.f32.mrf.mxu0
      %v4377 = vadd.f32 %v2647, %v4376
      %4378 = vmatprep.mubr.bf16.mxu0 0
      %4379 = vmatmul.mubr.bf16.gmra.mxu0 %v3446
      %v4380 = vpop.f32.mrf.mxu0
      %v4381 = vadd.f32 %v2652, %v4380
      %v4382 = vpop.f32.mrf.mxu0
      %v4383 = vadd.f32 %v2652, %v4382
      %v4384 = vpop.f32.mrf.mxu0
      %v4385 = vadd.f32 %v2657, %v4384
      %v4386 = vpop.f32.mrf.mxu0
      %v4387 = vadd.f32 %v2657, %v4386
      %4388 = vmatprep.mubr.bf16.mxu0 0
      %4389 = vmatmul.mubr.bf16.gmra.mxu0 %v3447
      %v4390 = vpop.f32.mrf.mxu0
      %v4391 = vadd.f32 %v2662, %v4390
      %v4392 = vpop.f32.mrf.mxu0
      %v4393 = vadd.f32 %v2662, %v4392
      %v4394 = vpop.f32.mrf.mxu0
      %v4395 = vadd.f32 %v2667, %v4394
      %v4396 = vpop.f32.mrf.mxu0
      %v4397 = vadd.f32 %v2667, %v4396
      %4398 = vmatprep.mubr.bf16.mxu0 0
      %4399 = vmatmul.mubr.bf16.gmra.mxu0 %v3448
      %v4400 = vpop.f32.mrf.mxu0
      %v4401 = vadd.f32 %v2672, %v4400
      %v4402 = vpop.f32.mrf.mxu0
      %v4403 = vadd.f32 %v2672, %v4402
      %v4404 = vpop.f32.mrf.mxu0
      %v4405 = vadd.f32 %v2677, %v4404
      %v4406 = vpop.f32.mrf.mxu0
      %v4407 = vadd.f32 %v2677, %v4406
      %4408 = vmatprep.mubr.bf16.mxu0 0
      %4409 = vmatmul.mubr.bf16.gmra.mxu0 %v3449
      %v4410 = vpop.f32.mrf.mxu0
      %v4411 = vadd.f32 %v2682, %v4410
      %v4412 = vpop.f32.mrf.mxu0
      %v4413 = vadd.f32 %v2682, %v4412
      %v4414 = vpop.f32.mrf.mxu0
      %v4415 = vadd.f32 %v2687, %v4414
      %v4416 = vpop.f32.mrf.mxu0
      %v4417 = vadd.f32 %v2687, %v4416
      %4418 = vmatprep.mubr.bf16.mxu0 0
      %4419 = vmatmul.mubr.bf16.gmra.mxu0 %v3450
      %v4420 = vpop.f32.mrf.mxu0
      %v4421 = vadd.f32 %v2692, %v4420
      %v4422 = vpop.f32.mrf.mxu0
      %v4423 = vadd.f32 %v2692, %v4422
      %v4424 = vpop.f32.mrf.mxu0
      %v4425 = vadd.f32 %v2697, %v4424
      %v4426 = vpop.f32.mrf.mxu0
      %v4427 = vadd.f32 %v2697, %v4426
      %4428 = vmatprep.mubr.bf16.mxu0 0
      %4429 = vmatmul.mubr.bf16.gmra.mxu0 %v3451
      %v4430 = vpop.f32.mrf.mxu0
      %v4431 = vadd.f32 %v2702, %v4430
      %v4432 = vpop.f32.mrf.mxu0
      %v4433 = vadd.f32 %v2702, %v4432
      %v4434 = vpop.f32.mrf.mxu0
      %v4435 = vadd.f32 %v2707, %v4434
      %v4436 = vpop.f32.mrf.mxu0
      %v4437 = vadd.f32 %v2707, %v4436
      %4438 = vmatprep.mubr.bf16.mxu0 0
      %4439 = vmatmul.mubr.bf16.gmra.mxu0 %v3452
      %v4440 = vpop.f32.mrf.mxu0
      %v4441 = vadd.f32 %v2712, %v4440
      %v4442 = vpop.f32.mrf.mxu0
      %v4443 = vadd.f32 %v2712, %v4442
      %v4444 = vpop.f32.mrf.mxu0
      %v4445 = vadd.f32 %v2717, %v4444
      %v4446 = vpop.f32.mrf.mxu0
      %v4447 = vadd.f32 %v2717, %v4446
      %4448 = vmatprep.mubr.bf16.mxu0 0
      %4449 = vmatmul.mubr.bf16.gmra.mxu0 %v3453
      %v4450 = vpop.f32.mrf.mxu0
      %v4451 = vadd.f32 %v2722, %v4450
      %v4452 = vpop.f32.mrf.mxu0
      %v4453 = vadd.f32 %v2722, %v4452
      %v4454 = vpop.f32.mrf.mxu0
      %v4455 = vadd.f32 %v2727, %v4454
      %v4456 = vpop.f32.mrf.mxu0
      %v4457 = vadd.f32 %v2727, %v4456
      %4458 = vmatprep.mubr.bf16.mxu0 0
      %4459 = vmatmul.mubr.bf16.gmra.mxu0 %v3454
      %v4460 = vpop.f32.mrf.mxu0
      %v4461 = vadd.f32 %v2732, %v4460
      %v4462 = vpop.f32.mrf.mxu0
      %v4463 = vadd.f32 %v2732, %v4462
      %v4464 = vpop.f32.mrf.mxu0
      %v4465 = vadd.f32 %v2737, %v4464
      %v4466 = vpop.f32.mrf.mxu0
      %v4467 = vadd.f32 %v2737, %v4466
      %4468 = vmatprep.mubr.bf16.mxu0 0
      %4469 = vmatmul.mubr.bf16.gmra.mxu0 %v3455
      %v4470 = vpop.f32.mrf.mxu0
      %v4471 = vadd.f32 %v2742, %v4470
      %v4472 = vpop.f32.mrf.mxu0
      %v4473 = vadd.f32 %v2742, %v4472
      %v4474 = vpop.f32.mrf.mxu0
      %v4475 = vadd.f32 %v2747, %v4474
      %v4476 = vpop.f32.mrf.mxu0
      %v4477 = vadd.f32 %v2747, %v4476
      %4478 = vmatprep.mubr.bf16.mxu0 0
      %4479 = vmatmul.mubr.bf16.gmra.mxu0 %v3456
      %v4480 = vpop.f32.mrf.mxu0
      %v4481 = vadd.f32 %v2752, %v4480
      %v4482 = vpop.f32.mrf.mxu0
      %v4483 = vadd.f32 %v2752, %v4482
      %v4484 = vpop.f32.mrf.mxu0
      %v4485 = vadd.f32 %v2757, %v4484
      %v4486 = vpop.f32.mrf.mxu0
      %v4487 = vadd.f32 %v2757, %v4486
      %4488 = vmatprep.mubr.bf16.mxu0 0
      %4489 = vmatmul.mubr.bf16.gmra.mxu0 %v3457
      %v4490 = vpop.f32.mrf.mxu0
      %v4491 = vadd.f32 %v2762, %v4490
      %v4492 = vpop.f32.mrf.mxu0
      %v4493 = vadd.f32 %v2762, %v4492
      %v4494 = vpop.f32.mrf.mxu0
      %v4495 = vadd.f32 %v2767, %v4494
      %v4496 = vpop.f32.mrf.mxu0
      %v4497 = vadd.f32 %v2767, %v4496
      %4498 = vmatprep.mubr.bf16.mxu0 0
      %4499 = vmatmul.mubr.bf16.gmra.mxu0 %v3458
      %v4500 = vpop.f32.mrf.mxu0
      %v4501 = vadd.f32 %v2772, %v4500
      %v4502 = vpop.f32.mrf.mxu0
      %v4503 = vadd.f32 %v2772, %v4502
      %v4504 = vpop.f32.mrf.mxu0
      %v4505 = vadd.f32 %v2777, %v4504
      %v4506 = vpop.f32.mrf.mxu0
      %v4507 = vadd.f32 %v2777, %v4506
      %4508 = vmatprep.mubr.bf16.mxu0 0
      %4509 = vmatmul.mubr.bf16.gmra.mxu0 %v3459
      %v4510 = vpop.f32.mrf.mxu0
      %v4511 = vadd.f32 %v2782, %v4510
      %v4512 = vpop.f32.mrf.mxu0
      %v4513 = vadd.f32 %v2782, %v4512
      %v4514 = vpop.f32.mrf.mxu0
      %v4515 = vadd.f32 %v2787, %v4514
      %v4516 = vpop.f32.mrf.mxu0
      %v4517 = vadd.f32 %v2787, %v4516
      %4518 = vmatprep.mubr.bf16.mxu0 0
      %4519 = vmatmul.mubr.bf16.gmra.mxu0 %v3460
      %v4520 = vpop.f32.mrf.mxu0
      %v4521 = vadd.f32 %v2792, %v4520
      %v4522 = vpop.f32.mrf.mxu0
      %v4523 = vadd.f32 %v2792, %v4522
      %v4524 = vpop.f32.mrf.mxu0
      %v4525 = vadd.f32 %v2797, %v4524
      %v4526 = vpop.f32.mrf.mxu0
      %v4527 = vadd.f32 %v2797, %v4526
      %4528 = vmatprep.mubr.bf16.mxu0 0
      %4529 = vmatmul.mubr.bf16.gmra.mxu0 %v3461
      %v4530 = vpop.f32.mrf.mxu0
      %v4531 = vadd.f32 %v2802, %v4530
      %v4532 = vpop.f32.mrf.mxu0
      %v4533 = vadd.f32 %v2802, %v4532
      %v4534 = vpop.f32.mrf.mxu0
      %v4535 = vadd.f32 %v2807, %v4534
      %v4536 = vpop.f32.mrf.mxu0
      %v4537 = vadd.f32 %v2807, %v4536
      %4538 = vmatprep.mubr.bf16.mxu0 0
      %4539 = vmatmul.mubr.bf16.gmra.mxu0 %v3462
      %v4540 = vpop.f32.mrf.mxu0
      %v4541 = vadd.f32 %v2812, %v4540
      %v4542 = vpop.f32.mrf.mxu0
      %v4543 = vadd.f32 %v2812, %v4542
      %v4544 = vpop.f32.mrf.mxu0
      %v4545 = vadd.f32 %v2817, %v4544
      %v4546 = vpop.f32.mrf.mxu0
      %v4547 = vadd.f32 %v2817, %v4546
      %4548 = vmatprep.mubr.bf16.mxu0 0
      %4549 = vmatmul.mubr.bf16.gmra.mxu0 %v3463
      %v4550 = vpop.f32.mrf.mxu0
      %v4551 = vadd.f32 %v2822, %v4550
      %v4552 = vpop.f32.mrf.mxu0
      %v4553 = vadd.f32 %v2822, %v4552
      %v4554 = vpop.f32.mrf.mxu0
      %v4555 = vadd.f32 %v2827, %v4554
      %v4556 = vpop.f32.mrf.mxu0
      %v4557 = vadd.f32 %v2827, %v4556
      %4558 = vmatprep.mubr.bf16.mxu0 0
      %4559 = vmatmul.mubr.bf16.gmra.mxu0 %v3464
      %v4560 = vpop.f32.mrf.mxu0
      %v4561 = vadd.f32 %v2832, %v4560
      %v4562 = vpop.f32.mrf.mxu0
      %v4563 = vadd.f32 %v2832, %v4562
      %v4564 = vpop.f32.mrf.mxu0
      %v4565 = vadd.f32 %v2837, %v4564
      %v4566 = vpop.f32.mrf.mxu0
      %v4567 = vadd.f32 %v2837, %v4566
      %4568 = vmatprep.mubr.bf16.mxu0 0
      %4569 = vmatmul.mubr.bf16.gmra.mxu0 %v3465
      %v4570 = vpop.f32.mrf.mxu0
      %v4571 = vadd.f32 %v2842, %v4570
      %v4572 = vpop.f32.mrf.mxu0
      %v4573 = vadd.f32 %v2842, %v4572
      %v4574 = vpop.f32.mrf.mxu0
      %v4575 = vadd.f32 %v2847, %v4574
      %v4576 = vpop.f32.mrf.mxu0
      %v4577 = vadd.f32 %v2847, %v4576
      %4578 = vmatprep.mubr.bf16.mxu0 0
      %4579 = vmatmul.mubr.bf16.gmra.mxu0 %v3466
      %v4580 = vpop.f32.mrf.mxu0
      %v4581 = vadd.f32 %v2852, %v4580
      %v4582 = vpop.f32.mrf.mxu0
      %v4583 = vadd.f32 %v2852, %v4582
      %v4584 = vpop.f32.mrf.mxu0
      %v4585 = vadd.f32 %v2857, %v4584
      %v4586 = vpop.f32.mrf.mxu0
      %v4587 = vadd.f32 %v2857, %v4586
      %4588 = vmatprep.mubr.bf16.mxu0 0
      %4589 = vmatmul.mubr.bf16.gmra.mxu0 %v3467
      %v4590 = vpop.f32.mrf.mxu0
      %v4591 = vadd.f32 %v2862, %v4590
      %v4592 = vpop.f32.mrf.mxu0
      %v4593 = vadd.f32 %v2862, %v4592
      %v4594 = vpop.f32.mrf.mxu0
      %v4595 = vadd.f32 %v2867, %v4594
      %v4596 = vpop.f32.mrf.mxu0
      %v4597 = vadd.f32 %v2867, %v4596
      %4598 = vmatprep.mubr.bf16.mxu0 0
      %4599 = vmatmul.mubr.bf16.gmra.mxu0 %v3468
      %v4600 = vpop.f32.mrf.mxu0
      %v4601 = vadd.f32 %v2872, %v4600
      %v4602 = vpop.f32.mrf.mxu0
      %v4603 = vadd.f32 %v2872, %v4602
      %v4604 = vpop.f32.mrf.mxu0
      %v4605 = vadd.f32 %v2877, %v4604
      %v4606 = vpop.f32.mrf.mxu0
      %v4607 = vadd.f32 %v2877, %v4606
      %4608 = vmatprep.mubr.bf16.mxu0 0
      %4609 = vmatmul.mubr.bf16.gmra.mxu0 %v3469
      %v4610 = vpop.f32.mrf.mxu0
      %v4611 = vadd.f32 %v2882, %v4610
      %v4612 = vpop.f32.mrf.mxu0
      %v4613 = vadd.f32 %v2882, %v4612
      %v4614 = vpop.f32.mrf.mxu0
      %v4615 = vadd.f32 %v2887, %v4614
      %v4616 = vpop.f32.mrf.mxu0
      %v4617 = vadd.f32 %v2887, %v4616
      %4618 = vmatprep.mubr.bf16.mxu0 0
      %4619 = vmatmul.mubr.bf16.gmra.mxu0 %v3470
      %v4620 = vpop.f32.mrf.mxu0
      %v4621 = vadd.f32 %v2892, %v4620
      %v4622 = vpop.f32.mrf.mxu0
      %v4623 = vadd.f32 %v2892, %v4622
      %v4624 = vpop.f32.mrf.mxu0
      %v4625 = vadd.f32 %v2897, %v4624
      %v4626 = vpop.f32.mrf.mxu0
      %v4627 = vadd.f32 %v2897, %v4626
      %4628 = vmatprep.mubr.bf16.mxu0 0
      %4629 = vmatmul.mubr.bf16.gmra.mxu0 %v3471
      %v4630 = vpop.f32.mrf.mxu0
      %v4631 = vadd.f32 %v2902, %v4630
      %v4632 = vpop.f32.mrf.mxu0
      %v4633 = vadd.f32 %v2902, %v4632
      %v4634 = vpop.f32.mrf.mxu0
      %v4635 = vadd.f32 %v2907, %v4634
      %v4636 = vpop.f32.mrf.mxu0
      %v4637 = vadd.f32 %v2907, %v4636
      %4638 = vmatprep.mubr.bf16.mxu0 0
      %4639 = vmatmul.mubr.bf16.gmra.mxu0 %v3472
      %v4640 = vpop.f32.mrf.mxu0
      %v4641 = vadd.f32 %v2912, %v4640
      %v4642 = vpop.f32.mrf.mxu0
      %v4643 = vadd.f32 %v2912, %v4642
      %v4644 = vpop.f32.mrf.mxu0
      %v4645 = vadd.f32 %v2917, %v4644
      %v4646 = vpop.f32.mrf.mxu0
      %v4647 = vadd.f32 %v2917, %v4646
      %4648 = vmatprep.mubr.bf16.mxu0 0
      %4649 = vmatmul.mubr.bf16.gmra.mxu0 %v3473
      %v4650 = vpop.f32.mrf.mxu0
      %v4651 = vadd.f32 %v2922, %v4650
      %v4652 = vpop.f32.mrf.mxu0
      %v4653 = vadd.f32 %v2922, %v4652
      %v4654 = vpop.f32.mrf.mxu0
      %v4655 = vadd.f32 %v2927, %v4654
      %v4656 = vpop.f32.mrf.mxu0
      %v4657 = vadd.f32 %v2927, %v4656
      %4658 = vmatprep.mubr.bf16.mxu0 0
      %4659 = vmatmul.mubr.bf16.gmra.mxu0 %v3474
      %v4660 = vpop.f32.mrf.mxu0
      %v4661 = vadd.f32 %v2932, %v4660
      %v4662 = vpop.f32.mrf.mxu0
      %v4663 = vadd.f32 %v2932, %v4662
      %v4664 = vpop.f32.mrf.mxu0
      %v4665 = vadd.f32 %v2937, %v4664
      %v4666 = vpop.f32.mrf.mxu0
      %v4667 = vadd.f32 %v2937, %v4666
      %4668 = vmatprep.mubr.bf16.mxu0 0
      %4669 = vmatmul.mubr.bf16.gmra.mxu0 %v3475
      %v4670 = vpop.f32.mrf.mxu0
      %v4671 = vadd.f32 %v2942, %v4670
      %v4672 = vpop.f32.mrf.mxu0
      %v4673 = vadd.f32 %v2942, %v4672
      %v4674 = vpop.f32.mrf.mxu0
      %v4675 = vadd.f32 %v2947, %v4674
      %v4676 = vpop.f32.mrf.mxu0
      %v4677 = vadd.f32 %v2947, %v4676
      %4678 = vmatprep.mubr.bf16.mxu0 0
      %4679 = vmatmul.mubr.bf16.gmra.mxu0 %v3476
      %v4680 = vpop.f32.mrf.mxu0
      %v4681 = vadd.f32 %v2952, %v4680
      %v4682 = vpop.f32.mrf.mxu0
      %v4683 = vadd.f32 %v2952, %v4682
      %v4684 = vpop.f32.mrf.mxu0
      %v4685 = vadd.f32 %v2957, %v4684
      %v4686 = vpop.f32.mrf.mxu0
      %v4687 = vadd.f32 %v2957, %v4686
      %4688 = vmatprep.mubr.bf16.mxu0 0
      %4689 = vmatmul.mubr.bf16.gmra.mxu0 %v3477
      %v4690 = vpop.f32.mrf.mxu0
      %v4691 = vadd.f32 %v2962, %v4690
      %v4692 = vpop.f32.mrf.mxu0
      %v4693 = vadd.f32 %v2962, %v4692
      %v4694 = vpop.f32.mrf.mxu0
      %v4695 = vadd.f32 %v2967, %v4694
      %v4696 = vpop.f32.mrf.mxu0
      %v4697 = vadd.f32 %v2967, %v4696
      %4698 = vmatprep.mubr.bf16.mxu0 0
      %4699 = vmatmul.mubr.bf16.gmra.mxu0 %v3478
      %v4700 = vpop.f32.mrf.mxu0
      %v4701 = vadd.f32 %v2972, %v4700
      %v4702 = vpop.f32.mrf.mxu0
      %v4703 = vadd.f32 %v2972, %v4702
      %v4704 = vpop.f32.mrf.mxu0
      %v4705 = vadd.f32 %v2977, %v4704
      %v4706 = vpop.f32.mrf.mxu0
      %v4707 = vadd.f32 %v2977, %v4706
      %4708 = vmatprep.mubr.bf16.mxu0 0
      %4709 = vmatmul.mubr.bf16.gmra.mxu0 %v3479
      %v4710 = vpop.f32.mrf.mxu0
      %v4711 = vadd.f32 %v2982, %v4710
      %v4712 = vpop.f32.mrf.mxu0
      %v4713 = vadd.f32 %v2982, %v4712
      %v4714 = vpop.f32.mrf.mxu0
      %v4715 = vadd.f32 %v2987, %v4714
      %v4716 = vpop.f32.mrf.mxu0
      %v4717 = vadd.f32 %v2987, %v4716
      %4718 = vmatprep.mubr.bf16.mxu0 0
      %4719 = vmatmul.mubr.bf16.gmra.mxu0 %v3480
      %v4720 = vpop.f32.mrf.mxu0
      %v4721 = vadd.f32 %v2992, %v4720
      %v4722 = vpop.f32.mrf.mxu0
      %v4723 = vadd.f32 %v2992, %v4722
      %v4724 = vpop.f32.mrf.mxu0
      %v4725 = vadd.f32 %v2997, %v4724
      %v4726 = vpop.f32.mrf.mxu0
      %v4727 = vadd.f32 %v2997, %v4726
      %4728 = vmatprep.mubr.bf16.mxu0 0
      %4729 = vmatmul.mubr.bf16.gmra.mxu0 %v3481
      %v4730 = vpop.f32.mrf.mxu0
      %v4731 = vadd.f32 %v3002, %v4730
      %v4732 = vpop.f32.mrf.mxu0
      %v4733 = vadd.f32 %v3002, %v4732
      %v4734 = vpop.f32.mrf.mxu0
      %v4735 = vadd.f32 %v3007, %v4734
      %v4736 = vpop.f32.mrf.mxu0
      %v4737 = vadd.f32 %v3007, %v4736
      %4738 = vmatprep.mubr.bf16.mxu0 0
      %4739 = vmatmul.mubr.bf16.gmra.mxu0 %v3482
      %v4740 = vpop.f32.mrf.mxu0
      %v4741 = vadd.f32 %v3012, %v4740
      %v4742 = vpop.f32.mrf.mxu0
      %v4743 = vadd.f32 %v3012, %v4742
      %v4744 = vpop.f32.mrf.mxu0
      %v4745 = vadd.f32 %v3017, %v4744
      %v4746 = vpop.f32.mrf.mxu0
      %v4747 = vadd.f32 %v3017, %v4746
      %4748 = vmatprep.mubr.bf16.mxu0 0
      %4749 = vmatmul.mubr.bf16.gmra.mxu0 %v3483
      %v4750 = vpop.f32.mrf.mxu0
      %v4751 = vadd.f32 %v3022, %v4750
      %v4752 = vpop.f32.mrf.mxu0
      %v4753 = vadd.f32 %v3022, %v4752
      %v4754 = vpop.f32.mrf.mxu0
      %v4755 = vadd.f32 %v3027, %v4754
      %v4756 = vpop.f32.mrf.mxu0
      %v4757 = vadd.f32 %v3027, %v4756
      %4758 = vmatprep.mubr.bf16.mxu0 0
      %4759 = vmatmul.mubr.bf16.gmra.mxu0 %v3484
      %v4760 = vpop.f32.mrf.mxu0
      %v4761 = vadd.f32 %v3032, %v4760
      %v4762 = vpop.f32.mrf.mxu0
      %v4763 = vadd.f32 %v3032, %v4762
      %v4764 = vpop.f32.mrf.mxu0
      %v4765 = vadd.f32 %v3037, %v4764
      %v4766 = vpop.f32.mrf.mxu0
      %v4767 = vadd.f32 %v3037, %v4766
      %4768 = vmatprep.mubr.bf16.mxu0 0
      %4769 = vmatmul.mubr.bf16.gmra.mxu0 %v3485
      %v4770 = vpop.f32.mrf.mxu0
      %v4771 = vadd.f32 %v3042, %v4770
      %v4772 = vpop.f32.mrf.mxu0
      %v4773 = vadd.f32 %v3042, %v4772
      %v4774 = vpop.f32.mrf.mxu0
      %v4775 = vadd.f32 %v3047, %v4774
      %v4776 = vpop.f32.mrf.mxu0
      %v4777 = vadd.f32 %v3047, %v4776
      %4778 = vmatprep.mubr.bf16.mxu0 0
      %4779 = vmatmul.mubr.bf16.gmra.mxu0 %v3486
      %v4780 = vpop.f32.mrf.mxu0
      %v4781 = vadd.f32 %v3052, %v4780
      %v4782 = vpop.f32.mrf.mxu0
      %v4783 = vadd.f32 %v3052, %v4782
      %v4784 = vpop.f32.mrf.mxu0
      %v4785 = vadd.f32 %v3057, %v4784
      %v4786 = vpop.f32.mrf.mxu0
      %v4787 = vadd.f32 %v3057, %v4786
      %4788 = vmatprep.mubr.bf16.mxu0 0
      %4789 = vmatmul.mubr.bf16.gmra.mxu0 %v3487
      %v4790 = vpop.f32.mrf.mxu0
      %v4791 = vadd.f32 %v3062, %v4790
      %v4792 = vpop.f32.mrf.mxu0
      %v4793 = vadd.f32 %v3062, %v4792
      %v4794 = vpop.f32.mrf.mxu0
      %v4795 = vadd.f32 %v3067, %v4794
      %v4796 = vpop.f32.mrf.mxu0
      %v4797 = vadd.f32 %v3067, %v4796
      %4798 = vmatprep.mubr.bf16.mxu0 0
      %4799 = vmatmul.mubr.bf16.gmra.mxu0 %v3488
      %v4800 = vpop.f32.mrf.mxu0
      %v4801 = vadd.f32 %v3072, %v4800
      %v4802 = vpop.f32.mrf.mxu0
      %v4803 = vadd.f32 %v3072, %v4802
      %v4804 = vpop.f32.mrf.mxu0
      %v4805 = vadd.f32 %v3077, %v4804
      %v4806 = vpop.f32.mrf.mxu0
      %v4807 = vadd.f32 %v3077, %v4806
      %4808 = vmatprep.mubr.bf16.mxu0 0
      %4809 = vmatmul.mubr.bf16.gmra.mxu0 %v3489
      %v4810 = vpop.f32.mrf.mxu0
      %v4811 = vadd.f32 %v3082, %v4810
      %v4812 = vpop.f32.mrf.mxu0
      %v4813 = vadd.f32 %v3082, %v4812
      %v4814 = vpop.f32.mrf.mxu0
      %v4815 = vadd.f32 %v3087, %v4814
      %v4816 = vpop.f32.mrf.mxu0
      %v4817 = vadd.f32 %v3087, %v4816
      %4818 = vmatprep.mubr.bf16.mxu0 0
      %4819 = vmatmul.mubr.bf16.gmra.mxu0 %v3490
      %v4820 = vpop.f32.mrf.mxu0
      %v4821 = vadd.f32 %v3092, %v4820
      %v4822 = vpop.f32.mrf.mxu0
      %v4823 = vadd.f32 %v3092, %v4822
      %v4824 = vpop.f32.mrf.mxu0
      %v4825 = vadd.f32 %v3097, %v4824
      %v4826 = vpop.f32.mrf.mxu0
      %v4827 = vadd.f32 %v3097, %v4826
      %4828 = vmatprep.mubr.bf16.mxu0 0
      %4829 = vmatmul.mubr.bf16.gmra.mxu0 %v3491
      %v4830 = vpop.f32.mrf.mxu0
      %v4831 = vadd.f32 %v3102, %v4830
      %v4832 = vpop.f32.mrf.mxu0
      %v4833 = vadd.f32 %v3102, %v4832
      %v4834 = vpop.f32.mrf.mxu0
      %v4835 = vadd.f32 %v3107, %v4834
      %v4836 = vpop.f32.mrf.mxu0
      %v4837 = vadd.f32 %v3107, %v4836
      %4838 = vmatprep.mubr.bf16.mxu0 0
      %4839 = vmatmul.mubr.bf16.gmra.mxu0 %v3492
      %v4840 = vpop.f32.mrf.mxu0
      %v4841 = vadd.f32 %v3112, %v4840
      %v4842 = vpop.f32.mrf.mxu0
      %v4843 = vadd.f32 %v3112, %v4842
      %v4844 = vpop.f32.mrf.mxu0
      %v4845 = vadd.f32 %v3117, %v4844
      %v4846 = vpop.f32.mrf.mxu0
      %v4847 = vadd.f32 %v3117, %v4846
      %4848 = vmatprep.mubr.bf16.mxu0 0
      %4849 = vmatmul.mubr.bf16.gmra.mxu0 %v3493
      %v4850 = vpop.f32.mrf.mxu0
      %v4851 = vadd.f32 %v3122, %v4850
      %v4852 = vpop.f32.mrf.mxu0
      %v4853 = vadd.f32 %v3122, %v4852
      %v4854 = vpop.f32.mrf.mxu0
      %v4855 = vadd.f32 %v3127, %v4854
      %v4856 = vpop.f32.mrf.mxu0
      %v4857 = vadd.f32 %v3127, %v4856
      %4858 = vmatprep.mubr.bf16.mxu0 0
      %4859 = vmatmul.mubr.bf16.gmra.mxu0 %v3494
      %v4860 = vpop.f32.mrf.mxu0
      %v4861 = vadd.f32 %v3132, %v4860
      %v4862 = vpop.f32.mrf.mxu0
      %v4863 = vadd.f32 %v3132, %v4862
      %v4864 = vpop.f32.mrf.mxu0
      %v4865 = vadd.f32 %v3137, %v4864
      %v4866 = vpop.f32.mrf.mxu0
      %v4867 = vadd.f32 %v3137, %v4866
      %4868 = vmatprep.mubr.bf16.mxu0 0
      %4869 = vmatmul.mubr.bf16.gmra.mxu0 %v3495
      %v4870 = vpop.f32.mrf.mxu0
      %v4871 = vadd.f32 %v3142, %v4870
      %v4872 = vpop.f32.mrf.mxu0
      %v4873 = vadd.f32 %v3142, %v4872
      %v4874 = vpop.f32.mrf.mxu0
      %v4875 = vadd.f32 %v3147, %v4874
      %v4876 = vpop.f32.mrf.mxu0
      %v4877 = vadd.f32 %v3147, %v4876
      %4878 = vmatprep.mubr.bf16.mxu0 0
      %4879 = vmatmul.mubr.bf16.gmra.mxu0 %v3496
      %v4880 = vpop.f32.mrf.mxu0
      %v4881 = vadd.f32 %v3152, %v4880
      %v4882 = vpop.f32.mrf.mxu0
      %v4883 = vadd.f32 %v3152, %v4882
      %v4884 = vpop.f32.mrf.mxu0
      %v4885 = vadd.f32 %v3157, %v4884
      %v4886 = vpop.f32.mrf.mxu0
      %v4887 = vadd.f32 %v3157, %v4886
      %4888 = vmatprep.mubr.bf16.mxu0 0
      %4889 = vmatmul.mubr.bf16.gmra.mxu0 %v3497
      %v4890 = vpop.f32.mrf.mxu0
      %v4891 = vadd.f32 %v3162, %v4890
      %v4892 = vpop.f32.mrf.mxu0
      %v4893 = vadd.f32 %v3162, %v4892
      %v4894 = vpop.f32.mrf.mxu0
      %v4895 = vadd.f32 %v3167, %v4894
      %v4896 = vpop.f32.mrf.mxu0
      %v4897 = vadd.f32 %v3167, %v4896
      %4898 = vmatprep.mubr.bf16.mxu0 0
      %4899 = vmatmul.mubr.bf16.gmra.mxu0 %v3498
      %v4900 = vpop.f32.mrf.mxu0
      %v4901 = vadd.f32 %v3172, %v4900
      %v4902 = vpop.f32.mrf.mxu0
      %v4903 = vadd.f32 %v3172, %v4902
      %v4904 = vpop.f32.mrf.mxu0
      %v4905 = vadd.f32 %v3177, %v4904
      %v4906 = vpop.f32.mrf.mxu0
      %v4907 = vadd.f32 %v3177, %v4906
      %4908 = vdwg.mxu0
      %4909 = vmatprep.subr.bf16.mxu0 %v2408
      %4910 = vmatpush1.bf16.msra.mxu0 %v2407
      %4911 = vmatprep.subr.bf16.mxu0 %v2400
      %4912 = vmatpush1.bf16.msra.mxu0 %v2399
      %4913 = vmatprep.subr.bf16.mxu0 %v2392
      %4914 = vmatpush1.bf16.msra.mxu0 %v2391
      %4915 = vmatprep.subr.bf16.mxu0 %v2384
      %4916 = vmatpush1.bf16.msra.mxu0 %v2383
      %4917 = vmatprep.subr.bf16.mxu0 %v2376
      %4918 = vmatpush1.bf16.msra.mxu0 %v2375
      %4919 = vmatprep.subr.bf16.mxu0 %v2368
      %4920 = vmatpush1.bf16.msra.mxu0 %v2367
      %4921 = vmatprep.subr.bf16.mxu0 %v2360
      %4922 = vmatpush1.bf16.msra.mxu0 %v2359
      %4923 = vmatprep.subr.bf16.mxu0 %v2352
      %4924 = vmatpush1.bf16.msra.mxu0 %v2351
      %4925 = vmatprep.subr.bf16.mxu0 0
      %4926 = vmatpush2.bf16.msra.mxu0 0
      %4927 = vmatprep.subr.bf16.mxu0 0
      %4928 = vmatpush2.bf16.msra.mxu0 0
      %4929 = vmatprep.subr.bf16.mxu0 0
      %4930 = vmatpush2.bf16.msra.mxu0 0
      %4931 = vmatprep.subr.bf16.mxu0 0
      %4932 = vmatpush2.bf16.msra.mxu0 0
      %4933 = vmatprep.subr.bf16.mxu0 0
      %4934 = vmatpush2.bf16.msra.mxu0 0
      %4935 = vmatprep.subr.bf16.mxu0 0
      %4936 = vmatpush2.bf16.msra.mxu0 0
      %4937 = vmatprep.subr.bf16.mxu0 0
      %4938 = vmatpush2.bf16.msra.mxu0 0
      %4939 = vmatprep.subr.bf16.mxu0 0
      %4940 = vmatpush2.bf16.msra.mxu0 0
      %4941 = vmatprep.mubr.bf16.mxu0 0
      %4942 = vmatmul.mubr.bf16.gmra.mxu0 %v3435
      %v4943 = vpop.f32.mrf.mxu0
      %v4944 = vadd.f32 %v2542, %v4943
      %v4945 = vpop.f32.mrf.mxu0
      %v4946 = vadd.f32 %v2542, %v4945
      %v4947 = vpop.f32.mrf.mxu0
      %v4948 = vadd.f32 %v2547, %v4947
      %v4949 = vpop.f32.mrf.mxu0
      %v4950 = vadd.f32 %v2547, %v4949
      %4951 = vmatprep.mubr.bf16.mxu0 0
      %4952 = vmatmul.mubr.bf16.gmra.mxu0 %v3436
      %v4953 = vpop.f32.mrf.mxu0
      %v4954 = vadd.f32 %v2552, %v4953
      %v4955 = vpop.f32.mrf.mxu0
      %v4956 = vadd.f32 %v2552, %v4955
      %v4957 = vpop.f32.mrf.mxu0
      %v4958 = vadd.f32 %v2557, %v4957
      %v4959 = vpop.f32.mrf.mxu0
      %v4960 = vadd.f32 %v2557, %v4959
      %4961 = vmatprep.mubr.bf16.mxu0 0
      %4962 = vmatmul.mubr.bf16.gmra.mxu0 %v3437
      %v4963 = vpop.f32.mrf.mxu0
      %v4964 = vadd.f32 %v2562, %v4963
      %v4965 = vpop.f32.mrf.mxu0
      %v4966 = vadd.f32 %v2562, %v4965
      %v4967 = vpop.f32.mrf.mxu0
      %v4968 = vadd.f32 %v2567, %v4967
      %v4969 = vpop.f32.mrf.mxu0
      %v4970 = vadd.f32 %v2567, %v4969
      %4971 = vmatprep.mubr.bf16.mxu0 0
      %4972 = vmatmul.mubr.bf16.gmra.mxu0 %v3438
      %v4973 = vpop.f32.mrf.mxu0
      %v4974 = vadd.f32 %v2572, %v4973
      %v4975 = vpop.f32.mrf.mxu0
      %v4976 = vadd.f32 %v2572, %v4975
      %v4977 = vpop.f32.mrf.mxu0
      %v4978 = vadd.f32 %v2577, %v4977
      %v4979 = vpop.f32.mrf.mxu0
      %v4980 = vadd.f32 %v2577, %v4979
      %4981 = vmatprep.mubr.bf16.mxu0 0
      %4982 = vmatmul.mubr.bf16.gmra.mxu0 %v3439
      %v4983 = vpop.f32.mrf.mxu0
      %v4984 = vadd.f32 %v2582, %v4983
      %v4985 = vpop.f32.mrf.mxu0
      %v4986 = vadd.f32 %v2582, %v4985
      %v4987 = vpop.f32.mrf.mxu0
      %v4988 = vadd.f32 %v2587, %v4987
      %v4989 = vpop.f32.mrf.mxu0
      %v4990 = vadd.f32 %v2587, %v4989
      %4991 = vmatprep.mubr.bf16.mxu0 0
      %4992 = vmatmul.mubr.bf16.gmra.mxu0 %v3440
      %v4993 = vpop.f32.mrf.mxu0
      %v4994 = vadd.f32 %v2592, %v4993
      %v4995 = vpop.f32.mrf.mxu0
      %v4996 = vadd.f32 %v2592, %v4995
      %v4997 = vpop.f32.mrf.mxu0
      %v4998 = vadd.f32 %v2597, %v4997
      %v4999 = vpop.f32.mrf.mxu0
      %v5000 = vadd.f32 %v2597, %v4999
      %5001 = vmatprep.mubr.bf16.mxu0 0
      %5002 = vmatmul.mubr.bf16.gmra.mxu0 %v3441
      %v5003 = vpop.f32.mrf.mxu0
      %v5004 = vadd.f32 %v2602, %v5003
      %v5005 = vpop.f32.mrf.mxu0
      %v5006 = vadd.f32 %v2602, %v5005
      %v5007 = vpop.f32.mrf.mxu0
      %v5008 = vadd.f32 %v2607, %v5007
      %v5009 = vpop.f32.mrf.mxu0
      %v5010 = vadd.f32 %v2607, %v5009
      %5011 = vmatprep.mubr.bf16.mxu0 0
      %5012 = vmatmul.mubr.bf16.gmra.mxu0 %v3442
      %v5013 = vpop.f32.mrf.mxu0
      %v5014 = vadd.f32 %v2612, %v5013
      %v5015 = vpop.f32.mrf.mxu0
      %v5016 = vadd.f32 %v2612, %v5015
      %v5017 = vpop.f32.mrf.mxu0
      %v5018 = vadd.f32 %v2617, %v5017
      %v5019 = vpop.f32.mrf.mxu0
      %v5020 = vadd.f32 %v2617, %v5019
      %5021 = vmatprep.mubr.bf16.mxu0 0
      %5022 = vmatmul.mubr.bf16.gmra.mxu0 %v3443
      %v5023 = vpop.f32.mrf.mxu0
      %v5024 = vadd.f32 %v2622, %v5023
      %v5025 = vpop.f32.mrf.mxu0
      %v5026 = vadd.f32 %v2622, %v5025
      %v5027 = vpop.f32.mrf.mxu0
      %v5028 = vadd.f32 %v2627, %v5027
      %v5029 = vpop.f32.mrf.mxu0
      %v5030 = vadd.f32 %v2627, %v5029
      %5031 = vmatprep.mubr.bf16.mxu0 0
      %5032 = vmatmul.mubr.bf16.gmra.mxu0 %v3444
      %v5033 = vpop.f32.mrf.mxu0
      %v5034 = vadd.f32 %v2632, %v5033
      %v5035 = vpop.f32.mrf.mxu0
      %v5036 = vadd.f32 %v2632, %v5035
      %v5037 = vpop.f32.mrf.mxu0
      %v5038 = vadd.f32 %v2637, %v5037
      %v5039 = vpop.f32.mrf.mxu0
      %v5040 = vadd.f32 %v2637, %v5039
      %5041 = vmatprep.mubr.bf16.mxu0 0
      %5042 = vmatmul.mubr.bf16.gmra.mxu0 %v3445
      %v5043 = vpop.f32.mrf.mxu0
      %v5044 = vadd.f32 %v2642, %v5043
      %v5045 = vpop.f32.mrf.mxu0
      %v5046 = vadd.f32 %v2642, %v5045
      %v5047 = vpop.f32.mrf.mxu0
      %v5048 = vadd.f32 %v2647, %v5047
      %v5049 = vpop.f32.mrf.mxu0
      %v5050 = vadd.f32 %v2647, %v5049
      %5051 = vmatprep.mubr.bf16.mxu0 0
      %5052 = vmatmul.mubr.bf16.gmra.mxu0 %v3446
      %v5053 = vpop.f32.mrf.mxu0
      %v5054 = vadd.f32 %v2652, %v5053
      %v5055 = vpop.f32.mrf.mxu0
      %v5056 = vadd.f32 %v2652, %v5055
      %v5057 = vpop.f32.mrf.mxu0
      %v5058 = vadd.f32 %v2657, %v5057
      %v5059 = vpop.f32.mrf.mxu0
      %v5060 = vadd.f32 %v2657, %v5059
      %5061 = vmatprep.mubr.bf16.mxu0 0
      %5062 = vmatmul.mubr.bf16.gmra.mxu0 %v3447
      %v5063 = vpop.f32.mrf.mxu0
      %v5064 = vadd.f32 %v2662, %v5063
      %v5065 = vpop.f32.mrf.mxu0
      %v5066 = vadd.f32 %v2662, %v5065
      %v5067 = vpop.f32.mrf.mxu0
      %v5068 = vadd.f32 %v2667, %v5067
      %v5069 = vpop.f32.mrf.mxu0
      %v5070 = vadd.f32 %v2667, %v5069
      %5071 = vmatprep.mubr.bf16.mxu0 0
      %5072 = vmatmul.mubr.bf16.gmra.mxu0 %v3448
      %v5073 = vpop.f32.mrf.mxu0
      %v5074 = vadd.f32 %v2672, %v5073
      %v5075 = vpop.f32.mrf.mxu0
      %v5076 = vadd.f32 %v2672, %v5075
      %v5077 = vpop.f32.mrf.mxu0
      %v5078 = vadd.f32 %v2677, %v5077
      %v5079 = vpop.f32.mrf.mxu0
      %v5080 = vadd.f32 %v2677, %v5079
      %5081 = vmatprep.mubr.bf16.mxu0 0
      %5082 = vmatmul.mubr.bf16.gmra.mxu0 %v3449
      %v5083 = vpop.f32.mrf.mxu0
      %v5084 = vadd.f32 %v2682, %v5083
      %v5085 = vpop.f32.mrf.mxu0
      %v5086 = vadd.f32 %v2682, %v5085
      %v5087 = vpop.f32.mrf.mxu0
      %v5088 = vadd.f32 %v2687, %v5087
      %v5089 = vpop.f32.mrf.mxu0
      %v5090 = vadd.f32 %v2687, %v5089
      %5091 = vmatprep.mubr.bf16.mxu0 0
      %5092 = vmatmul.mubr.bf16.gmra.mxu0 %v3450
      %v5093 = vpop.f32.mrf.mxu0
      %v5094 = vadd.f32 %v2692, %v5093
      %v5095 = vpop.f32.mrf.mxu0
      %v5096 = vadd.f32 %v2692, %v5095
      %v5097 = vpop.f32.mrf.mxu0
      %v5098 = vadd.f32 %v2697, %v5097
      %v5099 = vpop.f32.mrf.mxu0
      %v5100 = vadd.f32 %v2697, %v5099
      %5101 = vmatprep.mubr.bf16.mxu0 0
      %5102 = vmatmul.mubr.bf16.gmra.mxu0 %v3451
      %v5103 = vpop.f32.mrf.mxu0
      %v5104 = vadd.f32 %v2702, %v5103
      %v5105 = vpop.f32.mrf.mxu0
      %v5106 = vadd.f32 %v2702, %v5105
      %v5107 = vpop.f32.mrf.mxu0
      %v5108 = vadd.f32 %v2707, %v5107
      %v5109 = vpop.f32.mrf.mxu0
      %v5110 = vadd.f32 %v2707, %v5109
      %5111 = vmatprep.mubr.bf16.mxu0 0
      %5112 = vmatmul.mubr.bf16.gmra.mxu0 %v3452
      %v5113 = vpop.f32.mrf.mxu0
      %v5114 = vadd.f32 %v2712, %v5113
      %v5115 = vpop.f32.mrf.mxu0
      %v5116 = vadd.f32 %v2712, %v5115
      %v5117 = vpop.f32.mrf.mxu0
      %v5118 = vadd.f32 %v2717, %v5117
      %v5119 = vpop.f32.mrf.mxu0
      %v5120 = vadd.f32 %v2717, %v5119
      %5121 = vmatprep.mubr.bf16.mxu0 0
      %5122 = vmatmul.mubr.bf16.gmra.mxu0 %v3453
      %v5123 = vpop.f32.mrf.mxu0
      %v5124 = vadd.f32 %v2722, %v5123
      %v5125 = vpop.f32.mrf.mxu0
      %v5126 = vadd.f32 %v2722, %v5125
      %v5127 = vpop.f32.mrf.mxu0
      %v5128 = vadd.f32 %v2727, %v5127
      %v5129 = vpop.f32.mrf.mxu0
      %v5130 = vadd.f32 %v2727, %v5129
      %5131 = vmatprep.mubr.bf16.mxu0 0
      %5132 = vmatmul.mubr.bf16.gmra.mxu0 %v3454
      %v5133 = vpop.f32.mrf.mxu0
      %v5134 = vadd.f32 %v2732, %v5133
      %v5135 = vpop.f32.mrf.mxu0
      %v5136 = vadd.f32 %v2732, %v5135
      %v5137 = vpop.f32.mrf.mxu0
      %v5138 = vadd.f32 %v2737, %v5137
      %v5139 = vpop.f32.mrf.mxu0
      %v5140 = vadd.f32 %v2737, %v5139
      %5141 = vmatprep.mubr.bf16.mxu0 0
      %5142 = vmatmul.mubr.bf16.gmra.mxu0 %v3455
      %v5143 = vpop.f32.mrf.mxu0
      %v5144 = vadd.f32 %v2742, %v5143
      %v5145 = vpop.f32.mrf.mxu0
      %v5146 = vadd.f32 %v2742, %v5145
      %v5147 = vpop.f32.mrf.mxu0
      %v5148 = vadd.f32 %v2747, %v5147
      %v5149 = vpop.f32.mrf.mxu0
      %v5150 = vadd.f32 %v2747, %v5149
      %5151 = vmatprep.mubr.bf16.mxu0 0
      %5152 = vmatmul.mubr.bf16.gmra.mxu0 %v3456
      %v5153 = vpop.f32.mrf.mxu0
      %v5154 = vadd.f32 %v2752, %v5153
      %v5155 = vpop.f32.mrf.mxu0
      %v5156 = vadd.f32 %v2752, %v5155
      %v5157 = vpop.f32.mrf.mxu0
      %v5158 = vadd.f32 %v2757, %v5157
      %v5159 = vpop.f32.mrf.mxu0
      %v5160 = vadd.f32 %v2757, %v5159
      %5161 = vmatprep.mubr.bf16.mxu0 0
      %5162 = vmatmul.mubr.bf16.gmra.mxu0 %v3457
      %v5163 = vpop.f32.mrf.mxu0
      %v5164 = vadd.f32 %v2762, %v5163
      %v5165 = vpop.f32.mrf.mxu0
      %v5166 = vadd.f32 %v2762, %v5165
      %v5167 = vpop.f32.mrf.mxu0
      %v5168 = vadd.f32 %v2767, %v5167
      %v5169 = vpop.f32.mrf.mxu0
      %v5170 = vadd.f32 %v2767, %v5169
      %5171 = vmatprep.mubr.bf16.mxu0 0
      %5172 = vmatmul.mubr.bf16.gmra.mxu0 %v3458
      %v5173 = vpop.f32.mrf.mxu0
      %v5174 = vadd.f32 %v2772, %v5173
      %v5175 = vpop.f32.mrf.mxu0
      %v5176 = vadd.f32 %v2772, %v5175
      %v5177 = vpop.f32.mrf.mxu0
      %v5178 = vadd.f32 %v2777, %v5177
      %v5179 = vpop.f32.mrf.mxu0
      %v5180 = vadd.f32 %v2777, %v5179
      %5181 = vmatprep.mubr.bf16.mxu0 0
      %5182 = vmatmul.mubr.bf16.gmra.mxu0 %v3459
      %v5183 = vpop.f32.mrf.mxu0
      %v5184 = vadd.f32 %v2782, %v5183
      %v5185 = vpop.f32.mrf.mxu0
      %v5186 = vadd.f32 %v2782, %v5185
      %v5187 = vpop.f32.mrf.mxu0
      %v5188 = vadd.f32 %v2787, %v5187
      %v5189 = vpop.f32.mrf.mxu0
      %v5190 = vadd.f32 %v2787, %v5189
      %5191 = vmatprep.mubr.bf16.mxu0 0
      %5192 = vmatmul.mubr.bf16.gmra.mxu0 %v3460
      %v5193 = vpop.f32.mrf.mxu0
      %v5194 = vadd.f32 %v2792, %v5193
      %v5195 = vpop.f32.mrf.mxu0
      %v5196 = vadd.f32 %v2792, %v5195
      %v5197 = vpop.f32.mrf.mxu0
      %v5198 = vadd.f32 %v2797, %v5197
      %v5199 = vpop.f32.mrf.mxu0
      %v5200 = vadd.f32 %v2797, %v5199
      %5201 = vmatprep.mubr.bf16.mxu0 0
      %5202 = vmatmul.mubr.bf16.gmra.mxu0 %v3461
      %v5203 = vpop.f32.mrf.mxu0
      %v5204 = vadd.f32 %v2802, %v5203
      %v5205 = vpop.f32.mrf.mxu0
      %v5206 = vadd.f32 %v2802, %v5205
      %v5207 = vpop.f32.mrf.mxu0
      %v5208 = vadd.f32 %v2807, %v5207
      %v5209 = vpop.f32.mrf.mxu0
      %v5210 = vadd.f32 %v2807, %v5209
      %5211 = vmatprep.mubr.bf16.mxu0 0
      %5212 = vmatmul.mubr.bf16.gmra.mxu0 %v3462
      %v5213 = vpop.f32.mrf.mxu0
      %v5214 = vadd.f32 %v2812, %v5213
      %v5215 = vpop.f32.mrf.mxu0
      %v5216 = vadd.f32 %v2812, %v5215
      %v5217 = vpop.f32.mrf.mxu0
      %v5218 = vadd.f32 %v2817, %v5217
      %v5219 = vpop.f32.mrf.mxu0
      %v5220 = vadd.f32 %v2817, %v5219
      %5221 = vmatprep.mubr.bf16.mxu0 0
      %5222 = vmatmul.mubr.bf16.gmra.mxu0 %v3463
      %v5223 = vpop.f32.mrf.mxu0
      %v5224 = vadd.f32 %v2822, %v5223
      %v5225 = vpop.f32.mrf.mxu0
      %v5226 = vadd.f32 %v2822, %v5225
      %v5227 = vpop.f32.mrf.mxu0
      %v5228 = vadd.f32 %v2827, %v5227
      %v5229 = vpop.f32.mrf.mxu0
      %v5230 = vadd.f32 %v2827, %v5229
      %5231 = vmatprep.mubr.bf16.mxu0 0
      %5232 = vmatmul.mubr.bf16.gmra.mxu0 %v3464
      %v5233 = vpop.f32.mrf.mxu0
      %v5234 = vadd.f32 %v2832, %v5233
      %v5235 = vpop.f32.mrf.mxu0
      %v5236 = vadd.f32 %v2832, %v5235
      %v5237 = vpop.f32.mrf.mxu0
      %v5238 = vadd.f32 %v2837, %v5237
      %v5239 = vpop.f32.mrf.mxu0
      %v5240 = vadd.f32 %v2837, %v5239
      %5241 = vmatprep.mubr.bf16.mxu0 0
      %5242 = vmatmul.mubr.bf16.gmra.mxu0 %v3465
      %v5243 = vpop.f32.mrf.mxu0
      %v5244 = vadd.f32 %v2842, %v5243
      %v5245 = vpop.f32.mrf.mxu0
      %v5246 = vadd.f32 %v2842, %v5245
      %v5247 = vpop.f32.mrf.mxu0
      %v5248 = vadd.f32 %v2847, %v5247
      %v5249 = vpop.f32.mrf.mxu0
      %v5250 = vadd.f32 %v2847, %v5249
      %5251 = vmatprep.mubr.bf16.mxu0 0
      %5252 = vmatmul.mubr.bf16.gmra.mxu0 %v3466
      %v5253 = vpop.f32.mrf.mxu0
      %v5254 = vadd.f32 %v2852, %v5253
      %v5255 = vpop.f32.mrf.mxu0
      %v5256 = vadd.f32 %v2852, %v5255
      %v5257 = vpop.f32.mrf.mxu0
      %v5258 = vadd.f32 %v2857, %v5257
      %v5259 = vpop.f32.mrf.mxu0
      %v5260 = vadd.f32 %v2857, %v5259
      %5261 = vmatprep.mubr.bf16.mxu0 0
      %5262 = vmatmul.mubr.bf16.gmra.mxu0 %v3467
      %v5263 = vpop.f32.mrf.mxu0
      %v5264 = vadd.f32 %v2862, %v5263
      %v5265 = vpop.f32.mrf.mxu0
      %v5266 = vadd.f32 %v2862, %v5265
      %v5267 = vpop.f32.mrf.mxu0
      %v5268 = vadd.f32 %v2867, %v5267
      %v5269 = vpop.f32.mrf.mxu0
      %v5270 = vadd.f32 %v2867, %v5269
      %5271 = vmatprep.mubr.bf16.mxu0 0
      %5272 = vmatmul.mubr.bf16.gmra.mxu0 %v3468
      %v5273 = vpop.f32.mrf.mxu0
      %v5274 = vadd.f32 %v2872, %v5273
      %v5275 = vpop.f32.mrf.mxu0
      %v5276 = vadd.f32 %v2872, %v5275
      %v5277 = vpop.f32.mrf.mxu0
      %v5278 = vadd.f32 %v2877, %v5277
      %v5279 = vpop.f32.mrf.mxu0
      %v5280 = vadd.f32 %v2877, %v5279
      %5281 = vmatprep.mubr.bf16.mxu0 0
      %5282 = vmatmul.mubr.bf16.gmra.mxu0 %v3469
      %v5283 = vpop.f32.mrf.mxu0
      %v5284 = vadd.f32 %v2882, %v5283
      %v5285 = vpop.f32.mrf.mxu0
      %v5286 = vadd.f32 %v2882, %v5285
      %v5287 = vpop.f32.mrf.mxu0
      %v5288 = vadd.f32 %v2887, %v5287
      %v5289 = vpop.f32.mrf.mxu0
      %v5290 = vadd.f32 %v2887, %v5289
      %5291 = vmatprep.mubr.bf16.mxu0 0
      %5292 = vmatmul.mubr.bf16.gmra.mxu0 %v3470
      %v5293 = vpop.f32.mrf.mxu0
      %v5294 = vadd.f32 %v2892, %v5293
      %v5295 = vpop.f32.mrf.mxu0
      %v5296 = vadd.f32 %v2892, %v5295
      %v5297 = vpop.f32.mrf.mxu0
      %v5298 = vadd.f32 %v2897, %v5297
      %v5299 = vpop.f32.mrf.mxu0
      %v5300 = vadd.f32 %v2897, %v5299
      %5301 = vmatprep.mubr.bf16.mxu0 0
      %5302 = vmatmul.mubr.bf16.gmra.mxu0 %v3471
      %v5303 = vpop.f32.mrf.mxu0
      %v5304 = vadd.f32 %v2902, %v5303
      %v5305 = vpop.f32.mrf.mxu0
      %v5306 = vadd.f32 %v2902, %v5305
      %v5307 = vpop.f32.mrf.mxu0
      %v5308 = vadd.f32 %v2907, %v5307
      %v5309 = vpop.f32.mrf.mxu0
      %v5310 = vadd.f32 %v2907, %v5309
      %5311 = vmatprep.mubr.bf16.mxu0 0
      %5312 = vmatmul.mubr.bf16.gmra.mxu0 %v3472
      %v5313 = vpop.f32.mrf.mxu0
      %v5314 = vadd.f32 %v2912, %v5313
      %v5315 = vpop.f32.mrf.mxu0
      %v5316 = vadd.f32 %v2912, %v5315
      %v5317 = vpop.f32.mrf.mxu0
      %v5318 = vadd.f32 %v2917, %v5317
      %v5319 = vpop.f32.mrf.mxu0
      %v5320 = vadd.f32 %v2917, %v5319
      %5321 = vmatprep.mubr.bf16.mxu0 0
      %5322 = vmatmul.mubr.bf16.gmra.mxu0 %v3473
      %v5323 = vpop.f32.mrf.mxu0
      %v5324 = vadd.f32 %v2922, %v5323
      %v5325 = vpop.f32.mrf.mxu0
      %v5326 = vadd.f32 %v2922, %v5325
      %v5327 = vpop.f32.mrf.mxu0
      %v5328 = vadd.f32 %v2927, %v5327
      %v5329 = vpop.f32.mrf.mxu0
      %v5330 = vadd.f32 %v2927, %v5329
      %5331 = vmatprep.mubr.bf16.mxu0 0
      %5332 = vmatmul.mubr.bf16.gmra.mxu0 %v3474
      %v5333 = vpop.f32.mrf.mxu0
      %v5334 = vadd.f32 %v2932, %v5333
      %v5335 = vpop.f32.mrf.mxu0
      %v5336 = vadd.f32 %v2932, %v5335
      %v5337 = vpop.f32.mrf.mxu0
      %v5338 = vadd.f32 %v2937, %v5337
      %v5339 = vpop.f32.mrf.mxu0
      %v5340 = vadd.f32 %v2937, %v5339
      %5341 = vmatprep.mubr.bf16.mxu0 0
      %5342 = vmatmul.mubr.bf16.gmra.mxu0 %v3475
      %v5343 = vpop.f32.mrf.mxu0
      %v5344 = vadd.f32 %v2942, %v5343
      %v5345 = vpop.f32.mrf.mxu0
      %v5346 = vadd.f32 %v2942, %v5345
      %v5347 = vpop.f32.mrf.mxu0
      %v5348 = vadd.f32 %v2947, %v5347
      %v5349 = vpop.f32.mrf.mxu0
      %v5350 = vadd.f32 %v2947, %v5349
      %5351 = vmatprep.mubr.bf16.mxu0 0
      %5352 = vmatmul.mubr.bf16.gmra.mxu0 %v3476
      %v5353 = vpop.f32.mrf.mxu0
      %v5354 = vadd.f32 %v2952, %v5353
      %v5355 = vpop.f32.mrf.mxu0
      %v5356 = vadd.f32 %v2952, %v5355
      %v5357 = vpop.f32.mrf.mxu0
      %v5358 = vadd.f32 %v2957, %v5357
      %v5359 = vpop.f32.mrf.mxu0
      %v5360 = vadd.f32 %v2957, %v5359
      %5361 = vmatprep.mubr.bf16.mxu0 0
      %5362 = vmatmul.mubr.bf16.gmra.mxu0 %v3477
      %v5363 = vpop.f32.mrf.mxu0
      %v5364 = vadd.f32 %v2962, %v5363
      %v5365 = vpop.f32.mrf.mxu0
      %v5366 = vadd.f32 %v2962, %v5365
      %v5367 = vpop.f32.mrf.mxu0
      %v5368 = vadd.f32 %v2967, %v5367
      %v5369 = vpop.f32.mrf.mxu0
      %v5370 = vadd.f32 %v2967, %v5369
      %5371 = vmatprep.mubr.bf16.mxu0 0
      %5372 = vmatmul.mubr.bf16.gmra.mxu0 %v3478
      %v5373 = vpop.f32.mrf.mxu0
      %v5374 = vadd.f32 %v2972, %v5373
      %v5375 = vpop.f32.mrf.mxu0
      %v5376 = vadd.f32 %v2972, %v5375
      %v5377 = vpop.f32.mrf.mxu0
      %v5378 = vadd.f32 %v2977, %v5377
      %v5379 = vpop.f32.mrf.mxu0
      %v5380 = vadd.f32 %v2977, %v5379
      %5381 = vmatprep.mubr.bf16.mxu0 0
      %5382 = vmatmul.mubr.bf16.gmra.mxu0 %v3479
      %v5383 = vpop.f32.mrf.mxu0
      %v5384 = vadd.f32 %v2982, %v5383
      %v5385 = vpop.f32.mrf.mxu0
      %v5386 = vadd.f32 %v2982, %v5385
      %v5387 = vpop.f32.mrf.mxu0
      %v5388 = vadd.f32 %v2987, %v5387
      %v5389 = vpop.f32.mrf.mxu0
      %v5390 = vadd.f32 %v2987, %v5389
      %5391 = vmatprep.mubr.bf16.mxu0 0
      %5392 = vmatmul.mubr.bf16.gmra.mxu0 %v3480
      %v5393 = vpop.f32.mrf.mxu0
      %v5394 = vadd.f32 %v2992, %v5393
      %v5395 = vpop.f32.mrf.mxu0
      %v5396 = vadd.f32 %v2992, %v5395
      %v5397 = vpop.f32.mrf.mxu0
      %v5398 = vadd.f32 %v2997, %v5397
      %v5399 = vpop.f32.mrf.mxu0
      %v5400 = vadd.f32 %v2997, %v5399
      %5401 = vmatprep.mubr.bf16.mxu0 0
      %5402 = vmatmul.mubr.bf16.gmra.mxu0 %v3481
      %v5403 = vpop.f32.mrf.mxu0
      %v5404 = vadd.f32 %v3002, %v5403
      %v5405 = vpop.f32.mrf.mxu0
      %v5406 = vadd.f32 %v3002, %v5405
      %v5407 = vpop.f32.mrf.mxu0
      %v5408 = vadd.f32 %v3007, %v5407
      %v5409 = vpop.f32.mrf.mxu0
      %v5410 = vadd.f32 %v3007, %v5409
      %5411 = vmatprep.mubr.bf16.mxu0 0
      %5412 = vmatmul.mubr.bf16.gmra.mxu0 %v3482
      %v5413 = vpop.f32.mrf.mxu0
      %v5414 = vadd.f32 %v3012, %v5413
      %v5415 = vpop.f32.mrf.mxu0
      %v5416 = vadd.f32 %v3012, %v5415
      %v5417 = vpop.f32.mrf.mxu0
      %v5418 = vadd.f32 %v3017, %v5417
      %v5419 = vpop.f32.mrf.mxu0
      %v5420 = vadd.f32 %v3017, %v5419
      %5421 = vmatprep.mubr.bf16.mxu0 0
      %5422 = vmatmul.mubr.bf16.gmra.mxu0 %v3483
      %v5423 = vpop.f32.mrf.mxu0
      %v5424 = vadd.f32 %v3022, %v5423
      %v5425 = vpop.f32.mrf.mxu0
      %v5426 = vadd.f32 %v3022, %v5425
      %v5427 = vpop.f32.mrf.mxu0
      %v5428 = vadd.f32 %v3027, %v5427
      %v5429 = vpop.f32.mrf.mxu0
      %v5430 = vadd.f32 %v3027, %v5429
      %5431 = vmatprep.mubr.bf16.mxu0 0
      %5432 = vmatmul.mubr.bf16.gmra.mxu0 %v3484
      %v5433 = vpop.f32.mrf.mxu0
      %v5434 = vadd.f32 %v3032, %v5433
      %v5435 = vpop.f32.mrf.mxu0
      %v5436 = vadd.f32 %v3032, %v5435
      %v5437 = vpop.f32.mrf.mxu0
      %v5438 = vadd.f32 %v3037, %v5437
      %v5439 = vpop.f32.mrf.mxu0
      %v5440 = vadd.f32 %v3037, %v5439
      %5441 = vmatprep.mubr.bf16.mxu0 0
      %5442 = vmatmul.mubr.bf16.gmra.mxu0 %v3485
      %v5443 = vpop.f32.mrf.mxu0
      %v5444 = vadd.f32 %v3042, %v5443
      %v5445 = vpop.f32.mrf.mxu0
      %v5446 = vadd.f32 %v3042, %v5445
      %v5447 = vpop.f32.mrf.mxu0
      %v5448 = vadd.f32 %v3047, %v5447
      %v5449 = vpop.f32.mrf.mxu0
      %v5450 = vadd.f32 %v3047, %v5449
      %5451 = vmatprep.mubr.bf16.mxu0 0
      %5452 = vmatmul.mubr.bf16.gmra.mxu0 %v3486
      %v5453 = vpop.f32.mrf.mxu0
      %v5454 = vadd.f32 %v3052, %v5453
      %v5455 = vpop.f32.mrf.mxu0
      %v5456 = vadd.f32 %v3052, %v5455
      %v5457 = vpop.f32.mrf.mxu0
      %v5458 = vadd.f32 %v3057, %v5457
      %v5459 = vpop.f32.mrf.mxu0
      %v5460 = vadd.f32 %v3057, %v5459
      %5461 = vmatprep.mubr.bf16.mxu0 0
      %5462 = vmatmul.mubr.bf16.gmra.mxu0 %v3487
      %v5463 = vpop.f32.mrf.mxu0
      %v5464 = vadd.f32 %v3062, %v5463
      %v5465 = vpop.f32.mrf.mxu0
      %v5466 = vadd.f32 %v3062, %v5465
      %v5467 = vpop.f32.mrf.mxu0
      %v5468 = vadd.f32 %v3067, %v5467
      %v5469 = vpop.f32.mrf.mxu0
      %v5470 = vadd.f32 %v3067, %v5469
      %5471 = vmatprep.mubr.bf16.mxu0 0
      %5472 = vmatmul.mubr.bf16.gmra.mxu0 %v3488
      %v5473 = vpop.f32.mrf.mxu0
      %v5474 = vadd.f32 %v3072, %v5473
      %v5475 = vpop.f32.mrf.mxu0
      %v5476 = vadd.f32 %v3072, %v5475
      %v5477 = vpop.f32.mrf.mxu0
      %v5478 = vadd.f32 %v3077, %v5477
      %v5479 = vpop.f32.mrf.mxu0
      %v5480 = vadd.f32 %v3077, %v5479
      %5481 = vmatprep.mubr.bf16.mxu0 0
      %5482 = vmatmul.mubr.bf16.gmra.mxu0 %v3489
      %v5483 = vpop.f32.mrf.mxu0
      %v5484 = vadd.f32 %v3082, %v5483
      %v5485 = vpop.f32.mrf.mxu0
      %v5486 = vadd.f32 %v3082, %v5485
      %v5487 = vpop.f32.mrf.mxu0
      %v5488 = vadd.f32 %v3087, %v5487
      %v5489 = vpop.f32.mrf.mxu0
      %v5490 = vadd.f32 %v3087, %v5489
      %5491 = vmatprep.mubr.bf16.mxu0 0
      %5492 = vmatmul.mubr.bf16.gmra.mxu0 %v3490
      %v5493 = vpop.f32.mrf.mxu0
      %v5494 = vadd.f32 %v3092, %v5493
      %v5495 = vpop.f32.mrf.mxu0
      %v5496 = vadd.f32 %v3092, %v5495
      %v5497 = vpop.f32.mrf.mxu0
      %v5498 = vadd.f32 %v3097, %v5497
      %v5499 = vpop.f32.mrf.mxu0
      %v5500 = vadd.f32 %v3097, %v5499
      %5501 = vmatprep.mubr.bf16.mxu0 0
      %5502 = vmatmul.mubr.bf16.gmra.mxu0 %v3491
      %v5503 = vpop.f32.mrf.mxu0
      %v5504 = vadd.f32 %v3102, %v5503
      %v5505 = vpop.f32.mrf.mxu0
      %v5506 = vadd.f32 %v3102, %v5505
      %v5507 = vpop.f32.mrf.mxu0
      %v5508 = vadd.f32 %v3107, %v5507
      %v5509 = vpop.f32.mrf.mxu0
      %v5510 = vadd.f32 %v3107, %v5509
      %5511 = vmatprep.mubr.bf16.mxu0 0
      %5512 = vmatmul.mubr.bf16.gmra.mxu0 %v3492
      %v5513 = vpop.f32.mrf.mxu0
      %v5514 = vadd.f32 %v3112, %v5513
      %v5515 = vpop.f32.mrf.mxu0
      %v5516 = vadd.f32 %v3112, %v5515
      %v5517 = vpop.f32.mrf.mxu0
      %v5518 = vadd.f32 %v3117, %v5517
      %v5519 = vpop.f32.mrf.mxu0
      %v5520 = vadd.f32 %v3117, %v5519
      %5521 = vmatprep.mubr.bf16.mxu0 0
      %5522 = vmatmul.mubr.bf16.gmra.mxu0 %v3493
      %v5523 = vpop.f32.mrf.mxu0
      %v5524 = vadd.f32 %v3122, %v5523
      %v5525 = vpop.f32.mrf.mxu0
      %v5526 = vadd.f32 %v3122, %v5525
      %v5527 = vpop.f32.mrf.mxu0
      %v5528 = vadd.f32 %v3127, %v5527
      %v5529 = vpop.f32.mrf.mxu0
      %v5530 = vadd.f32 %v3127, %v5529
      %5531 = vmatprep.mubr.bf16.mxu0 0
      %5532 = vmatmul.mubr.bf16.gmra.mxu0 %v3494
      %v5533 = vpop.f32.mrf.mxu0
      %v5534 = vadd.f32 %v3132, %v5533
      %v5535 = vpop.f32.mrf.mxu0
      %v5536 = vadd.f32 %v3132, %v5535
      %v5537 = vpop.f32.mrf.mxu0
      %v5538 = vadd.f32 %v3137, %v5537
      %v5539 = vpop.f32.mrf.mxu0
      %v5540 = vadd.f32 %v3137, %v5539
      %5541 = vmatprep.mubr.bf16.mxu0 0
      %5542 = vmatmul.mubr.bf16.gmra.mxu0 %v3495
      %v5543 = vpop.f32.mrf.mxu0
      %v5544 = vadd.f32 %v3142, %v5543
      %v5545 = vpop.f32.mrf.mxu0
      %v5546 = vadd.f32 %v3142, %v5545
      %v5547 = vpop.f32.mrf.mxu0
      %v5548 = vadd.f32 %v3147, %v5547
      %v5549 = vpop.f32.mrf.mxu0
      %v5550 = vadd.f32 %v3147, %v5549
      %5551 = vmatprep.mubr.bf16.mxu0 0
      %5552 = vmatmul.mubr.bf16.gmra.mxu0 %v3496
      %v5553 = vpop.f32.mrf.mxu0
      %v5554 = vadd.f32 %v3152, %v5553
      %v5555 = vpop.f32.mrf.mxu0
      %v5556 = vadd.f32 %v3152, %v5555
      %v5557 = vpop.f32.mrf.mxu0
      %v5558 = vadd.f32 %v3157, %v5557
      %v5559 = vpop.f32.mrf.mxu0
      %v5560 = vadd.f32 %v3157, %v5559
      %5561 = vmatprep.mubr.bf16.mxu0 0
      %5562 = vmatmul.mubr.bf16.gmra.mxu0 %v3497
      %v5563 = vpop.f32.mrf.mxu0
      %v5564 = vadd.f32 %v3162, %v5563
      %v5565 = vpop.f32.mrf.mxu0
      %v5566 = vadd.f32 %v3162, %v5565
      %v5567 = vpop.f32.mrf.mxu0
      %v5568 = vadd.f32 %v3167, %v5567
      %v5569 = vpop.f32.mrf.mxu0
      %v5570 = vadd.f32 %v3167, %v5569
      %5571 = vmatprep.mubr.bf16.mxu0 0
      %5572 = vmatmul.mubr.bf16.gmra.mxu0 %v3498
      %v5573 = vpop.f32.mrf.mxu0
      %v5574 = vadd.f32 %v3172, %v5573
      %v5575 = vpop.f32.mrf.mxu0
      %v5576 = vadd.f32 %v3172, %v5575
      %v5577 = vpop.f32.mrf.mxu0
      %v5578 = vadd.f32 %v3177, %v5577
      %v5579 = vpop.f32.mrf.mxu0
      %v5580 = vadd.f32 %v3177, %v5579
      %5581 = vdwg.mxu0
      %5582 = vmatprep.subr.bf16.mxu0 %v2410
      %5583 = vmatpush1.bf16.msra.mxu0 %v2409
      %5584 = vmatprep.subr.bf16.mxu0 %v2402
      %5585 = vmatpush1.bf16.msra.mxu0 %v2401
      %5586 = vmatprep.subr.bf16.mxu0 %v2394
      %5587 = vmatpush1.bf16.msra.mxu0 %v2393
      %5588 = vmatprep.subr.bf16.mxu0 %v2386
      %5589 = vmatpush1.bf16.msra.mxu0 %v2385
      %5590 = vmatprep.subr.bf16.mxu0 %v2378
      %5591 = vmatpush1.bf16.msra.mxu0 %v2377
      %5592 = vmatprep.subr.bf16.mxu0 %v2370
      %5593 = vmatpush1.bf16.msra.mxu0 %v2369
      %5594 = vmatprep.subr.bf16.mxu0 %v2362
      %5595 = vmatpush1.bf16.msra.mxu0 %v2361
      %5596 = vmatprep.subr.bf16.mxu0 %v2354
      %5597 = vmatpush1.bf16.msra.mxu0 %v2353
      %5598 = vmatprep.subr.bf16.mxu0 0
      %5599 = vmatpush2.bf16.msra.mxu0 0
      %5600 = vmatprep.subr.bf16.mxu0 0
      %5601 = vmatpush2.bf16.msra.mxu0 0
      %5602 = vmatprep.subr.bf16.mxu0 0
      %5603 = vmatpush2.bf16.msra.mxu0 0
      %5604 = vmatprep.subr.bf16.mxu0 0
      %5605 = vmatpush2.bf16.msra.mxu0 0
      %5606 = vmatprep.subr.bf16.mxu0 0
      %5607 = vmatpush2.bf16.msra.mxu0 0
      %5608 = vmatprep.subr.bf16.mxu0 0
      %5609 = vmatpush2.bf16.msra.mxu0 0
      %5610 = vmatprep.subr.bf16.mxu0 0
      %5611 = vmatpush2.bf16.msra.mxu0 0
      %5612 = vmatprep.subr.bf16.mxu0 0
      %5613 = vmatpush2.bf16.msra.mxu0 0
      %5614 = vmatprep.mubr.bf16.mxu0 0
      %5615 = vmatmul.mubr.bf16.gmra.mxu0 %v3435
      %v5616 = vpop.f32.mrf.mxu0
      %v5617 = vadd.f32 %v2542, %v5616
      %v5618 = vpop.f32.mrf.mxu0
      %v5619 = vadd.f32 %v2542, %v5618
      %v5620 = vpop.f32.mrf.mxu0
      %v5621 = vadd.f32 %v2547, %v5620
      %v5622 = vpop.f32.mrf.mxu0
      %v5623 = vadd.f32 %v2547, %v5622
      %5624 = vmatprep.mubr.bf16.mxu0 0
      %5625 = vmatmul.mubr.bf16.gmra.mxu0 %v3436
      %v5626 = vpop.f32.mrf.mxu0
      %v5627 = vadd.f32 %v2552, %v5626
      %v5628 = vpop.f32.mrf.mxu0
      %v5629 = vadd.f32 %v2552, %v5628
      %v5630 = vpop.f32.mrf.mxu0
      %v5631 = vadd.f32 %v2557, %v5630
      %v5632 = vpop.f32.mrf.mxu0
      %v5633 = vadd.f32 %v2557, %v5632
      %5634 = vmatprep.mubr.bf16.mxu0 0
      %5635 = vmatmul.mubr.bf16.gmra.mxu0 %v3437
      %v5636 = vpop.f32.mrf.mxu0
      %v5637 = vadd.f32 %v2562, %v5636
      %v5638 = vpop.f32.mrf.mxu0
      %v5639 = vadd.f32 %v2562, %v5638
      %v5640 = vpop.f32.mrf.mxu0
      %v5641 = vadd.f32 %v2567, %v5640
      %v5642 = vpop.f32.mrf.mxu0
      %v5643 = vadd.f32 %v2567, %v5642
      %5644 = vmatprep.mubr.bf16.mxu0 0
      %5645 = vmatmul.mubr.bf16.gmra.mxu0 %v3438
      %v5646 = vpop.f32.mrf.mxu0
      %v5647 = vadd.f32 %v2572, %v5646
      %v5648 = vpop.f32.mrf.mxu0
      %v5649 = vadd.f32 %v2572, %v5648
      %v5650 = vpop.f32.mrf.mxu0
      %v5651 = vadd.f32 %v2577, %v5650
      %v5652 = vpop.f32.mrf.mxu0
      %v5653 = vadd.f32 %v2577, %v5652
      %5654 = vmatprep.mubr.bf16.mxu0 0
      %5655 = vmatmul.mubr.bf16.gmra.mxu0 %v3439
      %v5656 = vpop.f32.mrf.mxu0
      %v5657 = vadd.f32 %v2582, %v5656
      %v5658 = vpop.f32.mrf.mxu0
      %v5659 = vadd.f32 %v2582, %v5658
      %v5660 = vpop.f32.mrf.mxu0
      %v5661 = vadd.f32 %v2587, %v5660
      %v5662 = vpop.f32.mrf.mxu0
      %v5663 = vadd.f32 %v2587, %v5662
      %5664 = vmatprep.mubr.bf16.mxu0 0
      %5665 = vmatmul.mubr.bf16.gmra.mxu0 %v3440
      %v5666 = vpop.f32.mrf.mxu0
      %v5667 = vadd.f32 %v2592, %v5666
      %v5668 = vpop.f32.mrf.mxu0
      %v5669 = vadd.f32 %v2592, %v5668
      %v5670 = vpop.f32.mrf.mxu0
      %v5671 = vadd.f32 %v2597, %v5670
      %v5672 = vpop.f32.mrf.mxu0
      %v5673 = vadd.f32 %v2597, %v5672
      %5674 = vmatprep.mubr.bf16.mxu0 0
      %5675 = vmatmul.mubr.bf16.gmra.mxu0 %v3441
      %v5676 = vpop.f32.mrf.mxu0
      %v5677 = vadd.f32 %v2602, %v5676
      %v5678 = vpop.f32.mrf.mxu0
      %v5679 = vadd.f32 %v2602, %v5678
      %v5680 = vpop.f32.mrf.mxu0
      %v5681 = vadd.f32 %v2607, %v5680
      %v5682 = vpop.f32.mrf.mxu0
      %v5683 = vadd.f32 %v2607, %v5682
      %5684 = vmatprep.mubr.bf16.mxu0 0
      %5685 = vmatmul.mubr.bf16.gmra.mxu0 %v3442
      %v5686 = vpop.f32.mrf.mxu0
      %v5687 = vadd.f32 %v2612, %v5686
      %v5688 = vpop.f32.mrf.mxu0
      %v5689 = vadd.f32 %v2612, %v5688
      %v5690 = vpop.f32.mrf.mxu0
      %v5691 = vadd.f32 %v2617, %v5690
      %v5692 = vpop.f32.mrf.mxu0
      %v5693 = vadd.f32 %v2617, %v5692
      %5694 = vmatprep.mubr.bf16.mxu0 0
      %5695 = vmatmul.mubr.bf16.gmra.mxu0 %v3443
      %v5696 = vpop.f32.mrf.mxu0
      %v5697 = vadd.f32 %v2622, %v5696
      %v5698 = vpop.f32.mrf.mxu0
      %v5699 = vadd.f32 %v2622, %v5698
      %v5700 = vpop.f32.mrf.mxu0
      %v5701 = vadd.f32 %v2627, %v5700
      %v5702 = vpop.f32.mrf.mxu0
      %v5703 = vadd.f32 %v2627, %v5702
      %5704 = vmatprep.mubr.bf16.mxu0 0
      %5705 = vmatmul.mubr.bf16.gmra.mxu0 %v3444
      %v5706 = vpop.f32.mrf.mxu0
      %v5707 = vadd.f32 %v2632, %v5706
      %v5708 = vpop.f32.mrf.mxu0
      %v5709 = vadd.f32 %v2632, %v5708
      %v5710 = vpop.f32.mrf.mxu0
      %v5711 = vadd.f32 %v2637, %v5710
      %v5712 = vpop.f32.mrf.mxu0
      %v5713 = vadd.f32 %v2637, %v5712
      %5714 = vmatprep.mubr.bf16.mxu0 0
      %5715 = vmatmul.mubr.bf16.gmra.mxu0 %v3445
      %v5716 = vpop.f32.mrf.mxu0
      %v5717 = vadd.f32 %v2642, %v5716
      %v5718 = vpop.f32.mrf.mxu0
      %v5719 = vadd.f32 %v2642, %v5718
      %v5720 = vpop.f32.mrf.mxu0
      %v5721 = vadd.f32 %v2647, %v5720
      %v5722 = vpop.f32.mrf.mxu0
      %v5723 = vadd.f32 %v2647, %v5722
      %5724 = vmatprep.mubr.bf16.mxu0 0
      %5725 = vmatmul.mubr.bf16.gmra.mxu0 %v3446
      %v5726 = vpop.f32.mrf.mxu0
      %v5727 = vadd.f32 %v2652, %v5726
      %v5728 = vpop.f32.mrf.mxu0
      %v5729 = vadd.f32 %v2652, %v5728
      %v5730 = vpop.f32.mrf.mxu0
      %v5731 = vadd.f32 %v2657, %v5730
      %v5732 = vpop.f32.mrf.mxu0
      %v5733 = vadd.f32 %v2657, %v5732
      %5734 = vmatprep.mubr.bf16.mxu0 0
      %5735 = vmatmul.mubr.bf16.gmra.mxu0 %v3447
      %v5736 = vpop.f32.mrf.mxu0
      %v5737 = vadd.f32 %v2662, %v5736
      %v5738 = vpop.f32.mrf.mxu0
      %v5739 = vadd.f32 %v2662, %v5738
      %v5740 = vpop.f32.mrf.mxu0
      %v5741 = vadd.f32 %v2667, %v5740
      %v5742 = vpop.f32.mrf.mxu0
      %v5743 = vadd.f32 %v2667, %v5742
      %5744 = vmatprep.mubr.bf16.mxu0 0
      %5745 = vmatmul.mubr.bf16.gmra.mxu0 %v3448
      %v5746 = vpop.f32.mrf.mxu0
      %v5747 = vadd.f32 %v2672, %v5746
      %v5748 = vpop.f32.mrf.mxu0
      %v5749 = vadd.f32 %v2672, %v5748
      %v5750 = vpop.f32.mrf.mxu0
      %v5751 = vadd.f32 %v2677, %v5750
      %v5752 = vpop.f32.mrf.mxu0
      %v5753 = vadd.f32 %v2677, %v5752
      %5754 = vmatprep.mubr.bf16.mxu0 0
      %5755 = vmatmul.mubr.bf16.gmra.mxu0 %v3449
      %v5756 = vpop.f32.mrf.mxu0
      %v5757 = vadd.f32 %v2682, %v5756
      %v5758 = vpop.f32.mrf.mxu0
      %v5759 = vadd.f32 %v2682, %v5758
      %v5760 = vpop.f32.mrf.mxu0
      %v5761 = vadd.f32 %v2687, %v5760
      %v5762 = vpop.f32.mrf.mxu0
      %v5763 = vadd.f32 %v2687, %v5762
      %5764 = vmatprep.mubr.bf16.mxu0 0
      %5765 = vmatmul.mubr.bf16.gmra.mxu0 %v3450
      %v5766 = vpop.f32.mrf.mxu0
      %v5767 = vadd.f32 %v2692, %v5766
      %v5768 = vpop.f32.mrf.mxu0
      %v5769 = vadd.f32 %v2692, %v5768
      %v5770 = vpop.f32.mrf.mxu0
      %v5771 = vadd.f32 %v2697, %v5770
      %v5772 = vpop.f32.mrf.mxu0
      %v5773 = vadd.f32 %v2697, %v5772
      %5774 = vmatprep.mubr.bf16.mxu0 0
      %5775 = vmatmul.mubr.bf16.gmra.mxu0 %v3451
      %v5776 = vpop.f32.mrf.mxu0
      %v5777 = vadd.f32 %v2702, %v5776
      %v5778 = vpop.f32.mrf.mxu0
      %v5779 = vadd.f32 %v2702, %v5778
      %v5780 = vpop.f32.mrf.mxu0
      %v5781 = vadd.f32 %v2707, %v5780
      %v5782 = vpop.f32.mrf.mxu0
      %v5783 = vadd.f32 %v2707, %v5782
      %5784 = vmatprep.mubr.bf16.mxu0 0
      %5785 = vmatmul.mubr.bf16.gmra.mxu0 %v3452
      %v5786 = vpop.f32.mrf.mxu0
      %v5787 = vadd.f32 %v2712, %v5786
      %v5788 = vpop.f32.mrf.mxu0
      %v5789 = vadd.f32 %v2712, %v5788
      %v5790 = vpop.f32.mrf.mxu0
      %v5791 = vadd.f32 %v2717, %v5790
      %v5792 = vpop.f32.mrf.mxu0
      %v5793 = vadd.f32 %v2717, %v5792
      %5794 = vmatprep.mubr.bf16.mxu0 0
      %5795 = vmatmul.mubr.bf16.gmra.mxu0 %v3453
      %v5796 = vpop.f32.mrf.mxu0
      %v5797 = vadd.f32 %v2722, %v5796
      %v5798 = vpop.f32.mrf.mxu0
      %v5799 = vadd.f32 %v2722, %v5798
      %v5800 = vpop.f32.mrf.mxu0
      %v5801 = vadd.f32 %v2727, %v5800
      %v5802 = vpop.f32.mrf.mxu0
      %v5803 = vadd.f32 %v2727, %v5802
      %5804 = vmatprep.mubr.bf16.mxu0 0
      %5805 = vmatmul.mubr.bf16.gmra.mxu0 %v3454
      %v5806 = vpop.f32.mrf.mxu0
      %v5807 = vadd.f32 %v2732, %v5806
      %v5808 = vpop.f32.mrf.mxu0
      %v5809 = vadd.f32 %v2732, %v5808
      %v5810 = vpop.f32.mrf.mxu0
      %v5811 = vadd.f32 %v2737, %v5810
      %v5812 = vpop.f32.mrf.mxu0
      %v5813 = vadd.f32 %v2737, %v5812
      %5814 = vmatprep.mubr.bf16.mxu0 0
      %5815 = vmatmul.mubr.bf16.gmra.mxu0 %v3455
      %v5816 = vpop.f32.mrf.mxu0
      %v5817 = vadd.f32 %v2742, %v5816
      %v5818 = vpop.f32.mrf.mxu0
      %v5819 = vadd.f32 %v2742, %v5818
      %v5820 = vpop.f32.mrf.mxu0
      %v5821 = vadd.f32 %v2747, %v5820
      %v5822 = vpop.f32.mrf.mxu0
      %v5823 = vadd.f32 %v2747, %v5822
      %5824 = vmatprep.mubr.bf16.mxu0 0
      %5825 = vmatmul.mubr.bf16.gmra.mxu0 %v3456
      %v5826 = vpop.f32.mrf.mxu0
      %v5827 = vadd.f32 %v2752, %v5826
      %v5828 = vpop.f32.mrf.mxu0
      %v5829 = vadd.f32 %v2752, %v5828
      %v5830 = vpop.f32.mrf.mxu0
      %v5831 = vadd.f32 %v2757, %v5830
      %v5832 = vpop.f32.mrf.mxu0
      %v5833 = vadd.f32 %v2757, %v5832
      %5834 = vmatprep.mubr.bf16.mxu0 0
      %5835 = vmatmul.mubr.bf16.gmra.mxu0 %v3457
      %v5836 = vpop.f32.mrf.mxu0
      %v5837 = vadd.f32 %v2762, %v5836
      %v5838 = vpop.f32.mrf.mxu0
      %v5839 = vadd.f32 %v2762, %v5838
      %v5840 = vpop.f32.mrf.mxu0
      %v5841 = vadd.f32 %v2767, %v5840
      %v5842 = vpop.f32.mrf.mxu0
      %v5843 = vadd.f32 %v2767, %v5842
      %5844 = vmatprep.mubr.bf16.mxu0 0
      %5845 = vmatmul.mubr.bf16.gmra.mxu0 %v3458
      %v5846 = vpop.f32.mrf.mxu0
      %v5847 = vadd.f32 %v2772, %v5846
      %v5848 = vpop.f32.mrf.mxu0
      %v5849 = vadd.f32 %v2772, %v5848
      %v5850 = vpop.f32.mrf.mxu0
      %v5851 = vadd.f32 %v2777, %v5850
      %v5852 = vpop.f32.mrf.mxu0
      %v5853 = vadd.f32 %v2777, %v5852
      %5854 = vmatprep.mubr.bf16.mxu0 0
      %5855 = vmatmul.mubr.bf16.gmra.mxu0 %v3459
      %v5856 = vpop.f32.mrf.mxu0
      %v5857 = vadd.f32 %v2782, %v5856
      %v5858 = vpop.f32.mrf.mxu0
      %v5859 = vadd.f32 %v2782, %v5858
      %v5860 = vpop.f32.mrf.mxu0
      %v5861 = vadd.f32 %v2787, %v5860
      %v5862 = vpop.f32.mrf.mxu0
      %v5863 = vadd.f32 %v2787, %v5862
      %5864 = vmatprep.mubr.bf16.mxu0 0
      %5865 = vmatmul.mubr.bf16.gmra.mxu0 %v3460
      %v5866 = vpop.f32.mrf.mxu0
      %v5867 = vadd.f32 %v2792, %v5866
      %v5868 = vpop.f32.mrf.mxu0
      %v5869 = vadd.f32 %v2792, %v5868
      %v5870 = vpop.f32.mrf.mxu0
      %v5871 = vadd.f32 %v2797, %v5870
      %v5872 = vpop.f32.mrf.mxu0
      %v5873 = vadd.f32 %v2797, %v5872
      %5874 = vmatprep.mubr.bf16.mxu0 0
      %5875 = vmatmul.mubr.bf16.gmra.mxu0 %v3461
      %v5876 = vpop.f32.mrf.mxu0
      %v5877 = vadd.f32 %v2802, %v5876
      %v5878 = vpop.f32.mrf.mxu0
      %v5879 = vadd.f32 %v2802, %v5878
      %v5880 = vpop.f32.mrf.mxu0
      %v5881 = vadd.f32 %v2807, %v5880
      %v5882 = vpop.f32.mrf.mxu0
      %v5883 = vadd.f32 %v2807, %v5882
      %5884 = vmatprep.mubr.bf16.mxu0 0
      %5885 = vmatmul.mubr.bf16.gmra.mxu0 %v3462
      %v5886 = vpop.f32.mrf.mxu0
      %v5887 = vadd.f32 %v2812, %v5886
      %v5888 = vpop.f32.mrf.mxu0
      %v5889 = vadd.f32 %v2812, %v5888
      %v5890 = vpop.f32.mrf.mxu0
      %v5891 = vadd.f32 %v2817, %v5890
      %v5892 = vpop.f32.mrf.mxu0
      %v5893 = vadd.f32 %v2817, %v5892
      %5894 = vmatprep.mubr.bf16.mxu0 0
      %5895 = vmatmul.mubr.bf16.gmra.mxu0 %v3463
      %v5896 = vpop.f32.mrf.mxu0
      %v5897 = vadd.f32 %v2822, %v5896
      %v5898 = vpop.f32.mrf.mxu0
      %v5899 = vadd.f32 %v2822, %v5898
      %v5900 = vpop.f32.mrf.mxu0
      %v5901 = vadd.f32 %v2827, %v5900
      %v5902 = vpop.f32.mrf.mxu0
      %v5903 = vadd.f32 %v2827, %v5902
      %5904 = vmatprep.mubr.bf16.mxu0 0
      %5905 = vmatmul.mubr.bf16.gmra.mxu0 %v3464
      %v5906 = vpop.f32.mrf.mxu0
      %v5907 = vadd.f32 %v2832, %v5906
      %v5908 = vpop.f32.mrf.mxu0
      %v5909 = vadd.f32 %v2832, %v5908
      %v5910 = vpop.f32.mrf.mxu0
      %v5911 = vadd.f32 %v2837, %v5910
      %v5912 = vpop.f32.mrf.mxu0
      %v5913 = vadd.f32 %v2837, %v5912
      %5914 = vmatprep.mubr.bf16.mxu0 0
      %5915 = vmatmul.mubr.bf16.gmra.mxu0 %v3465
      %v5916 = vpop.f32.mrf.mxu0
      %v5917 = vadd.f32 %v2842, %v5916
      %v5918 = vpop.f32.mrf.mxu0
      %v5919 = vadd.f32 %v2842, %v5918
      %v5920 = vpop.f32.mrf.mxu0
      %v5921 = vadd.f32 %v2847, %v5920
      %v5922 = vpop.f32.mrf.mxu0
      %v5923 = vadd.f32 %v2847, %v5922
      %5924 = vmatprep.mubr.bf16.mxu0 0
      %5925 = vmatmul.mubr.bf16.gmra.mxu0 %v3466
      %v5926 = vpop.f32.mrf.mxu0
      %v5927 = vadd.f32 %v2852, %v5926
      %v5928 = vpop.f32.mrf.mxu0
      %v5929 = vadd.f32 %v2852, %v5928
      %v5930 = vpop.f32.mrf.mxu0
      %v5931 = vadd.f32 %v2857, %v5930
      %v5932 = vpop.f32.mrf.mxu0
      %v5933 = vadd.f32 %v2857, %v5932
      %5934 = vmatprep.mubr.bf16.mxu0 0
      %5935 = vmatmul.mubr.bf16.gmra.mxu0 %v3467
      %v5936 = vpop.f32.mrf.mxu0
      %v5937 = vadd.f32 %v2862, %v5936
      %v5938 = vpop.f32.mrf.mxu0
      %v5939 = vadd.f32 %v2862, %v5938
      %v5940 = vpop.f32.mrf.mxu0
      %v5941 = vadd.f32 %v2867, %v5940
      %v5942 = vpop.f32.mrf.mxu0
      %v5943 = vadd.f32 %v2867, %v5942
      %5944 = vmatprep.mubr.bf16.mxu0 0
      %5945 = vmatmul.mubr.bf16.gmra.mxu0 %v3468
      %v5946 = vpop.f32.mrf.mxu0
      %v5947 = vadd.f32 %v2872, %v5946
      %v5948 = vpop.f32.mrf.mxu0
      %v5949 = vadd.f32 %v2872, %v5948
      %v5950 = vpop.f32.mrf.mxu0
      %v5951 = vadd.f32 %v2877, %v5950
      %v5952 = vpop.f32.mrf.mxu0
      %v5953 = vadd.f32 %v2877, %v5952
      %5954 = vmatprep.mubr.bf16.mxu0 0
      %5955 = vmatmul.mubr.bf16.gmra.mxu0 %v3469
      %v5956 = vpop.f32.mrf.mxu0
      %v5957 = vadd.f32 %v2882, %v5956
      %v5958 = vpop.f32.mrf.mxu0
      %v5959 = vadd.f32 %v2882, %v5958
      %v5960 = vpop.f32.mrf.mxu0
      %v5961 = vadd.f32 %v2887, %v5960
      %v5962 = vpop.f32.mrf.mxu0
      %v5963 = vadd.f32 %v2887, %v5962
      %5964 = vmatprep.mubr.bf16.mxu0 0
      %5965 = vmatmul.mubr.bf16.gmra.mxu0 %v3470
      %v5966 = vpop.f32.mrf.mxu0
      %v5967 = vadd.f32 %v2892, %v5966
      %v5968 = vpop.f32.mrf.mxu0
      %v5969 = vadd.f32 %v2892, %v5968
      %v5970 = vpop.f32.mrf.mxu0
      %v5971 = vadd.f32 %v2897, %v5970
      %v5972 = vpop.f32.mrf.mxu0
      %v5973 = vadd.f32 %v2897, %v5972
      %5974 = vmatprep.mubr.bf16.mxu0 0
      %5975 = vmatmul.mubr.bf16.gmra.mxu0 %v3471
      %v5976 = vpop.f32.mrf.mxu0
      %v5977 = vadd.f32 %v2902, %v5976
      %v5978 = vpop.f32.mrf.mxu0
      %v5979 = vadd.f32 %v2902, %v5978
      %v5980 = vpop.f32.mrf.mxu0
      %v5981 = vadd.f32 %v2907, %v5980
      %v5982 = vpop.f32.mrf.mxu0
      %v5983 = vadd.f32 %v2907, %v5982
      %5984 = vmatprep.mubr.bf16.mxu0 0
      %5985 = vmatmul.mubr.bf16.gmra.mxu0 %v3472
      %v5986 = vpop.f32.mrf.mxu0
      %v5987 = vadd.f32 %v2912, %v5986
      %v5988 = vpop.f32.mrf.mxu0
      %v5989 = vadd.f32 %v2912, %v5988
      %v5990 = vpop.f32.mrf.mxu0
      %v5991 = vadd.f32 %v2917, %v5990
      %v5992 = vpop.f32.mrf.mxu0
      %v5993 = vadd.f32 %v2917, %v5992
      %5994 = vmatprep.mubr.bf16.mxu0 0
      %5995 = vmatmul.mubr.bf16.gmra.mxu0 %v3473
      %v5996 = vpop.f32.mrf.mxu0
      %v5997 = vadd.f32 %v2922, %v5996
      %v5998 = vpop.f32.mrf.mxu0
      %v5999 = vadd.f32 %v2922, %v5998
      %v6000 = vpop.f32.mrf.mxu0
      %v6001 = vadd.f32 %v2927, %v6000
      %v6002 = vpop.f32.mrf.mxu0
      %v6003 = vadd.f32 %v2927, %v6002
      %6004 = vmatprep.mubr.bf16.mxu0 0
      %6005 = vmatmul.mubr.bf16.gmra.mxu0 %v3474
      %v6006 = vpop.f32.mrf.mxu0
      %v6007 = vadd.f32 %v2932, %v6006
      %v6008 = vpop.f32.mrf.mxu0
      %v6009 = vadd.f32 %v2932, %v6008
      %v6010 = vpop.f32.mrf.mxu0
      %v6011 = vadd.f32 %v2937, %v6010
      %v6012 = vpop.f32.mrf.mxu0
      %v6013 = vadd.f32 %v2937, %v6012
      %6014 = vmatprep.mubr.bf16.mxu0 0
      %6015 = vmatmul.mubr.bf16.gmra.mxu0 %v3475
      %v6016 = vpop.f32.mrf.mxu0
      %v6017 = vadd.f32 %v2942, %v6016
      %v6018 = vpop.f32.mrf.mxu0
      %v6019 = vadd.f32 %v2942, %v6018
      %v6020 = vpop.f32.mrf.mxu0
      %v6021 = vadd.f32 %v2947, %v6020
      %v6022 = vpop.f32.mrf.mxu0
      %v6023 = vadd.f32 %v2947, %v6022
      %6024 = vmatprep.mubr.bf16.mxu0 0
      %6025 = vmatmul.mubr.bf16.gmra.mxu0 %v3476
      %v6026 = vpop.f32.mrf.mxu0
      %v6027 = vadd.f32 %v2952, %v6026
      %v6028 = vpop.f32.mrf.mxu0
      %v6029 = vadd.f32 %v2952, %v6028
      %v6030 = vpop.f32.mrf.mxu0
      %v6031 = vadd.f32 %v2957, %v6030
      %v6032 = vpop.f32.mrf.mxu0
      %v6033 = vadd.f32 %v2957, %v6032
      %6034 = vmatprep.mubr.bf16.mxu0 0
      %6035 = vmatmul.mubr.bf16.gmra.mxu0 %v3477
      %v6036 = vpop.f32.mrf.mxu0
      %v6037 = vadd.f32 %v2962, %v6036
      %v6038 = vpop.f32.mrf.mxu0
      %v6039 = vadd.f32 %v2962, %v6038
      %v6040 = vpop.f32.mrf.mxu0
      %v6041 = vadd.f32 %v2967, %v6040
      %v6042 = vpop.f32.mrf.mxu0
      %v6043 = vadd.f32 %v2967, %v6042
      %6044 = vmatprep.mubr.bf16.mxu0 0
      %6045 = vmatmul.mubr.bf16.gmra.mxu0 %v3478
      %v6046 = vpop.f32.mrf.mxu0
      %v6047 = vadd.f32 %v2972, %v6046
      %v6048 = vpop.f32.mrf.mxu0
      %v6049 = vadd.f32 %v2972, %v6048
      %v6050 = vpop.f32.mrf.mxu0
      %v6051 = vadd.f32 %v2977, %v6050
      %v6052 = vpop.f32.mrf.mxu0
      %v6053 = vadd.f32 %v2977, %v6052
      %6054 = vmatprep.mubr.bf16.mxu0 0
      %6055 = vmatmul.mubr.bf16.gmra.mxu0 %v3479
      %v6056 = vpop.f32.mrf.mxu0
      %v6057 = vadd.f32 %v2982, %v6056
      %v6058 = vpop.f32.mrf.mxu0
      %v6059 = vadd.f32 %v2982, %v6058
      %v6060 = vpop.f32.mrf.mxu0
      %v6061 = vadd.f32 %v2987, %v6060
      %v6062 = vpop.f32.mrf.mxu0
      %v6063 = vadd.f32 %v2987, %v6062
      %6064 = vmatprep.mubr.bf16.mxu0 0
      %6065 = vmatmul.mubr.bf16.gmra.mxu0 %v3480
      %v6066 = vpop.f32.mrf.mxu0
      %v6067 = vadd.f32 %v2992, %v6066
      %v6068 = vpop.f32.mrf.mxu0
      %v6069 = vadd.f32 %v2992, %v6068
      %v6070 = vpop.f32.mrf.mxu0
      %v6071 = vadd.f32 %v2997, %v6070
      %v6072 = vpop.f32.mrf.mxu0
      %v6073 = vadd.f32 %v2997, %v6072
      %6074 = vmatprep.mubr.bf16.mxu0 0
      %6075 = vmatmul.mubr.bf16.gmra.mxu0 %v3481
      %v6076 = vpop.f32.mrf.mxu0
      %v6077 = vadd.f32 %v3002, %v6076
      %v6078 = vpop.f32.mrf.mxu0
      %v6079 = vadd.f32 %v3002, %v6078
      %v6080 = vpop.f32.mrf.mxu0
      %v6081 = vadd.f32 %v3007, %v6080
      %v6082 = vpop.f32.mrf.mxu0
      %v6083 = vadd.f32 %v3007, %v6082
      %6084 = vmatprep.mubr.bf16.mxu0 0
      %6085 = vmatmul.mubr.bf16.gmra.mxu0 %v3482
      %v6086 = vpop.f32.mrf.mxu0
      %v6087 = vadd.f32 %v3012, %v6086
      %v6088 = vpop.f32.mrf.mxu0
      %v6089 = vadd.f32 %v3012, %v6088
      %v6090 = vpop.f32.mrf.mxu0
      %v6091 = vadd.f32 %v3017, %v6090
      %v6092 = vpop.f32.mrf.mxu0
      %v6093 = vadd.f32 %v3017, %v6092
      %6094 = vmatprep.mubr.bf16.mxu0 0
      %6095 = vmatmul.mubr.bf16.gmra.mxu0 %v3483
      %v6096 = vpop.f32.mrf.mxu0
      %v6097 = vadd.f32 %v3022, %v6096
      %v6098 = vpop.f32.mrf.mxu0
      %v6099 = vadd.f32 %v3022, %v6098
      %v6100 = vpop.f32.mrf.mxu0
      %v6101 = vadd.f32 %v3027, %v6100
      %v6102 = vpop.f32.mrf.mxu0
      %v6103 = vadd.f32 %v3027, %v6102
      %6104 = vmatprep.mubr.bf16.mxu0 0
      %6105 = vmatmul.mubr.bf16.gmra.mxu0 %v3484
      %v6106 = vpop.f32.mrf.mxu0
      %v6107 = vadd.f32 %v3032, %v6106
      %v6108 = vpop.f32.mrf.mxu0
      %v6109 = vadd.f32 %v3032, %v6108
      %v6110 = vpop.f32.mrf.mxu0
      %v6111 = vadd.f32 %v3037, %v6110
      %v6112 = vpop.f32.mrf.mxu0
      %v6113 = vadd.f32 %v3037, %v6112
      %6114 = vmatprep.mubr.bf16.mxu0 0
      %6115 = vmatmul.mubr.bf16.gmra.mxu0 %v3485
      %v6116 = vpop.f32.mrf.mxu0
      %v6117 = vadd.f32 %v3042, %v6116
      %v6118 = vpop.f32.mrf.mxu0
      %v6119 = vadd.f32 %v3042, %v6118
      %v6120 = vpop.f32.mrf.mxu0
      %v6121 = vadd.f32 %v3047, %v6120
      %v6122 = vpop.f32.mrf.mxu0
      %v6123 = vadd.f32 %v3047, %v6122
      %6124 = vmatprep.mubr.bf16.mxu0 0
      %6125 = vmatmul.mubr.bf16.gmra.mxu0 %v3486
      %v6126 = vpop.f32.mrf.mxu0
      %v6127 = vadd.f32 %v3052, %v6126
      %v6128 = vpop.f32.mrf.mxu0
      %v6129 = vadd.f32 %v3052, %v6128
      %v6130 = vpop.f32.mrf.mxu0
      %v6131 = vadd.f32 %v3057, %v6130
      %v6132 = vpop.f32.mrf.mxu0
      %v6133 = vadd.f32 %v3057, %v6132
      %6134 = vmatprep.mubr.bf16.mxu0 0
      %6135 = vmatmul.mubr.bf16.gmra.mxu0 %v3487
      %v6136 = vpop.f32.mrf.mxu0
      %v6137 = vadd.f32 %v3062, %v6136
      %v6138 = vpop.f32.mrf.mxu0
      %v6139 = vadd.f32 %v3062, %v6138
      %v6140 = vpop.f32.mrf.mxu0
      %v6141 = vadd.f32 %v3067, %v6140
      %v6142 = vpop.f32.mrf.mxu0
      %v6143 = vadd.f32 %v3067, %v6142
      %6144 = vmatprep.mubr.bf16.mxu0 0
      %6145 = vmatmul.mubr.bf16.gmra.mxu0 %v3488
      %v6146 = vpop.f32.mrf.mxu0
      %v6147 = vadd.f32 %v3072, %v6146
      %v6148 = vpop.f32.mrf.mxu0
      %v6149 = vadd.f32 %v3072, %v6148
      %v6150 = vpop.f32.mrf.mxu0
      %v6151 = vadd.f32 %v3077, %v6150
      %v6152 = vpop.f32.mrf.mxu0
      %v6153 = vadd.f32 %v3077, %v6152
      %6154 = vmatprep.mubr.bf16.mxu0 0
      %6155 = vmatmul.mubr.bf16.gmra.mxu0 %v3489
      %v6156 = vpop.f32.mrf.mxu0
      %v6157 = vadd.f32 %v3082, %v6156
      %v6158 = vpop.f32.mrf.mxu0
      %v6159 = vadd.f32 %v3082, %v6158
      %v6160 = vpop.f32.mrf.mxu0
      %v6161 = vadd.f32 %v3087, %v6160
      %v6162 = vpop.f32.mrf.mxu0
      %v6163 = vadd.f32 %v3087, %v6162
      %6164 = vmatprep.mubr.bf16.mxu0 0
      %6165 = vmatmul.mubr.bf16.gmra.mxu0 %v3490
      %v6166 = vpop.f32.mrf.mxu0
      %v6167 = vadd.f32 %v3092, %v6166
      %v6168 = vpop.f32.mrf.mxu0
      %v6169 = vadd.f32 %v3092, %v6168
      %v6170 = vpop.f32.mrf.mxu0
      %v6171 = vadd.f32 %v3097, %v6170
      %v6172 = vpop.f32.mrf.mxu0
      %v6173 = vadd.f32 %v3097, %v6172
      %6174 = vmatprep.mubr.bf16.mxu0 0
      %6175 = vmatmul.mubr.bf16.gmra.mxu0 %v3491
      %v6176 = vpop.f32.mrf.mxu0
      %v6177 = vadd.f32 %v3102, %v6176
      %v6178 = vpop.f32.mrf.mxu0
      %v6179 = vadd.f32 %v3102, %v6178
      %v6180 = vpop.f32.mrf.mxu0
      %v6181 = vadd.f32 %v3107, %v6180
      %v6182 = vpop.f32.mrf.mxu0
      %v6183 = vadd.f32 %v3107, %v6182
      %6184 = vmatprep.mubr.bf16.mxu0 0
      %6185 = vmatmul.mubr.bf16.gmra.mxu0 %v3492
      %v6186 = vpop.f32.mrf.mxu0
      %v6187 = vadd.f32 %v3112, %v6186
      %v6188 = vpop.f32.mrf.mxu0
      %v6189 = vadd.f32 %v3112, %v6188
      %v6190 = vpop.f32.mrf.mxu0
      %v6191 = vadd.f32 %v3117, %v6190
      %v6192 = vpop.f32.mrf.mxu0
      %v6193 = vadd.f32 %v3117, %v6192
      %6194 = vmatprep.mubr.bf16.mxu0 0
      %6195 = vmatmul.mubr.bf16.gmra.mxu0 %v3493
      %v6196 = vpop.f32.mrf.mxu0
      %v6197 = vadd.f32 %v3122, %v6196
      %v6198 = vpop.f32.mrf.mxu0
      %v6199 = vadd.f32 %v3122, %v6198
      %v6200 = vpop.f32.mrf.mxu0
      %v6201 = vadd.f32 %v3127, %v6200
      %v6202 = vpop.f32.mrf.mxu0
      %v6203 = vadd.f32 %v3127, %v6202
      %6204 = vmatprep.mubr.bf16.mxu0 0
      %6205 = vmatmul.mubr.bf16.gmra.mxu0 %v3494
      %v6206 = vpop.f32.mrf.mxu0
      %v6207 = vadd.f32 %v3132, %v6206
      %v6208 = vpop.f32.mrf.mxu0
      %v6209 = vadd.f32 %v3132, %v6208
      %v6210 = vpop.f32.mrf.mxu0
      %v6211 = vadd.f32 %v3137, %v6210
      %v6212 = vpop.f32.mrf.mxu0
      %v6213 = vadd.f32 %v3137, %v6212
      %6214 = vmatprep.mubr.bf16.mxu0 0
      %6215 = vmatmul.mubr.bf16.gmra.mxu0 %v3495
      %v6216 = vpop.f32.mrf.mxu0
      %v6217 = vadd.f32 %v3142, %v6216
      %v6218 = vpop.f32.mrf.mxu0
      %v6219 = vadd.f32 %v3142, %v6218
      %v6220 = vpop.f32.mrf.mxu0
      %v6221 = vadd.f32 %v3147, %v6220
      %v6222 = vpop.f32.mrf.mxu0
      %v6223 = vadd.f32 %v3147, %v6222
      %6224 = vmatprep.mubr.bf16.mxu0 0
      %6225 = vmatmul.mubr.bf16.gmra.mxu0 %v3496
      %v6226 = vpop.f32.mrf.mxu0
      %v6227 = vadd.f32 %v3152, %v6226
      %v6228 = vpop.f32.mrf.mxu0
      %v6229 = vadd.f32 %v3152, %v6228
      %v6230 = vpop.f32.mrf.mxu0
      %v6231 = vadd.f32 %v3157, %v6230
      %v6232 = vpop.f32.mrf.mxu0
      %v6233 = vadd.f32 %v3157, %v6232
      %6234 = vmatprep.mubr.bf16.mxu0 0
      %6235 = vmatmul.mubr.bf16.gmra.mxu0 %v3497
      %v6236 = vpop.f32.mrf.mxu0
      %v6237 = vadd.f32 %v3162, %v6236
      %v6238 = vpop.f32.mrf.mxu0
      %v6239 = vadd.f32 %v3162, %v6238
      %v6240 = vpop.f32.mrf.mxu0
      %v6241 = vadd.f32 %v3167, %v6240
      %v6242 = vpop.f32.mrf.mxu0
      %v6243 = vadd.f32 %v3167, %v6242
      %6244 = vmatprep.mubr.bf16.mxu0 0
      %6245 = vmatmul.mubr.bf16.gmra.mxu0 %v3498
      %v6246 = vpop.f32.mrf.mxu0
      %v6247 = vadd.f32 %v3172, %v6246
      %v6248 = vpop.f32.mrf.mxu0
      %v6249 = vadd.f32 %v3172, %v6248
      %v6250 = vpop.f32.mrf.mxu0
      %v6251 = vadd.f32 %v3177, %v6250
      %v6252 = vpop.f32.mrf.mxu0
      %v6253 = vadd.f32 %v3177, %v6252
      %6254 = vdwg.mxu0
      %v6255 = vmax.f32 %v3598, 0.0
      %v6256 = vmax.f32 %v3600, 0.0
      %v6257 = vmax.f32 %v4271, 0.0
      %v6258 = vmax.f32 %v4273, 0.0
      %v6259 = vmax.f32 %v4944, 0.0
      %v6260 = vmax.f32 %v4946, 0.0
      %v6261 = vmax.f32 %v5617, 0.0
      %v6262 = vmax.f32 %v5619, 0.0
      %v6263 = vmax.f32 %v3602, 0.0
      %v6264 = vmax.f32 %v3604, 0.0
      %v6265 = vmax.f32 %v4275, 0.0
      %v6266 = vmax.f32 %v4277, 0.0
      %v6267 = vmax.f32 %v4948, 0.0
      %v6268 = vmax.f32 %v4950, 0.0
      %v6269 = vmax.f32 %v5621, 0.0
      %v6270 = vmax.f32 %v5623, 0.0
      %v6271 = vmax.f32 %v3608, 0.0
      %v6272 = vmax.f32 %v3610, 0.0
      %v6273 = vmax.f32 %v4281, 0.0
      %v6274 = vmax.f32 %v4283, 0.0
      %v6275 = vmax.f32 %v4954, 0.0
      %v6276 = vmax.f32 %v4956, 0.0
      %v6277 = vmax.f32 %v5627, 0.0
      %v6278 = vmax.f32 %v5629, 0.0
      %v6279 = vmax.f32 %v3612, 0.0
      %v6280 = vmax.f32 %v3614, 0.0
      %v6281 = vmax.f32 %v4285, 0.0
      %v6282 = vmax.f32 %v4287, 0.0
      %v6283 = vmax.f32 %v4958, 0.0
      %v6284 = vmax.f32 %v4960, 0.0
      %v6285 = vmax.f32 %v5631, 0.0
      %v6286 = vmax.f32 %v5633, 0.0
      %v6287 = vmax.f32 %v3618, 0.0
      %v6288 = vmax.f32 %v3620, 0.0
      %v6289 = vmax.f32 %v4291, 0.0
      %v6290 = vmax.f32 %v4293, 0.0
      %v6291 = vmax.f32 %v4964, 0.0
      %v6292 = vmax.f32 %v4966, 0.0
      %v6293 = vmax.f32 %v5637, 0.0
      %v6294 = vmax.f32 %v5639, 0.0
      %v6295 = vmax.f32 %v3622, 0.0
      %v6296 = vmax.f32 %v3624, 0.0
      %v6297 = vmax.f32 %v4295, 0.0
      %v6298 = vmax.f32 %v4297, 0.0
      %v6299 = vmax.f32 %v4968, 0.0
      %v6300 = vmax.f32 %v4970, 0.0
      %v6301 = vmax.f32 %v5641, 0.0
      %v6302 = vmax.f32 %v5643, 0.0
      %v6303 = vmax.f32 %v3628, 0.0
      %v6304 = vmax.f32 %v3630, 0.0
      %v6305 = vmax.f32 %v4301, 0.0
      %v6306 = vmax.f32 %v4303, 0.0
      %v6307 = vmax.f32 %v4974, 0.0
      %v6308 = vmax.f32 %v4976, 0.0
      %v6309 = vmax.f32 %v5647, 0.0
      %v6310 = vmax.f32 %v5649, 0.0
      %v6311 = vmax.f32 %v3632, 0.0
      %v6312 = vmax.f32 %v3634, 0.0
      %v6313 = vmax.f32 %v4305, 0.0
      %v6314 = vmax.f32 %v4307, 0.0
      %v6315 = vmax.f32 %v4978, 0.0
      %v6316 = vmax.f32 %v4980, 0.0
      %v6317 = vmax.f32 %v5651, 0.0
      %v6318 = vmax.f32 %v5653, 0.0
      %v6319 = vmax.f32 %v3638, 0.0
      %v6320 = vmax.f32 %v3640, 0.0
      %v6321 = vmax.f32 %v4311, 0.0
      %v6322 = vmax.f32 %v4313, 0.0
      %v6323 = vmax.f32 %v4984, 0.0
      %v6324 = vmax.f32 %v4986, 0.0
      %v6325 = vmax.f32 %v5657, 0.0
      %v6326 = vmax.f32 %v5659, 0.0
      %v6327 = vmax.f32 %v3642, 0.0
      %v6328 = vmax.f32 %v3644, 0.0
      %v6329 = vmax.f32 %v4315, 0.0
      %v6330 = vmax.f32 %v4317, 0.0
      %v6331 = vmax.f32 %v4988, 0.0
      %v6332 = vmax.f32 %v4990, 0.0
      %v6333 = vmax.f32 %v5661, 0.0
      %v6334 = vmax.f32 %v5663, 0.0
      %v6335 = vmax.f32 %v3648, 0.0
      %v6336 = vmax.f32 %v3650, 0.0
      %v6337 = vmax.f32 %v4321, 0.0
      %v6338 = vmax.f32 %v4323, 0.0
      %v6339 = vmax.f32 %v4994, 0.0
      %v6340 = vmax.f32 %v4996, 0.0
      %v6341 = vmax.f32 %v5667, 0.0
      %v6342 = vmax.f32 %v5669, 0.0
      %v6343 = vmax.f32 %v3652, 0.0
      %v6344 = vmax.f32 %v3654, 0.0
      %v6345 = vmax.f32 %v4325, 0.0
      %v6346 = vmax.f32 %v4327, 0.0
      %v6347 = vmax.f32 %v4998, 0.0
      %v6348 = vmax.f32 %v5000, 0.0
      %v6349 = vmax.f32 %v5671, 0.0
      %v6350 = vmax.f32 %v5673, 0.0
      %v6351 = vmax.f32 %v3658, 0.0
      %v6352 = vmax.f32 %v3660, 0.0
      %v6353 = vmax.f32 %v4331, 0.0
      %v6354 = vmax.f32 %v4333, 0.0
      %v6355 = vmax.f32 %v5004, 0.0
      %v6356 = vmax.f32 %v5006, 0.0
      %v6357 = vmax.f32 %v5677, 0.0
      %v6358 = vmax.f32 %v5679, 0.0
      %v6359 = vmax.f32 %v3662, 0.0
      %v6360 = vmax.f32 %v3664, 0.0
      %v6361 = vmax.f32 %v4335, 0.0
      %v6362 = vmax.f32 %v4337, 0.0
      %v6363 = vmax.f32 %v5008, 0.0
      %v6364 = vmax.f32 %v5010, 0.0
      %v6365 = vmax.f32 %v5681, 0.0
      %v6366 = vmax.f32 %v5683, 0.0
      %v6367 = vmax.f32 %v3668, 0.0
      %v6368 = vmax.f32 %v3670, 0.0
      %v6369 = vmax.f32 %v4341, 0.0
      %v6370 = vmax.f32 %v4343, 0.0
      %v6371 = vmax.f32 %v5014, 0.0
      %v6372 = vmax.f32 %v5016, 0.0
      %v6373 = vmax.f32 %v5687, 0.0
      %v6374 = vmax.f32 %v5689, 0.0
      %v6375 = vmax.f32 %v3672, 0.0
      %v6376 = vmax.f32 %v3674, 0.0
      %v6377 = vmax.f32 %v4345, 0.0
      %v6378 = vmax.f32 %v4347, 0.0
      %v6379 = vmax.f32 %v5018, 0.0
      %v6380 = vmax.f32 %v5020, 0.0
      %v6381 = vmax.f32 %v5691, 0.0
      %v6382 = vmax.f32 %v5693, 0.0
      %v6383 = vmax.f32 %v3678, 0.0
      %v6384 = vmax.f32 %v3680, 0.0
      %v6385 = vmax.f32 %v4351, 0.0
      %v6386 = vmax.f32 %v4353, 0.0
      %v6387 = vmax.f32 %v5024, 0.0
      %v6388 = vmax.f32 %v5026, 0.0
      %v6389 = vmax.f32 %v5697, 0.0
      %v6390 = vmax.f32 %v5699, 0.0
      %v6391 = vmax.f32 %v3682, 0.0
      %v6392 = vmax.f32 %v3684, 0.0
      %v6393 = vmax.f32 %v4355, 0.0
      %v6394 = vmax.f32 %v4357, 0.0
      %v6395 = vmax.f32 %v5028, 0.0
      %v6396 = vmax.f32 %v5030, 0.0
      %v6397 = vmax.f32 %v5701, 0.0
      %v6398 = vmax.f32 %v5703, 0.0
      %v6399 = vmax.f32 %v3688, 0.0
      %v6400 = vmax.f32 %v3690, 0.0
      %v6401 = vmax.f32 %v4361, 0.0
      %v6402 = vmax.f32 %v4363, 0.0
      %v6403 = vmax.f32 %v5034, 0.0
      %v6404 = vmax.f32 %v5036, 0.0
      %v6405 = vmax.f32 %v5707, 0.0
      %v6406 = vmax.f32 %v5709, 0.0
      %v6407 = vmax.f32 %v3692, 0.0
      %v6408 = vmax.f32 %v3694, 0.0
      %v6409 = vmax.f32 %v4365, 0.0
      %v6410 = vmax.f32 %v4367, 0.0
      %v6411 = vmax.f32 %v5038, 0.0
      %v6412 = vmax.f32 %v5040, 0.0
      %v6413 = vmax.f32 %v5711, 0.0
      %v6414 = vmax.f32 %v5713, 0.0
      %v6415 = vmax.f32 %v3698, 0.0
      %v6416 = vmax.f32 %v3700, 0.0
      %v6417 = vmax.f32 %v4371, 0.0
      %v6418 = vmax.f32 %v4373, 0.0
      %v6419 = vmax.f32 %v5044, 0.0
      %v6420 = vmax.f32 %v5046, 0.0
      %v6421 = vmax.f32 %v5717, 0.0
      %v6422 = vmax.f32 %v5719, 0.0
      %v6423 = vmax.f32 %v3702, 0.0
      %v6424 = vmax.f32 %v3704, 0.0
      %v6425 = vmax.f32 %v4375, 0.0
      %v6426 = vmax.f32 %v4377, 0.0
      %v6427 = vmax.f32 %v5048, 0.0
      %v6428 = vmax.f32 %v5050, 0.0
      %v6429 = vmax.f32 %v5721, 0.0
      %v6430 = vmax.f32 %v5723, 0.0
      %v6431 = vmax.f32 %v3708, 0.0
      %v6432 = vmax.f32 %v3710, 0.0
      %v6433 = vmax.f32 %v4381, 0.0
      %v6434 = vmax.f32 %v4383, 0.0
      %v6435 = vmax.f32 %v5054, 0.0
      %v6436 = vmax.f32 %v5056, 0.0
      %v6437 = vmax.f32 %v5727, 0.0
      %v6438 = vmax.f32 %v5729, 0.0
      %v6439 = vmax.f32 %v3712, 0.0
      %v6440 = vmax.f32 %v3714, 0.0
      %v6441 = vmax.f32 %v4385, 0.0
      %v6442 = vmax.f32 %v4387, 0.0
      %v6443 = vmax.f32 %v5058, 0.0
      %v6444 = vmax.f32 %v5060, 0.0
      %v6445 = vmax.f32 %v5731, 0.0
      %v6446 = vmax.f32 %v5733, 0.0
      %v6447 = vmax.f32 %v3718, 0.0
      %v6448 = vmax.f32 %v3720, 0.0
      %v6449 = vmax.f32 %v4391, 0.0
      %v6450 = vmax.f32 %v4393, 0.0
      %v6451 = vmax.f32 %v5064, 0.0
      %v6452 = vmax.f32 %v5066, 0.0
      %v6453 = vmax.f32 %v5737, 0.0
      %v6454 = vmax.f32 %v5739, 0.0
      %v6455 = vmax.f32 %v3722, 0.0
      %v6456 = vmax.f32 %v3724, 0.0
      %v6457 = vmax.f32 %v4395, 0.0
      %v6458 = vmax.f32 %v4397, 0.0
      %v6459 = vmax.f32 %v5068, 0.0
      %v6460 = vmax.f32 %v5070, 0.0
      %v6461 = vmax.f32 %v5741, 0.0
      %v6462 = vmax.f32 %v5743, 0.0
      %v6463 = vmax.f32 %v3728, 0.0
      %v6464 = vmax.f32 %v3730, 0.0
      %v6465 = vmax.f32 %v4401, 0.0
      %v6466 = vmax.f32 %v4403, 0.0
      %v6467 = vmax.f32 %v5074, 0.0
      %v6468 = vmax.f32 %v5076, 0.0
      %v6469 = vmax.f32 %v5747, 0.0
      %v6470 = vmax.f32 %v5749, 0.0
      %v6471 = vmax.f32 %v3732, 0.0
      %v6472 = vmax.f32 %v3734, 0.0
      %v6473 = vmax.f32 %v4405, 0.0
      %v6474 = vmax.f32 %v4407, 0.0
      %v6475 = vmax.f32 %v5078, 0.0
      %v6476 = vmax.f32 %v5080, 0.0
      %v6477 = vmax.f32 %v5751, 0.0
      %v6478 = vmax.f32 %v5753, 0.0
      %v6479 = vmax.f32 %v3738, 0.0
      %v6480 = vmax.f32 %v3740, 0.0
      %v6481 = vmax.f32 %v4411, 0.0
      %v6482 = vmax.f32 %v4413, 0.0
      %v6483 = vmax.f32 %v5084, 0.0
      %v6484 = vmax.f32 %v5086, 0.0
      %v6485 = vmax.f32 %v5757, 0.0
      %v6486 = vmax.f32 %v5759, 0.0
      %v6487 = vmax.f32 %v3742, 0.0
      %v6488 = vmax.f32 %v3744, 0.0
      %v6489 = vmax.f32 %v4415, 0.0
      %v6490 = vmax.f32 %v4417, 0.0
      %v6491 = vmax.f32 %v5088, 0.0
      %v6492 = vmax.f32 %v5090, 0.0
      %v6493 = vmax.f32 %v5761, 0.0
      %v6494 = vmax.f32 %v5763, 0.0
      %v6495 = vmax.f32 %v3748, 0.0
      %v6496 = vmax.f32 %v3750, 0.0
      %v6497 = vmax.f32 %v4421, 0.0
      %v6498 = vmax.f32 %v4423, 0.0
      %v6499 = vmax.f32 %v5094, 0.0
      %v6500 = vmax.f32 %v5096, 0.0
      %v6501 = vmax.f32 %v5767, 0.0
      %v6502 = vmax.f32 %v5769, 0.0
      %v6503 = vmax.f32 %v3752, 0.0
      %v6504 = vmax.f32 %v3754, 0.0
      %v6505 = vmax.f32 %v4425, 0.0
      %v6506 = vmax.f32 %v4427, 0.0
      %v6507 = vmax.f32 %v5098, 0.0
      %v6508 = vmax.f32 %v5100, 0.0
      %v6509 = vmax.f32 %v5771, 0.0
      %v6510 = vmax.f32 %v5773, 0.0
      %v6511 = vmax.f32 %v3758, 0.0
      %v6512 = vmax.f32 %v3760, 0.0
      %v6513 = vmax.f32 %v4431, 0.0
      %v6514 = vmax.f32 %v4433, 0.0
      %v6515 = vmax.f32 %v5104, 0.0
      %v6516 = vmax.f32 %v5106, 0.0
      %v6517 = vmax.f32 %v5777, 0.0
      %v6518 = vmax.f32 %v5779, 0.0
      %v6519 = vmax.f32 %v3762, 0.0
      %v6520 = vmax.f32 %v3764, 0.0
      %v6521 = vmax.f32 %v4435, 0.0
      %v6522 = vmax.f32 %v4437, 0.0
      %v6523 = vmax.f32 %v5108, 0.0
      %v6524 = vmax.f32 %v5110, 0.0
      %v6525 = vmax.f32 %v5781, 0.0
      %v6526 = vmax.f32 %v5783, 0.0
      %v6527 = vmax.f32 %v3768, 0.0
      %v6528 = vmax.f32 %v3770, 0.0
      %v6529 = vmax.f32 %v4441, 0.0
      %v6530 = vmax.f32 %v4443, 0.0
      %v6531 = vmax.f32 %v5114, 0.0
      %v6532 = vmax.f32 %v5116, 0.0
      %v6533 = vmax.f32 %v5787, 0.0
      %v6534 = vmax.f32 %v5789, 0.0
      %v6535 = vmax.f32 %v3772, 0.0
      %v6536 = vmax.f32 %v3774, 0.0
      %v6537 = vmax.f32 %v4445, 0.0
      %v6538 = vmax.f32 %v4447, 0.0
      %v6539 = vmax.f32 %v5118, 0.0
      %v6540 = vmax.f32 %v5120, 0.0
      %v6541 = vmax.f32 %v5791, 0.0
      %v6542 = vmax.f32 %v5793, 0.0
      %v6543 = vmax.f32 %v3778, 0.0
      %v6544 = vmax.f32 %v3780, 0.0
      %v6545 = vmax.f32 %v4451, 0.0
      %v6546 = vmax.f32 %v4453, 0.0
      %v6547 = vmax.f32 %v5124, 0.0
      %v6548 = vmax.f32 %v5126, 0.0
      %v6549 = vmax.f32 %v5797, 0.0
      %v6550 = vmax.f32 %v5799, 0.0
      %v6551 = vmax.f32 %v3782, 0.0
      %v6552 = vmax.f32 %v3784, 0.0
      %v6553 = vmax.f32 %v4455, 0.0
      %v6554 = vmax.f32 %v4457, 0.0
      %v6555 = vmax.f32 %v5128, 0.0
      %v6556 = vmax.f32 %v5130, 0.0
      %v6557 = vmax.f32 %v5801, 0.0
      %v6558 = vmax.f32 %v5803, 0.0
      %v6559 = vmax.f32 %v3788, 0.0
      %v6560 = vmax.f32 %v3790, 0.0
      %v6561 = vmax.f32 %v4461, 0.0
      %v6562 = vmax.f32 %v4463, 0.0
      %v6563 = vmax.f32 %v5134, 0.0
      %v6564 = vmax.f32 %v5136, 0.0
      %v6565 = vmax.f32 %v5807, 0.0
      %v6566 = vmax.f32 %v5809, 0.0
      %v6567 = vmax.f32 %v3792, 0.0
      %v6568 = vmax.f32 %v3794, 0.0
      %v6569 = vmax.f32 %v4465, 0.0
      %v6570 = vmax.f32 %v4467, 0.0
      %v6571 = vmax.f32 %v5138, 0.0
      %v6572 = vmax.f32 %v5140, 0.0
      %v6573 = vmax.f32 %v5811, 0.0
      %v6574 = vmax.f32 %v5813, 0.0
      %v6575 = vmax.f32 %v3798, 0.0
      %v6576 = vmax.f32 %v3800, 0.0
      %v6577 = vmax.f32 %v4471, 0.0
      %v6578 = vmax.f32 %v4473, 0.0
      %v6579 = vmax.f32 %v5144, 0.0
      %v6580 = vmax.f32 %v5146, 0.0
      %v6581 = vmax.f32 %v5817, 0.0
      %v6582 = vmax.f32 %v5819, 0.0
      %v6583 = vmax.f32 %v3802, 0.0
      %v6584 = vmax.f32 %v3804, 0.0
      %v6585 = vmax.f32 %v4475, 0.0
      %v6586 = vmax.f32 %v4477, 0.0
      %v6587 = vmax.f32 %v5148, 0.0
      %v6588 = vmax.f32 %v5150, 0.0
      %v6589 = vmax.f32 %v5821, 0.0
      %v6590 = vmax.f32 %v5823, 0.0
      %v6591 = vmax.f32 %v3808, 0.0
      %v6592 = vmax.f32 %v3810, 0.0
      %v6593 = vmax.f32 %v4481, 0.0
      %v6594 = vmax.f32 %v4483, 0.0
      %v6595 = vmax.f32 %v5154, 0.0
      %v6596 = vmax.f32 %v5156, 0.0
      %v6597 = vmax.f32 %v5827, 0.0
      %v6598 = vmax.f32 %v5829, 0.0
      %v6599 = vmax.f32 %v3812, 0.0
      %v6600 = vmax.f32 %v3814, 0.0
      %v6601 = vmax.f32 %v4485, 0.0
      %v6602 = vmax.f32 %v4487, 0.0
      %v6603 = vmax.f32 %v5158, 0.0
      %v6604 = vmax.f32 %v5160, 0.0
      %v6605 = vmax.f32 %v5831, 0.0
      %v6606 = vmax.f32 %v5833, 0.0
      %v6607 = vmax.f32 %v3818, 0.0
      %v6608 = vmax.f32 %v3820, 0.0
      %v6609 = vmax.f32 %v4491, 0.0
      %v6610 = vmax.f32 %v4493, 0.0
      %v6611 = vmax.f32 %v5164, 0.0
      %v6612 = vmax.f32 %v5166, 0.0
      %v6613 = vmax.f32 %v5837, 0.0
      %v6614 = vmax.f32 %v5839, 0.0
      %v6615 = vmax.f32 %v3822, 0.0
      %v6616 = vmax.f32 %v3824, 0.0
      %v6617 = vmax.f32 %v4495, 0.0
      %v6618 = vmax.f32 %v4497, 0.0
      %v6619 = vmax.f32 %v5168, 0.0
      %v6620 = vmax.f32 %v5170, 0.0
      %v6621 = vmax.f32 %v5841, 0.0
      %v6622 = vmax.f32 %v5843, 0.0
      %v6623 = vmax.f32 %v3828, 0.0
      %v6624 = vmax.f32 %v3830, 0.0
      %v6625 = vmax.f32 %v4501, 0.0
      %v6626 = vmax.f32 %v4503, 0.0
      %v6627 = vmax.f32 %v5174, 0.0
      %v6628 = vmax.f32 %v5176, 0.0
      %v6629 = vmax.f32 %v5847, 0.0
      %v6630 = vmax.f32 %v5849, 0.0
      %v6631 = vmax.f32 %v3832, 0.0
      %v6632 = vmax.f32 %v3834, 0.0
      %v6633 = vmax.f32 %v4505, 0.0
      %v6634 = vmax.f32 %v4507, 0.0
      %v6635 = vmax.f32 %v5178, 0.0
      %v6636 = vmax.f32 %v5180, 0.0
      %v6637 = vmax.f32 %v5851, 0.0
      %v6638 = vmax.f32 %v5853, 0.0
      %v6639 = vmax.f32 %v3838, 0.0
      %v6640 = vmax.f32 %v3840, 0.0
      %v6641 = vmax.f32 %v4511, 0.0
      %v6642 = vmax.f32 %v4513, 0.0
      %v6643 = vmax.f32 %v5184, 0.0
      %v6644 = vmax.f32 %v5186, 0.0
      %v6645 = vmax.f32 %v5857, 0.0
      %v6646 = vmax.f32 %v5859, 0.0
      %v6647 = vmax.f32 %v3842, 0.0
      %v6648 = vmax.f32 %v3844, 0.0
      %v6649 = vmax.f32 %v4515, 0.0
      %v6650 = vmax.f32 %v4517, 0.0
      %v6651 = vmax.f32 %v5188, 0.0
      %v6652 = vmax.f32 %v5190, 0.0
      %v6653 = vmax.f32 %v5861, 0.0
      %v6654 = vmax.f32 %v5863, 0.0
      %v6655 = vmax.f32 %v3848, 0.0
      %v6656 = vmax.f32 %v3850, 0.0
      %v6657 = vmax.f32 %v4521, 0.0
      %v6658 = vmax.f32 %v4523, 0.0
      %v6659 = vmax.f32 %v5194, 0.0
      %v6660 = vmax.f32 %v5196, 0.0
      %v6661 = vmax.f32 %v5867, 0.0
      %v6662 = vmax.f32 %v5869, 0.0
      %v6663 = vmax.f32 %v3852, 0.0
      %v6664 = vmax.f32 %v3854, 0.0
      %v6665 = vmax.f32 %v4525, 0.0
      %v6666 = vmax.f32 %v4527, 0.0
      %v6667 = vmax.f32 %v5198, 0.0
      %v6668 = vmax.f32 %v5200, 0.0
      %v6669 = vmax.f32 %v5871, 0.0
      %v6670 = vmax.f32 %v5873, 0.0
      %v6671 = vmax.f32 %v3858, 0.0
      %v6672 = vmax.f32 %v3860, 0.0
      %v6673 = vmax.f32 %v4531, 0.0
      %v6674 = vmax.f32 %v4533, 0.0
      %v6675 = vmax.f32 %v5204, 0.0
      %v6676 = vmax.f32 %v5206, 0.0
      %v6677 = vmax.f32 %v5877, 0.0
      %v6678 = vmax.f32 %v5879, 0.0
      %v6679 = vmax.f32 %v3862, 0.0
      %v6680 = vmax.f32 %v3864, 0.0
      %v6681 = vmax.f32 %v4535, 0.0
      %v6682 = vmax.f32 %v4537, 0.0
      %v6683 = vmax.f32 %v5208, 0.0
      %v6684 = vmax.f32 %v5210, 0.0
      %v6685 = vmax.f32 %v5881, 0.0
      %v6686 = vmax.f32 %v5883, 0.0
      %v6687 = vmax.f32 %v3868, 0.0
      %v6688 = vmax.f32 %v3870, 0.0
      %v6689 = vmax.f32 %v4541, 0.0
      %v6690 = vmax.f32 %v4543, 0.0
      %v6691 = vmax.f32 %v5214, 0.0
      %v6692 = vmax.f32 %v5216, 0.0
      %v6693 = vmax.f32 %v5887, 0.0
      %v6694 = vmax.f32 %v5889, 0.0
      %v6695 = vmax.f32 %v3872, 0.0
      %v6696 = vmax.f32 %v3874, 0.0
      %v6697 = vmax.f32 %v4545, 0.0
      %v6698 = vmax.f32 %v4547, 0.0
      %v6699 = vmax.f32 %v5218, 0.0
      %v6700 = vmax.f32 %v5220, 0.0
      %v6701 = vmax.f32 %v5891, 0.0
      %v6702 = vmax.f32 %v5893, 0.0
      %v6703 = vmax.f32 %v3878, 0.0
      %v6704 = vmax.f32 %v3880, 0.0
      %v6705 = vmax.f32 %v4551, 0.0
      %v6706 = vmax.f32 %v4553, 0.0
      %v6707 = vmax.f32 %v5224, 0.0
      %v6708 = vmax.f32 %v5226, 0.0
      %v6709 = vmax.f32 %v5897, 0.0
      %v6710 = vmax.f32 %v5899, 0.0
      %v6711 = vmax.f32 %v3882, 0.0
      %v6712 = vmax.f32 %v3884, 0.0
      %v6713 = vmax.f32 %v4555, 0.0
      %v6714 = vmax.f32 %v4557, 0.0
      %v6715 = vmax.f32 %v5228, 0.0
      %v6716 = vmax.f32 %v5230, 0.0
      %v6717 = vmax.f32 %v5901, 0.0
      %v6718 = vmax.f32 %v5903, 0.0
      %v6719 = vmax.f32 %v3888, 0.0
      %v6720 = vmax.f32 %v3890, 0.0
      %v6721 = vmax.f32 %v4561, 0.0
      %v6722 = vmax.f32 %v4563, 0.0
      %v6723 = vmax.f32 %v5234, 0.0
      %v6724 = vmax.f32 %v5236, 0.0
      %v6725 = vmax.f32 %v5907, 0.0
      %v6726 = vmax.f32 %v5909, 0.0
      %v6727 = vmax.f32 %v3892, 0.0
      %v6728 = vmax.f32 %v3894, 0.0
      %v6729 = vmax.f32 %v4565, 0.0
      %v6730 = vmax.f32 %v4567, 0.0
      %v6731 = vmax.f32 %v5238, 0.0
      %v6732 = vmax.f32 %v5240, 0.0
      %v6733 = vmax.f32 %v5911, 0.0
      %v6734 = vmax.f32 %v5913, 0.0
      %v6735 = vmax.f32 %v3898, 0.0
      %v6736 = vmax.f32 %v3900, 0.0
      %v6737 = vmax.f32 %v4571, 0.0
      %v6738 = vmax.f32 %v4573, 0.0
      %v6739 = vmax.f32 %v5244, 0.0
      %v6740 = vmax.f32 %v5246, 0.0
      %v6741 = vmax.f32 %v5917, 0.0
      %v6742 = vmax.f32 %v5919, 0.0
      %v6743 = vmax.f32 %v3902, 0.0
      %v6744 = vmax.f32 %v3904, 0.0
      %v6745 = vmax.f32 %v4575, 0.0
      %v6746 = vmax.f32 %v4577, 0.0
      %v6747 = vmax.f32 %v5248, 0.0
      %v6748 = vmax.f32 %v5250, 0.0
      %v6749 = vmax.f32 %v5921, 0.0
      %v6750 = vmax.f32 %v5923, 0.0
      %v6751 = vmax.f32 %v3908, 0.0
      %v6752 = vmax.f32 %v3910, 0.0
      %v6753 = vmax.f32 %v4581, 0.0
      %v6754 = vmax.f32 %v4583, 0.0
      %v6755 = vmax.f32 %v5254, 0.0
      %v6756 = vmax.f32 %v5256, 0.0
      %v6757 = vmax.f32 %v5927, 0.0
      %v6758 = vmax.f32 %v5929, 0.0
      %v6759 = vmax.f32 %v3912, 0.0
      %v6760 = vmax.f32 %v3914, 0.0
      %v6761 = vmax.f32 %v4585, 0.0
      %v6762 = vmax.f32 %v4587, 0.0
      %v6763 = vmax.f32 %v5258, 0.0
      %v6764 = vmax.f32 %v5260, 0.0
      %v6765 = vmax.f32 %v5931, 0.0
      %v6766 = vmax.f32 %v5933, 0.0
      %v6767 = vmax.f32 %v3918, 0.0
      %v6768 = vmax.f32 %v3920, 0.0
      %v6769 = vmax.f32 %v4591, 0.0
      %v6770 = vmax.f32 %v4593, 0.0
      %v6771 = vmax.f32 %v5264, 0.0
      %v6772 = vmax.f32 %v5266, 0.0
      %v6773 = vmax.f32 %v5937, 0.0
      %v6774 = vmax.f32 %v5939, 0.0
      %v6775 = vmax.f32 %v3922, 0.0
      %v6776 = vmax.f32 %v3924, 0.0
      %v6777 = vmax.f32 %v4595, 0.0
      %v6778 = vmax.f32 %v4597, 0.0
      %v6779 = vmax.f32 %v5268, 0.0
      %v6780 = vmax.f32 %v5270, 0.0
      %v6781 = vmax.f32 %v5941, 0.0
      %v6782 = vmax.f32 %v5943, 0.0
      %v6783 = vmax.f32 %v3928, 0.0
      %v6784 = vmax.f32 %v3930, 0.0
      %v6785 = vmax.f32 %v4601, 0.0
      %v6786 = vmax.f32 %v4603, 0.0
      %v6787 = vmax.f32 %v5274, 0.0
      %v6788 = vmax.f32 %v5276, 0.0
      %v6789 = vmax.f32 %v5947, 0.0
      %v6790 = vmax.f32 %v5949, 0.0
      %v6791 = vmax.f32 %v3932, 0.0
      %v6792 = vmax.f32 %v3934, 0.0
      %v6793 = vmax.f32 %v4605, 0.0
      %v6794 = vmax.f32 %v4607, 0.0
      %v6795 = vmax.f32 %v5278, 0.0
      %v6796 = vmax.f32 %v5280, 0.0
      %v6797 = vmax.f32 %v5951, 0.0
      %v6798 = vmax.f32 %v5953, 0.0
      %v6799 = vmax.f32 %v3938, 0.0
      %v6800 = vmax.f32 %v3940, 0.0
      %v6801 = vmax.f32 %v4611, 0.0
      %v6802 = vmax.f32 %v4613, 0.0
      %v6803 = vmax.f32 %v5284, 0.0
      %v6804 = vmax.f32 %v5286, 0.0
      %v6805 = vmax.f32 %v5957, 0.0
      %v6806 = vmax.f32 %v5959, 0.0
      %v6807 = vmax.f32 %v3942, 0.0
      %v6808 = vmax.f32 %v3944, 0.0
      %v6809 = vmax.f32 %v4615, 0.0
      %v6810 = vmax.f32 %v4617, 0.0
      %v6811 = vmax.f32 %v5288, 0.0
      %v6812 = vmax.f32 %v5290, 0.0
      %v6813 = vmax.f32 %v5961, 0.0
      %v6814 = vmax.f32 %v5963, 0.0
      %v6815 = vmax.f32 %v3948, 0.0
      %v6816 = vmax.f32 %v3950, 0.0
      %v6817 = vmax.f32 %v4621, 0.0
      %v6818 = vmax.f32 %v4623, 0.0
      %v6819 = vmax.f32 %v5294, 0.0
      %v6820 = vmax.f32 %v5296, 0.0
      %v6821 = vmax.f32 %v5967, 0.0
      %v6822 = vmax.f32 %v5969, 0.0
      %v6823 = vmax.f32 %v3952, 0.0
      %v6824 = vmax.f32 %v3954, 0.0
      %v6825 = vmax.f32 %v4625, 0.0
      %v6826 = vmax.f32 %v4627, 0.0
      %v6827 = vmax.f32 %v5298, 0.0
      %v6828 = vmax.f32 %v5300, 0.0
      %v6829 = vmax.f32 %v5971, 0.0
      %v6830 = vmax.f32 %v5973, 0.0
      %v6831 = vmax.f32 %v3958, 0.0
      %v6832 = vmax.f32 %v3960, 0.0
      %v6833 = vmax.f32 %v4631, 0.0
      %v6834 = vmax.f32 %v4633, 0.0
      %v6835 = vmax.f32 %v5304, 0.0
      %v6836 = vmax.f32 %v5306, 0.0
      %v6837 = vmax.f32 %v5977, 0.0
      %v6838 = vmax.f32 %v5979, 0.0
      %v6839 = vmax.f32 %v3962, 0.0
      %v6840 = vmax.f32 %v3964, 0.0
      %v6841 = vmax.f32 %v4635, 0.0
      %v6842 = vmax.f32 %v4637, 0.0
      %v6843 = vmax.f32 %v5308, 0.0
      %v6844 = vmax.f32 %v5310, 0.0
      %v6845 = vmax.f32 %v5981, 0.0
      %v6846 = vmax.f32 %v5983, 0.0
      %v6847 = vmax.f32 %v3968, 0.0
      %v6848 = vmax.f32 %v3970, 0.0
      %v6849 = vmax.f32 %v4641, 0.0
      %v6850 = vmax.f32 %v4643, 0.0
      %v6851 = vmax.f32 %v5314, 0.0
      %v6852 = vmax.f32 %v5316, 0.0
      %v6853 = vmax.f32 %v5987, 0.0
      %v6854 = vmax.f32 %v5989, 0.0
      %v6855 = vmax.f32 %v3972, 0.0
      %v6856 = vmax.f32 %v3974, 0.0
      %v6857 = vmax.f32 %v4645, 0.0
      %v6858 = vmax.f32 %v4647, 0.0
      %v6859 = vmax.f32 %v5318, 0.0
      %v6860 = vmax.f32 %v5320, 0.0
      %v6861 = vmax.f32 %v5991, 0.0
      %v6862 = vmax.f32 %v5993, 0.0
      %v6863 = vmax.f32 %v3978, 0.0
      %v6864 = vmax.f32 %v3980, 0.0
      %v6865 = vmax.f32 %v4651, 0.0
      %v6866 = vmax.f32 %v4653, 0.0
      %v6867 = vmax.f32 %v5324, 0.0
      %v6868 = vmax.f32 %v5326, 0.0
      %v6869 = vmax.f32 %v5997, 0.0
      %v6870 = vmax.f32 %v5999, 0.0
      %v6871 = vmax.f32 %v3982, 0.0
      %v6872 = vmax.f32 %v3984, 0.0
      %v6873 = vmax.f32 %v4655, 0.0
      %v6874 = vmax.f32 %v4657, 0.0
      %v6875 = vmax.f32 %v5328, 0.0
      %v6876 = vmax.f32 %v5330, 0.0
      %v6877 = vmax.f32 %v6001, 0.0
      %v6878 = vmax.f32 %v6003, 0.0
      %v6879 = vmax.f32 %v3988, 0.0
      %v6880 = vmax.f32 %v3990, 0.0
      %v6881 = vmax.f32 %v4661, 0.0
      %v6882 = vmax.f32 %v4663, 0.0
      %v6883 = vmax.f32 %v5334, 0.0
      %v6884 = vmax.f32 %v5336, 0.0
      %v6885 = vmax.f32 %v6007, 0.0
      %v6886 = vmax.f32 %v6009, 0.0
      %v6887 = vmax.f32 %v3992, 0.0
      %v6888 = vmax.f32 %v3994, 0.0
      %v6889 = vmax.f32 %v4665, 0.0
      %v6890 = vmax.f32 %v4667, 0.0
      %v6891 = vmax.f32 %v5338, 0.0
      %v6892 = vmax.f32 %v5340, 0.0
      %v6893 = vmax.f32 %v6011, 0.0
      %v6894 = vmax.f32 %v6013, 0.0
      %v6895 = vmax.f32 %v3998, 0.0
      %v6896 = vmax.f32 %v4000, 0.0
      %v6897 = vmax.f32 %v4671, 0.0
      %v6898 = vmax.f32 %v4673, 0.0
      %v6899 = vmax.f32 %v5344, 0.0
      %v6900 = vmax.f32 %v5346, 0.0
      %v6901 = vmax.f32 %v6017, 0.0
      %v6902 = vmax.f32 %v6019, 0.0
      %v6903 = vmax.f32 %v4002, 0.0
      %v6904 = vmax.f32 %v4004, 0.0
      %v6905 = vmax.f32 %v4675, 0.0
      %v6906 = vmax.f32 %v4677, 0.0
      %v6907 = vmax.f32 %v5348, 0.0
      %v6908 = vmax.f32 %v5350, 0.0
      %v6909 = vmax.f32 %v6021, 0.0
      %v6910 = vmax.f32 %v6023, 0.0
      %v6911 = vmax.f32 %v4008, 0.0
      %v6912 = vmax.f32 %v4010, 0.0
      %v6913 = vmax.f32 %v4681, 0.0
      %v6914 = vmax.f32 %v4683, 0.0
      %v6915 = vmax.f32 %v5354, 0.0
      %v6916 = vmax.f32 %v5356, 0.0
      %v6917 = vmax.f32 %v6027, 0.0
      %v6918 = vmax.f32 %v6029, 0.0
      %v6919 = vmax.f32 %v4012, 0.0
      %v6920 = vmax.f32 %v4014, 0.0
      %v6921 = vmax.f32 %v4685, 0.0
      %v6922 = vmax.f32 %v4687, 0.0
      %v6923 = vmax.f32 %v5358, 0.0
      %v6924 = vmax.f32 %v5360, 0.0
      %v6925 = vmax.f32 %v6031, 0.0
      %v6926 = vmax.f32 %v6033, 0.0
      %v6927 = vmax.f32 %v4018, 0.0
      %v6928 = vmax.f32 %v4020, 0.0
      %v6929 = vmax.f32 %v4691, 0.0
      %v6930 = vmax.f32 %v4693, 0.0
      %v6931 = vmax.f32 %v5364, 0.0
      %v6932 = vmax.f32 %v5366, 0.0
      %v6933 = vmax.f32 %v6037, 0.0
      %v6934 = vmax.f32 %v6039, 0.0
      %v6935 = vmax.f32 %v4022, 0.0
      %v6936 = vmax.f32 %v4024, 0.0
      %v6937 = vmax.f32 %v4695, 0.0
      %v6938 = vmax.f32 %v4697, 0.0
      %v6939 = vmax.f32 %v5368, 0.0
      %v6940 = vmax.f32 %v5370, 0.0
      %v6941 = vmax.f32 %v6041, 0.0
      %v6942 = vmax.f32 %v6043, 0.0
      %v6943 = vmax.f32 %v4028, 0.0
      %v6944 = vmax.f32 %v4030, 0.0
      %v6945 = vmax.f32 %v4701, 0.0
      %v6946 = vmax.f32 %v4703, 0.0
      %v6947 = vmax.f32 %v5374, 0.0
      %v6948 = vmax.f32 %v5376, 0.0
      %v6949 = vmax.f32 %v6047, 0.0
      %v6950 = vmax.f32 %v6049, 0.0
      %v6951 = vmax.f32 %v4032, 0.0
      %v6952 = vmax.f32 %v4034, 0.0
      %v6953 = vmax.f32 %v4705, 0.0
      %v6954 = vmax.f32 %v4707, 0.0
      %v6955 = vmax.f32 %v5378, 0.0
      %v6956 = vmax.f32 %v5380, 0.0
      %v6957 = vmax.f32 %v6051, 0.0
      %v6958 = vmax.f32 %v6053, 0.0
      %v6959 = vmax.f32 %v4038, 0.0
      %v6960 = vmax.f32 %v4040, 0.0
      %v6961 = vmax.f32 %v4711, 0.0
      %v6962 = vmax.f32 %v4713, 0.0
      %v6963 = vmax.f32 %v5384, 0.0
      %v6964 = vmax.f32 %v5386, 0.0
      %v6965 = vmax.f32 %v6057, 0.0
      %v6966 = vmax.f32 %v6059, 0.0
      %v6967 = vmax.f32 %v4042, 0.0
      %v6968 = vmax.f32 %v4044, 0.0
      %v6969 = vmax.f32 %v4715, 0.0
      %v6970 = vmax.f32 %v4717, 0.0
      %v6971 = vmax.f32 %v5388, 0.0
      %v6972 = vmax.f32 %v5390, 0.0
      %v6973 = vmax.f32 %v6061, 0.0
      %v6974 = vmax.f32 %v6063, 0.0
      %v6975 = vmax.f32 %v4048, 0.0
      %v6976 = vmax.f32 %v4050, 0.0
      %v6977 = vmax.f32 %v4721, 0.0
      %v6978 = vmax.f32 %v4723, 0.0
      %v6979 = vmax.f32 %v5394, 0.0
      %v6980 = vmax.f32 %v5396, 0.0
      %v6981 = vmax.f32 %v6067, 0.0
      %v6982 = vmax.f32 %v6069, 0.0
      %v6983 = vmax.f32 %v4052, 0.0
      %v6984 = vmax.f32 %v4054, 0.0
      %v6985 = vmax.f32 %v4725, 0.0
      %v6986 = vmax.f32 %v4727, 0.0
      %v6987 = vmax.f32 %v5398, 0.0
      %v6988 = vmax.f32 %v5400, 0.0
      %v6989 = vmax.f32 %v6071, 0.0
      %v6990 = vmax.f32 %v6073, 0.0
      %v6991 = vmax.f32 %v4058, 0.0
      %v6992 = vmax.f32 %v4060, 0.0
      %v6993 = vmax.f32 %v4731, 0.0
      %v6994 = vmax.f32 %v4733, 0.0
      %v6995 = vmax.f32 %v5404, 0.0
      %v6996 = vmax.f32 %v5406, 0.0
      %v6997 = vmax.f32 %v6077, 0.0
      %v6998 = vmax.f32 %v6079, 0.0
      %v6999 = vmax.f32 %v4062, 0.0
      %v7000 = vmax.f32 %v4064, 0.0
      %v7001 = vmax.f32 %v4735, 0.0
      %v7002 = vmax.f32 %v4737, 0.0
      %v7003 = vmax.f32 %v5408, 0.0
      %v7004 = vmax.f32 %v5410, 0.0
      %v7005 = vmax.f32 %v6081, 0.0
      %v7006 = vmax.f32 %v6083, 0.0
      %v7007 = vmax.f32 %v4068, 0.0
      %v7008 = vmax.f32 %v4070, 0.0
      %v7009 = vmax.f32 %v4741, 0.0
      %v7010 = vmax.f32 %v4743, 0.0
      %v7011 = vmax.f32 %v5414, 0.0
      %v7012 = vmax.f32 %v5416, 0.0
      %v7013 = vmax.f32 %v6087, 0.0
      %v7014 = vmax.f32 %v6089, 0.0
      %v7015 = vmax.f32 %v4072, 0.0
      %v7016 = vmax.f32 %v4074, 0.0
      %v7017 = vmax.f32 %v4745, 0.0
      %v7018 = vmax.f32 %v4747, 0.0
      %v7019 = vmax.f32 %v5418, 0.0
      %v7020 = vmax.f32 %v5420, 0.0
      %v7021 = vmax.f32 %v6091, 0.0
      %v7022 = vmax.f32 %v6093, 0.0
      %v7023 = vmax.f32 %v4078, 0.0
      %v7024 = vmax.f32 %v4080, 0.0
      %v7025 = vmax.f32 %v4751, 0.0
      %v7026 = vmax.f32 %v4753, 0.0
      %v7027 = vmax.f32 %v5424, 0.0
      %v7028 = vmax.f32 %v5426, 0.0
      %v7029 = vmax.f32 %v6097, 0.0
      %v7030 = vmax.f32 %v6099, 0.0
      %v7031 = vmax.f32 %v4082, 0.0
      %v7032 = vmax.f32 %v4084, 0.0
      %v7033 = vmax.f32 %v4755, 0.0
      %v7034 = vmax.f32 %v4757, 0.0
      %v7035 = vmax.f32 %v5428, 0.0
      %v7036 = vmax.f32 %v5430, 0.0
      %v7037 = vmax.f32 %v6101, 0.0
      %v7038 = vmax.f32 %v6103, 0.0
      %v7039 = vmax.f32 %v4088, 0.0
      %v7040 = vmax.f32 %v4090, 0.0
      %v7041 = vmax.f32 %v4761, 0.0
      %v7042 = vmax.f32 %v4763, 0.0
      %v7043 = vmax.f32 %v5434, 0.0
      %v7044 = vmax.f32 %v5436, 0.0
      %v7045 = vmax.f32 %v6107, 0.0
      %v7046 = vmax.f32 %v6109, 0.0
      %v7047 = vmax.f32 %v4092, 0.0
      %v7048 = vmax.f32 %v4094, 0.0
      %v7049 = vmax.f32 %v4765, 0.0
      %v7050 = vmax.f32 %v4767, 0.0
      %v7051 = vmax.f32 %v5438, 0.0
      %v7052 = vmax.f32 %v5440, 0.0
      %v7053 = vmax.f32 %v6111, 0.0
      %v7054 = vmax.f32 %v6113, 0.0
      %v7055 = vmax.f32 %v4098, 0.0
      %v7056 = vmax.f32 %v4100, 0.0
      %v7057 = vmax.f32 %v4771, 0.0
      %v7058 = vmax.f32 %v4773, 0.0
      %v7059 = vmax.f32 %v5444, 0.0
      %v7060 = vmax.f32 %v5446, 0.0
      %v7061 = vmax.f32 %v6117, 0.0
      %v7062 = vmax.f32 %v6119, 0.0
      %v7063 = vmax.f32 %v4102, 0.0
      %v7064 = vmax.f32 %v4104, 0.0
      %v7065 = vmax.f32 %v4775, 0.0
      %v7066 = vmax.f32 %v4777, 0.0
      %v7067 = vmax.f32 %v5448, 0.0
      %v7068 = vmax.f32 %v5450, 0.0
      %v7069 = vmax.f32 %v6121, 0.0
      %v7070 = vmax.f32 %v6123, 0.0
      %v7071 = vmax.f32 %v4108, 0.0
      %v7072 = vmax.f32 %v4110, 0.0
      %v7073 = vmax.f32 %v4781, 0.0
      %v7074 = vmax.f32 %v4783, 0.0
      %v7075 = vmax.f32 %v5454, 0.0
      %v7076 = vmax.f32 %v5456, 0.0
      %v7077 = vmax.f32 %v6127, 0.0
      %v7078 = vmax.f32 %v6129, 0.0
      %v7079 = vmax.f32 %v4112, 0.0
      %v7080 = vmax.f32 %v4114, 0.0
      %v7081 = vmax.f32 %v4785, 0.0
      %v7082 = vmax.f32 %v4787, 0.0
      %v7083 = vmax.f32 %v5458, 0.0
      %v7084 = vmax.f32 %v5460, 0.0
      %v7085 = vmax.f32 %v6131, 0.0
      %v7086 = vmax.f32 %v6133, 0.0
      %v7087 = vmax.f32 %v4118, 0.0
      %v7088 = vmax.f32 %v4120, 0.0
      %v7089 = vmax.f32 %v4791, 0.0
      %v7090 = vmax.f32 %v4793, 0.0
      %v7091 = vmax.f32 %v5464, 0.0
      %v7092 = vmax.f32 %v5466, 0.0
      %v7093 = vmax.f32 %v6137, 0.0
      %v7094 = vmax.f32 %v6139, 0.0
      %v7095 = vmax.f32 %v4122, 0.0
      %v7096 = vmax.f32 %v4124, 0.0
      %v7097 = vmax.f32 %v4795, 0.0
      %v7098 = vmax.f32 %v4797, 0.0
      %v7099 = vmax.f32 %v5468, 0.0
      %v7100 = vmax.f32 %v5470, 0.0
      %v7101 = vmax.f32 %v6141, 0.0
      %v7102 = vmax.f32 %v6143, 0.0
      %v7103 = vmax.f32 %v4128, 0.0
      %v7104 = vmax.f32 %v4130, 0.0
      %v7105 = vmax.f32 %v4801, 0.0
      %v7106 = vmax.f32 %v4803, 0.0
      %v7107 = vmax.f32 %v5474, 0.0
      %v7108 = vmax.f32 %v5476, 0.0
      %v7109 = vmax.f32 %v6147, 0.0
      %v7110 = vmax.f32 %v6149, 0.0
      %v7111 = vmax.f32 %v4132, 0.0
      %v7112 = vmax.f32 %v4134, 0.0
      %v7113 = vmax.f32 %v4805, 0.0
      %v7114 = vmax.f32 %v4807, 0.0
      %v7115 = vmax.f32 %v5478, 0.0
      %v7116 = vmax.f32 %v5480, 0.0
      %v7117 = vmax.f32 %v6151, 0.0
      %v7118 = vmax.f32 %v6153, 0.0
      %v7119 = vmax.f32 %v4138, 0.0
      %v7120 = vmax.f32 %v4140, 0.0
      %v7121 = vmax.f32 %v4811, 0.0
      %v7122 = vmax.f32 %v4813, 0.0
      %v7123 = vmax.f32 %v5484, 0.0
      %v7124 = vmax.f32 %v5486, 0.0
      %v7125 = vmax.f32 %v6157, 0.0
      %v7126 = vmax.f32 %v6159, 0.0
      %v7127 = vmax.f32 %v4142, 0.0
      %v7128 = vmax.f32 %v4144, 0.0
      %v7129 = vmax.f32 %v4815, 0.0
      %v7130 = vmax.f32 %v4817, 0.0
      %v7131 = vmax.f32 %v5488, 0.0
      %v7132 = vmax.f32 %v5490, 0.0
      %v7133 = vmax.f32 %v6161, 0.0
      %v7134 = vmax.f32 %v6163, 0.0
      %v7135 = vmax.f32 %v4148, 0.0
      %v7136 = vmax.f32 %v4150, 0.0
      %v7137 = vmax.f32 %v4821, 0.0
      %v7138 = vmax.f32 %v4823, 0.0
      %v7139 = vmax.f32 %v5494, 0.0
      %v7140 = vmax.f32 %v5496, 0.0
      %v7141 = vmax.f32 %v6167, 0.0
      %v7142 = vmax.f32 %v6169, 0.0
      %v7143 = vmax.f32 %v4152, 0.0
      %v7144 = vmax.f32 %v4154, 0.0
      %v7145 = vmax.f32 %v4825, 0.0
      %v7146 = vmax.f32 %v4827, 0.0
      %v7147 = vmax.f32 %v5498, 0.0
      %v7148 = vmax.f32 %v5500, 0.0
      %v7149 = vmax.f32 %v6171, 0.0
      %v7150 = vmax.f32 %v6173, 0.0
      %v7151 = vmax.f32 %v4158, 0.0
      %v7152 = vmax.f32 %v4160, 0.0
      %v7153 = vmax.f32 %v4831, 0.0
      %v7154 = vmax.f32 %v4833, 0.0
      %v7155 = vmax.f32 %v5504, 0.0
      %v7156 = vmax.f32 %v5506, 0.0
      %v7157 = vmax.f32 %v6177, 0.0
      %v7158 = vmax.f32 %v6179, 0.0
      %v7159 = vmax.f32 %v4162, 0.0
      %v7160 = vmax.f32 %v4164, 0.0
      %v7161 = vmax.f32 %v4835, 0.0
      %v7162 = vmax.f32 %v4837, 0.0
      %v7163 = vmax.f32 %v5508, 0.0
      %v7164 = vmax.f32 %v5510, 0.0
      %v7165 = vmax.f32 %v6181, 0.0
      %v7166 = vmax.f32 %v6183, 0.0
      %v7167 = vmax.f32 %v4168, 0.0
      %v7168 = vmax.f32 %v4170, 0.0
      %v7169 = vmax.f32 %v4841, 0.0
      %v7170 = vmax.f32 %v4843, 0.0
      %v7171 = vmax.f32 %v5514, 0.0
      %v7172 = vmax.f32 %v5516, 0.0
      %v7173 = vmax.f32 %v6187, 0.0
      %v7174 = vmax.f32 %v6189, 0.0
      %v7175 = vmax.f32 %v4172, 0.0
      %v7176 = vmax.f32 %v4174, 0.0
      %v7177 = vmax.f32 %v4845, 0.0
      %v7178 = vmax.f32 %v4847, 0.0
      %v7179 = vmax.f32 %v5518, 0.0
      %v7180 = vmax.f32 %v5520, 0.0
      %v7181 = vmax.f32 %v6191, 0.0
      %v7182 = vmax.f32 %v6193, 0.0
      %v7183 = vmax.f32 %v4178, 0.0
      %v7184 = vmax.f32 %v4180, 0.0
      %v7185 = vmax.f32 %v4851, 0.0
      %v7186 = vmax.f32 %v4853, 0.0
      %v7187 = vmax.f32 %v5524, 0.0
      %v7188 = vmax.f32 %v5526, 0.0
      %v7189 = vmax.f32 %v6197, 0.0
      %v7190 = vmax.f32 %v6199, 0.0
      %v7191 = vmax.f32 %v4182, 0.0
      %v7192 = vmax.f32 %v4184, 0.0
      %v7193 = vmax.f32 %v4855, 0.0
      %v7194 = vmax.f32 %v4857, 0.0
      %v7195 = vmax.f32 %v5528, 0.0
      %v7196 = vmax.f32 %v5530, 0.0
      %v7197 = vmax.f32 %v6201, 0.0
      %v7198 = vmax.f32 %v6203, 0.0
      %v7199 = vmax.f32 %v4188, 0.0
      %v7200 = vmax.f32 %v4190, 0.0
      %v7201 = vmax.f32 %v4861, 0.0
      %v7202 = vmax.f32 %v4863, 0.0
      %v7203 = vmax.f32 %v5534, 0.0
      %v7204 = vmax.f32 %v5536, 0.0
      %v7205 = vmax.f32 %v6207, 0.0
      %v7206 = vmax.f32 %v6209, 0.0
      %v7207 = vmax.f32 %v4192, 0.0
      %v7208 = vmax.f32 %v4194, 0.0
      %v7209 = vmax.f32 %v4865, 0.0
      %v7210 = vmax.f32 %v4867, 0.0
      %v7211 = vmax.f32 %v5538, 0.0
      %v7212 = vmax.f32 %v5540, 0.0
      %v7213 = vmax.f32 %v6211, 0.0
      %v7214 = vmax.f32 %v6213, 0.0
      %v7215 = vmax.f32 %v4198, 0.0
      %v7216 = vmax.f32 %v4200, 0.0
      %v7217 = vmax.f32 %v4871, 0.0
      %v7218 = vmax.f32 %v4873, 0.0
      %v7219 = vmax.f32 %v5544, 0.0
      %v7220 = vmax.f32 %v5546, 0.0
      %v7221 = vmax.f32 %v6217, 0.0
      %v7222 = vmax.f32 %v6219, 0.0
      %v7223 = vmax.f32 %v4202, 0.0
      %v7224 = vmax.f32 %v4204, 0.0
      %v7225 = vmax.f32 %v4875, 0.0
      %v7226 = vmax.f32 %v4877, 0.0
      %v7227 = vmax.f32 %v5548, 0.0
      %v7228 = vmax.f32 %v5550, 0.0
      %v7229 = vmax.f32 %v6221, 0.0
      %v7230 = vmax.f32 %v6223, 0.0
      %v7231 = vmax.f32 %v4208, 0.0
      %v7232 = vmax.f32 %v4210, 0.0
      %v7233 = vmax.f32 %v4881, 0.0
      %v7234 = vmax.f32 %v4883, 0.0
      %v7235 = vmax.f32 %v5554, 0.0
      %v7236 = vmax.f32 %v5556, 0.0
      %v7237 = vmax.f32 %v6227, 0.0
      %v7238 = vmax.f32 %v6229, 0.0
      %v7239 = vmax.f32 %v4212, 0.0
      %v7240 = vmax.f32 %v4214, 0.0
      %v7241 = vmax.f32 %v4885, 0.0
      %v7242 = vmax.f32 %v4887, 0.0
      %v7243 = vmax.f32 %v5558, 0.0
      %v7244 = vmax.f32 %v5560, 0.0
      %v7245 = vmax.f32 %v6231, 0.0
      %v7246 = vmax.f32 %v6233, 0.0
      %v7247 = vmax.f32 %v4218, 0.0
      %v7248 = vmax.f32 %v4220, 0.0
      %v7249 = vmax.f32 %v4891, 0.0
      %v7250 = vmax.f32 %v4893, 0.0
      %v7251 = vmax.f32 %v5564, 0.0
      %v7252 = vmax.f32 %v5566, 0.0
      %v7253 = vmax.f32 %v6237, 0.0
      %v7254 = vmax.f32 %v6239, 0.0
      %v7255 = vmax.f32 %v4222, 0.0
      %v7256 = vmax.f32 %v4224, 0.0
      %v7257 = vmax.f32 %v4895, 0.0
      %v7258 = vmax.f32 %v4897, 0.0
      %v7259 = vmax.f32 %v5568, 0.0
      %v7260 = vmax.f32 %v5570, 0.0
      %v7261 = vmax.f32 %v6241, 0.0
      %v7262 = vmax.f32 %v6243, 0.0
      %v7263 = vmax.f32 %v4228, 0.0
      %v7264 = vmax.f32 %v4230, 0.0
      %v7265 = vmax.f32 %v4901, 0.0
      %v7266 = vmax.f32 %v4903, 0.0
      %v7267 = vmax.f32 %v5574, 0.0
      %v7268 = vmax.f32 %v5576, 0.0
      %v7269 = vmax.f32 %v6247, 0.0
      %v7270 = vmax.f32 %v6249, 0.0
      %v7271 = vmax.f32 %v4232, 0.0
      %v7272 = vmax.f32 %v4234, 0.0
      %v7273 = vmax.f32 %v4905, 0.0
      %v7274 = vmax.f32 %v4907, 0.0
      %v7275 = vmax.f32 %v5578, 0.0
      %v7276 = vmax.f32 %v5580, 0.0
      %v7277 = vmax.f32 %v6251, 0.0
      %v7278 = vmax.f32 %v6253, 0.0
      %v7279 = vmax.f32 %v6255, %v6256
      %v7280 = vmax.f32 %v6263, %v6264
      %v7281 = vmax.f32 %v6271, %v6272
      %v7282 = vmax.f32 %v6279, %v6280
      %v7283 = vmax.f32 %v6287, %v6288
      %v7284 = vmax.f32 %v6295, %v6296
      %v7285 = vmax.f32 %v6303, %v6304
      %v7286 = vmax.f32 %v6311, %v6312
      %v7287 = vmax.f32 %v6319, %v6320
      %v7288 = vmax.f32 %v6327, %v6328
      %v7289 = vmax.f32 %v6335, %v6336
      %v7290 = vmax.f32 %v6343, %v6344
      %v7291 = vmax.f32 %v6351, %v6352
      %v7292 = vmax.f32 %v6359, %v6360
      %v7293 = vmax.f32 %v6367, %v6368
      %v7294 = vmax.f32 %v6375, %v6376
      %v7295 = vmax.f32 %v6383, %v6384
      %v7296 = vmax.f32 %v6391, %v6392
      %v7297 = vmax.f32 %v6399, %v6400
      %v7298 = vmax.f32 %v6407, %v6408
      %v7299 = vmax.f32 %v6415, %v6416
      %v7300 = vmax.f32 %v6423, %v6424
      %v7301 = vmax.f32 %v6431, %v6432
      %v7302 = vmax.f32 %v6439, %v6440
      %v7303 = vmax.f32 %v6447, %v6448
      %v7304 = vmax.f32 %v6455, %v6456
      %v7305 = vmax.f32 %v6463, %v6464
      %v7306 = vmax.f32 %v6471, %v6472
      %v7307 = vmax.f32 %v6479, %v6480
      %v7308 = vmax.f32 %v6487, %v6488
      %v7309 = vmax.f32 %v6495, %v6496
      %v7310 = vmax.f32 %v6503, %v6504
      %v7311 = vmax.f32 %v6511, %v6512
      %v7312 = vmax.f32 %v6519, %v6520
      %v7313 = vmax.f32 %v6527, %v6528
      %v7314 = vmax.f32 %v6535, %v6536
      %v7315 = vmax.f32 %v6543, %v6544
      %v7316 = vmax.f32 %v6551, %v6552
      %v7317 = vmax.f32 %v6559, %v6560
      %v7318 = vmax.f32 %v6567, %v6568
      %v7319 = vmax.f32 %v6575, %v6576
      %v7320 = vmax.f32 %v6583, %v6584
      %v7321 = vmax.f32 %v6591, %v6592
      %v7322 = vmax.f32 %v6599, %v6600
      %v7323 = vmax.f32 %v6607, %v6608
      %v7324 = vmax.f32 %v6615, %v6616
      %v7325 = vmax.f32 %v6623, %v6624
      %v7326 = vmax.f32 %v6631, %v6632
      %v7327 = vmax.f32 %v6639, %v6640
      %v7328 = vmax.f32 %v6647, %v6648
      %v7329 = vmax.f32 %v6655, %v6656
      %v7330 = vmax.f32 %v6663, %v6664
      %v7331 = vmax.f32 %v6671, %v6672
      %v7332 = vmax.f32 %v6679, %v6680
      %v7333 = vmax.f32 %v6687, %v6688
      %v7334 = vmax.f32 %v6695, %v6696
      %v7335 = vmax.f32 %v6703, %v6704
      %v7336 = vmax.f32 %v6711, %v6712
      %v7337 = vmax.f32 %v6719, %v6720
      %v7338 = vmax.f32 %v6727, %v6728
      %v7339 = vmax.f32 %v6735, %v6736
      %v7340 = vmax.f32 %v6743, %v6744
      %v7341 = vmax.f32 %v6751, %v6752
      %v7342 = vmax.f32 %v6759, %v6760
      %v7343 = vmax.f32 %v6767, %v6768
      %v7344 = vmax.f32 %v6775, %v6776
      %v7345 = vmax.f32 %v6783, %v6784
      %v7346 = vmax.f32 %v6791, %v6792
      %v7347 = vmax.f32 %v6799, %v6800
      %v7348 = vmax.f32 %v6807, %v6808
      %v7349 = vmax.f32 %v6815, %v6816
      %v7350 = vmax.f32 %v6823, %v6824
      %v7351 = vmax.f32 %v6831, %v6832
      %v7352 = vmax.f32 %v6839, %v6840
      %v7353 = vmax.f32 %v6847, %v6848
      %v7354 = vmax.f32 %v6855, %v6856
      %v7355 = vmax.f32 %v6863, %v6864
      %v7356 = vmax.f32 %v6871, %v6872
      %v7357 = vmax.f32 %v6879, %v6880
      %v7358 = vmax.f32 %v6887, %v6888
      %v7359 = vmax.f32 %v6895, %v6896
      %v7360 = vmax.f32 %v6903, %v6904
      %v7361 = vmax.f32 %v6911, %v6912
      %v7362 = vmax.f32 %v6919, %v6920
      %v7363 = vmax.f32 %v6927, %v6928
      %v7364 = vmax.f32 %v6935, %v6936
      %v7365 = vmax.f32 %v6943, %v6944
      %v7366 = vmax.f32 %v6951, %v6952
      %v7367 = vmax.f32 %v6959, %v6960
      %v7368 = vmax.f32 %v6967, %v6968
      %v7369 = vmax.f32 %v6975, %v6976
      %v7370 = vmax.f32 %v6983, %v6984
      %v7371 = vmax.f32 %v6991, %v6992
      %v7372 = vmax.f32 %v6999, %v7000
      %v7373 = vmax.f32 %v7007, %v7008
      %v7374 = vmax.f32 %v7015, %v7016
      %v7375 = vmax.f32 %v7023, %v7024
      %v7376 = vmax.f32 %v7031, %v7032
      %v7377 = vmax.f32 %v7039, %v7040
      %v7378 = vmax.f32 %v7047, %v7048
      %v7379 = vmax.f32 %v7055, %v7056
      %v7380 = vmax.f32 %v7063, %v7064
      %v7381 = vmax.f32 %v7071, %v7072
      %v7382 = vmax.f32 %v7079, %v7080
      %v7383 = vmax.f32 %v7087, %v7088
      %v7384 = vmax.f32 %v7095, %v7096
      %v7385 = vmax.f32 %v7103, %v7104
      %v7386 = vmax.f32 %v7111, %v7112
      %v7387 = vmax.f32 %v7119, %v7120
      %v7388 = vmax.f32 %v7127, %v7128
      %v7389 = vmax.f32 %v7135, %v7136
      %v7390 = vmax.f32 %v7143, %v7144
      %v7391 = vmax.f32 %v7151, %v7152
      %v7392 = vmax.f32 %v7159, %v7160
      %v7393 = vmax.f32 %v7167, %v7168
      %v7394 = vmax.f32 %v7175, %v7176
      %v7395 = vmax.f32 %v7183, %v7184
      %v7396 = vmax.f32 %v7191, %v7192
      %v7397 = vmax.f32 %v7199, %v7200
      %v7398 = vmax.f32 %v7207, %v7208
      %v7399 = vmax.f32 %v7215, %v7216
      %v7400 = vmax.f32 %v7223, %v7224
      %v7401 = vmax.f32 %v7231, %v7232
      %v7402 = vmax.f32 %v7239, %v7240
      %v7403 = vmax.f32 %v7247, %v7248
      %v7404 = vmax.f32 %v7255, %v7256
      %v7405 = vmax.f32 %v7263, %v7264
      %v7406 = vmax.f32 %v7271, %v7272
      %v7407 = vmax.f32 %v7279, %v6257
      %v7408 = vmax.f32 %v7280, %v6265
      %v7409 = vmax.f32 %v7281, %v6273
      %v7410 = vmax.f32 %v7282, %v6281
      %v7411 = vmax.f32 %v7283, %v6289
      %v7412 = vmax.f32 %v7284, %v6297
      %v7413 = vmax.f32 %v7285, %v6305
      %v7414 = vmax.f32 %v7286, %v6313
      %v7415 = vmax.f32 %v7287, %v6321
      %v7416 = vmax.f32 %v7288, %v6329
      %v7417 = vmax.f32 %v7289, %v6337
      %v7418 = vmax.f32 %v7290, %v6345
      %v7419 = vmax.f32 %v7291, %v6353
      %v7420 = vmax.f32 %v7292, %v6361
      %v7421 = vmax.f32 %v7293, %v6369
      %v7422 = vmax.f32 %v7294, %v6377
      %v7423 = vmax.f32 %v7295, %v6385
      %v7424 = vmax.f32 %v7296, %v6393
      %v7425 = vmax.f32 %v7297, %v6401
      %v7426 = vmax.f32 %v7298, %v6409
      %v7427 = vmax.f32 %v7299, %v6417
      %v7428 = vmax.f32 %v7300, %v6425
      %v7429 = vmax.f32 %v7301, %v6433
      %v7430 = vmax.f32 %v7302, %v6441
      %v7431 = vmax.f32 %v7303, %v6449
      %v7432 = vmax.f32 %v7304, %v6457
      %v7433 = vmax.f32 %v7305, %v6465
      %v7434 = vmax.f32 %v7306, %v6473
      %v7435 = vmax.f32 %v7307, %v6481
      %v7436 = vmax.f32 %v7308, %v6489
      %v7437 = vmax.f32 %v7309, %v6497
      %v7438 = vmax.f32 %v7310, %v6505
      %v7439 = vmax.f32 %v7311, %v6513
      %v7440 = vmax.f32 %v7312, %v6521
      %v7441 = vmax.f32 %v7313, %v6529
      %v7442 = vmax.f32 %v7314, %v6537
      %v7443 = vmax.f32 %v7315, %v6545
      %v7444 = vmax.f32 %v7316, %v6553
      %v7445 = vmax.f32 %v7317, %v6561
      %v7446 = vmax.f32 %v7318, %v6569
      %v7447 = vmax.f32 %v7319, %v6577
      %v7448 = vmax.f32 %v7320, %v6585
      %v7449 = vmax.f32 %v7321, %v6593
      %v7450 = vmax.f32 %v7322, %v6601
      %v7451 = vmax.f32 %v7323, %v6609
      %v7452 = vmax.f32 %v7324, %v6617
      %v7453 = vmax.f32 %v7325, %v6625
      %v7454 = vmax.f32 %v7326, %v6633
      %v7455 = vmax.f32 %v7327, %v6641
      %v7456 = vmax.f32 %v7328, %v6649
      %v7457 = vmax.f32 %v7329, %v6657
      %v7458 = vmax.f32 %v7330, %v6665
      %v7459 = vmax.f32 %v7331, %v6673
      %v7460 = vmax.f32 %v7332, %v6681
      %v7461 = vmax.f32 %v7333, %v6689
      %v7462 = vmax.f32 %v7334, %v6697
      %v7463 = vmax.f32 %v7335, %v6705
      %v7464 = vmax.f32 %v7336, %v6713
      %v7465 = vmax.f32 %v7337, %v6721
      %v7466 = vmax.f32 %v7338, %v6729
      %v7467 = vmax.f32 %v7339, %v6737
      %v7468 = vmax.f32 %v7340, %v6745
      %v7469 = vmax.f32 %v7341, %v6753
      %v7470 = vmax.f32 %v7342, %v6761
      %v7471 = vmax.f32 %v7343, %v6769
      %v7472 = vmax.f32 %v7344, %v6777
      %v7473 = vmax.f32 %v7345, %v6785
      %v7474 = vmax.f32 %v7346, %v6793
      %v7475 = vmax.f32 %v7347, %v6801
      %v7476 = vmax.f32 %v7348, %v6809
      %v7477 = vmax.f32 %v7349, %v6817
      %v7478 = vmax.f32 %v7350, %v6825
      %v7479 = vmax.f32 %v7351, %v6833
      %v7480 = vmax.f32 %v7352, %v6841
      %v7481 = vmax.f32 %v7353, %v6849
      %v7482 = vmax.f32 %v7354, %v6857
      %v7483 = vmax.f32 %v7355, %v6865
      %v7484 = vmax.f32 %v7356, %v6873
      %v7485 = vmax.f32 %v7357, %v6881
      %v7486 = vmax.f32 %v7358, %v6889
      %v7487 = vmax.f32 %v7359, %v6897
      %v7488 = vmax.f32 %v7360, %v6905
      %v7489 = vmax.f32 %v7361, %v6913
      %v7490 = vmax.f32 %v7362, %v6921
      %v7491 = vmax.f32 %v7363, %v6929
      %v7492 = vmax.f32 %v7364, %v6937
      %v7493 = vmax.f32 %v7365, %v6945
      %v7494 = vmax.f32 %v7366, %v6953
      %v7495 = vmax.f32 %v7367, %v6961
      %v7496 = vmax.f32 %v7368, %v6969
      %v7497 = vmax.f32 %v7369, %v6977
      %v7498 = vmax.f32 %v7370, %v6985
      %v7499 = vmax.f32 %v7371, %v6993
      %v7500 = vmax.f32 %v7372, %v7001
      %v7501 = vmax.f32 %v7373, %v7009
      %v7502 = vmax.f32 %v7374, %v7017
      %v7503 = vmax.f32 %v7375, %v7025
      %v7504 = vmax.f32 %v7376, %v7033
      %v7505 = vmax.f32 %v7377, %v7041
      %v7506 = vmax.f32 %v7378, %v7049
      %v7507 = vmax.f32 %v7379, %v7057
      %v7508 = vmax.f32 %v7380, %v7065
      %v7509 = vmax.f32 %v7381, %v7073
      %v7510 = vmax.f32 %v7382, %v7081
      %v7511 = vmax.f32 %v7383, %v7089
      %v7512 = vmax.f32 %v7384, %v7097
      %v7513 = vmax.f32 %v7385, %v7105
      %v7514 = vmax.f32 %v7386, %v7113
      %v7515 = vmax.f32 %v7387, %v7121
      %v7516 = vmax.f32 %v7388, %v7129
      %v7517 = vmax.f32 %v7389, %v7137
      %v7518 = vmax.f32 %v7390, %v7145
      %v7519 = vmax.f32 %v7391, %v7153
      %v7520 = vmax.f32 %v7392, %v7161
      %v7521 = vmax.f32 %v7393, %v7169
      %v7522 = vmax.f32 %v7394, %v7177
      %v7523 = vmax.f32 %v7395, %v7185
      %v7524 = vmax.f32 %v7396, %v7193
      %v7525 = vmax.f32 %v7397, %v7201
      %v7526 = vmax.f32 %v7398, %v7209
      %v7527 = vmax.f32 %v7399, %v7217
      %v7528 = vmax.f32 %v7400, %v7225
      %v7529 = vmax.f32 %v7401, %v7233
      %v7530 = vmax.f32 %v7402, %v7241
      %v7531 = vmax.f32 %v7403, %v7249
      %v7532 = vmax.f32 %v7404, %v7257
      %v7533 = vmax.f32 %v7405, %v7265
      %v7534 = vmax.f32 %v7406, %v7273
      %v7535 = vmax.f32 %v7407, %v6258
      %v7536 = vmax.f32 %v7408, %v6266
      %v7537 = vmax.f32 %v7409, %v6274
      %v7538 = vmax.f32 %v7410, %v6282
      %v7539 = vmax.f32 %v7411, %v6290
      %v7540 = vmax.f32 %v7412, %v6298
      %v7541 = vmax.f32 %v7413, %v6306
      %v7542 = vmax.f32 %v7414, %v6314
      %v7543 = vmax.f32 %v7415, %v6322
      %v7544 = vmax.f32 %v7416, %v6330
      %v7545 = vmax.f32 %v7417, %v6338
      %v7546 = vmax.f32 %v7418, %v6346
      %v7547 = vmax.f32 %v7419, %v6354
      %v7548 = vmax.f32 %v7420, %v6362
      %v7549 = vmax.f32 %v7421, %v6370
      %v7550 = vmax.f32 %v7422, %v6378
      %v7551 = vmax.f32 %v7423, %v6386
      %v7552 = vmax.f32 %v7424, %v6394
      %v7553 = vmax.f32 %v7425, %v6402
      %v7554 = vmax.f32 %v7426, %v6410
      %v7555 = vmax.f32 %v7427, %v6418
      %v7556 = vmax.f32 %v7428, %v6426
      %v7557 = vmax.f32 %v7429, %v6434
      %v7558 = vmax.f32 %v7430, %v6442
      %v7559 = vmax.f32 %v7431, %v6450
      %v7560 = vmax.f32 %v7432, %v6458
      %v7561 = vmax.f32 %v7433, %v6466
      %v7562 = vmax.f32 %v7434, %v6474
      %v7563 = vmax.f32 %v7435, %v6482
      %v7564 = vmax.f32 %v7436, %v6490
      %v7565 = vmax.f32 %v7437, %v6498
      %v7566 = vmax.f32 %v7438, %v6506
      %v7567 = vmax.f32 %v7439, %v6514
      %v7568 = vmax.f32 %v7440, %v6522
      %v7569 = vmax.f32 %v7441, %v6530
      %v7570 = vmax.f32 %v7442, %v6538
      %v7571 = vmax.f32 %v7443, %v6546
      %v7572 = vmax.f32 %v7444, %v6554
      %v7573 = vmax.f32 %v7445, %v6562
      %v7574 = vmax.f32 %v7446, %v6570
      %v7575 = vmax.f32 %v7447, %v6578
      %v7576 = vmax.f32 %v7448, %v6586
      %v7577 = vmax.f32 %v7449, %v6594
      %v7578 = vmax.f32 %v7450, %v6602
      %v7579 = vmax.f32 %v7451, %v6610
      %v7580 = vmax.f32 %v7452, %v6618
      %v7581 = vmax.f32 %v7453, %v6626
      %v7582 = vmax.f32 %v7454, %v6634
      %v7583 = vmax.f32 %v7455, %v6642
      %v7584 = vmax.f32 %v7456, %v6650
      %v7585 = vmax.f32 %v7457, %v6658
      %v7586 = vmax.f32 %v7458, %v6666
      %v7587 = vmax.f32 %v7459, %v6674
      %v7588 = vmax.f32 %v7460, %v6682
      %v7589 = vmax.f32 %v7461, %v6690
      %v7590 = vmax.f32 %v7462, %v6698
      %v7591 = vmax.f32 %v7463, %v6706
      %v7592 = vmax.f32 %v7464, %v6714
      %v7593 = vmax.f32 %v7465, %v6722
      %v7594 = vmax.f32 %v7466, %v6730
      %v7595 = vmax.f32 %v7467, %v6738
      %v7596 = vmax.f32 %v7468, %v6746
      %v7597 = vmax.f32 %v7469, %v6754
      %v7598 = vmax.f32 %v7470, %v6762
      %v7599 = vmax.f32 %v7471, %v6770
      %v7600 = vmax.f32 %v7472, %v6778
      %v7601 = vmax.f32 %v7473, %v6786
      %v7602 = vmax.f32 %v7474, %v6794
      %v7603 = vmax.f32 %v7475, %v6802
      %v7604 = vmax.f32 %v7476, %v6810
      %v7605 = vmax.f32 %v7477, %v6818
      %v7606 = vmax.f32 %v7478, %v6826
      %v7607 = vmax.f32 %v7479, %v6834
      %v7608 = vmax.f32 %v7480, %v6842
      %v7609 = vmax.f32 %v7481, %v6850
      %v7610 = vmax.f32 %v7482, %v6858
      %v7611 = vmax.f32 %v7483, %v6866
      %v7612 = vmax.f32 %v7484, %v6874
      %v7613 = vmax.f32 %v7485, %v6882
      %v7614 = vmax.f32 %v7486, %v6890
      %v7615 = vmax.f32 %v7487, %v6898
      %v7616 = vmax.f32 %v7488, %v6906
      %v7617 = vmax.f32 %v7489, %v6914
      %v7618 = vmax.f32 %v7490, %v6922
      %v7619 = vmax.f32 %v7491, %v6930
      %v7620 = vmax.f32 %v7492, %v6938
      %v7621 = vmax.f32 %v7493, %v6946
      %v7622 = vmax.f32 %v7494, %v6954
      %v7623 = vmax.f32 %v7495, %v6962
      %v7624 = vmax.f32 %v7496, %v6970
      %v7625 = vmax.f32 %v7497, %v6978
      %v7626 = vmax.f32 %v7498, %v6986
      %v7627 = vmax.f32 %v7499, %v6994
      %v7628 = vmax.f32 %v7500, %v7002
      %v7629 = vmax.f32 %v7501, %v7010
      %v7630 = vmax.f32 %v7502, %v7018
      %v7631 = vmax.f32 %v7503, %v7026
      %v7632 = vmax.f32 %v7504, %v7034
      %v7633 = vmax.f32 %v7505, %v7042
      %v7634 = vmax.f32 %v7506, %v7050
      %v7635 = vmax.f32 %v7507, %v7058
      %v7636 = vmax.f32 %v7508, %v7066
      %v7637 = vmax.f32 %v7509, %v7074
      %v7638 = vmax.f32 %v7510, %v7082
      %v7639 = vmax.f32 %v7511, %v7090
      %v7640 = vmax.f32 %v7512, %v7098
      %v7641 = vmax.f32 %v7513, %v7106
      %v7642 = vmax.f32 %v7514, %v7114
      %v7643 = vmax.f32 %v7515, %v7122
      %v7644 = vmax.f32 %v7516, %v7130
      %v7645 = vmax.f32 %v7517, %v7138
      %v7646 = vmax.f32 %v7518, %v7146
      %v7647 = vmax.f32 %v7519, %v7154
      %v7648 = vmax.f32 %v7520, %v7162
      %v7649 = vmax.f32 %v7521, %v7170
      %v7650 = vmax.f32 %v7522, %v7178
      %v7651 = vmax.f32 %v7523, %v7186
      %v7652 = vmax.f32 %v7524, %v7194
      %v7653 = vmax.f32 %v7525, %v7202
      %v7654 = vmax.f32 %v7526, %v7210
      %v7655 = vmax.f32 %v7527, %v7218
      %v7656 = vmax.f32 %v7528, %v7226
      %v7657 = vmax.f32 %v7529, %v7234
      %v7658 = vmax.f32 %v7530, %v7242
      %v7659 = vmax.f32 %v7531, %v7250
      %v7660 = vmax.f32 %v7532, %v7258
      %v7661 = vmax.f32 %v7533, %v7266
      %v7662 = vmax.f32 %v7534, %v7274
      %v7663 = vmax.f32 %v7535, %v6259
      %v7664 = vmax.f32 %v7536, %v6267
      %v7665 = vmax.f32 %v7537, %v6275
      %v7666 = vmax.f32 %v7538, %v6283
      %v7667 = vmax.f32 %v7539, %v6291
      %v7668 = vmax.f32 %v7540, %v6299
      %v7669 = vmax.f32 %v7541, %v6307
      %v7670 = vmax.f32 %v7542, %v6315
      %v7671 = vmax.f32 %v7543, %v6323
      %v7672 = vmax.f32 %v7544, %v6331
      %v7673 = vmax.f32 %v7545, %v6339
      %v7674 = vmax.f32 %v7546, %v6347
      %v7675 = vmax.f32 %v7547, %v6355
      %v7676 = vmax.f32 %v7548, %v6363
      %v7677 = vmax.f32 %v7549, %v6371
      %v7678 = vmax.f32 %v7550, %v6379
      %v7679 = vmax.f32 %v7551, %v6387
      %v7680 = vmax.f32 %v7552, %v6395
      %v7681 = vmax.f32 %v7553, %v6403
      %v7682 = vmax.f32 %v7554, %v6411
      %v7683 = vmax.f32 %v7555, %v6419
      %v7684 = vmax.f32 %v7556, %v6427
      %v7685 = vmax.f32 %v7557, %v6435
      %v7686 = vmax.f32 %v7558, %v6443
      %v7687 = vmax.f32 %v7559, %v6451
      %v7688 = vmax.f32 %v7560, %v6459
      %v7689 = vmax.f32 %v7561, %v6467
      %v7690 = vmax.f32 %v7562, %v6475
      %v7691 = vmax.f32 %v7563, %v6483
      %v7692 = vmax.f32 %v7564, %v6491
      %v7693 = vmax.f32 %v7565, %v6499
      %v7694 = vmax.f32 %v7566, %v6507
      %v7695 = vmax.f32 %v7567, %v6515
      %v7696 = vmax.f32 %v7568, %v6523
      %v7697 = vmax.f32 %v7569, %v6531
      %v7698 = vmax.f32 %v7570, %v6539
      %v7699 = vmax.f32 %v7571, %v6547
      %v7700 = vmax.f32 %v7572, %v6555
      %v7701 = vmax.f32 %v7573, %v6563
      %v7702 = vmax.f32 %v7574, %v6571
      %v7703 = vmax.f32 %v7575, %v6579
      %v7704 = vmax.f32 %v7576, %v6587
      %v7705 = vmax.f32 %v7577, %v6595
      %v7706 = vmax.f32 %v7578, %v6603
      %v7707 = vmax.f32 %v7579, %v6611
      %v7708 = vmax.f32 %v7580, %v6619
      %v7709 = vmax.f32 %v7581, %v6627
      %v7710 = vmax.f32 %v7582, %v6635
      %v7711 = vmax.f32 %v7583, %v6643
      %v7712 = vmax.f32 %v7584, %v6651
      %v7713 = vmax.f32 %v7585, %v6659
      %v7714 = vmax.f32 %v7586, %v6667
      %v7715 = vmax.f32 %v7587, %v6675
      %v7716 = vmax.f32 %v7588, %v6683
      %v7717 = vmax.f32 %v7589, %v6691
      %v7718 = vmax.f32 %v7590, %v6699
      %v7719 = vmax.f32 %v7591, %v6707
      %v7720 = vmax.f32 %v7592, %v6715
      %v7721 = vmax.f32 %v7593, %v6723
      %v7722 = vmax.f32 %v7594, %v6731
      %v7723 = vmax.f32 %v7595, %v6739
      %v7724 = vmax.f32 %v7596, %v6747
      %v7725 = vmax.f32 %v7597, %v6755
      %v7726 = vmax.f32 %v7598, %v6763
      %v7727 = vmax.f32 %v7599, %v6771
      %v7728 = vmax.f32 %v7600, %v6779
      %v7729 = vmax.f32 %v7601, %v6787
      %v7730 = vmax.f32 %v7602, %v6795
      %v7731 = vmax.f32 %v7603, %v6803
      %v7732 = vmax.f32 %v7604, %v6811
      %v7733 = vmax.f32 %v7605, %v6819
      %v7734 = vmax.f32 %v7606, %v6827
      %v7735 = vmax.f32 %v7607, %v6835
      %v7736 = vmax.f32 %v7608, %v6843
      %v7737 = vmax.f32 %v7609, %v6851
      %v7738 = vmax.f32 %v7610, %v6859
      %v7739 = vmax.f32 %v7611, %v6867
      %v7740 = vmax.f32 %v7612, %v6875
      %v7741 = vmax.f32 %v7613, %v6883
      %v7742 = vmax.f32 %v7614, %v6891
      %v7743 = vmax.f32 %v7615, %v6899
      %v7744 = vmax.f32 %v7616, %v6907
      %v7745 = vmax.f32 %v7617, %v6915
      %v7746 = vmax.f32 %v7618, %v6923
      %v7747 = vmax.f32 %v7619, %v6931
      %v7748 = vmax.f32 %v7620, %v6939
      %v7749 = vmax.f32 %v7621, %v6947
      %v7750 = vmax.f32 %v7622, %v6955
      %v7751 = vmax.f32 %v7623, %v6963
      %v7752 = vmax.f32 %v7624, %v6971
      %v7753 = vmax.f32 %v7625, %v6979
      %v7754 = vmax.f32 %v7626, %v6987
      %v7755 = vmax.f32 %v7627, %v6995
      %v7756 = vmax.f32 %v7628, %v7003
      %v7757 = vmax.f32 %v7629, %v7011
      %v7758 = vmax.f32 %v7630, %v7019
      %v7759 = vmax.f32 %v7631, %v7027
      %v7760 = vmax.f32 %v7632, %v7035
      %v7761 = vmax.f32 %v7633, %v7043
      %v7762 = vmax.f32 %v7634, %v7051
      %v7763 = vmax.f32 %v7635, %v7059
      %v7764 = vmax.f32 %v7636, %v7067
      %v7765 = vmax.f32 %v7637, %v7075
      %v7766 = vmax.f32 %v7638, %v7083
      %v7767 = vmax.f32 %v7639, %v7091
      %v7768 = vmax.f32 %v7640, %v7099
      %v7769 = vmax.f32 %v7641, %v7107
      %v7770 = vmax.f32 %v7642, %v7115
      %v7771 = vmax.f32 %v7643, %v7123
      %v7772 = vmax.f32 %v7644, %v7131
      %v7773 = vmax.f32 %v7645, %v7139
      %v7774 = vmax.f32 %v7646, %v7147
      %v7775 = vmax.f32 %v7647, %v7155
      %v7776 = vmax.f32 %v7648, %v7163
      %v7777 = vmax.f32 %v7649, %v7171
      %v7778 = vmax.f32 %v7650, %v7179
      %v7779 = vmax.f32 %v7651, %v7187
      %v7780 = vmax.f32 %v7652, %v7195
      %v7781 = vmax.f32 %v7653, %v7203
      %v7782 = vmax.f32 %v7654, %v7211
      %v7783 = vmax.f32 %v7655, %v7219
      %v7784 = vmax.f32 %v7656, %v7227
      %v7785 = vmax.f32 %v7657, %v7235
      %v7786 = vmax.f32 %v7658, %v7243
      %v7787 = vmax.f32 %v7659, %v7251
      %v7788 = vmax.f32 %v7660, %v7259
      %v7789 = vmax.f32 %v7661, %v7267
      %v7790 = vmax.f32 %v7662, %v7275
      %v7791 = vmax.f32 %v7663, %v6260
      %v7792 = vmax.f32 %v7664, %v6268
      %v7793 = vmax.f32 %v7665, %v6276
      %v7794 = vmax.f32 %v7666, %v6284
      %v7795 = vmax.f32 %v7667, %v6292
      %v7796 = vmax.f32 %v7668, %v6300
      %v7797 = vmax.f32 %v7669, %v6308
      %v7798 = vmax.f32 %v7670, %v6316
      %v7799 = vmax.f32 %v7671, %v6324
      %v7800 = vmax.f32 %v7672, %v6332
      %v7801 = vmax.f32 %v7673, %v6340
      %v7802 = vmax.f32 %v7674, %v6348
      %v7803 = vmax.f32 %v7675, %v6356
      %v7804 = vmax.f32 %v7676, %v6364
      %v7805 = vmax.f32 %v7677, %v6372
      %v7806 = vmax.f32 %v7678, %v6380
      %v7807 = vmax.f32 %v7679, %v6388
      %v7808 = vmax.f32 %v7680, %v6396
      %v7809 = vmax.f32 %v7681, %v6404
      %v7810 = vmax.f32 %v7682, %v6412
      %v7811 = vmax.f32 %v7683, %v6420
      %v7812 = vmax.f32 %v7684, %v6428
      %v7813 = vmax.f32 %v7685, %v6436
      %v7814 = vmax.f32 %v7686, %v6444
      %v7815 = vmax.f32 %v7687, %v6452
      %v7816 = vmax.f32 %v7688, %v6460
      %v7817 = vmax.f32 %v7689, %v6468
      %v7818 = vmax.f32 %v7690, %v6476
      %v7819 = vmax.f32 %v7691, %v6484
      %v7820 = vmax.f32 %v7692, %v6492
      %v7821 = vmax.f32 %v7693, %v6500
      %v7822 = vmax.f32 %v7694, %v6508
      %v7823 = vmax.f32 %v7695, %v6516
      %v7824 = vmax.f32 %v7696, %v6524
      %v7825 = vmax.f32 %v7697, %v6532
      %v7826 = vmax.f32 %v7698, %v6540
      %v7827 = vmax.f32 %v7699, %v6548
      %v7828 = vmax.f32 %v7700, %v6556
      %v7829 = vmax.f32 %v7701, %v6564
      %v7830 = vmax.f32 %v7702, %v6572
      %v7831 = vmax.f32 %v7703, %v6580
      %v7832 = vmax.f32 %v7704, %v6588
      %v7833 = vmax.f32 %v7705, %v6596
      %v7834 = vmax.f32 %v7706, %v6604
      %v7835 = vmax.f32 %v7707, %v6612
      %v7836 = vmax.f32 %v7708, %v6620
      %v7837 = vmax.f32 %v7709, %v6628
      %v7838 = vmax.f32 %v7710, %v6636
      %v7839 = vmax.f32 %v7711, %v6644
      %v7840 = vmax.f32 %v7712, %v6652
      %v7841 = vmax.f32 %v7713, %v6660
      %v7842 = vmax.f32 %v7714, %v6668
      %v7843 = vmax.f32 %v7715, %v6676
      %v7844 = vmax.f32 %v7716, %v6684
      %v7845 = vmax.f32 %v7717, %v6692
      %v7846 = vmax.f32 %v7718, %v6700
      %v7847 = vmax.f32 %v7719, %v6708
      %v7848 = vmax.f32 %v7720, %v6716
      %v7849 = vmax.f32 %v7721, %v6724
      %v7850 = vmax.f32 %v7722, %v6732
      %v7851 = vmax.f32 %v7723, %v6740
      %v7852 = vmax.f32 %v7724, %v6748
      %v7853 = vmax.f32 %v7725, %v6756
      %v7854 = vmax.f32 %v7726, %v6764
      %v7855 = vmax.f32 %v7727, %v6772
      %v7856 = vmax.f32 %v7728, %v6780
      %v7857 = vmax.f32 %v7729, %v6788
      %v7858 = vmax.f32 %v7730, %v6796
      %v7859 = vmax.f32 %v7731, %v6804
      %v7860 = vmax.f32 %v7732, %v6812
      %v7861 = vmax.f32 %v7733, %v6820
      %v7862 = vmax.f32 %v7734, %v6828
      %v7863 = vmax.f32 %v7735, %v6836
      %v7864 = vmax.f32 %v7736, %v6844
      %v7865 = vmax.f32 %v7737, %v6852
      %v7866 = vmax.f32 %v7738, %v6860
      %v7867 = vmax.f32 %v7739, %v6868
      %v7868 = vmax.f32 %v7740, %v6876
      %v7869 = vmax.f32 %v7741, %v6884
      %v7870 = vmax.f32 %v7742, %v6892
      %v7871 = vmax.f32 %v7743, %v6900
      %v7872 = vmax.f32 %v7744, %v6908
      %v7873 = vmax.f32 %v7745, %v6916
      %v7874 = vmax.f32 %v7746, %v6924
      %v7875 = vmax.f32 %v7747, %v6932
      %v7876 = vmax.f32 %v7748, %v6940
      %v7877 = vmax.f32 %v7749, %v6948
      %v7878 = vmax.f32 %v7750, %v6956
      %v7879 = vmax.f32 %v7751, %v6964
      %v7880 = vmax.f32 %v7752, %v6972
      %v7881 = vmax.f32 %v7753, %v6980
      %v7882 = vmax.f32 %v7754, %v6988
      %v7883 = vmax.f32 %v7755, %v6996
      %v7884 = vmax.f32 %v7756, %v7004
      %v7885 = vmax.f32 %v7757, %v7012
      %v7886 = vmax.f32 %v7758, %v7020
      %v7887 = vmax.f32 %v7759, %v7028
      %v7888 = vmax.f32 %v7760, %v7036
      %v7889 = vmax.f32 %v7761, %v7044
      %v7890 = vmax.f32 %v7762, %v7052
      %v7891 = vmax.f32 %v7763, %v7060
      %v7892 = vmax.f32 %v7764, %v7068
      %v7893 = vmax.f32 %v7765, %v7076
      %v7894 = vmax.f32 %v7766, %v7084
      %v7895 = vmax.f32 %v7767, %v7092
      %v7896 = vmax.f32 %v7768, %v7100
      %v7897 = vmax.f32 %v7769, %v7108
      %v7898 = vmax.f32 %v7770, %v7116
      %v7899 = vmax.f32 %v7771, %v7124
      %v7900 = vmax.f32 %v7772, %v7132
      %v7901 = vmax.f32 %v7773, %v7140
      %v7902 = vmax.f32 %v7774, %v7148
      %v7903 = vmax.f32 %v7775, %v7156
      %v7904 = vmax.f32 %v7776, %v7164
      %v7905 = vmax.f32 %v7777, %v7172
      %v7906 = vmax.f32 %v7778, %v7180
      %v7907 = vmax.f32 %v7779, %v7188
      %v7908 = vmax.f32 %v7780, %v7196
      %v7909 = vmax.f32 %v7781, %v7204
      %v7910 = vmax.f32 %v7782, %v7212
      %v7911 = vmax.f32 %v7783, %v7220
      %v7912 = vmax.f32 %v7784, %v7228
      %v7913 = vmax.f32 %v7785, %v7236
      %v7914 = vmax.f32 %v7786, %v7244
      %v7915 = vmax.f32 %v7787, %v7252
      %v7916 = vmax.f32 %v7788, %v7260
      %v7917 = vmax.f32 %v7789, %v7268
      %v7918 = vmax.f32 %v7790, %v7276
      %v7919 = vmax.f32 %v7791, %v6261
      %v7920 = vmax.f32 %v7792, %v6269
      %v7921 = vmax.f32 %v7793, %v6277
      %v7922 = vmax.f32 %v7794, %v6285
      %v7923 = vmax.f32 %v7795, %v6293
      %v7924 = vmax.f32 %v7796, %v6301
      %v7925 = vmax.f32 %v7797, %v6309
      %v7926 = vmax.f32 %v7798, %v6317
      %v7927 = vmax.f32 %v7799, %v6325
      %v7928 = vmax.f32 %v7800, %v6333
      %v7929 = vmax.f32 %v7801, %v6341
      %v7930 = vmax.f32 %v7802, %v6349
      %v7931 = vmax.f32 %v7803, %v6357
      %v7932 = vmax.f32 %v7804, %v6365
      %v7933 = vmax.f32 %v7805, %v6373
      %v7934 = vmax.f32 %v7806, %v6381
      %v7935 = vmax.f32 %v7807, %v6389
      %v7936 = vmax.f32 %v7808, %v6397
      %v7937 = vmax.f32 %v7809, %v6405
      %v7938 = vmax.f32 %v7810, %v6413
      %v7939 = vmax.f32 %v7811, %v6421
      %v7940 = vmax.f32 %v7812, %v6429
      %v7941 = vmax.f32 %v7813, %v6437
      %v7942 = vmax.f32 %v7814, %v6445
      %v7943 = vmax.f32 %v7815, %v6453
      %v7944 = vmax.f32 %v7816, %v6461
      %v7945 = vmax.f32 %v7817, %v6469
      %v7946 = vmax.f32 %v7818, %v6477
      %v7947 = vmax.f32 %v7819, %v6485
      %v7948 = vmax.f32 %v7820, %v6493
      %v7949 = vmax.f32 %v7821, %v6501
      %v7950 = vmax.f32 %v7822, %v6509
      %v7951 = vmax.f32 %v7823, %v6517
      %v7952 = vmax.f32 %v7824, %v6525
      %v7953 = vmax.f32 %v7825, %v6533
      %v7954 = vmax.f32 %v7826, %v6541
      %v7955 = vmax.f32 %v7827, %v6549
      %v7956 = vmax.f32 %v7828, %v6557
      %v7957 = vmax.f32 %v7829, %v6565
      %v7958 = vmax.f32 %v7830, %v6573
      %v7959 = vmax.f32 %v7831, %v6581
      %v7960 = vmax.f32 %v7832, %v6589
      %v7961 = vmax.f32 %v7833, %v6597
      %v7962 = vmax.f32 %v7834, %v6605
      %v7963 = vmax.f32 %v7835, %v6613
      %v7964 = vmax.f32 %v7836, %v6621
      %v7965 = vmax.f32 %v7837, %v6629
      %v7966 = vmax.f32 %v7838, %v6637
      %v7967 = vmax.f32 %v7839, %v6645
      %v7968 = vmax.f32 %v7840, %v6653
      %v7969 = vmax.f32 %v7841, %v6661
      %v7970 = vmax.f32 %v7842, %v6669
      %v7971 = vmax.f32 %v7843, %v6677
      %v7972 = vmax.f32 %v7844, %v6685
      %v7973 = vmax.f32 %v7845, %v6693
      %v7974 = vmax.f32 %v7846, %v6701
      %v7975 = vmax.f32 %v7847, %v6709
      %v7976 = vmax.f32 %v7848, %v6717
      %v7977 = vmax.f32 %v7849, %v6725
      %v7978 = vmax.f32 %v7850, %v6733
      %v7979 = vmax.f32 %v7851, %v6741
      %v7980 = vmax.f32 %v7852, %v6749
      %v7981 = vmax.f32 %v7853, %v6757
      %v7982 = vmax.f32 %v7854, %v6765
      %v7983 = vmax.f32 %v7855, %v6773
      %v7984 = vmax.f32 %v7856, %v6781
      %v7985 = vmax.f32 %v7857, %v6789
      %v7986 = vmax.f32 %v7858, %v6797
      %v7987 = vmax.f32 %v7859, %v6805
      %v7988 = vmax.f32 %v7860, %v6813
      %v7989 = vmax.f32 %v7861, %v6821
      %v7990 = vmax.f32 %v7862, %v6829
      %v7991 = vmax.f32 %v7863, %v6837
      %v7992 = vmax.f32 %v7864, %v6845
      %v7993 = vmax.f32 %v7865, %v6853
      %v7994 = vmax.f32 %v7866, %v6861
      %v7995 = vmax.f32 %v7867, %v6869
      %v7996 = vmax.f32 %v7868, %v6877
      %v7997 = vmax.f32 %v7869, %v6885
      %v7998 = vmax.f32 %v7870, %v6893
      %v7999 = vmax.f32 %v7871, %v6901
      %v8000 = vmax.f32 %v7872, %v6909
      %v8001 = vmax.f32 %v7873, %v6917
      %v8002 = vmax.f32 %v7874, %v6925
      %v8003 = vmax.f32 %v7875, %v6933
      %v8004 = vmax.f32 %v7876, %v6941
      %v8005 = vmax.f32 %v7877, %v6949
      %v8006 = vmax.f32 %v7878, %v6957
      %v8007 = vmax.f32 %v7879, %v6965
      %v8008 = vmax.f32 %v7880, %v6973
      %v8009 = vmax.f32 %v7881, %v6981
      %v8010 = vmax.f32 %v7882, %v6989
      %v8011 = vmax.f32 %v7883, %v6997
      %v8012 = vmax.f32 %v7884, %v7005
      %v8013 = vmax.f32 %v7885, %v7013
      %v8014 = vmax.f32 %v7886, %v7021
      %v8015 = vmax.f32 %v7887, %v7029
      %v8016 = vmax.f32 %v7888, %v7037
      %v8017 = vmax.f32 %v7889, %v7045
      %v8018 = vmax.f32 %v7890, %v7053
      %v8019 = vmax.f32 %v7891, %v7061
      %v8020 = vmax.f32 %v7892, %v7069
      %v8021 = vmax.f32 %v7893, %v7077
      %v8022 = vmax.f32 %v7894, %v7085
      %v8023 = vmax.f32 %v7895, %v7093
      %v8024 = vmax.f32 %v7896, %v7101
      %v8025 = vmax.f32 %v7897, %v7109
      %v8026 = vmax.f32 %v7898, %v7117
      %v8027 = vmax.f32 %v7899, %v7125
      %v8028 = vmax.f32 %v7900, %v7133
      %v8029 = vmax.f32 %v7901, %v7141
      %v8030 = vmax.f32 %v7902, %v7149
      %v8031 = vmax.f32 %v7903, %v7157
      %v8032 = vmax.f32 %v7904, %v7165
      %v8033 = vmax.f32 %v7905, %v7173
      %v8034 = vmax.f32 %v7906, %v7181
      %v8035 = vmax.f32 %v7907, %v7189
      %v8036 = vmax.f32 %v7908, %v7197
      %v8037 = vmax.f32 %v7909, %v7205
      %v8038 = vmax.f32 %v7910, %v7213
      %v8039 = vmax.f32 %v7911, %v7221
      %v8040 = vmax.f32 %v7912, %v7229
      %v8041 = vmax.f32 %v7913, %v7237
      %v8042 = vmax.f32 %v7914, %v7245
      %v8043 = vmax.f32 %v7915, %v7253
      %v8044 = vmax.f32 %v7916, %v7261
      %v8045 = vmax.f32 %v7917, %v7269
      %v8046 = vmax.f32 %v7918, %v7277
      %v8047 = vmax.f32 %v7919, %v6262
      %v8048 = vmax.f32 %v7920, %v6270
      %v8049 = vmax.f32 %v7921, %v6278
      %v8050 = vmax.f32 %v7922, %v6286
      %v8051 = vmax.f32 %v7923, %v6294
      %v8052 = vmax.f32 %v7924, %v6302
      %v8053 = vmax.f32 %v7925, %v6310
      %v8054 = vmax.f32 %v7926, %v6318
      %v8055 = vmax.f32 %v7927, %v6326
      %v8056 = vmax.f32 %v7928, %v6334
      %v8057 = vmax.f32 %v7929, %v6342
      %v8058 = vmax.f32 %v7930, %v6350
      %v8059 = vmax.f32 %v7931, %v6358
      %v8060 = vmax.f32 %v7932, %v6366
      %v8061 = vmax.f32 %v7933, %v6374
      %v8062 = vmax.f32 %v7934, %v6382
      %v8063 = vmax.f32 %v7935, %v6390
      %v8064 = vmax.f32 %v7936, %v6398
      %v8065 = vmax.f32 %v7937, %v6406
      %v8066 = vmax.f32 %v7938, %v6414
      %v8067 = vmax.f32 %v7939, %v6422
      %v8068 = vmax.f32 %v7940, %v6430
      %v8069 = vmax.f32 %v7941, %v6438
      %v8070 = vmax.f32 %v7942, %v6446
      %v8071 = vmax.f32 %v7943, %v6454
      %v8072 = vmax.f32 %v7944, %v6462
      %v8073 = vmax.f32 %v7945, %v6470
      %v8074 = vmax.f32 %v7946, %v6478
      %v8075 = vmax.f32 %v7947, %v6486
      %v8076 = vmax.f32 %v7948, %v6494
      %v8077 = vmax.f32 %v7949, %v6502
      %v8078 = vmax.f32 %v7950, %v6510
      %v8079 = vmax.f32 %v7951, %v6518
      %v8080 = vmax.f32 %v7952, %v6526
      %v8081 = vmax.f32 %v7953, %v6534
      %v8082 = vmax.f32 %v7954, %v6542
      %v8083 = vmax.f32 %v7955, %v6550
      %v8084 = vmax.f32 %v7956, %v6558
      %v8085 = vmax.f32 %v7957, %v6566
      %v8086 = vmax.f32 %v7958, %v6574
      %v8087 = vmax.f32 %v7959, %v6582
      %v8088 = vmax.f32 %v7960, %v6590
      %v8089 = vmax.f32 %v7961, %v6598
      %v8090 = vmax.f32 %v7962, %v6606
      %v8091 = vmax.f32 %v7963, %v6614
      %v8092 = vmax.f32 %v7964, %v6622
      %v8093 = vmax.f32 %v7965, %v6630
      %v8094 = vmax.f32 %v7966, %v6638
      %v8095 = vmax.f32 %v7967, %v6646
      %v8096 = vmax.f32 %v7968, %v6654
      %v8097 = vmax.f32 %v7969, %v6662
      %v8098 = vmax.f32 %v7970, %v6670
      %v8099 = vmax.f32 %v7971, %v6678
      %v8100 = vmax.f32 %v7972, %v6686
      %v8101 = vmax.f32 %v7973, %v6694
      %v8102 = vmax.f32 %v7974, %v6702
      %v8103 = vmax.f32 %v7975, %v6710
      %v8104 = vmax.f32 %v7976, %v6718
      %v8105 = vmax.f32 %v7977, %v6726
      %v8106 = vmax.f32 %v7978, %v6734
      %v8107 = vmax.f32 %v7979, %v6742
      %v8108 = vmax.f32 %v7980, %v6750
      %v8109 = vmax.f32 %v7981, %v6758
      %v8110 = vmax.f32 %v7982, %v6766
      %v8111 = vmax.f32 %v7983, %v6774
      %v8112 = vmax.f32 %v7984, %v6782
      %v8113 = vmax.f32 %v7985, %v6790
      %v8114 = vmax.f32 %v7986, %v6798
      %v8115 = vmax.f32 %v7987, %v6806
      %v8116 = vmax.f32 %v7988, %v6814
      %v8117 = vmax.f32 %v7989, %v6822
      %v8118 = vmax.f32 %v7990, %v6830
      %v8119 = vmax.f32 %v7991, %v6838
      %v8120 = vmax.f32 %v7992, %v6846
      %v8121 = vmax.f32 %v7993, %v6854
      %v8122 = vmax.f32 %v7994, %v6862
      %v8123 = vmax.f32 %v7995, %v6870
      %v8124 = vmax.f32 %v7996, %v6878
      %v8125 = vmax.f32 %v7997, %v6886
      %v8126 = vmax.f32 %v7998, %v6894
      %v8127 = vmax.f32 %v7999, %v6902
      %v8128 = vmax.f32 %v8000, %v6910
      %v8129 = vmax.f32 %v8001, %v6918
      %v8130 = vmax.f32 %v8002, %v6926
      %v8131 = vmax.f32 %v8003, %v6934
      %v8132 = vmax.f32 %v8004, %v6942
      %v8133 = vmax.f32 %v8005, %v6950
      %v8134 = vmax.f32 %v8006, %v6958
      %v8135 = vmax.f32 %v8007, %v6966
      %v8136 = vmax.f32 %v8008, %v6974
      %v8137 = vmax.f32 %v8009, %v6982
      %v8138 = vmax.f32 %v8010, %v6990
      %v8139 = vmax.f32 %v8011, %v6998
      %v8140 = vmax.f32 %v8012, %v7006
      %v8141 = vmax.f32 %v8013, %v7014
      %v8142 = vmax.f32 %v8014, %v7022
      %v8143 = vmax.f32 %v8015, %v7030
      %v8144 = vmax.f32 %v8016, %v7038
      %v8145 = vmax.f32 %v8017, %v7046
      %v8146 = vmax.f32 %v8018, %v7054
      %v8147 = vmax.f32 %v8019, %v7062
      %v8148 = vmax.f32 %v8020, %v7070
      %v8149 = vmax.f32 %v8021, %v7078
      %v8150 = vmax.f32 %v8022, %v7086
      %v8151 = vmax.f32 %v8023, %v7094
      %v8152 = vmax.f32 %v8024, %v7102
      %v8153 = vmax.f32 %v8025, %v7110
      %v8154 = vmax.f32 %v8026, %v7118
      %v8155 = vmax.f32 %v8027, %v7126
      %v8156 = vmax.f32 %v8028, %v7134
      %v8157 = vmax.f32 %v8029, %v7142
      %v8158 = vmax.f32 %v8030, %v7150
      %v8159 = vmax.f32 %v8031, %v7158
      %v8160 = vmax.f32 %v8032, %v7166
      %v8161 = vmax.f32 %v8033, %v7174
      %v8162 = vmax.f32 %v8034, %v7182
      %v8163 = vmax.f32 %v8035, %v7190
      %v8164 = vmax.f32 %v8036, %v7198
      %v8165 = vmax.f32 %v8037, %v7206
      %v8166 = vmax.f32 %v8038, %v7214
      %v8167 = vmax.f32 %v8039, %v7222
      %v8168 = vmax.f32 %v8040, %v7230
      %v8169 = vmax.f32 %v8041, %v7238
      %v8170 = vmax.f32 %v8042, %v7246
      %v8171 = vmax.f32 %v8043, %v7254
      %v8172 = vmax.f32 %v8044, %v7262
      %v8173 = vmax.f32 %v8045, %v7270
      %v8174 = vmax.f32 %v8046, %v7278
      %v8175 = vld [vmem:[#allocation2] sm:$0xff]
      %v8176 = vld [vmem:[#allocation2 + $0x8] sm:$0xff]
      %v8177 = vld [vmem:[#allocation2 + $0x10] sm:$0xff]
      %v8178 = vld [vmem:[#allocation2 + $0x18] sm:$0xff]
      %v8179 = vld [vmem:[#allocation2 + $0x20] sm:$0xff]
      %v8180 = vld [vmem:[#allocation2 + $0x28] sm:$0xff]
      %v8181 = vld [vmem:[#allocation2 + $0x30] sm:$0xff]
      %v8182 = vld [vmem:[#allocation2 + $0x38] sm:$0xff]
      %v8183 = vld [vmem:[#allocation2 + $0x40] sm:$0xff]
      %v8184 = vld [vmem:[#allocation2 + $0x48] sm:$0xff]
      %v8185 = vld [vmem:[#allocation2 + $0x50] sm:$0xff]
      %v8186 = vld [vmem:[#allocation2 + $0x58] sm:$0xff]
      %v8187 = vld [vmem:[#allocation2 + $0x60] sm:$0xff]
      %v8188 = vld [vmem:[#allocation2 + $0x68] sm:$0xff]
      %v8189 = vld [vmem:[#allocation2 + $0x70] sm:$0xff]
      %v8190 = vld [vmem:[#allocation2 + $0x78] sm:$0xff]
      %v8191 = vld [vmem:[#allocation2 + $0x80] sm:$0xff]
      %v8192 = vld [vmem:[#allocation2 + $0x88] sm:$0xff]
      %v8193 = vld [vmem:[#allocation2 + $0x90] sm:$0xff]
      %v8194 = vld [vmem:[#allocation2 + $0x98] sm:$0xff]
      %v8195 = vld [vmem:[#allocation2 + $0xa0] sm:$0xff]
      %v8196 = vld [vmem:[#allocation2 + $0xa8] sm:$0xff]
      %v8197 = vld [vmem:[#allocation2 + $0xb0] sm:$0xff]
      %v8198 = vld [vmem:[#allocation2 + $0xb8] sm:$0xff]
      %v8199 = vld [vmem:[#allocation2 + $0xc0] sm:$0xff]
      %v8200 = vld [vmem:[#allocation2 + $0xc8] sm:$0xff]
      %v8201 = vld [vmem:[#allocation2 + $0xd0] sm:$0xff]
      %v8202 = vld [vmem:[#allocation2 + $0xd8] sm:$0xff]
      %v8203 = vld [vmem:[#allocation2 + $0xe0] sm:$0xff]
      %v8204 = vld [vmem:[#allocation2 + $0xe8] sm:$0xff]
      %v8205 = vld [vmem:[#allocation2 + $0xf0] sm:$0xff]
      %v8206 = vld [vmem:[#allocation2 + $0xf8] sm:$0xff]
      %v8207 = vld [vmem:[#allocation2 + $0x100] sm:$0xff]
      %v8208 = vld [vmem:[#allocation2 + $0x108] sm:$0xff]
      %v8209 = vld [vmem:[#allocation2 + $0x110] sm:$0xff]
      %v8210 = vld [vmem:[#allocation2 + $0x118] sm:$0xff]
      %v8211 = vld [vmem:[#allocation2 + $0x120] sm:$0xff]
      %v8212 = vld [vmem:[#allocation2 + $0x128] sm:$0xff]
      %v8213 = vld [vmem:[#allocation2 + $0x130] sm:$0xff]
      %v8214 = vld [vmem:[#allocation2 + $0x138] sm:$0xff]
      %v8215 = vld [vmem:[#allocation2 + $0x140] sm:$0xff]
      %v8216 = vld [vmem:[#allocation2 + $0x148] sm:$0xff]
      %v8217 = vld [vmem:[#allocation2 + $0x150] sm:$0xff]
      %v8218 = vld [vmem:[#allocation2 + $0x158] sm:$0xff]
      %v8219 = vld [vmem:[#allocation2 + $0x160] sm:$0xff]
      %v8220 = vld [vmem:[#allocation2 + $0x168] sm:$0xff]
      %v8221 = vld [vmem:[#allocation2 + $0x170] sm:$0xff]
      %v8222 = vld [vmem:[#allocation2 + $0x178] sm:$0xff]
      %v8223 = vld [vmem:[#allocation2 + $0x180] sm:$0xff]
      %v8224 = vld [vmem:[#allocation2 + $0x188] sm:$0xff]
      %v8225 = vld [vmem:[#allocation2 + $0x190] sm:$0xff]
      %v8226 = vld [vmem:[#allocation2 + $0x198] sm:$0xff]
      %v8227 = vld [vmem:[#allocation2 + $0x1a0] sm:$0xff]
      %v8228 = vld [vmem:[#allocation2 + $0x1a8] sm:$0xff]
      %v8229 = vld [vmem:[#allocation2 + $0x1b0] sm:$0xff]
      %v8230 = vld [vmem:[#allocation2 + $0x1b8] sm:$0xff]
      %v8231 = vld [vmem:[#allocation2 + $0x1c0] sm:$0xff]
      %v8232 = vld [vmem:[#allocation2 + $0x1c8] sm:$0xff]
      %v8233 = vld [vmem:[#allocation2 + $0x1d0] sm:$0xff]
      %v8234 = vld [vmem:[#allocation2 + $0x1d8] sm:$0xff]
      %v8235 = vld [vmem:[#allocation2 + $0x1e0] sm:$0xff]
      %v8236 = vld [vmem:[#allocation2 + $0x1e8] sm:$0xff]
      %v8237 = vld [vmem:[#allocation2 + $0x1f0] sm:$0xff]
      %v8238 = vld [vmem:[#allocation2 + $0x1f8] sm:$0xff]
      %v8239 = vld [vmem:[#allocation2 + $0x200] sm:$0xff]
      %v8240 = vld [vmem:[#allocation2 + $0x208] sm:$0xff]
      %v8241 = vld [vmem:[#allocation2 + $0x210] sm:$0xff]
      %v8242 = vld [vmem:[#allocation2 + $0x218] sm:$0xff]
      %v8243 = vld [vmem:[#allocation2 + $0x220] sm:$0xff]
      %v8244 = vld [vmem:[#allocation2 + $0x228] sm:$0xff]
      %v8245 = vld [vmem:[#allocation2 + $0x230] sm:$0xff]
      %v8246 = vld [vmem:[#allocation2 + $0x238] sm:$0xff]
      %v8247 = vld [vmem:[#allocation2 + $0x240] sm:$0xff]
      %v8248 = vld [vmem:[#allocation2 + $0x248] sm:$0xff]
      %v8249 = vld [vmem:[#allocation2 + $0x250] sm:$0xff]
      %v8250 = vld [vmem:[#allocation2 + $0x258] sm:$0xff]
      %v8251 = vld [vmem:[#allocation2 + $0x260] sm:$0xff]
      %v8252 = vld [vmem:[#allocation2 + $0x268] sm:$0xff]
      %v8253 = vld [vmem:[#allocation2 + $0x270] sm:$0xff]
      %v8254 = vld [vmem:[#allocation2 + $0x278] sm:$0xff]
      %v8255 = vld [vmem:[#allocation2 + $0x280] sm:$0xff]
      %v8256 = vld [vmem:[#allocation2 + $0x288] sm:$0xff]
      %v8257 = vld [vmem:[#allocation2 + $0x290] sm:$0xff]
      %v8258 = vld [vmem:[#allocation2 + $0x298] sm:$0xff]
      %v8259 = vld [vmem:[#allocation2 + $0x2a0] sm:$0xff]
      %v8260 = vld [vmem:[#allocation2 + $0x2a8] sm:$0xff]
      %v8261 = vld [vmem:[#allocation2 + $0x2b0] sm:$0xff]
      %v8262 = vld [vmem:[#allocation2 + $0x2b8] sm:$0xff]
      %v8263 = vld [vmem:[#allocation2 + $0x2c0] sm:$0xff]
      %v8264 = vld [vmem:[#allocation2 + $0x2c8] sm:$0xff]
      %v8265 = vld [vmem:[#allocation2 + $0x2d0] sm:$0xff]
      %v8266 = vld [vmem:[#allocation2 + $0x2d8] sm:$0xff]
      %v8267 = vld [vmem:[#allocation2 + $0x2e0] sm:$0xff]
      %v8268 = vld [vmem:[#allocation2 + $0x2e8] sm:$0xff]
      %v8269 = vld [vmem:[#allocation2 + $0x2f0] sm:$0xff]
      %v8270 = vld [vmem:[#allocation2 + $0x2f8] sm:$0xff]
      %v8271 = vld [vmem:[#allocation2 + $0x300] sm:$0xff]
      %v8272 = vld [vmem:[#allocation2 + $0x308] sm:$0xff]
      %v8273 = vld [vmem:[#allocation2 + $0x310] sm:$0xff]
      %v8274 = vld [vmem:[#allocation2 + $0x318] sm:$0xff]
      %v8275 = vld [vmem:[#allocation2 + $0x320] sm:$0xff]
      %v8276 = vld [vmem:[#allocation2 + $0x328] sm:$0xff]
      %v8277 = vld [vmem:[#allocation2 + $0x330] sm:$0xff]
      %v8278 = vld [vmem:[#allocation2 + $0x338] sm:$0xff]
      %v8279 = vld [vmem:[#allocation2 + $0x340] sm:$0xff]
      %v8280 = vld [vmem:[#allocation2 + $0x348] sm:$0xff]
      %v8281 = vld [vmem:[#allocation2 + $0x350] sm:$0xff]
      %v8282 = vld [vmem:[#allocation2 + $0x358] sm:$0xff]
      %v8283 = vld [vmem:[#allocation2 + $0x360] sm:$0xff]
      %v8284 = vld [vmem:[#allocation2 + $0x368] sm:$0xff]
      %v8285 = vld [vmem:[#allocation2 + $0x370] sm:$0xff]
      %v8286 = vld [vmem:[#allocation2 + $0x378] sm:$0xff]
      %v8287 = vld [vmem:[#allocation2 + $0x380] sm:$0xff]
      %v8288 = vld [vmem:[#allocation2 + $0x388] sm:$0xff]
      %v8289 = vld [vmem:[#allocation2 + $0x390] sm:$0xff]
      %v8290 = vld [vmem:[#allocation2 + $0x398] sm:$0xff]
      %v8291 = vld [vmem:[#allocation2 + $0x3a0] sm:$0xff]
      %v8292 = vld [vmem:[#allocation2 + $0x3a8] sm:$0xff]
      %v8293 = vld [vmem:[#allocation2 + $0x3b0] sm:$0xff]
      %v8294 = vld [vmem:[#allocation2 + $0x3b8] sm:$0xff]
      %v8295 = vld [vmem:[#allocation2 + $0x3c0] sm:$0xff]
      %v8296 = vld [vmem:[#allocation2 + $0x3c8] sm:$0xff]
      %v8297 = vld [vmem:[#allocation2 + $0x3d0] sm:$0xff]
      %v8298 = vld [vmem:[#allocation2 + $0x3d8] sm:$0xff]
      %v8299 = vld [vmem:[#allocation2 + $0x3e0] sm:$0xff]
      %v8300 = vld [vmem:[#allocation2 + $0x3e8] sm:$0xff]
      %v8301 = vld [vmem:[#allocation2 + $0x3f0] sm:$0xff]
      %v8302 = vld [vmem:[#allocation2 + $0x3f8] sm:$0xff]
      %v8303 = vmax.f32 %v8175, %v8047
      %v8304 = vmax.f32 %v8176, %v8048
      %v8305 = vmax.f32 %v8177, %v8049
      %v8306 = vmax.f32 %v8178, %v8050
      %v8307 = vmax.f32 %v8179, %v8051
      %v8308 = vmax.f32 %v8180, %v8052
      %v8309 = vmax.f32 %v8181, %v8053
      %v8310 = vmax.f32 %v8182, %v8054
      %v8311 = vmax.f32 %v8183, %v8055
      %v8312 = vmax.f32 %v8184, %v8056
      %v8313 = vmax.f32 %v8185, %v8057
      %v8314 = vmax.f32 %v8186, %v8058
      %v8315 = vmax.f32 %v8187, %v8059
      %v8316 = vmax.f32 %v8188, %v8060
      %v8317 = vmax.f32 %v8189, %v8061
      %v8318 = vmax.f32 %v8190, %v8062
      %v8319 = vmax.f32 %v8191, %v8063
      %v8320 = vmax.f32 %v8192, %v8064
      %v8321 = vmax.f32 %v8193, %v8065
      %v8322 = vmax.f32 %v8194, %v8066
      %v8323 = vmax.f32 %v8195, %v8067
      %v8324 = vmax.f32 %v8196, %v8068
      %v8325 = vmax.f32 %v8197, %v8069
      %v8326 = vmax.f32 %v8198, %v8070
      %v8327 = vmax.f32 %v8199, %v8071
      %v8328 = vmax.f32 %v8200, %v8072
      %v8329 = vmax.f32 %v8201, %v8073
      %v8330 = vmax.f32 %v8202, %v8074
      %v8331 = vmax.f32 %v8203, %v8075
      %v8332 = vmax.f32 %v8204, %v8076
      %v8333 = vmax.f32 %v8205, %v8077
      %v8334 = vmax.f32 %v8206, %v8078
      %v8335 = vmax.f32 %v8207, %v8079
      %v8336 = vmax.f32 %v8208, %v8080
      %v8337 = vmax.f32 %v8209, %v8081
      %v8338 = vmax.f32 %v8210, %v8082
      %v8339 = vmax.f32 %v8211, %v8083
      %v8340 = vmax.f32 %v8212, %v8084
      %v8341 = vmax.f32 %v8213, %v8085
      %v8342 = vmax.f32 %v8214, %v8086
      %v8343 = vmax.f32 %v8215, %v8087
      %v8344 = vmax.f32 %v8216, %v8088
      %v8345 = vmax.f32 %v8217, %v8089
      %v8346 = vmax.f32 %v8218, %v8090
      %v8347 = vmax.f32 %v8219, %v8091
      %v8348 = vmax.f32 %v8220, %v8092
      %v8349 = vmax.f32 %v8221, %v8093
      %v8350 = vmax.f32 %v8222, %v8094
      %v8351 = vmax.f32 %v8223, %v8095
      %v8352 = vmax.f32 %v8224, %v8096
      %v8353 = vmax.f32 %v8225, %v8097
      %v8354 = vmax.f32 %v8226, %v8098
      %v8355 = vmax.f32 %v8227, %v8099
      %v8356 = vmax.f32 %v8228, %v8100
      %v8357 = vmax.f32 %v8229, %v8101
      %v8358 = vmax.f32 %v8230, %v8102
      %v8359 = vmax.f32 %v8231, %v8103
      %v8360 = vmax.f32 %v8232, %v8104
      %v8361 = vmax.f32 %v8233, %v8105
      %v8362 = vmax.f32 %v8234, %v8106
      %v8363 = vmax.f32 %v8235, %v8107
      %v8364 = vmax.f32 %v8236, %v8108
      %v8365 = vmax.f32 %v8237, %v8109
      %v8366 = vmax.f32 %v8238, %v8110
      %v8367 = vmax.f32 %v8239, %v8111
      %v8368 = vmax.f32 %v8240, %v8112
      %v8369 = vmax.f32 %v8241, %v8113
      %v8370 = vmax.f32 %v8242, %v8114
      %v8371 = vmax.f32 %v8243, %v8115
      %v8372 = vmax.f32 %v8244, %v8116
      %v8373 = vmax.f32 %v8245, %v8117
      %v8374 = vmax.f32 %v8246, %v8118
      %v8375 = vmax.f32 %v8247, %v8119
      %v8376 = vmax.f32 %v8248, %v8120
      %v8377 = vmax.f32 %v8249, %v8121
      %v8378 = vmax.f32 %v8250, %v8122
      %v8379 = vmax.f32 %v8251, %v8123
      %v8380 = vmax.f32 %v8252, %v8124
      %v8381 = vmax.f32 %v8253, %v8125
      %v8382 = vmax.f32 %v8254, %v8126
      %v8383 = vmax.f32 %v8255, %v8127
      %v8384 = vmax.f32 %v8256, %v8128
      %v8385 = vmax.f32 %v8257, %v8129
      %v8386 = vmax.f32 %v8258, %v8130
      %v8387 = vmax.f32 %v8259, %v8131
      %v8388 = vmax.f32 %v8260, %v8132
      %v8389 = vmax.f32 %v8261, %v8133
      %v8390 = vmax.f32 %v8262, %v8134
      %v8391 = vmax.f32 %v8263, %v8135
      %v8392 = vmax.f32 %v8264, %v8136
      %v8393 = vmax.f32 %v8265, %v8137
      %v8394 = vmax.f32 %v8266, %v8138
      %v8395 = vmax.f32 %v8267, %v8139
      %v8396 = vmax.f32 %v8268, %v8140
      %v8397 = vmax.f32 %v8269, %v8141
      %v8398 = vmax.f32 %v8270, %v8142
      %v8399 = vmax.f32 %v8271, %v8143
      %v8400 = vmax.f32 %v8272, %v8144
      %v8401 = vmax.f32 %v8273, %v8145
      %v8402 = vmax.f32 %v8274, %v8146
      %v8403 = vmax.f32 %v8275, %v8147
      %v8404 = vmax.f32 %v8276, %v8148
      %v8405 = vmax.f32 %v8277, %v8149
      %v8406 = vmax.f32 %v8278, %v8150
      %v8407 = vmax.f32 %v8279, %v8151
      %v8408 = vmax.f32 %v8280, %v8152
      %v8409 = vmax.f32 %v8281, %v8153
      %v8410 = vmax.f32 %v8282, %v8154
      %v8411 = vmax.f32 %v8283, %v8155
      %v8412 = vmax.f32 %v8284, %v8156
      %v8413 = vmax.f32 %v8285, %v8157
      %v8414 = vmax.f32 %v8286, %v8158
      %v8415 = vmax.f32 %v8287, %v8159
      %v8416 = vmax.f32 %v8288, %v8160
      %v8417 = vmax.f32 %v8289, %v8161
      %v8418 = vmax.f32 %v8290, %v8162
      %v8419 = vmax.f32 %v8291, %v8163
      %v8420 = vmax.f32 %v8292, %v8164
      %v8421 = vmax.f32 %v8293, %v8165
      %v8422 = vmax.f32 %v8294, %v8166
      %v8423 = vmax.f32 %v8295, %v8167
      %v8424 = vmax.f32 %v8296, %v8168
      %v8425 = vmax.f32 %v8297, %v8169
      %v8426 = vmax.f32 %v8298, %v8170
      %v8427 = vmax.f32 %v8299, %v8171
      %v8428 = vmax.f32 %v8300, %v8172
      %v8429 = vmax.f32 %v8301, %v8173
      %v8430 = vmax.f32 %v8302, %v8174
      %8431 = vst [vmem:[#allocation2] sm:$0xff] %v8303
      %8432 = vst [vmem:[#allocation2 + $0x8] sm:$0xff] %v8304
      %8433 = vst [vmem:[#allocation2 + $0x10] sm:$0xff] %v8305
      %8434 = vst [vmem:[#allocation2 + $0x18] sm:$0xff] %v8306
      %8435 = vst [vmem:[#allocation2 + $0x20] sm:$0xff] %v8307
      %8436 = vst [vmem:[#allocation2 + $0x28] sm:$0xff] %v8308
      %8437 = vst [vmem:[#allocation2 + $0x30] sm:$0xff] %v8309
      %8438 = vst [vmem:[#allocation2 + $0x38] sm:$0xff] %v8310
      %8439 = vst [vmem:[#allocation2 + $0x40] sm:$0xff] %v8311
      %8440 = vst [vmem:[#allocation2 + $0x48] sm:$0xff] %v8312
      %8441 = vst [vmem:[#allocation2 + $0x50] sm:$0xff] %v8313
      %8442 = vst [vmem:[#allocation2 + $0x58] sm:$0xff] %v8314
      %8443 = vst [vmem:[#allocation2 + $0x60] sm:$0xff] %v8315
      %8444 = vst [vmem:[#allocation2 + $0x68] sm:$0xff] %v8316
      %8445 = vst [vmem:[#allocation2 + $0x70] sm:$0xff] %v8317
      %8446 = vst [vmem:[#allocation2 + $0x78] sm:$0xff] %v8318
      %8447 = vst [vmem:[#allocation2 + $0x80] sm:$0xff] %v8319
      %8448 = vst [vmem:[#allocation2 + $0x88] sm:$0xff] %v8320
      %8449 = vst [vmem:[#allocation2 + $0x90] sm:$0xff] %v8321
      %8450 = vst [vmem:[#allocation2 + $0x98] sm:$0xff] %v8322
      %8451 = vst [vmem:[#allocation2 + $0xa0] sm:$0xff] %v8323
      %8452 = vst [vmem:[#allocation2 + $0xa8] sm:$0xff] %v8324
      %8453 = vst [vmem:[#allocation2 + $0xb0] sm:$0xff] %v8325
      %8454 = vst [vmem:[#allocation2 + $0xb8] sm:$0xff] %v8326
      %8455 = vst [vmem:[#allocation2 + $0xc0] sm:$0xff] %v8327
      %8456 = vst [vmem:[#allocation2 + $0xc8] sm:$0xff] %v8328
      %8457 = vst [vmem:[#allocation2 + $0xd0] sm:$0xff] %v8329
      %8458 = vst [vmem:[#allocation2 + $0xd8] sm:$0xff] %v8330
      %8459 = vst [vmem:[#allocation2 + $0xe0] sm:$0xff] %v8331
      %8460 = vst [vmem:[#allocation2 + $0xe8] sm:$0xff] %v8332
      %8461 = vst [vmem:[#allocation2 + $0xf0] sm:$0xff] %v8333
      %8462 = vst [vmem:[#allocation2 + $0xf8] sm:$0xff] %v8334
      %8463 = vst [vmem:[#allocation2 + $0x100] sm:$0xff] %v8335
      %8464 = vst [vmem:[#allocation2 + $0x108] sm:$0xff] %v8336
      %8465 = vst [vmem:[#allocation2 + $0x110] sm:$0xff] %v8337
      %8466 = vst [vmem:[#allocation2 + $0x118] sm:$0xff] %v8338
      %8467 = vst [vmem:[#allocation2 + $0x120] sm:$0xff] %v8339
      %8468 = vst [vmem:[#allocation2 + $0x128] sm:$0xff] %v8340
      %8469 = vst [vmem:[#allocation2 + $0x130] sm:$0xff] %v8341
      %8470 = vst [vmem:[#allocation2 + $0x138] sm:$0xff] %v8342
      %8471 = vst [vmem:[#allocation2 + $0x140] sm:$0xff] %v8343
      %8472 = vst [vmem:[#allocation2 + $0x148] sm:$0xff] %v8344
      %8473 = vst [vmem:[#allocation2 + $0x150] sm:$0xff] %v8345
      %8474 = vst [vmem:[#allocation2 + $0x158] sm:$0xff] %v8346
      %8475 = vst [vmem:[#allocation2 + $0x160] sm:$0xff] %v8347
      %8476 = vst [vmem:[#allocation2 + $0x168] sm:$0xff] %v8348
      %8477 = vst [vmem:[#allocation2 + $0x170] sm:$0xff] %v8349
      %8478 = vst [vmem:[#allocation2 + $0x178] sm:$0xff] %v8350
      %8479 = vst [vmem:[#allocation2 + $0x180] sm:$0xff] %v8351
      %8480 = vst [vmem:[#allocation2 + $0x188] sm:$0xff] %v8352
      %8481 = vst [vmem:[#allocation2 + $0x190] sm:$0xff] %v8353
      %8482 = vst [vmem:[#allocation2 + $0x198] sm:$0xff] %v8354
      %8483 = vst [vmem:[#allocation2 + $0x1a0] sm:$0xff] %v8355
      %8484 = vst [vmem:[#allocation2 + $0x1a8] sm:$0xff] %v8356
      %8485 = vst [vmem:[#allocation2 + $0x1b0] sm:$0xff] %v8357
      %8486 = vst [vmem:[#allocation2 + $0x1b8] sm:$0xff] %v8358
      %8487 = vst [vmem:[#allocation2 + $0x1c0] sm:$0xff] %v8359
      %8488 = vst [vmem:[#allocation2 + $0x1c8] sm:$0xff] %v8360
      %8489 = vst [vmem:[#allocation2 + $0x1d0] sm:$0xff] %v8361
      %8490 = vst [vmem:[#allocation2 + $0x1d8] sm:$0xff] %v8362
      %8491 = vst [vmem:[#allocation2 + $0x1e0] sm:$0xff] %v8363
      %8492 = vst [vmem:[#allocation2 + $0x1e8] sm:$0xff] %v8364
      %8493 = vst [vmem:[#allocation2 + $0x1f0] sm:$0xff] %v8365
      %8494 = vst [vmem:[#allocation2 + $0x1f8] sm:$0xff] %v8366
      %8495 = vst [vmem:[#allocation2 + $0x200] sm:$0xff] %v8367
      %8496 = vst [vmem:[#allocation2 + $0x208] sm:$0xff] %v8368
      %8497 = vst [vmem:[#allocation2 + $0x210] sm:$0xff] %v8369
      %8498 = vst [vmem:[#allocation2 + $0x218] sm:$0xff] %v8370
      %8499 = vst [vmem:[#allocation2 + $0x220] sm:$0xff] %v8371
      %8500 = vst [vmem:[#allocation2 + $0x228] sm:$0xff] %v8372
      %8501 = vst [vmem:[#allocation2 + $0x230] sm:$0xff] %v8373
      %8502 = vst [vmem:[#allocation2 + $0x238] sm:$0xff] %v8374
      %8503 = vst [vmem:[#allocation2 + $0x240] sm:$0xff] %v8375
      %8504 = vst [vmem:[#allocation2 + $0x248] sm:$0xff] %v8376
      %8505 = vst [vmem:[#allocation2 + $0x250] sm:$0xff] %v8377
      %8506 = vst [vmem:[#allocation2 + $0x258] sm:$0xff] %v8378
      %8507 = vst [vmem:[#allocation2 + $0x260] sm:$0xff] %v8379
      %8508 = vst [vmem:[#allocation2 + $0x268] sm:$0xff] %v8380
      %8509 = vst [vmem:[#allocation2 + $0x270] sm:$0xff] %v8381
      %8510 = vst [vmem:[#allocation2 + $0x278] sm:$0xff] %v8382
      %8511 = vst [vmem:[#allocation2 + $0x280] sm:$0xff] %v8383
      %8512 = vst [vmem:[#allocation2 + $0x288] sm:$0xff] %v8384
      %8513 = vst [vmem:[#allocation2 + $0x290] sm:$0xff] %v8385
      %8514 = vst [vmem:[#allocation2 + $0x298] sm:$0xff] %v8386
      %8515 = vst [vmem:[#allocation2 + $0x2a0] sm:$0xff] %v8387
      %8516 = vst [vmem:[#allocation2 + $0x2a8] sm:$0xff] %v8388
      %8517 = vst [vmem:[#allocation2 + $0x2b0] sm:$0xff] %v8389
      %8518 = vst [vmem:[#allocation2 + $0x2b8] sm:$0xff] %v8390
      %8519 = vst [vmem:[#allocation2 + $0x2c0] sm:$0xff] %v8391
      %8520 = vst [vmem:[#allocation2 + $0x2c8] sm:$0xff] %v8392
      %8521 = vst [vmem:[#allocation2 + $0x2d0] sm:$0xff] %v8393
      %8522 = vst [vmem:[#allocation2 + $0x2d8] sm:$0xff] %v8394
      %8523 = vst [vmem:[#allocation2 + $0x2e0] sm:$0xff] %v8395
      %8524 = vst [vmem:[#allocation2 + $0x2e8] sm:$0xff] %v8396
      %8525 = vst [vmem:[#allocation2 + $0x2f0] sm:$0xff] %v8397
      %8526 = vst [vmem:[#allocation2 + $0x2f8] sm:$0xff] %v8398
      %8527 = vst [vmem:[#allocation2 + $0x300] sm:$0xff] %v8399
      %8528 = vst [vmem:[#allocation2 + $0x308] sm:$0xff] %v8400
      %8529 = vst [vmem:[#allocation2 + $0x310] sm:$0xff] %v8401
      %8530 = vst [vmem:[#allocation2 + $0x318] sm:$0xff] %v8402
      %8531 = vst [vmem:[#allocation2 + $0x320] sm:$0xff] %v8403
      %8532 = vst [vmem:[#allocation2 + $0x328] sm:$0xff] %v8404
      %8533 = vst [vmem:[#allocation2 + $0x330] sm:$0xff] %v8405
      %8534 = vst [vmem:[#allocation2 + $0x338] sm:$0xff] %v8406
      %8535 = vst [vmem:[#allocation2 + $0x340] sm:$0xff] %v8407
      %8536 = vst [vmem:[#allocation2 + $0x348] sm:$0xff] %v8408
      %8537 = vst [vmem:[#allocation2 + $0x350] sm:$0xff] %v8409
      %8538 = vst [vmem:[#allocation2 + $0x358] sm:$0xff] %v8410
      %8539 = vst [vmem:[#allocation2 + $0x360] sm:$0xff] %v8411
      %8540 = vst [vmem:[#allocation2 + $0x368] sm:$0xff] %v8412
      %8541 = vst [vmem:[#allocation2 + $0x370] sm:$0xff] %v8413
      %8542 = vst [vmem:[#allocation2 + $0x378] sm:$0xff] %v8414
      %8543 = vst [vmem:[#allocation2 + $0x380] sm:$0xff] %v8415
      %8544 = vst [vmem:[#allocation2 + $0x388] sm:$0xff] %v8416
      %8545 = vst [vmem:[#allocation2 + $0x390] sm:$0xff] %v8417
      %8546 = vst [vmem:[#allocation2 + $0x398] sm:$0xff] %v8418
      %8547 = vst [vmem:[#allocation2 + $0x3a0] sm:$0xff] %v8419
      %8548 = vst [vmem:[#allocation2 + $0x3a8] sm:$0xff] %v8420
      %8549 = vst [vmem:[#allocation2 + $0x3b0] sm:$0xff] %v8421
      %8550 = vst [vmem:[#allocation2 + $0x3b8] sm:$0xff] %v8422
      %8551 = vst [vmem:[#allocation2 + $0x3c0] sm:$0xff] %v8423
      %8552 = vst [vmem:[#allocation2 + $0x3c8] sm:$0xff] %v8424
      %8553 = vst [vmem:[#allocation2 + $0x3d0] sm:$0xff] %v8425
      %8554 = vst [vmem:[#allocation2 + $0x3d8] sm:$0xff] %v8426
      %8555 = vst [vmem:[#allocation2 + $0x3e0] sm:$0xff] %v8427
      %8556 = vst [vmem:[#allocation2 + $0x3e8] sm:$0xff] %v8428
      %8557 = vst [vmem:[#allocation2 + $0x3f0] sm:$0xff] %v8429
      %8558 = vst [vmem:[#allocation2 + $0x3f8] sm:$0xff] %v8430
      %p8559 = scmp.eq.s32.totalorder %s29, 1
      // Predicated region
      $region77: #{stn3d_forward.1} parent=71 // pred_check
        %p8560 = pneg %p8559
      $region78: #{stn3d_forward.1} parent=71 // pred_check_branch
        %8562 = sbr.rel (%p8560) target = $region80
      $region79: #{stn3d_forward.1} parent=71 // pred_region
        %v8563 = vld [vmem:[#allocation2] sm:$0xff]
        %v8564 = vld [vmem:[#allocation2 + $0x8] sm:$0xff]
        %v8565 = vld [vmem:[#allocation2 + $0x10] sm:$0xff]
        %v8566 = vld [vmem:[#allocation2 + $0x18] sm:$0xff]
        %v8567 = vld [vmem:[#allocation2 + $0x20] sm:$0xff]
        %v8568 = vld [vmem:[#allocation2 + $0x28] sm:$0xff]
        %v8569 = vld [vmem:[#allocation2 + $0x30] sm:$0xff]
        %v8570 = vld [vmem:[#allocation2 + $0x38] sm:$0xff]
        %v8571 = vld [vmem:[#allocation2 + $0x40] sm:$0xff]
        %v8572 = vld [vmem:[#allocation2 + $0x48] sm:$0xff]
        %v8573 = vld [vmem:[#allocation2 + $0x50] sm:$0xff]
        %v8574 = vld [vmem:[#allocation2 + $0x58] sm:$0xff]
        %v8575 = vld [vmem:[#allocation2 + $0x60] sm:$0xff]
        %v8576 = vld [vmem:[#allocation2 + $0x68] sm:$0xff]
        %v8577 = vld [vmem:[#allocation2 + $0x70] sm:$0xff]
        %v8578 = vld [vmem:[#allocation2 + $0x78] sm:$0xff]
        %v8579 = vld [vmem:[#allocation2 + $0x80] sm:$0xff]
        %v8580 = vld [vmem:[#allocation2 + $0x88] sm:$0xff]
        %v8581 = vld [vmem:[#allocation2 + $0x90] sm:$0xff]
        %v8582 = vld [vmem:[#allocation2 + $0x98] sm:$0xff]
        %v8583 = vld [vmem:[#allocation2 + $0xa0] sm:$0xff]
        %v8584 = vld [vmem:[#allocation2 + $0xa8] sm:$0xff]
        %v8585 = vld [vmem:[#allocation2 + $0xb0] sm:$0xff]
        %v8586 = vld [vmem:[#allocation2 + $0xb8] sm:$0xff]
        %v8587 = vld [vmem:[#allocation2 + $0xc0] sm:$0xff]
        %v8588 = vld [vmem:[#allocation2 + $0xc8] sm:$0xff]
        %v8589 = vld [vmem:[#allocation2 + $0xd0] sm:$0xff]
        %v8590 = vld [vmem:[#allocation2 + $0xd8] sm:$0xff]
        %v8591 = vld [vmem:[#allocation2 + $0xe0] sm:$0xff]
        %v8592 = vld [vmem:[#allocation2 + $0xe8] sm:$0xff]
        %v8593 = vld [vmem:[#allocation2 + $0xf0] sm:$0xff]
        %v8594 = vld [vmem:[#allocation2 + $0xf8] sm:$0xff]
        %v8595 = vld [vmem:[#allocation2 + $0x100] sm:$0xff]
        %v8596 = vld [vmem:[#allocation2 + $0x108] sm:$0xff]
        %v8597 = vld [vmem:[#allocation2 + $0x110] sm:$0xff]
        %v8598 = vld [vmem:[#allocation2 + $0x118] sm:$0xff]
        %v8599 = vld [vmem:[#allocation2 + $0x120] sm:$0xff]
        %v8600 = vld [vmem:[#allocation2 + $0x128] sm:$0xff]
        %v8601 = vld [vmem:[#allocation2 + $0x130] sm:$0xff]
        %v8602 = vld [vmem:[#allocation2 + $0x138] sm:$0xff]
        %v8603 = vld [vmem:[#allocation2 + $0x140] sm:$0xff]
        %v8604 = vld [vmem:[#allocation2 + $0x148] sm:$0xff]
        %v8605 = vld [vmem:[#allocation2 + $0x150] sm:$0xff]
        %v8606 = vld [vmem:[#allocation2 + $0x158] sm:$0xff]
        %v8607 = vld [vmem:[#allocation2 + $0x160] sm:$0xff]
        %v8608 = vld [vmem:[#allocation2 + $0x168] sm:$0xff]
        %v8609 = vld [vmem:[#allocation2 + $0x170] sm:$0xff]
        %v8610 = vld [vmem:[#allocation2 + $0x178] sm:$0xff]
        %v8611 = vld [vmem:[#allocation2 + $0x180] sm:$0xff]
        %v8612 = vld [vmem:[#allocation2 + $0x188] sm:$0xff]
        %v8613 = vld [vmem:[#allocation2 + $0x190] sm:$0xff]
        %v8614 = vld [vmem:[#allocation2 + $0x198] sm:$0xff]
        %v8615 = vld [vmem:[#allocation2 + $0x1a0] sm:$0xff]
        %v8616 = vld [vmem:[#allocation2 + $0x1a8] sm:$0xff]
        %v8617 = vld [vmem:[#allocation2 + $0x1b0] sm:$0xff]
        %v8618 = vld [vmem:[#allocation2 + $0x1b8] sm:$0xff]
        %v8619 = vld [vmem:[#allocation2 + $0x1c0] sm:$0xff]
        %v8620 = vld [vmem:[#allocation2 + $0x1c8] sm:$0xff]
        %v8621 = vld [vmem:[#allocation2 + $0x1d0] sm:$0xff]
        %v8622 = vld [vmem:[#allocation2 + $0x1d8] sm:$0xff]
        %v8623 = vld [vmem:[#allocation2 + $0x1e0] sm:$0xff]
        %v8624 = vld [vmem:[#allocation2 + $0x1e8] sm:$0xff]
        %v8625 = vld [vmem:[#allocation2 + $0x1f0] sm:$0xff]
        %v8626 = vld [vmem:[#allocation2 + $0x1f8] sm:$0xff]
        %v8627 = vld [vmem:[#allocation2 + $0x200] sm:$0xff]
        %v8628 = vld [vmem:[#allocation2 + $0x208] sm:$0xff]
        %v8629 = vld [vmem:[#allocation2 + $0x210] sm:$0xff]
        %v8630 = vld [vmem:[#allocation2 + $0x218] sm:$0xff]
        %v8631 = vld [vmem:[#allocation2 + $0x220] sm:$0xff]
        %v8632 = vld [vmem:[#allocation2 + $0x228] sm:$0xff]
        %v8633 = vld [vmem:[#allocation2 + $0x230] sm:$0xff]
        %v8634 = vld [vmem:[#allocation2 + $0x238] sm:$0xff]
        %v8635 = vld [vmem:[#allocation2 + $0x240] sm:$0xff]
        %v8636 = vld [vmem:[#allocation2 + $0x248] sm:$0xff]
        %v8637 = vld [vmem:[#allocation2 + $0x250] sm:$0xff]
        %v8638 = vld [vmem:[#allocation2 + $0x258] sm:$0xff]
        %v8639 = vld [vmem:[#allocation2 + $0x260] sm:$0xff]
        %v8640 = vld [vmem:[#allocation2 + $0x268] sm:$0xff]
        %v8641 = vld [vmem:[#allocation2 + $0x270] sm:$0xff]
        %v8642 = vld [vmem:[#allocation2 + $0x278] sm:$0xff]
        %v8643 = vld [vmem:[#allocation2 + $0x280] sm:$0xff]
        %v8644 = vld [vmem:[#allocation2 + $0x288] sm:$0xff]
        %v8645 = vld [vmem:[#allocation2 + $0x290] sm:$0xff]
        %v8646 = vld [vmem:[#allocation2 + $0x298] sm:$0xff]
        %v8647 = vld [vmem:[#allocation2 + $0x2a0] sm:$0xff]
        %v8648 = vld [vmem:[#allocation2 + $0x2a8] sm:$0xff]
        %v8649 = vld [vmem:[#allocation2 + $0x2b0] sm:$0xff]
        %v8650 = vld [vmem:[#allocation2 + $0x2b8] sm:$0xff]
        %v8651 = vld [vmem:[#allocation2 + $0x2c0] sm:$0xff]
        %v8652 = vld [vmem:[#allocation2 + $0x2c8] sm:$0xff]
        %v8653 = vld [vmem:[#allocation2 + $0x2d0] sm:$0xff]
        %v8654 = vld [vmem:[#allocation2 + $0x2d8] sm:$0xff]
        %v8655 = vld [vmem:[#allocation2 + $0x2e0] sm:$0xff]
        %v8656 = vld [vmem:[#allocation2 + $0x2e8] sm:$0xff]
        %v8657 = vld [vmem:[#allocation2 + $0x2f0] sm:$0xff]
        %v8658 = vld [vmem:[#allocation2 + $0x2f8] sm:$0xff]
        %v8659 = vld [vmem:[#allocation2 + $0x300] sm:$0xff]
        %v8660 = vld [vmem:[#allocation2 + $0x308] sm:$0xff]
        %v8661 = vld [vmem:[#allocation2 + $0x310] sm:$0xff]
        %v8662 = vld [vmem:[#allocation2 + $0x318] sm:$0xff]
        %v8663 = vld [vmem:[#allocation2 + $0x320] sm:$0xff]
        %v8664 = vld [vmem:[#allocation2 + $0x328] sm:$0xff]
        %v8665 = vld [vmem:[#allocation2 + $0x330] sm:$0xff]
        %v8666 = vld [vmem:[#allocation2 + $0x338] sm:$0xff]
        %v8667 = vld [vmem:[#allocation2 + $0x340] sm:$0xff]
        %v8668 = vld [vmem:[#allocation2 + $0x348] sm:$0xff]
        %v8669 = vld [vmem:[#allocation2 + $0x350] sm:$0xff]
        %v8670 = vld [vmem:[#allocation2 + $0x358] sm:$0xff]
        %v8671 = vld [vmem:[#allocation2 + $0x360] sm:$0xff]
        %v8672 = vld [vmem:[#allocation2 + $0x368] sm:$0xff]
        %v8673 = vld [vmem:[#allocation2 + $0x370] sm:$0xff]
        %v8674 = vld [vmem:[#allocation2 + $0x378] sm:$0xff]
        %v8675 = vld [vmem:[#allocation2 + $0x380] sm:$0xff]
        %v8676 = vld [vmem:[#allocation2 + $0x388] sm:$0xff]
        %v8677 = vld [vmem:[#allocation2 + $0x390] sm:$0xff]
        %v8678 = vld [vmem:[#allocation2 + $0x398] sm:$0xff]
        %v8679 = vld [vmem:[#allocation2 + $0x3a0] sm:$0xff]
        %v8680 = vld [vmem:[#allocation2 + $0x3a8] sm:$0xff]
        %v8681 = vld [vmem:[#allocation2 + $0x3b0] sm:$0xff]
        %v8682 = vld [vmem:[#allocation2 + $0x3b8] sm:$0xff]
        %v8683 = vld [vmem:[#allocation2 + $0x3c0] sm:$0xff]
        %v8684 = vld [vmem:[#allocation2 + $0x3c8] sm:$0xff]
        %v8685 = vld [vmem:[#allocation2 + $0x3d0] sm:$0xff]
        %v8686 = vld [vmem:[#allocation2 + $0x3d8] sm:$0xff]
        %v8687 = vld [vmem:[#allocation2 + $0x3e0] sm:$0xff]
        %v8688 = vld [vmem:[#allocation2 + $0x3e8] sm:$0xff]
        %v8689 = vld [vmem:[#allocation2 + $0x3f0] sm:$0xff]
        %v8690 = vld [vmem:[#allocation2 + $0x3f8] sm:$0xff]
        %8691 = vxpose.xlu0.b32.start [1/16] %v8563, 128
        %8692 = vxpose.xlu0.b32.cont [2/16] %v8564, 128
        %8693 = vxpose.xlu0.b32.cont [3/16] %v8565, 128
        %8694 = vxpose.xlu0.b32.cont [4/16] %v8566, 128
        %8695 = vxpose.xlu0.b32.cont [5/16] %v8567, 128
        %8696 = vxpose.xlu0.b32.cont [6/16] %v8568, 128
        %8697 = vxpose.xlu0.b32.cont [7/16] %v8569, 128
        %8698 = vxpose.xlu0.b32.cont [8/16] %v8570, 128
        %8699 = vxpose.xlu0.b32.cont [9/16] %v8571, 128
        %8700 = vxpose.xlu0.b32.cont [10/16] %v8572, 128
        %8701 = vxpose.xlu0.b32.cont [11/16] %v8573, 128
        %8702 = vxpose.xlu0.b32.cont [12/16] %v8574, 128
        %8703 = vxpose.xlu0.b32.cont [13/16] %v8575, 128
        %8704 = vxpose.xlu0.b32.cont [14/16] %v8576, 128
        %8705 = vxpose.xlu0.b32.cont [15/16] %v8577, 128
        %8706 = vxpose.xlu0.b32.end [16/16] %v8578, 128
        %v8707 = vpop.trf.xlu0
        %v8708 = vpop.trf.xlu0
        %v8709 = vpop.trf.xlu0
        %v8710 = vpop.trf.xlu0
        %v8711 = vpop.trf.xlu0
        %v8712 = vpop.trf.xlu0
        %v8713 = vpop.trf.xlu0
        %v8714 = vpop.trf.xlu0
        %v8715 = vpop.trf.xlu0
        %v8716 = vpop.trf.xlu0
        %v8717 = vpop.trf.xlu0
        %v8718 = vpop.trf.xlu0
        %v8719 = vpop.trf.xlu0
        %v8720 = vpop.trf.xlu0
        %v8721 = vpop.trf.xlu0
        %v8722 = vpop.trf.xlu0
        %8723 = vxpose.xlu0.b32.start [1/16] %v8579, 128
        %8724 = vxpose.xlu0.b32.cont [2/16] %v8580, 128
        %8725 = vxpose.xlu0.b32.cont [3/16] %v8581, 128
        %8726 = vxpose.xlu0.b32.cont [4/16] %v8582, 128
        %8727 = vxpose.xlu0.b32.cont [5/16] %v8583, 128
        %8728 = vxpose.xlu0.b32.cont [6/16] %v8584, 128
        %8729 = vxpose.xlu0.b32.cont [7/16] %v8585, 128
        %8730 = vxpose.xlu0.b32.cont [8/16] %v8586, 128
        %8731 = vxpose.xlu0.b32.cont [9/16] %v8587, 128
        %8732 = vxpose.xlu0.b32.cont [10/16] %v8588, 128
        %8733 = vxpose.xlu0.b32.cont [11/16] %v8589, 128
        %8734 = vxpose.xlu0.b32.cont [12/16] %v8590, 128
        %8735 = vxpose.xlu0.b32.cont [13/16] %v8591, 128
        %8736 = vxpose.xlu0.b32.cont [14/16] %v8592, 128
        %8737 = vxpose.xlu0.b32.cont [15/16] %v8593, 128
        %8738 = vxpose.xlu0.b32.end [16/16] %v8594, 128
        %v8739 = vpop.trf.xlu0
        %v8740 = vpop.trf.xlu0
        %v8741 = vpop.trf.xlu0
        %v8742 = vpop.trf.xlu0
        %v8743 = vpop.trf.xlu0
        %v8744 = vpop.trf.xlu0
        %v8745 = vpop.trf.xlu0
        %v8746 = vpop.trf.xlu0
        %v8747 = vpop.trf.xlu0
        %v8748 = vpop.trf.xlu0
        %v8749 = vpop.trf.xlu0
        %v8750 = vpop.trf.xlu0
        %v8751 = vpop.trf.xlu0
        %v8752 = vpop.trf.xlu0
        %v8753 = vpop.trf.xlu0
        %v8754 = vpop.trf.xlu0
        %8755 = vxpose.xlu0.b32.start [1/16] %v8595, 128
        %8756 = vxpose.xlu0.b32.cont [2/16] %v8596, 128
        %8757 = vxpose.xlu0.b32.cont [3/16] %v8597, 128
        %8758 = vxpose.xlu0.b32.cont [4/16] %v8598, 128
        %8759 = vxpose.xlu0.b32.cont [5/16] %v8599, 128
        %8760 = vxpose.xlu0.b32.cont [6/16] %v8600, 128
        %8761 = vxpose.xlu0.b32.cont [7/16] %v8601, 128
        %8762 = vxpose.xlu0.b32.cont [8/16] %v8602, 128
        %8763 = vxpose.xlu0.b32.cont [9/16] %v8603, 128
        %8764 = vxpose.xlu0.b32.cont [10/16] %v8604, 128
        %8765 = vxpose.xlu0.b32.cont [11/16] %v8605, 128
        %8766 = vxpose.xlu0.b32.cont [12/16] %v8606, 128
        %8767 = vxpose.xlu0.b32.cont [13/16] %v8607, 128
        %8768 = vxpose.xlu0.b32.cont [14/16] %v8608, 128
        %8769 = vxpose.xlu0.b32.cont [15/16] %v8609, 128
        %8770 = vxpose.xlu0.b32.end [16/16] %v8610, 128
        %v8771 = vpop.trf.xlu0
        %v8772 = vpop.trf.xlu0
        %v8773 = vpop.trf.xlu0
        %v8774 = vpop.trf.xlu0
        %v8775 = vpop.trf.xlu0
        %v8776 = vpop.trf.xlu0
        %v8777 = vpop.trf.xlu0
        %v8778 = vpop.trf.xlu0
        %v8779 = vpop.trf.xlu0
        %v8780 = vpop.trf.xlu0
        %v8781 = vpop.trf.xlu0
        %v8782 = vpop.trf.xlu0
        %v8783 = vpop.trf.xlu0
        %v8784 = vpop.trf.xlu0
        %v8785 = vpop.trf.xlu0
        %v8786 = vpop.trf.xlu0
        %8787 = vxpose.xlu0.b32.start [1/16] %v8611, 128
        %8788 = vxpose.xlu0.b32.cont [2/16] %v8612, 128
        %8789 = vxpose.xlu0.b32.cont [3/16] %v8613, 128
        %8790 = vxpose.xlu0.b32.cont [4/16] %v8614, 128
        %8791 = vxpose.xlu0.b32.cont [5/16] %v8615, 128
        %8792 = vxpose.xlu0.b32.cont [6/16] %v8616, 128
        %8793 = vxpose.xlu0.b32.cont [7/16] %v8617, 128
        %8794 = vxpose.xlu0.b32.cont [8/16] %v8618, 128
        %8795 = vxpose.xlu0.b32.cont [9/16] %v8619, 128
        %8796 = vxpose.xlu0.b32.cont [10/16] %v8620, 128
        %8797 = vxpose.xlu0.b32.cont [11/16] %v8621, 128
        %8798 = vxpose.xlu0.b32.cont [12/16] %v8622, 128
        %8799 = vxpose.xlu0.b32.cont [13/16] %v8623, 128
        %8800 = vxpose.xlu0.b32.cont [14/16] %v8624, 128
        %8801 = vxpose.xlu0.b32.cont [15/16] %v8625, 128
        %8802 = vxpose.xlu0.b32.end [16/16] %v8626, 128
        %v8803 = vpop.trf.xlu0
        %v8804 = vpop.trf.xlu0
        %v8805 = vpop.trf.xlu0
        %v8806 = vpop.trf.xlu0
        %v8807 = vpop.trf.xlu0
        %v8808 = vpop.trf.xlu0
        %v8809 = vpop.trf.xlu0
        %v8810 = vpop.trf.xlu0
        %v8811 = vpop.trf.xlu0
        %v8812 = vpop.trf.xlu0
        %v8813 = vpop.trf.xlu0
        %v8814 = vpop.trf.xlu0
        %v8815 = vpop.trf.xlu0
        %v8816 = vpop.trf.xlu0
        %v8817 = vpop.trf.xlu0
        %v8818 = vpop.trf.xlu0
        %8819 = vxpose.xlu0.b32.start [1/16] %v8627, 128
        %8820 = vxpose.xlu0.b32.cont [2/16] %v8628, 128
        %8821 = vxpose.xlu0.b32.cont [3/16] %v8629, 128
        %8822 = vxpose.xlu0.b32.cont [4/16] %v8630, 128
        %8823 = vxpose.xlu0.b32.cont [5/16] %v8631, 128
        %8824 = vxpose.xlu0.b32.cont [6/16] %v8632, 128
        %8825 = vxpose.xlu0.b32.cont [7/16] %v8633, 128
        %8826 = vxpose.xlu0.b32.cont [8/16] %v8634, 128
        %8827 = vxpose.xlu0.b32.cont [9/16] %v8635, 128
        %8828 = vxpose.xlu0.b32.cont [10/16] %v8636, 128
        %8829 = vxpose.xlu0.b32.cont [11/16] %v8637, 128
        %8830 = vxpose.xlu0.b32.cont [12/16] %v8638, 128
        %8831 = vxpose.xlu0.b32.cont [13/16] %v8639, 128
        %8832 = vxpose.xlu0.b32.cont [14/16] %v8640, 128
        %8833 = vxpose.xlu0.b32.cont [15/16] %v8641, 128
        %8834 = vxpose.xlu0.b32.end [16/16] %v8642, 128
        %v8835 = vpop.trf.xlu0
        %v8836 = vpop.trf.xlu0
        %v8837 = vpop.trf.xlu0
        %v8838 = vpop.trf.xlu0
        %v8839 = vpop.trf.xlu0
        %v8840 = vpop.trf.xlu0
        %v8841 = vpop.trf.xlu0
        %v8842 = vpop.trf.xlu0
        %v8843 = vpop.trf.xlu0
        %v8844 = vpop.trf.xlu0
        %v8845 = vpop.trf.xlu0
        %v8846 = vpop.trf.xlu0
        %v8847 = vpop.trf.xlu0
        %v8848 = vpop.trf.xlu0
        %v8849 = vpop.trf.xlu0
        %v8850 = vpop.trf.xlu0
        %8851 = vxpose.xlu0.b32.start [1/16] %v8643, 128
        %8852 = vxpose.xlu0.b32.cont [2/16] %v8644, 128
        %8853 = vxpose.xlu0.b32.cont [3/16] %v8645, 128
        %8854 = vxpose.xlu0.b32.cont [4/16] %v8646, 128
        %8855 = vxpose.xlu0.b32.cont [5/16] %v8647, 128
        %8856 = vxpose.xlu0.b32.cont [6/16] %v8648, 128
        %8857 = vxpose.xlu0.b32.cont [7/16] %v8649, 128
        %8858 = vxpose.xlu0.b32.cont [8/16] %v8650, 128
        %8859 = vxpose.xlu0.b32.cont [9/16] %v8651, 128
        %8860 = vxpose.xlu0.b32.cont [10/16] %v8652, 128
        %8861 = vxpose.xlu0.b32.cont [11/16] %v8653, 128
        %8862 = vxpose.xlu0.b32.cont [12/16] %v8654, 128
        %8863 = vxpose.xlu0.b32.cont [13/16] %v8655, 128
        %8864 = vxpose.xlu0.b32.cont [14/16] %v8656, 128
        %8865 = vxpose.xlu0.b32.cont [15/16] %v8657, 128
        %8866 = vxpose.xlu0.b32.end [16/16] %v8658, 128
        %v8867 = vpop.trf.xlu0
        %v8868 = vpop.trf.xlu0
        %v8869 = vpop.trf.xlu0
        %v8870 = vpop.trf.xlu0
        %v8871 = vpop.trf.xlu0
        %v8872 = vpop.trf.xlu0
        %v8873 = vpop.trf.xlu0
        %v8874 = vpop.trf.xlu0
        %v8875 = vpop.trf.xlu0
        %v8876 = vpop.trf.xlu0
        %v8877 = vpop.trf.xlu0
        %v8878 = vpop.trf.xlu0
        %v8879 = vpop.trf.xlu0
        %v8880 = vpop.trf.xlu0
        %v8881 = vpop.trf.xlu0
        %v8882 = vpop.trf.xlu0
        %8883 = vxpose.xlu0.b32.start [1/16] %v8659, 128
        %8884 = vxpose.xlu0.b32.cont [2/16] %v8660, 128
        %8885 = vxpose.xlu0.b32.cont [3/16] %v8661, 128
        %8886 = vxpose.xlu0.b32.cont [4/16] %v8662, 128
        %8887 = vxpose.xlu0.b32.cont [5/16] %v8663, 128
        %8888 = vxpose.xlu0.b32.cont [6/16] %v8664, 128
        %8889 = vxpose.xlu0.b32.cont [7/16] %v8665, 128
        %8890 = vxpose.xlu0.b32.cont [8/16] %v8666, 128
        %8891 = vxpose.xlu0.b32.cont [9/16] %v8667, 128
        %8892 = vxpose.xlu0.b32.cont [10/16] %v8668, 128
        %8893 = vxpose.xlu0.b32.cont [11/16] %v8669, 128
        %8894 = vxpose.xlu0.b32.cont [12/16] %v8670, 128
        %8895 = vxpose.xlu0.b32.cont [13/16] %v8671, 128
        %8896 = vxpose.xlu0.b32.cont [14/16] %v8672, 128
        %8897 = vxpose.xlu0.b32.cont [15/16] %v8673, 128
        %8898 = vxpose.xlu0.b32.end [16/16] %v8674, 128
        %v8899 = vpop.trf.xlu0
        %v8900 = vpop.trf.xlu0
        %v8901 = vpop.trf.xlu0
        %v8902 = vpop.trf.xlu0
        %v8903 = vpop.trf.xlu0
        %v8904 = vpop.trf.xlu0
        %v8905 = vpop.trf.xlu0
        %v8906 = vpop.trf.xlu0
        %v8907 = vpop.trf.xlu0
        %v8908 = vpop.trf.xlu0
        %v8909 = vpop.trf.xlu0
        %v8910 = vpop.trf.xlu0
        %v8911 = vpop.trf.xlu0
        %v8912 = vpop.trf.xlu0
        %v8913 = vpop.trf.xlu0
        %v8914 = vpop.trf.xlu0
        %8915 = vxpose.xlu0.b32.start [1/16] %v8675, 128
        %8916 = vxpose.xlu0.b32.cont [2/16] %v8676, 128
        %8917 = vxpose.xlu0.b32.cont [3/16] %v8677, 128
        %8918 = vxpose.xlu0.b32.cont [4/16] %v8678, 128
        %8919 = vxpose.xlu0.b32.cont [5/16] %v8679, 128
        %8920 = vxpose.xlu0.b32.cont [6/16] %v8680, 128
        %8921 = vxpose.xlu0.b32.cont [7/16] %v8681, 128
        %8922 = vxpose.xlu0.b32.cont [8/16] %v8682, 128
        %8923 = vxpose.xlu0.b32.cont [9/16] %v8683, 128
        %8924 = vxpose.xlu0.b32.cont [10/16] %v8684, 128
        %8925 = vxpose.xlu0.b32.cont [11/16] %v8685, 128
        %8926 = vxpose.xlu0.b32.cont [12/16] %v8686, 128
        %8927 = vxpose.xlu0.b32.cont [13/16] %v8687, 128
        %8928 = vxpose.xlu0.b32.cont [14/16] %v8688, 128
        %8929 = vxpose.xlu0.b32.cont [15/16] %v8689, 128
        %8930 = vxpose.xlu0.b32.end [16/16] %v8690, 128
        %v8931 = vpop.trf.xlu0
        %v8932 = vpop.trf.xlu0
        %v8933 = vpop.trf.xlu0
        %v8934 = vpop.trf.xlu0
        %v8935 = vpop.trf.xlu0
        %v8936 = vpop.trf.xlu0
        %v8937 = vpop.trf.xlu0
        %v8938 = vpop.trf.xlu0
        %v8939 = vpop.trf.xlu0
        %v8940 = vpop.trf.xlu0
        %v8941 = vpop.trf.xlu0
        %v8942 = vpop.trf.xlu0
        %v8943 = vpop.trf.xlu0
        %v8944 = vpop.trf.xlu0
        %v8945 = vpop.trf.xlu0
        %v8946 = vpop.trf.xlu0
        %v8947 = vmax.f32 %v8707, %v8708
        %v8948 = vmax.f32 %v8947, %v8709
        %v8949 = vmax.f32 %v8948, %v8710
        %v8950 = vmax.f32 %v8949, %v8711
        %v8951 = vmax.f32 %v8950, %v8712
        %v8952 = vmax.f32 %v8951, %v8713
        %v8953 = vmax.f32 %v8952, %v8714
        %v8954 = vmax.f32 %v8953, %v8715
        %v8955 = vmax.f32 %v8954, %v8716
        %v8956 = vmax.f32 %v8955, %v8717
        %v8957 = vmax.f32 %v8956, %v8718
        %v8958 = vmax.f32 %v8957, %v8719
        %v8959 = vmax.f32 %v8958, %v8720
        %v8960 = vmax.f32 %v8959, %v8721
        %v8961 = vmax.f32 %v8960, %v8722
        %v8962 = vrot.slane %v8961, 4
        %v8963 = vmax.f32 %v8961, %v8962
        %v8964 = vrot.slane %v8963, 2
        %v8965 = vmax.f32 %v8963, %v8964
        %v8966 = vrot.slane %v8965, 1
        %v8967 = vmax.f32 %v8965, %v8966
        %v8968 = vmax.f32 %v8739, %v8740
        %v8969 = vmax.f32 %v8968, %v8741
        %v8970 = vmax.f32 %v8969, %v8742
        %v8971 = vmax.f32 %v8970, %v8743
        %v8972 = vmax.f32 %v8971, %v8744
        %v8973 = vmax.f32 %v8972, %v8745
        %v8974 = vmax.f32 %v8973, %v8746
        %v8975 = vmax.f32 %v8974, %v8747
        %v8976 = vmax.f32 %v8975, %v8748
        %v8977 = vmax.f32 %v8976, %v8749
        %v8978 = vmax.f32 %v8977, %v8750
        %v8979 = vmax.f32 %v8978, %v8751
        %v8980 = vmax.f32 %v8979, %v8752
        %v8981 = vmax.f32 %v8980, %v8753
        %v8982 = vmax.f32 %v8981, %v8754
        %v8983 = vrot.slane %v8982, 4
        %v8984 = vmax.f32 %v8982, %v8983
        %v8985 = vrot.slane %v8984, 2
        %v8986 = vmax.f32 %v8984, %v8985
        %v8987 = vrot.slane %v8986, 1
        %v8988 = vmax.f32 %v8986, %v8987
        %v8989 = vmax.f32 %v8771, %v8772
        %v8990 = vmax.f32 %v8989, %v8773
        %v8991 = vmax.f32 %v8990, %v8774
        %v8992 = vmax.f32 %v8991, %v8775
        %v8993 = vmax.f32 %v8992, %v8776
        %v8994 = vmax.f32 %v8993, %v8777
        %v8995 = vmax.f32 %v8994, %v8778
        %v8996 = vmax.f32 %v8995, %v8779
        %v8997 = vmax.f32 %v8996, %v8780
        %v8998 = vmax.f32 %v8997, %v8781
        %v8999 = vmax.f32 %v8998, %v8782
        %v9000 = vmax.f32 %v8999, %v8783
        %v9001 = vmax.f32 %v9000, %v8784
        %v9002 = vmax.f32 %v9001, %v8785
        %v9003 = vmax.f32 %v9002, %v8786
        %v9004 = vrot.slane %v9003, 4
        %v9005 = vmax.f32 %v9003, %v9004
        %v9006 = vrot.slane %v9005, 2
        %v9007 = vmax.f32 %v9005, %v9006
        %v9008 = vrot.slane %v9007, 1
        %v9009 = vmax.f32 %v9007, %v9008
        %v9010 = vmax.f32 %v8803, %v8804
        %v9011 = vmax.f32 %v9010, %v8805
        %v9012 = vmax.f32 %v9011, %v8806
        %v9013 = vmax.f32 %v9012, %v8807
        %v9014 = vmax.f32 %v9013, %v8808
        %v9015 = vmax.f32 %v9014, %v8809
        %v9016 = vmax.f32 %v9015, %v8810
        %v9017 = vmax.f32 %v9016, %v8811
        %v9018 = vmax.f32 %v9017, %v8812
        %v9019 = vmax.f32 %v9018, %v8813
        %v9020 = vmax.f32 %v9019, %v8814
        %v9021 = vmax.f32 %v9020, %v8815
        %v9022 = vmax.f32 %v9021, %v8816
        %v9023 = vmax.f32 %v9022, %v8817
        %v9024 = vmax.f32 %v9023, %v8818
        %v9025 = vrot.slane %v9024, 4
        %v9026 = vmax.f32 %v9024, %v9025
        %v9027 = vrot.slane %v9026, 2
        %v9028 = vmax.f32 %v9026, %v9027
        %v9029 = vrot.slane %v9028, 1
        %v9030 = vmax.f32 %v9028, %v9029
        %v9031 = vmax.f32 %v8835, %v8836
        %v9032 = vmax.f32 %v9031, %v8837
        %v9033 = vmax.f32 %v9032, %v8838
        %v9034 = vmax.f32 %v9033, %v8839
        %v9035 = vmax.f32 %v9034, %v8840
        %v9036 = vmax.f32 %v9035, %v8841
        %v9037 = vmax.f32 %v9036, %v8842
        %v9038 = vmax.f32 %v9037, %v8843
        %v9039 = vmax.f32 %v9038, %v8844
        %v9040 = vmax.f32 %v9039, %v8845
        %v9041 = vmax.f32 %v9040, %v8846
        %v9042 = vmax.f32 %v9041, %v8847
        %v9043 = vmax.f32 %v9042, %v8848
        %v9044 = vmax.f32 %v9043, %v8849
        %v9045 = vmax.f32 %v9044, %v8850
        %v9046 = vrot.slane %v9045, 4
        %v9047 = vmax.f32 %v9045, %v9046
        %v9048 = vrot.slane %v9047, 2
        %v9049 = vmax.f32 %v9047, %v9048
        %v9050 = vrot.slane %v9049, 1
        %v9051 = vmax.f32 %v9049, %v9050
        %v9052 = vmax.f32 %v8867, %v8868
        %v9053 = vmax.f32 %v9052, %v8869
        %v9054 = vmax.f32 %v9053, %v8870
        %v9055 = vmax.f32 %v9054, %v8871
        %v9056 = vmax.f32 %v9055, %v8872
        %v9057 = vmax.f32 %v9056, %v8873
        %v9058 = vmax.f32 %v9057, %v8874
        %v9059 = vmax.f32 %v9058, %v8875
        %v9060 = vmax.f32 %v9059, %v8876
        %v9061 = vmax.f32 %v9060, %v8877
        %v9062 = vmax.f32 %v9061, %v8878
        %v9063 = vmax.f32 %v9062, %v8879
        %v9064 = vmax.f32 %v9063, %v8880
        %v9065 = vmax.f32 %v9064, %v8881
        %v9066 = vmax.f32 %v9065, %v8882
        %v9067 = vrot.slane %v9066, 4
        %v9068 = vmax.f32 %v9066, %v9067
        %v9069 = vrot.slane %v9068, 2
        %v9070 = vmax.f32 %v9068, %v9069
        %v9071 = vrot.slane %v9070, 1
        %v9072 = vmax.f32 %v9070, %v9071
        %v9073 = vmax.f32 %v8899, %v8900
        %v9074 = vmax.f32 %v9073, %v8901
        %v9075 = vmax.f32 %v9074, %v8902
        %v9076 = vmax.f32 %v9075, %v8903
        %v9077 = vmax.f32 %v9076, %v8904
        %v9078 = vmax.f32 %v9077, %v8905
        %v9079 = vmax.f32 %v9078, %v8906
        %v9080 = vmax.f32 %v9079, %v8907
        %v9081 = vmax.f32 %v9080, %v8908
        %v9082 = vmax.f32 %v9081, %v8909
        %v9083 = vmax.f32 %v9082, %v8910
        %v9084 = vmax.f32 %v9083, %v8911
        %v9085 = vmax.f32 %v9084, %v8912
        %v9086 = vmax.f32 %v9085, %v8913
        %v9087 = vmax.f32 %v9086, %v8914
        %v9088 = vrot.slane %v9087, 4
        %v9089 = vmax.f32 %v9087, %v9088
        %v9090 = vrot.slane %v9089, 2
        %v9091 = vmax.f32 %v9089, %v9090
        %v9092 = vrot.slane %v9091, 1
        %v9093 = vmax.f32 %v9091, %v9092
        %v9094 = vmax.f32 %v8931, %v8932
        %v9095 = vmax.f32 %v9094, %v8933
        %v9096 = vmax.f32 %v9095, %v8934
        %v9097 = vmax.f32 %v9096, %v8935
        %v9098 = vmax.f32 %v9097, %v8936
        %v9099 = vmax.f32 %v9098, %v8937
        %v9100 = vmax.f32 %v9099, %v8938
        %v9101 = vmax.f32 %v9100, %v8939
        %v9102 = vmax.f32 %v9101, %v8940
        %v9103 = vmax.f32 %v9102, %v8941
        %v9104 = vmax.f32 %v9103, %v8942
        %v9105 = vmax.f32 %v9104, %v8943
        %v9106 = vmax.f32 %v9105, %v8944
        %v9107 = vmax.f32 %v9106, %v8945
        %v9108 = vmax.f32 %v9107, %v8946
        %v9109 = vrot.slane %v9108, 4
        %v9110 = vmax.f32 %v9108, %v9109
        %v9111 = vrot.slane %v9110, 2
        %v9112 = vmax.f32 %v9110, %v9111
        %v9113 = vrot.slane %v9112, 1
        %v9114 = vmax.f32 %v9112, %v9113
        %v9115 = vpack.c.bf16 %v8967, %v8967
        %v9116 = vpack.c.bf16 %v8988, %v8988
        %v9117 = vpack.c.bf16 %v9009, %v9009
        %v9118 = vpack.c.bf16 %v9030, %v9030
        %v9119 = vpack.c.bf16 %v9051, %v9051
        %v9120 = vpack.c.bf16 %v9072, %v9072
        %v9121 = vpack.c.bf16 %v9093, %v9093
        %v9122 = vpack.c.bf16 %v9114, %v9114
        %v9123 = vld [vmem:[%s7] sm:$0xff]
        %v9124 = vld [vmem:[%s7 + $0x8] sm:$0xff]
        %v9125 = vld [vmem:[%s7 + $0x10] sm:$0xff]
        %v9126 = vld [vmem:[%s7 + $0x18] sm:$0xff]
        %v9127 = vld [vmem:[%s7 + $0x20] sm:$0xff]
        %v9128 = vld [vmem:[%s7 + $0x28] sm:$0xff]
        %v9129 = vld [vmem:[%s7 + $0x30] sm:$0xff]
        %v9130 = vld [vmem:[%s7 + $0x38] sm:$0xff]
        %v9131 = vld [vmem:[%s7 + $0x40] sm:$0xff]
        %v9132 = vld [vmem:[%s7 + $0x48] sm:$0xff]
        %v9133 = vld [vmem:[%s7 + $0x50] sm:$0xff]
        %v9134 = vld [vmem:[%s7 + $0x58] sm:$0xff]
        %v9135 = vld [vmem:[%s7 + $0x60] sm:$0xff]
        %v9136 = vld [vmem:[%s7 + $0x68] sm:$0xff]
        %v9137 = vld [vmem:[%s7 + $0x70] sm:$0xff]
        %v9138 = vld [vmem:[%s7 + $0x78] sm:$0xff]
        %v9139 = vld [vmem:[%s7 + $0x80] sm:$0xff]
        %v9140 = vld [vmem:[%s7 + $0x88] sm:$0xff]
        %v9141 = vld [vmem:[%s7 + $0x90] sm:$0xff]
        %v9142 = vld [vmem:[%s7 + $0x98] sm:$0xff]
        %v9143 = vld [vmem:[%s7 + $0xa0] sm:$0xff]
        %v9144 = vld [vmem:[%s7 + $0xa8] sm:$0xff]
        %v9145 = vld [vmem:[%s7 + $0xb0] sm:$0xff]
        %v9146 = vld [vmem:[%s7 + $0xb8] sm:$0xff]
        %v9147 = vld [vmem:[%s7 + $0xc0] sm:$0xff]
        %v9148 = vld [vmem:[%s7 + $0xc8] sm:$0xff]
        %v9149 = vld [vmem:[%s7 + $0xd0] sm:$0xff]
        %v9150 = vld [vmem:[%s7 + $0xd8] sm:$0xff]
        %v9151 = vld [vmem:[%s7 + $0xe0] sm:$0xff]
        %v9152 = vld [vmem:[%s7 + $0xe8] sm:$0xff]
        %v9153 = vld [vmem:[%s7 + $0xf0] sm:$0xff]
        %v9154 = vld [vmem:[%s7 + $0xf8] sm:$0xff]
        %v9155 = vld [vmem:[%s7 + $0x100] sm:$0xff]
        %v9156 = vld [vmem:[%s7 + $0x108] sm:$0xff]
        %v9157 = vld [vmem:[%s7 + $0x110] sm:$0xff]
        %v9158 = vld [vmem:[%s7 + $0x118] sm:$0xff]
        %v9159 = vld [vmem:[%s7 + $0x120] sm:$0xff]
        %v9160 = vld [vmem:[%s7 + $0x128] sm:$0xff]
        %v9161 = vld [vmem:[%s7 + $0x130] sm:$0xff]
        %v9162 = vld [vmem:[%s7 + $0x138] sm:$0xff]
        %v9163 = vld [vmem:[%s7 + $0x140] sm:$0xff]
        %v9164 = vld [vmem:[%s7 + $0x148] sm:$0xff]
        %v9165 = vld [vmem:[%s7 + $0x150] sm:$0xff]
        %v9166 = vld [vmem:[%s7 + $0x158] sm:$0xff]
        %v9167 = vld [vmem:[%s7 + $0x160] sm:$0xff]
        %v9168 = vld [vmem:[%s7 + $0x168] sm:$0xff]
        %v9169 = vld [vmem:[%s7 + $0x170] sm:$0xff]
        %v9170 = vld [vmem:[%s7 + $0x178] sm:$0xff]
        %v9171 = vld [vmem:[%s7 + $0x180] sm:$0xff]
        %v9172 = vld [vmem:[%s7 + $0x188] sm:$0xff]
        %v9173 = vld [vmem:[%s7 + $0x190] sm:$0xff]
        %v9174 = vld [vmem:[%s7 + $0x198] sm:$0xff]
        %v9175 = vld [vmem:[%s7 + $0x1a0] sm:$0xff]
        %v9176 = vld [vmem:[%s7 + $0x1a8] sm:$0xff]
        %v9177 = vld [vmem:[%s7 + $0x1b0] sm:$0xff]
        %v9178 = vld [vmem:[%s7 + $0x1b8] sm:$0xff]
        %v9179 = vld [vmem:[%s7 + $0x1c0] sm:$0xff]
        %v9180 = vld [vmem:[%s7 + $0x1c8] sm:$0xff]
        %v9181 = vld [vmem:[%s7 + $0x1d0] sm:$0xff]
        %v9182 = vld [vmem:[%s7 + $0x1d8] sm:$0xff]
        %v9183 = vld [vmem:[%s7 + $0x1e0] sm:$0xff]
        %v9184 = vld [vmem:[%s7 + $0x1e8] sm:$0xff]
        %v9185 = vld [vmem:[%s7 + $0x1f0] sm:$0xff]
        %v9186 = vld [vmem:[%s7 + $0x1f8] sm:$0xff]
        %v9187 = vld [vmem:[%s7 + $0x200] sm:$0xff]
        %v9188 = vld [vmem:[%s7 + $0x208] sm:$0xff]
        %v9189 = vld [vmem:[%s7 + $0x210] sm:$0xff]
        %v9190 = vld [vmem:[%s7 + $0x218] sm:$0xff]
        %v9191 = vld [vmem:[%s7 + $0x220] sm:$0xff]
        %v9192 = vld [vmem:[%s7 + $0x228] sm:$0xff]
        %v9193 = vld [vmem:[%s7 + $0x230] sm:$0xff]
        %v9194 = vld [vmem:[%s7 + $0x238] sm:$0xff]
        %v9195 = vld [vmem:[%s7 + $0x240] sm:$0xff]
        %v9196 = vld [vmem:[%s7 + $0x248] sm:$0xff]
        %v9197 = vld [vmem:[%s7 + $0x250] sm:$0xff]
        %v9198 = vld [vmem:[%s7 + $0x258] sm:$0xff]
        %v9199 = vld [vmem:[%s7 + $0x260] sm:$0xff]
        %v9200 = vld [vmem:[%s7 + $0x268] sm:$0xff]
        %v9201 = vld [vmem:[%s7 + $0x270] sm:$0xff]
        %v9202 = vld [vmem:[%s7 + $0x278] sm:$0xff]
        %v9203 = vld [vmem:[%s7 + $0x280] sm:$0xff]
        %v9204 = vld [vmem:[%s7 + $0x288] sm:$0xff]
        %v9205 = vld [vmem:[%s7 + $0x290] sm:$0xff]
        %v9206 = vld [vmem:[%s7 + $0x298] sm:$0xff]
        %v9207 = vld [vmem:[%s7 + $0x2a0] sm:$0xff]
        %v9208 = vld [vmem:[%s7 + $0x2a8] sm:$0xff]
        %v9209 = vld [vmem:[%s7 + $0x2b0] sm:$0xff]
        %v9210 = vld [vmem:[%s7 + $0x2b8] sm:$0xff]
        %v9211 = vld [vmem:[%s7 + $0x2c0] sm:$0xff]
        %v9212 = vld [vmem:[%s7 + $0x2c8] sm:$0xff]
        %v9213 = vld [vmem:[%s7 + $0x2d0] sm:$0xff]
        %v9214 = vld [vmem:[%s7 + $0x2d8] sm:$0xff]
        %v9215 = vld [vmem:[%s7 + $0x2e0] sm:$0xff]
        %v9216 = vld [vmem:[%s7 + $0x2e8] sm:$0xff]
        %v9217 = vld [vmem:[%s7 + $0x2f0] sm:$0xff]
        %v9218 = vld [vmem:[%s7 + $0x2f8] sm:$0xff]
        %v9219 = vld [vmem:[%s7 + $0x300] sm:$0xff]
        %v9220 = vld [vmem:[%s7 + $0x308] sm:$0xff]
        %v9221 = vld [vmem:[%s7 + $0x310] sm:$0xff]
        %v9222 = vld [vmem:[%s7 + $0x318] sm:$0xff]
        %v9223 = vld [vmem:[%s7 + $0x320] sm:$0xff]
        %v9224 = vld [vmem:[%s7 + $0x328] sm:$0xff]
        %v9225 = vld [vmem:[%s7 + $0x330] sm:$0xff]
        %v9226 = vld [vmem:[%s7 + $0x338] sm:$0xff]
        %v9227 = vld [vmem:[%s7 + $0x340] sm:$0xff]
        %v9228 = vld [vmem:[%s7 + $0x348] sm:$0xff]
        %v9229 = vld [vmem:[%s7 + $0x350] sm:$0xff]
        %v9230 = vld [vmem:[%s7 + $0x358] sm:$0xff]
        %v9231 = vld [vmem:[%s7 + $0x360] sm:$0xff]
        %v9232 = vld [vmem:[%s7 + $0x368] sm:$0xff]
        %v9233 = vld [vmem:[%s7 + $0x370] sm:$0xff]
        %v9234 = vld [vmem:[%s7 + $0x378] sm:$0xff]
        %v9235 = vld [vmem:[%s7 + $0x380] sm:$0xff]
        %v9236 = vld [vmem:[%s7 + $0x388] sm:$0xff]
        %v9237 = vld [vmem:[%s7 + $0x390] sm:$0xff]
        %v9238 = vld [vmem:[%s7 + $0x398] sm:$0xff]
        %v9239 = vld [vmem:[%s7 + $0x3a0] sm:$0xff]
        %v9240 = vld [vmem:[%s7 + $0x3a8] sm:$0xff]
        %v9241 = vld [vmem:[%s7 + $0x3b0] sm:$0xff]
        %v9242 = vld [vmem:[%s7 + $0x3b8] sm:$0xff]
        %v9243 = vld [vmem:[%s7 + $0x3c0] sm:$0xff]
        %v9244 = vld [vmem:[%s7 + $0x3c8] sm:$0xff]
        %v9245 = vld [vmem:[%s7 + $0x3d0] sm:$0xff]
        %v9246 = vld [vmem:[%s7 + $0x3d8] sm:$0xff]
        %v9247 = vld [vmem:[%s7 + $0x3e0] sm:$0xff]
        %v9248 = vld [vmem:[%s7 + $0x3e8] sm:$0xff]
        %v9249 = vld [vmem:[%s7 + $0x3f0] sm:$0xff]
        %v9250 = vld [vmem:[%s7 + $0x3f8] sm:$0xff]
        %v9251 = vld [vmem:[%s7 + $0x400] sm:$0xff]
        %v9252 = vld [vmem:[%s7 + $0x408] sm:$0xff]
        %v9253 = vld [vmem:[%s7 + $0x410] sm:$0xff]
        %v9254 = vld [vmem:[%s7 + $0x418] sm:$0xff]
        %v9255 = vld [vmem:[%s7 + $0x420] sm:$0xff]
        %v9256 = vld [vmem:[%s7 + $0x428] sm:$0xff]
        %v9257 = vld [vmem:[%s7 + $0x430] sm:$0xff]
        %v9258 = vld [vmem:[%s7 + $0x438] sm:$0xff]
        %v9259 = vld [vmem:[%s7 + $0x440] sm:$0xff]
        %v9260 = vld [vmem:[%s7 + $0x448] sm:$0xff]
        %v9261 = vld [vmem:[%s7 + $0x450] sm:$0xff]
        %v9262 = vld [vmem:[%s7 + $0x458] sm:$0xff]
        %v9263 = vld [vmem:[%s7 + $0x460] sm:$0xff]
        %v9264 = vld [vmem:[%s7 + $0x468] sm:$0xff]
        %v9265 = vld [vmem:[%s7 + $0x470] sm:$0xff]
        %v9266 = vld [vmem:[%s7 + $0x478] sm:$0xff]
        %v9267 = vld [vmem:[%s7 + $0x480] sm:$0xff]
        %v9268 = vld [vmem:[%s7 + $0x488] sm:$0xff]
        %v9269 = vld [vmem:[%s7 + $0x490] sm:$0xff]
        %v9270 = vld [vmem:[%s7 + $0x498] sm:$0xff]
        %v9271 = vld [vmem:[%s7 + $0x4a0] sm:$0xff]
        %v9272 = vld [vmem:[%s7 + $0x4a8] sm:$0xff]
        %v9273 = vld [vmem:[%s7 + $0x4b0] sm:$0xff]
        %v9274 = vld [vmem:[%s7 + $0x4b8] sm:$0xff]
        %v9275 = vld [vmem:[%s7 + $0x4c0] sm:$0xff]
        %v9276 = vld [vmem:[%s7 + $0x4c8] sm:$0xff]
        %v9277 = vld [vmem:[%s7 + $0x4d0] sm:$0xff]
        %v9278 = vld [vmem:[%s7 + $0x4d8] sm:$0xff]
        %v9279 = vld [vmem:[%s7 + $0x4e0] sm:$0xff]
        %v9280 = vld [vmem:[%s7 + $0x4e8] sm:$0xff]
        %v9281 = vld [vmem:[%s7 + $0x4f0] sm:$0xff]
        %v9282 = vld [vmem:[%s7 + $0x4f8] sm:$0xff]
        %v9283 = vld [vmem:[%s7 + $0x500] sm:$0xff]
        %v9284 = vld [vmem:[%s7 + $0x508] sm:$0xff]
        %v9285 = vld [vmem:[%s7 + $0x510] sm:$0xff]
        %v9286 = vld [vmem:[%s7 + $0x518] sm:$0xff]
        %v9287 = vld [vmem:[%s7 + $0x520] sm:$0xff]
        %v9288 = vld [vmem:[%s7 + $0x528] sm:$0xff]
        %v9289 = vld [vmem:[%s7 + $0x530] sm:$0xff]
        %v9290 = vld [vmem:[%s7 + $0x538] sm:$0xff]
        %v9291 = vld [vmem:[%s7 + $0x540] sm:$0xff]
        %v9292 = vld [vmem:[%s7 + $0x548] sm:$0xff]
        %v9293 = vld [vmem:[%s7 + $0x550] sm:$0xff]
        %v9294 = vld [vmem:[%s7 + $0x558] sm:$0xff]
        %v9295 = vld [vmem:[%s7 + $0x560] sm:$0xff]
        %v9296 = vld [vmem:[%s7 + $0x568] sm:$0xff]
        %v9297 = vld [vmem:[%s7 + $0x570] sm:$0xff]
        %v9298 = vld [vmem:[%s7 + $0x578] sm:$0xff]
        %v9299 = vld [vmem:[%s7 + $0x580] sm:$0xff]
        %v9300 = vld [vmem:[%s7 + $0x588] sm:$0xff]
        %v9301 = vld [vmem:[%s7 + $0x590] sm:$0xff]
        %v9302 = vld [vmem:[%s7 + $0x598] sm:$0xff]
        %v9303 = vld [vmem:[%s7 + $0x5a0] sm:$0xff]
        %v9304 = vld [vmem:[%s7 + $0x5a8] sm:$0xff]
        %v9305 = vld [vmem:[%s7 + $0x5b0] sm:$0xff]
        %v9306 = vld [vmem:[%s7 + $0x5b8] sm:$0xff]
        %v9307 = vld [vmem:[%s7 + $0x5c0] sm:$0xff]
        %v9308 = vld [vmem:[%s7 + $0x5c8] sm:$0xff]
        %v9309 = vld [vmem:[%s7 + $0x5d0] sm:$0xff]
        %v9310 = vld [vmem:[%s7 + $0x5d8] sm:$0xff]
        %v9311 = vld [vmem:[%s7 + $0x5e0] sm:$0xff]
        %v9312 = vld [vmem:[%s7 + $0x5e8] sm:$0xff]
        %v9313 = vld [vmem:[%s7 + $0x5f0] sm:$0xff]
        %v9314 = vld [vmem:[%s7 + $0x5f8] sm:$0xff]
        %v9315 = vld [vmem:[%s7 + $0x600] sm:$0xff]
        %v9316 = vld [vmem:[%s7 + $0x608] sm:$0xff]
        %v9317 = vld [vmem:[%s7 + $0x610] sm:$0xff]
        %v9318 = vld [vmem:[%s7 + $0x618] sm:$0xff]
        %v9319 = vld [vmem:[%s7 + $0x620] sm:$0xff]
        %v9320 = vld [vmem:[%s7 + $0x628] sm:$0xff]
        %v9321 = vld [vmem:[%s7 + $0x630] sm:$0xff]
        %v9322 = vld [vmem:[%s7 + $0x638] sm:$0xff]
        %v9323 = vld [vmem:[%s7 + $0x640] sm:$0xff]
        %v9324 = vld [vmem:[%s7 + $0x648] sm:$0xff]
        %v9325 = vld [vmem:[%s7 + $0x650] sm:$0xff]
        %v9326 = vld [vmem:[%s7 + $0x658] sm:$0xff]
        %v9327 = vld [vmem:[%s7 + $0x660] sm:$0xff]
        %v9328 = vld [vmem:[%s7 + $0x668] sm:$0xff]
        %v9329 = vld [vmem:[%s7 + $0x670] sm:$0xff]
        %v9330 = vld [vmem:[%s7 + $0x678] sm:$0xff]
        %v9331 = vld [vmem:[%s7 + $0x680] sm:$0xff]
        %v9332 = vld [vmem:[%s7 + $0x688] sm:$0xff]
        %v9333 = vld [vmem:[%s7 + $0x690] sm:$0xff]
        %v9334 = vld [vmem:[%s7 + $0x698] sm:$0xff]
        %v9335 = vld [vmem:[%s7 + $0x6a0] sm:$0xff]
        %v9336 = vld [vmem:[%s7 + $0x6a8] sm:$0xff]
        %v9337 = vld [vmem:[%s7 + $0x6b0] sm:$0xff]
        %v9338 = vld [vmem:[%s7 + $0x6b8] sm:$0xff]
        %v9339 = vld [vmem:[%s7 + $0x6c0] sm:$0xff]
        %v9340 = vld [vmem:[%s7 + $0x6c8] sm:$0xff]
        %v9341 = vld [vmem:[%s7 + $0x6d0] sm:$0xff]
        %v9342 = vld [vmem:[%s7 + $0x6d8] sm:$0xff]
        %v9343 = vld [vmem:[%s7 + $0x6e0] sm:$0xff]
        %v9344 = vld [vmem:[%s7 + $0x6e8] sm:$0xff]
        %v9345 = vld [vmem:[%s7 + $0x6f0] sm:$0xff]
        %v9346 = vld [vmem:[%s7 + $0x6f8] sm:$0xff]
        %v9347 = vld [vmem:[%s7 + $0x700] sm:$0xff]
        %v9348 = vld [vmem:[%s7 + $0x708] sm:$0xff]
        %v9349 = vld [vmem:[%s7 + $0x710] sm:$0xff]
        %v9350 = vld [vmem:[%s7 + $0x718] sm:$0xff]
        %v9351 = vld [vmem:[%s7 + $0x720] sm:$0xff]
        %v9352 = vld [vmem:[%s7 + $0x728] sm:$0xff]
        %v9353 = vld [vmem:[%s7 + $0x730] sm:$0xff]
        %v9354 = vld [vmem:[%s7 + $0x738] sm:$0xff]
        %v9355 = vld [vmem:[%s7 + $0x740] sm:$0xff]
        %v9356 = vld [vmem:[%s7 + $0x748] sm:$0xff]
        %v9357 = vld [vmem:[%s7 + $0x750] sm:$0xff]
        %v9358 = vld [vmem:[%s7 + $0x758] sm:$0xff]
        %v9359 = vld [vmem:[%s7 + $0x760] sm:$0xff]
        %v9360 = vld [vmem:[%s7 + $0x768] sm:$0xff]
        %v9361 = vld [vmem:[%s7 + $0x770] sm:$0xff]
        %v9362 = vld [vmem:[%s7 + $0x778] sm:$0xff]
        %v9363 = vld [vmem:[%s7 + $0x780] sm:$0xff]
        %v9364 = vld [vmem:[%s7 + $0x788] sm:$0xff]
        %v9365 = vld [vmem:[%s7 + $0x790] sm:$0xff]
        %v9366 = vld [vmem:[%s7 + $0x798] sm:$0xff]
        %v9367 = vld [vmem:[%s7 + $0x7a0] sm:$0xff]
        %v9368 = vld [vmem:[%s7 + $0x7a8] sm:$0xff]
        %v9369 = vld [vmem:[%s7 + $0x7b0] sm:$0xff]
        %v9370 = vld [vmem:[%s7 + $0x7b8] sm:$0xff]
        %v9371 = vld [vmem:[%s7 + $0x7c0] sm:$0xff]
        %v9372 = vld [vmem:[%s7 + $0x7c8] sm:$0xff]
        %v9373 = vld [vmem:[%s7 + $0x7d0] sm:$0xff]
        %v9374 = vld [vmem:[%s7 + $0x7d8] sm:$0xff]
        %v9375 = vld [vmem:[%s7 + $0x7e0] sm:$0xff]
        %v9376 = vld [vmem:[%s7 + $0x7e8] sm:$0xff]
        %v9377 = vld [vmem:[%s7 + $0x7f0] sm:$0xff]
        %v9378 = vld [vmem:[%s7 + $0x7f8] sm:$0xff]
        %v9379 = vld [vmem:[%s8] sm:$0xf]
        %v9636 = vunpack.c.l.b16 %v9123
        %v9637 = vunpack.c.h.b16 %v9123
        %v9638 = vunpack.c.l.b16 %v9124
        %v9639 = vunpack.c.h.b16 %v9124
        %v9640 = vunpack.c.l.b16 %v9125
        %v9641 = vunpack.c.h.b16 %v9125
        %v9642 = vunpack.c.l.b16 %v9126
        %v9643 = vunpack.c.h.b16 %v9126
        %v9644 = vunpack.c.l.b16 %v9127
        %v9645 = vunpack.c.h.b16 %v9127
        %v9646 = vunpack.c.l.b16 %v9128
        %v9647 = vunpack.c.h.b16 %v9128
        %v9648 = vunpack.c.l.b16 %v9129
        %v9649 = vunpack.c.h.b16 %v9129
        %v9650 = vunpack.c.l.b16 %v9130
        %v9651 = vunpack.c.h.b16 %v9130
        %v9652 = vunpack.c.l.b16 %v9131
        %v9653 = vunpack.c.h.b16 %v9131
        %v9654 = vunpack.c.l.b16 %v9132
        %v9655 = vunpack.c.h.b16 %v9132
        %v9656 = vunpack.c.l.b16 %v9133
        %v9657 = vunpack.c.h.b16 %v9133
        %v9658 = vunpack.c.l.b16 %v9134
        %v9659 = vunpack.c.h.b16 %v9134
        %v9660 = vunpack.c.l.b16 %v9135
        %v9661 = vunpack.c.h.b16 %v9135
        %v9662 = vunpack.c.l.b16 %v9136
        %v9663 = vunpack.c.h.b16 %v9136
        %v9664 = vunpack.c.l.b16 %v9137
        %v9665 = vunpack.c.h.b16 %v9137
        %v9666 = vunpack.c.l.b16 %v9138
        %v9667 = vunpack.c.h.b16 %v9138
        %v9668 = vunpack.c.l.b16 %v9139
        %v9669 = vunpack.c.h.b16 %v9139
        %v9670 = vunpack.c.l.b16 %v9140
        %v9671 = vunpack.c.h.b16 %v9140
        %v9672 = vunpack.c.l.b16 %v9141
        %v9673 = vunpack.c.h.b16 %v9141
        %v9674 = vunpack.c.l.b16 %v9142
        %v9675 = vunpack.c.h.b16 %v9142
        %v9676 = vunpack.c.l.b16 %v9143
        %v9677 = vunpack.c.h.b16 %v9143
        %v9678 = vunpack.c.l.b16 %v9144
        %v9679 = vunpack.c.h.b16 %v9144
        %v9680 = vunpack.c.l.b16 %v9145
        %v9681 = vunpack.c.h.b16 %v9145
        %v9682 = vunpack.c.l.b16 %v9146
        %v9683 = vunpack.c.h.b16 %v9146
        %v9684 = vunpack.c.l.b16 %v9147
        %v9685 = vunpack.c.h.b16 %v9147
        %v9686 = vunpack.c.l.b16 %v9148
        %v9687 = vunpack.c.h.b16 %v9148
        %v9688 = vunpack.c.l.b16 %v9149
        %v9689 = vunpack.c.h.b16 %v9149
        %v9690 = vunpack.c.l.b16 %v9150
        %v9691 = vunpack.c.h.b16 %v9150
        %v9692 = vunpack.c.l.b16 %v9151
        %v9693 = vunpack.c.h.b16 %v9151
        %v9694 = vunpack.c.l.b16 %v9152
        %v9695 = vunpack.c.h.b16 %v9152
        %v9696 = vunpack.c.l.b16 %v9153
        %v9697 = vunpack.c.h.b16 %v9153
        %v9698 = vunpack.c.l.b16 %v9154
        %v9699 = vunpack.c.h.b16 %v9154
        %v9700 = vunpack.c.l.b16 %v9155
        %v9701 = vunpack.c.h.b16 %v9155
        %v9702 = vunpack.c.l.b16 %v9156
        %v9703 = vunpack.c.h.b16 %v9156
        %v9704 = vunpack.c.l.b16 %v9157
        %v9705 = vunpack.c.h.b16 %v9157
        %v9706 = vunpack.c.l.b16 %v9158
        %v9707 = vunpack.c.h.b16 %v9158
        %v9708 = vunpack.c.l.b16 %v9159
        %v9709 = vunpack.c.h.b16 %v9159
        %v9710 = vunpack.c.l.b16 %v9160
        %v9711 = vunpack.c.h.b16 %v9160
        %v9712 = vunpack.c.l.b16 %v9161
        %v9713 = vunpack.c.h.b16 %v9161
        %v9714 = vunpack.c.l.b16 %v9162
        %v9715 = vunpack.c.h.b16 %v9162
        %v9716 = vunpack.c.l.b16 %v9163
        %v9717 = vunpack.c.h.b16 %v9163
        %v9718 = vunpack.c.l.b16 %v9164
        %v9719 = vunpack.c.h.b16 %v9164
        %v9720 = vunpack.c.l.b16 %v9165
        %v9721 = vunpack.c.h.b16 %v9165
        %v9722 = vunpack.c.l.b16 %v9166
        %v9723 = vunpack.c.h.b16 %v9166
        %v9724 = vunpack.c.l.b16 %v9167
        %v9725 = vunpack.c.h.b16 %v9167
        %v9726 = vunpack.c.l.b16 %v9168
        %v9727 = vunpack.c.h.b16 %v9168
        %v9728 = vunpack.c.l.b16 %v9169
        %v9729 = vunpack.c.h.b16 %v9169
        %v9730 = vunpack.c.l.b16 %v9170
        %v9731 = vunpack.c.h.b16 %v9170
        %v9732 = vunpack.c.l.b16 %v9171
        %v9733 = vunpack.c.h.b16 %v9171
        %v9734 = vunpack.c.l.b16 %v9172
        %v9735 = vunpack.c.h.b16 %v9172
        %v9736 = vunpack.c.l.b16 %v9173
        %v9737 = vunpack.c.h.b16 %v9173
        %v9738 = vunpack.c.l.b16 %v9174
        %v9739 = vunpack.c.h.b16 %v9174
        %v9740 = vunpack.c.l.b16 %v9175
        %v9741 = vunpack.c.h.b16 %v9175
        %v9742 = vunpack.c.l.b16 %v9176
        %v9743 = vunpack.c.h.b16 %v9176
        %v9744 = vunpack.c.l.b16 %v9177
        %v9745 = vunpack.c.h.b16 %v9177
        %v9746 = vunpack.c.l.b16 %v9178
        %v9747 = vunpack.c.h.b16 %v9178
        %v9748 = vunpack.c.l.b16 %v9179
        %v9749 = vunpack.c.h.b16 %v9179
        %v9750 = vunpack.c.l.b16 %v9180
        %v9751 = vunpack.c.h.b16 %v9180
        %v9752 = vunpack.c.l.b16 %v9181
        %v9753 = vunpack.c.h.b16 %v9181
        %v9754 = vunpack.c.l.b16 %v9182
        %v9755 = vunpack.c.h.b16 %v9182
        %v9756 = vunpack.c.l.b16 %v9183
        %v9757 = vunpack.c.h.b16 %v9183
        %v9758 = vunpack.c.l.b16 %v9184
        %v9759 = vunpack.c.h.b16 %v9184
        %v9760 = vunpack.c.l.b16 %v9185
        %v9761 = vunpack.c.h.b16 %v9185
        %v9762 = vunpack.c.l.b16 %v9186
        %v9763 = vunpack.c.h.b16 %v9186
        %v9764 = vunpack.c.l.b16 %v9187
        %v9765 = vunpack.c.h.b16 %v9187
        %v9766 = vunpack.c.l.b16 %v9188
        %v9767 = vunpack.c.h.b16 %v9188
        %v9768 = vunpack.c.l.b16 %v9189
        %v9769 = vunpack.c.h.b16 %v9189
        %v9770 = vunpack.c.l.b16 %v9190
        %v9771 = vunpack.c.h.b16 %v9190
        %v9772 = vunpack.c.l.b16 %v9191
        %v9773 = vunpack.c.h.b16 %v9191
        %v9774 = vunpack.c.l.b16 %v9192
        %v9775 = vunpack.c.h.b16 %v9192
        %v9776 = vunpack.c.l.b16 %v9193
        %v9777 = vunpack.c.h.b16 %v9193
        %v9778 = vunpack.c.l.b16 %v9194
        %v9779 = vunpack.c.h.b16 %v9194
        %v9780 = vunpack.c.l.b16 %v9195
        %v9781 = vunpack.c.h.b16 %v9195
        %v9782 = vunpack.c.l.b16 %v9196
        %v9783 = vunpack.c.h.b16 %v9196
        %v9784 = vunpack.c.l.b16 %v9197
        %v9785 = vunpack.c.h.b16 %v9197
        %v9786 = vunpack.c.l.b16 %v9198
        %v9787 = vunpack.c.h.b16 %v9198
        %v9788 = vunpack.c.l.b16 %v9199
        %v9789 = vunpack.c.h.b16 %v9199
        %v9790 = vunpack.c.l.b16 %v9200
        %v9791 = vunpack.c.h.b16 %v9200
        %v9792 = vunpack.c.l.b16 %v9201
        %v9793 = vunpack.c.h.b16 %v9201
        %v9794 = vunpack.c.l.b16 %v9202
        %v9795 = vunpack.c.h.b16 %v9202
        %v9796 = vunpack.c.l.b16 %v9203
        %v9797 = vunpack.c.h.b16 %v9203
        %v9798 = vunpack.c.l.b16 %v9204
        %v9799 = vunpack.c.h.b16 %v9204
        %v9800 = vunpack.c.l.b16 %v9205
        %v9801 = vunpack.c.h.b16 %v9205
        %v9802 = vunpack.c.l.b16 %v9206
        %v9803 = vunpack.c.h.b16 %v9206
        %v9804 = vunpack.c.l.b16 %v9207
        %v9805 = vunpack.c.h.b16 %v9207
        %v9806 = vunpack.c.l.b16 %v9208
        %v9807 = vunpack.c.h.b16 %v9208
        %v9808 = vunpack.c.l.b16 %v9209
        %v9809 = vunpack.c.h.b16 %v9209
        %v9810 = vunpack.c.l.b16 %v9210
        %v9811 = vunpack.c.h.b16 %v9210
        %v9812 = vunpack.c.l.b16 %v9211
        %v9813 = vunpack.c.h.b16 %v9211
        %v9814 = vunpack.c.l.b16 %v9212
        %v9815 = vunpack.c.h.b16 %v9212
        %v9816 = vunpack.c.l.b16 %v9213
        %v9817 = vunpack.c.h.b16 %v9213
        %v9818 = vunpack.c.l.b16 %v9214
        %v9819 = vunpack.c.h.b16 %v9214
        %v9820 = vunpack.c.l.b16 %v9215
        %v9821 = vunpack.c.h.b16 %v9215
        %v9822 = vunpack.c.l.b16 %v9216
        %v9823 = vunpack.c.h.b16 %v9216
        %v9824 = vunpack.c.l.b16 %v9217
        %v9825 = vunpack.c.h.b16 %v9217
        %v9826 = vunpack.c.l.b16 %v9218
        %v9827 = vunpack.c.h.b16 %v9218
        %v9828 = vunpack.c.l.b16 %v9219
        %v9829 = vunpack.c.h.b16 %v9219
        %v9830 = vunpack.c.l.b16 %v9220
        %v9831 = vunpack.c.h.b16 %v9220
        %v9832 = vunpack.c.l.b16 %v9221
        %v9833 = vunpack.c.h.b16 %v9221
        %v9834 = vunpack.c.l.b16 %v9222
        %v9835 = vunpack.c.h.b16 %v9222
        %v9836 = vunpack.c.l.b16 %v9223
        %v9837 = vunpack.c.h.b16 %v9223
        %v9838 = vunpack.c.l.b16 %v9224
        %v9839 = vunpack.c.h.b16 %v9224
        %v9840 = vunpack.c.l.b16 %v9225
        %v9841 = vunpack.c.h.b16 %v9225
        %v9842 = vunpack.c.l.b16 %v9226
        %v9843 = vunpack.c.h.b16 %v9226
        %v9844 = vunpack.c.l.b16 %v9227
        %v9845 = vunpack.c.h.b16 %v9227
        %v9846 = vunpack.c.l.b16 %v9228
        %v9847 = vunpack.c.h.b16 %v9228
        %v9848 = vunpack.c.l.b16 %v9229
        %v9849 = vunpack.c.h.b16 %v9229
        %v9850 = vunpack.c.l.b16 %v9230
        %v9851 = vunpack.c.h.b16 %v9230
        %v9852 = vunpack.c.l.b16 %v9231
        %v9853 = vunpack.c.h.b16 %v9231
        %v9854 = vunpack.c.l.b16 %v9232
        %v9855 = vunpack.c.h.b16 %v9232
        %v9856 = vunpack.c.l.b16 %v9233
        %v9857 = vunpack.c.h.b16 %v9233
        %v9858 = vunpack.c.l.b16 %v9234
        %v9859 = vunpack.c.h.b16 %v9234
        %v9860 = vunpack.c.l.b16 %v9235
        %v9861 = vunpack.c.h.b16 %v9235
        %v9862 = vunpack.c.l.b16 %v9236
        %v9863 = vunpack.c.h.b16 %v9236
        %v9864 = vunpack.c.l.b16 %v9237
        %v9865 = vunpack.c.h.b16 %v9237
        %v9866 = vunpack.c.l.b16 %v9238
        %v9867 = vunpack.c.h.b16 %v9238
        %v9868 = vunpack.c.l.b16 %v9239
        %v9869 = vunpack.c.h.b16 %v9239
        %v9870 = vunpack.c.l.b16 %v9240
        %v9871 = vunpack.c.h.b16 %v9240
        %v9872 = vunpack.c.l.b16 %v9241
        %v9873 = vunpack.c.h.b16 %v9241
        %v9874 = vunpack.c.l.b16 %v9242
        %v9875 = vunpack.c.h.b16 %v9242
        %v9876 = vunpack.c.l.b16 %v9243
        %v9877 = vunpack.c.h.b16 %v9243
        %v9878 = vunpack.c.l.b16 %v9244
        %v9879 = vunpack.c.h.b16 %v9244
        %v9880 = vunpack.c.l.b16 %v9245
        %v9881 = vunpack.c.h.b16 %v9245
        %v9882 = vunpack.c.l.b16 %v9246
        %v9883 = vunpack.c.h.b16 %v9246
        %v9884 = vunpack.c.l.b16 %v9247
        %v9885 = vunpack.c.h.b16 %v9247
        %v9886 = vunpack.c.l.b16 %v9248
        %v9887 = vunpack.c.h.b16 %v9248
        %v9888 = vunpack.c.l.b16 %v9249
        %v9889 = vunpack.c.h.b16 %v9249
        %v9890 = vunpack.c.l.b16 %v9250
        %v9891 = vunpack.c.h.b16 %v9250
        %v9892 = vunpack.c.l.b16 %v9251
        %v9893 = vunpack.c.h.b16 %v9251
        %v9894 = vunpack.c.l.b16 %v9252
        %v9895 = vunpack.c.h.b16 %v9252
        %v9896 = vunpack.c.l.b16 %v9253
        %v9897 = vunpack.c.h.b16 %v9253
        %v9898 = vunpack.c.l.b16 %v9254
        %v9899 = vunpack.c.h.b16 %v9254
        %v9900 = vunpack.c.l.b16 %v9255
        %v9901 = vunpack.c.h.b16 %v9255
        %v9902 = vunpack.c.l.b16 %v9256
        %v9903 = vunpack.c.h.b16 %v9256
        %v9904 = vunpack.c.l.b16 %v9257
        %v9905 = vunpack.c.h.b16 %v9257
        %v9906 = vunpack.c.l.b16 %v9258
        %v9907 = vunpack.c.h.b16 %v9258
        %v9908 = vunpack.c.l.b16 %v9259
        %v9909 = vunpack.c.h.b16 %v9259
        %v9910 = vunpack.c.l.b16 %v9260
        %v9911 = vunpack.c.h.b16 %v9260
        %v9912 = vunpack.c.l.b16 %v9261
        %v9913 = vunpack.c.h.b16 %v9261
        %v9914 = vunpack.c.l.b16 %v9262
        %v9915 = vunpack.c.h.b16 %v9262
        %v9916 = vunpack.c.l.b16 %v9263
        %v9917 = vunpack.c.h.b16 %v9263
        %v9918 = vunpack.c.l.b16 %v9264
        %v9919 = vunpack.c.h.b16 %v9264
        %v9920 = vunpack.c.l.b16 %v9265
        %v9921 = vunpack.c.h.b16 %v9265
        %v9922 = vunpack.c.l.b16 %v9266
        %v9923 = vunpack.c.h.b16 %v9266
        %v9924 = vunpack.c.l.b16 %v9267
        %v9925 = vunpack.c.h.b16 %v9267
        %v9926 = vunpack.c.l.b16 %v9268
        %v9927 = vunpack.c.h.b16 %v9268
        %v9928 = vunpack.c.l.b16 %v9269
        %v9929 = vunpack.c.h.b16 %v9269
        %v9930 = vunpack.c.l.b16 %v9270
        %v9931 = vunpack.c.h.b16 %v9270
        %v9932 = vunpack.c.l.b16 %v9271
        %v9933 = vunpack.c.h.b16 %v9271
        %v9934 = vunpack.c.l.b16 %v9272
        %v9935 = vunpack.c.h.b16 %v9272
        %v9936 = vunpack.c.l.b16 %v9273
        %v9937 = vunpack.c.h.b16 %v9273
        %v9938 = vunpack.c.l.b16 %v9274
        %v9939 = vunpack.c.h.b16 %v9274
        %v9940 = vunpack.c.l.b16 %v9275
        %v9941 = vunpack.c.h.b16 %v9275
        %v9942 = vunpack.c.l.b16 %v9276
        %v9943 = vunpack.c.h.b16 %v9276
        %v9944 = vunpack.c.l.b16 %v9277
        %v9945 = vunpack.c.h.b16 %v9277
        %v9946 = vunpack.c.l.b16 %v9278
        %v9947 = vunpack.c.h.b16 %v9278
        %v9948 = vunpack.c.l.b16 %v9279
        %v9949 = vunpack.c.h.b16 %v9279
        %v9950 = vunpack.c.l.b16 %v9280
        %v9951 = vunpack.c.h.b16 %v9280
        %v9952 = vunpack.c.l.b16 %v9281
        %v9953 = vunpack.c.h.b16 %v9281
        %v9954 = vunpack.c.l.b16 %v9282
        %v9955 = vunpack.c.h.b16 %v9282
        %v9956 = vunpack.c.l.b16 %v9283
        %v9957 = vunpack.c.h.b16 %v9283
        %v9958 = vunpack.c.l.b16 %v9284
        %v9959 = vunpack.c.h.b16 %v9284
        %v9960 = vunpack.c.l.b16 %v9285
        %v9961 = vunpack.c.h.b16 %v9285
        %v9962 = vunpack.c.l.b16 %v9286
        %v9963 = vunpack.c.h.b16 %v9286
        %v9964 = vunpack.c.l.b16 %v9287
        %v9965 = vunpack.c.h.b16 %v9287
        %v9966 = vunpack.c.l.b16 %v9288
        %v9967 = vunpack.c.h.b16 %v9288
        %v9968 = vunpack.c.l.b16 %v9289
        %v9969 = vunpack.c.h.b16 %v9289
        %v9970 = vunpack.c.l.b16 %v9290
        %v9971 = vunpack.c.h.b16 %v9290
        %v9972 = vunpack.c.l.b16 %v9291
        %v9973 = vunpack.c.h.b16 %v9291
        %v9974 = vunpack.c.l.b16 %v9292
        %v9975 = vunpack.c.h.b16 %v9292
        %v9976 = vunpack.c.l.b16 %v9293
        %v9977 = vunpack.c.h.b16 %v9293
        %v9978 = vunpack.c.l.b16 %v9294
        %v9979 = vunpack.c.h.b16 %v9294
        %v9980 = vunpack.c.l.b16 %v9295
        %v9981 = vunpack.c.h.b16 %v9295
        %v9982 = vunpack.c.l.b16 %v9296
        %v9983 = vunpack.c.h.b16 %v9296
        %v9984 = vunpack.c.l.b16 %v9297
        %v9985 = vunpack.c.h.b16 %v9297
        %v9986 = vunpack.c.l.b16 %v9298
        %v9987 = vunpack.c.h.b16 %v9298
        %v9988 = vunpack.c.l.b16 %v9299
        %v9989 = vunpack.c.h.b16 %v9299
        %v9990 = vunpack.c.l.b16 %v9300
        %v9991 = vunpack.c.h.b16 %v9300
        %v9992 = vunpack.c.l.b16 %v9301
        %v9993 = vunpack.c.h.b16 %v9301
        %v9994 = vunpack.c.l.b16 %v9302
        %v9995 = vunpack.c.h.b16 %v9302
        %v9996 = vunpack.c.l.b16 %v9303
        %v9997 = vunpack.c.h.b16 %v9303
        %v9998 = vunpack.c.l.b16 %v9304
        %v9999 = vunpack.c.h.b16 %v9304
        %v10000 = vunpack.c.l.b16 %v9305
        %v10001 = vunpack.c.h.b16 %v9305
        %v10002 = vunpack.c.l.b16 %v9306
        %v10003 = vunpack.c.h.b16 %v9306
        %v10004 = vunpack.c.l.b16 %v9307
        %v10005 = vunpack.c.h.b16 %v9307
        %v10006 = vunpack.c.l.b16 %v9308
        %v10007 = vunpack.c.h.b16 %v9308
        %v10008 = vunpack.c.l.b16 %v9309
        %v10009 = vunpack.c.h.b16 %v9309
        %v10010 = vunpack.c.l.b16 %v9310
        %v10011 = vunpack.c.h.b16 %v9310
        %v10012 = vunpack.c.l.b16 %v9311
        %v10013 = vunpack.c.h.b16 %v9311
        %v10014 = vunpack.c.l.b16 %v9312
        %v10015 = vunpack.c.h.b16 %v9312
        %v10016 = vunpack.c.l.b16 %v9313
        %v10017 = vunpack.c.h.b16 %v9313
        %v10018 = vunpack.c.l.b16 %v9314
        %v10019 = vunpack.c.h.b16 %v9314
        %v10020 = vunpack.c.l.b16 %v9315
        %v10021 = vunpack.c.h.b16 %v9315
        %v10022 = vunpack.c.l.b16 %v9316
        %v10023 = vunpack.c.h.b16 %v9316
        %v10024 = vunpack.c.l.b16 %v9317
        %v10025 = vunpack.c.h.b16 %v9317
        %v10026 = vunpack.c.l.b16 %v9318
        %v10027 = vunpack.c.h.b16 %v9318
        %v10028 = vunpack.c.l.b16 %v9319
        %v10029 = vunpack.c.h.b16 %v9319
        %v10030 = vunpack.c.l.b16 %v9320
        %v10031 = vunpack.c.h.b16 %v9320
        %v10032 = vunpack.c.l.b16 %v9321
        %v10033 = vunpack.c.h.b16 %v9321
        %v10034 = vunpack.c.l.b16 %v9322
        %v10035 = vunpack.c.h.b16 %v9322
        %v10036 = vunpack.c.l.b16 %v9323
        %v10037 = vunpack.c.h.b16 %v9323
        %v10038 = vunpack.c.l.b16 %v9324
        %v10039 = vunpack.c.h.b16 %v9324
        %v10040 = vunpack.c.l.b16 %v9325
        %v10041 = vunpack.c.h.b16 %v9325
        %v10042 = vunpack.c.l.b16 %v9326
        %v10043 = vunpack.c.h.b16 %v9326
        %v10044 = vunpack.c.l.b16 %v9327
        %v10045 = vunpack.c.h.b16 %v9327
        %v10046 = vunpack.c.l.b16 %v9328
        %v10047 = vunpack.c.h.b16 %v9328
        %v10048 = vunpack.c.l.b16 %v9329
        %v10049 = vunpack.c.h.b16 %v9329
        %v10050 = vunpack.c.l.b16 %v9330
        %v10051 = vunpack.c.h.b16 %v9330
        %v10052 = vunpack.c.l.b16 %v9331
        %v10053 = vunpack.c.h.b16 %v9331
        %v10054 = vunpack.c.l.b16 %v9332
        %v10055 = vunpack.c.h.b16 %v9332
        %v10056 = vunpack.c.l.b16 %v9333
        %v10057 = vunpack.c.h.b16 %v9333
        %v10058 = vunpack.c.l.b16 %v9334
        %v10059 = vunpack.c.h.b16 %v9334
        %v10060 = vunpack.c.l.b16 %v9335
        %v10061 = vunpack.c.h.b16 %v9335
        %v10062 = vunpack.c.l.b16 %v9336
        %v10063 = vunpack.c.h.b16 %v9336
        %v10064 = vunpack.c.l.b16 %v9337
        %v10065 = vunpack.c.h.b16 %v9337
        %v10066 = vunpack.c.l.b16 %v9338
        %v10067 = vunpack.c.h.b16 %v9338
        %v10068 = vunpack.c.l.b16 %v9339
        %v10069 = vunpack.c.h.b16 %v9339
        %v10070 = vunpack.c.l.b16 %v9340
        %v10071 = vunpack.c.h.b16 %v9340
        %v10072 = vunpack.c.l.b16 %v9341
        %v10073 = vunpack.c.h.b16 %v9341
        %v10074 = vunpack.c.l.b16 %v9342
        %v10075 = vunpack.c.h.b16 %v9342
        %v10076 = vunpack.c.l.b16 %v9343
        %v10077 = vunpack.c.h.b16 %v9343
        %v10078 = vunpack.c.l.b16 %v9344
        %v10079 = vunpack.c.h.b16 %v9344
        %v10080 = vunpack.c.l.b16 %v9345
        %v10081 = vunpack.c.h.b16 %v9345
        %v10082 = vunpack.c.l.b16 %v9346
        %v10083 = vunpack.c.h.b16 %v9346
        %v10084 = vunpack.c.l.b16 %v9347
        %v10085 = vunpack.c.h.b16 %v9347
        %v10086 = vunpack.c.l.b16 %v9348
        %v10087 = vunpack.c.h.b16 %v9348
        %v10088 = vunpack.c.l.b16 %v9349
        %v10089 = vunpack.c.h.b16 %v9349
        %v10090 = vunpack.c.l.b16 %v9350
        %v10091 = vunpack.c.h.b16 %v9350
        %v10092 = vunpack.c.l.b16 %v9351
        %v10093 = vunpack.c.h.b16 %v9351
        %v10094 = vunpack.c.l.b16 %v9352
        %v10095 = vunpack.c.h.b16 %v9352
        %v10096 = vunpack.c.l.b16 %v9353
        %v10097 = vunpack.c.h.b16 %v9353
        %v10098 = vunpack.c.l.b16 %v9354
        %v10099 = vunpack.c.h.b16 %v9354
        %v10100 = vunpack.c.l.b16 %v9355
        %v10101 = vunpack.c.h.b16 %v9355
        %v10102 = vunpack.c.l.b16 %v9356
        %v10103 = vunpack.c.h.b16 %v9356
        %v10104 = vunpack.c.l.b16 %v9357
        %v10105 = vunpack.c.h.b16 %v9357
        %v10106 = vunpack.c.l.b16 %v9358
        %v10107 = vunpack.c.h.b16 %v9358
        %v10108 = vunpack.c.l.b16 %v9359
        %v10109 = vunpack.c.h.b16 %v9359
        %v10110 = vunpack.c.l.b16 %v9360
        %v10111 = vunpack.c.h.b16 %v9360
        %v10112 = vunpack.c.l.b16 %v9361
        %v10113 = vunpack.c.h.b16 %v9361
        %v10114 = vunpack.c.l.b16 %v9362
        %v10115 = vunpack.c.h.b16 %v9362
        %v10116 = vunpack.c.l.b16 %v9363
        %v10117 = vunpack.c.h.b16 %v9363
        %v10118 = vunpack.c.l.b16 %v9364
        %v10119 = vunpack.c.h.b16 %v9364
        %v10120 = vunpack.c.l.b16 %v9365
        %v10121 = vunpack.c.h.b16 %v9365
        %v10122 = vunpack.c.l.b16 %v9366
        %v10123 = vunpack.c.h.b16 %v9366
        %v10124 = vunpack.c.l.b16 %v9367
        %v10125 = vunpack.c.h.b16 %v9367
        %v10126 = vunpack.c.l.b16 %v9368
        %v10127 = vunpack.c.h.b16 %v9368
        %v10128 = vunpack.c.l.b16 %v9369
        %v10129 = vunpack.c.h.b16 %v9369
        %v10130 = vunpack.c.l.b16 %v9370
        %v10131 = vunpack.c.h.b16 %v9370
        %v10132 = vunpack.c.l.b16 %v9371
        %v10133 = vunpack.c.h.b16 %v9371
        %v10134 = vunpack.c.l.b16 %v9372
        %v10135 = vunpack.c.h.b16 %v9372
        %v10136 = vunpack.c.l.b16 %v9373
        %v10137 = vunpack.c.h.b16 %v9373
        %v10138 = vunpack.c.l.b16 %v9374
        %v10139 = vunpack.c.h.b16 %v9374
        %v10140 = vunpack.c.l.b16 %v9375
        %v10141 = vunpack.c.h.b16 %v9375
        %v10142 = vunpack.c.l.b16 %v9376
        %v10143 = vunpack.c.h.b16 %v9376
        %v10144 = vunpack.c.l.b16 %v9377
        %v10145 = vunpack.c.h.b16 %v9377
        %v10146 = vunpack.c.l.b16 %v9378
        %v10147 = vunpack.c.h.b16 %v9378
        %v10148 = vpack.c.b16 %v9640, %v9636
        %v10149 = vpack.c.b16 %v9641, %v9637
        %v10150 = vpack.c.b16 %v9642, %v9638
        %v10151 = vpack.c.b16 %v9643, %v9639
        %v10152 = vpack.c.b16 %v9648, %v9644
        %v10153 = vpack.c.b16 %v9649, %v9645
        %v10154 = vpack.c.b16 %v9650, %v9646
        %v10155 = vpack.c.b16 %v9651, %v9647
        %v10156 = vpack.c.b16 %v9656, %v9652
        %v10157 = vpack.c.b16 %v9657, %v9653
        %v10158 = vpack.c.b16 %v9658, %v9654
        %v10159 = vpack.c.b16 %v9659, %v9655
        %v10160 = vpack.c.b16 %v9664, %v9660
        %v10161 = vpack.c.b16 %v9665, %v9661
        %v10162 = vpack.c.b16 %v9666, %v9662
        %v10163 = vpack.c.b16 %v9667, %v9663
        %v10164 = vpack.c.b16 %v9672, %v9668
        %v10165 = vpack.c.b16 %v9673, %v9669
        %v10166 = vpack.c.b16 %v9674, %v9670
        %v10167 = vpack.c.b16 %v9675, %v9671
        %v10168 = vpack.c.b16 %v9680, %v9676
        %v10169 = vpack.c.b16 %v9681, %v9677
        %v10170 = vpack.c.b16 %v9682, %v9678
        %v10171 = vpack.c.b16 %v9683, %v9679
        %v10172 = vpack.c.b16 %v9688, %v9684
        %v10173 = vpack.c.b16 %v9689, %v9685
        %v10174 = vpack.c.b16 %v9690, %v9686
        %v10175 = vpack.c.b16 %v9691, %v9687
        %v10176 = vpack.c.b16 %v9696, %v9692
        %v10177 = vpack.c.b16 %v9697, %v9693
        %v10178 = vpack.c.b16 %v9698, %v9694
        %v10179 = vpack.c.b16 %v9699, %v9695
        %v10180 = vpack.c.b16 %v9704, %v9700
        %v10181 = vpack.c.b16 %v9705, %v9701
        %v10182 = vpack.c.b16 %v9706, %v9702
        %v10183 = vpack.c.b16 %v9707, %v9703
        %v10184 = vpack.c.b16 %v9712, %v9708
        %v10185 = vpack.c.b16 %v9713, %v9709
        %v10186 = vpack.c.b16 %v9714, %v9710
        %v10187 = vpack.c.b16 %v9715, %v9711
        %v10188 = vpack.c.b16 %v9720, %v9716
        %v10189 = vpack.c.b16 %v9721, %v9717
        %v10190 = vpack.c.b16 %v9722, %v9718
        %v10191 = vpack.c.b16 %v9723, %v9719
        %v10192 = vpack.c.b16 %v9728, %v9724
        %v10193 = vpack.c.b16 %v9729, %v9725
        %v10194 = vpack.c.b16 %v9730, %v9726
        %v10195 = vpack.c.b16 %v9731, %v9727
        %v10196 = vpack.c.b16 %v9736, %v9732
        %v10197 = vpack.c.b16 %v9737, %v9733
        %v10198 = vpack.c.b16 %v9738, %v9734
        %v10199 = vpack.c.b16 %v9739, %v9735
        %v10200 = vpack.c.b16 %v9744, %v9740
        %v10201 = vpack.c.b16 %v9745, %v9741
        %v10202 = vpack.c.b16 %v9746, %v9742
        %v10203 = vpack.c.b16 %v9747, %v9743
        %v10204 = vpack.c.b16 %v9752, %v9748
        %v10205 = vpack.c.b16 %v9753, %v9749
        %v10206 = vpack.c.b16 %v9754, %v9750
        %v10207 = vpack.c.b16 %v9755, %v9751
        %v10208 = vpack.c.b16 %v9760, %v9756
        %v10209 = vpack.c.b16 %v9761, %v9757
        %v10210 = vpack.c.b16 %v9762, %v9758
        %v10211 = vpack.c.b16 %v9763, %v9759
        %v10212 = vpack.c.b16 %v9768, %v9764
        %v10213 = vpack.c.b16 %v9769, %v9765
        %v10214 = vpack.c.b16 %v9770, %v9766
        %v10215 = vpack.c.b16 %v9771, %v9767
        %v10216 = vpack.c.b16 %v9776, %v9772
        %v10217 = vpack.c.b16 %v9777, %v9773
        %v10218 = vpack.c.b16 %v9778, %v9774
        %v10219 = vpack.c.b16 %v9779, %v9775
        %v10220 = vpack.c.b16 %v9784, %v9780
        %v10221 = vpack.c.b16 %v9785, %v9781
        %v10222 = vpack.c.b16 %v9786, %v9782
        %v10223 = vpack.c.b16 %v9787, %v9783
        %v10224 = vpack.c.b16 %v9792, %v9788
        %v10225 = vpack.c.b16 %v9793, %v9789
        %v10226 = vpack.c.b16 %v9794, %v9790
        %v10227 = vpack.c.b16 %v9795, %v9791
        %v10228 = vpack.c.b16 %v9800, %v9796
        %v10229 = vpack.c.b16 %v9801, %v9797
        %v10230 = vpack.c.b16 %v9802, %v9798
        %v10231 = vpack.c.b16 %v9803, %v9799
        %v10232 = vpack.c.b16 %v9808, %v9804
        %v10233 = vpack.c.b16 %v9809, %v9805
        %v10234 = vpack.c.b16 %v9810, %v9806
        %v10235 = vpack.c.b16 %v9811, %v9807
        %v10236 = vpack.c.b16 %v9816, %v9812
        %v10237 = vpack.c.b16 %v9817, %v9813
        %v10238 = vpack.c.b16 %v9818, %v9814
        %v10239 = vpack.c.b16 %v9819, %v9815
        %v10240 = vpack.c.b16 %v9824, %v9820
        %v10241 = vpack.c.b16 %v9825, %v9821
        %v10242 = vpack.c.b16 %v9826, %v9822
        %v10243 = vpack.c.b16 %v9827, %v9823
        %v10244 = vpack.c.b16 %v9832, %v9828
        %v10245 = vpack.c.b16 %v9833, %v9829
        %v10246 = vpack.c.b16 %v9834, %v9830
        %v10247 = vpack.c.b16 %v9835, %v9831
        %v10248 = vpack.c.b16 %v9840, %v9836
        %v10249 = vpack.c.b16 %v9841, %v9837
        %v10250 = vpack.c.b16 %v9842, %v9838
        %v10251 = vpack.c.b16 %v9843, %v9839
        %v10252 = vpack.c.b16 %v9848, %v9844
        %v10253 = vpack.c.b16 %v9849, %v9845
        %v10254 = vpack.c.b16 %v9850, %v9846
        %v10255 = vpack.c.b16 %v9851, %v9847
        %v10256 = vpack.c.b16 %v9856, %v9852
        %v10257 = vpack.c.b16 %v9857, %v9853
        %v10258 = vpack.c.b16 %v9858, %v9854
        %v10259 = vpack.c.b16 %v9859, %v9855
        %v10260 = vpack.c.b16 %v9864, %v9860
        %v10261 = vpack.c.b16 %v9865, %v9861
        %v10262 = vpack.c.b16 %v9866, %v9862
        %v10263 = vpack.c.b16 %v9867, %v9863
        %v10264 = vpack.c.b16 %v9872, %v9868
        %v10265 = vpack.c.b16 %v9873, %v9869
        %v10266 = vpack.c.b16 %v9874, %v9870
        %v10267 = vpack.c.b16 %v9875, %v9871
        %v10268 = vpack.c.b16 %v9880, %v9876
        %v10269 = vpack.c.b16 %v9881, %v9877
        %v10270 = vpack.c.b16 %v9882, %v9878
        %v10271 = vpack.c.b16 %v9883, %v9879
        %v10272 = vpack.c.b16 %v9888, %v9884
        %v10273 = vpack.c.b16 %v9889, %v9885
        %v10274 = vpack.c.b16 %v9890, %v9886
        %v10275 = vpack.c.b16 %v9891, %v9887
        %v10276 = vpack.c.b16 %v9896, %v9892
        %v10277 = vpack.c.b16 %v9897, %v9893
        %v10278 = vpack.c.b16 %v9898, %v9894
        %v10279 = vpack.c.b16 %v9899, %v9895
        %v10280 = vpack.c.b16 %v9904, %v9900
        %v10281 = vpack.c.b16 %v9905, %v9901
        %v10282 = vpack.c.b16 %v9906, %v9902
        %v10283 = vpack.c.b16 %v9907, %v9903
        %v10284 = vpack.c.b16 %v9912, %v9908
        %v10285 = vpack.c.b16 %v9913, %v9909
        %v10286 = vpack.c.b16 %v9914, %v9910
        %v10287 = vpack.c.b16 %v9915, %v9911
        %v10288 = vpack.c.b16 %v9920, %v9916
        %v10289 = vpack.c.b16 %v9921, %v9917
        %v10290 = vpack.c.b16 %v9922, %v9918
        %v10291 = vpack.c.b16 %v9923, %v9919
        %v10292 = vpack.c.b16 %v9928, %v9924
        %v10293 = vpack.c.b16 %v9929, %v9925
        %v10294 = vpack.c.b16 %v9930, %v9926
        %v10295 = vpack.c.b16 %v9931, %v9927
        %v10296 = vpack.c.b16 %v9936, %v9932
        %v10297 = vpack.c.b16 %v9937, %v9933
        %v10298 = vpack.c.b16 %v9938, %v9934
        %v10299 = vpack.c.b16 %v9939, %v9935
        %v10300 = vpack.c.b16 %v9944, %v9940
        %v10301 = vpack.c.b16 %v9945, %v9941
        %v10302 = vpack.c.b16 %v9946, %v9942
        %v10303 = vpack.c.b16 %v9947, %v9943
        %v10304 = vpack.c.b16 %v9952, %v9948
        %v10305 = vpack.c.b16 %v9953, %v9949
        %v10306 = vpack.c.b16 %v9954, %v9950
        %v10307 = vpack.c.b16 %v9955, %v9951
        %v10308 = vpack.c.b16 %v9960, %v9956
        %v10309 = vpack.c.b16 %v9961, %v9957
        %v10310 = vpack.c.b16 %v9962, %v9958
        %v10311 = vpack.c.b16 %v9963, %v9959
        %v10312 = vpack.c.b16 %v9968, %v9964
        %v10313 = vpack.c.b16 %v9969, %v9965
        %v10314 = vpack.c.b16 %v9970, %v9966
        %v10315 = vpack.c.b16 %v9971, %v9967
        %v10316 = vpack.c.b16 %v9976, %v9972
        %v10317 = vpack.c.b16 %v9977, %v9973
        %v10318 = vpack.c.b16 %v9978, %v9974
        %v10319 = vpack.c.b16 %v9979, %v9975
        %v10320 = vpack.c.b16 %v9984, %v9980
        %v10321 = vpack.c.b16 %v9985, %v9981
        %v10322 = vpack.c.b16 %v9986, %v9982
        %v10323 = vpack.c.b16 %v9987, %v9983
        %v10324 = vpack.c.b16 %v9992, %v9988
        %v10325 = vpack.c.b16 %v9993, %v9989
        %v10326 = vpack.c.b16 %v9994, %v9990
        %v10327 = vpack.c.b16 %v9995, %v9991
        %v10328 = vpack.c.b16 %v10000, %v9996
        %v10329 = vpack.c.b16 %v10001, %v9997
        %v10330 = vpack.c.b16 %v10002, %v9998
        %v10331 = vpack.c.b16 %v10003, %v9999
        %v10332 = vpack.c.b16 %v10008, %v10004
        %v10333 = vpack.c.b16 %v10009, %v10005
        %v10334 = vpack.c.b16 %v10010, %v10006
        %v10335 = vpack.c.b16 %v10011, %v10007
        %v10336 = vpack.c.b16 %v10016, %v10012
        %v10337 = vpack.c.b16 %v10017, %v10013
        %v10338 = vpack.c.b16 %v10018, %v10014
        %v10339 = vpack.c.b16 %v10019, %v10015
        %v10340 = vpack.c.b16 %v10024, %v10020
        %v10341 = vpack.c.b16 %v10025, %v10021
        %v10342 = vpack.c.b16 %v10026, %v10022
        %v10343 = vpack.c.b16 %v10027, %v10023
        %v10344 = vpack.c.b16 %v10032, %v10028
        %v10345 = vpack.c.b16 %v10033, %v10029
        %v10346 = vpack.c.b16 %v10034, %v10030
        %v10347 = vpack.c.b16 %v10035, %v10031
        %v10348 = vpack.c.b16 %v10040, %v10036
        %v10349 = vpack.c.b16 %v10041, %v10037
        %v10350 = vpack.c.b16 %v10042, %v10038
        %v10351 = vpack.c.b16 %v10043, %v10039
        %v10352 = vpack.c.b16 %v10048, %v10044
        %v10353 = vpack.c.b16 %v10049, %v10045
        %v10354 = vpack.c.b16 %v10050, %v10046
        %v10355 = vpack.c.b16 %v10051, %v10047
        %v10356 = vpack.c.b16 %v10056, %v10052
        %v10357 = vpack.c.b16 %v10057, %v10053
        %v10358 = vpack.c.b16 %v10058, %v10054
        %v10359 = vpack.c.b16 %v10059, %v10055
        %v10360 = vpack.c.b16 %v10064, %v10060
        %v10361 = vpack.c.b16 %v10065, %v10061
        %v10362 = vpack.c.b16 %v10066, %v10062
        %v10363 = vpack.c.b16 %v10067, %v10063
        %v10364 = vpack.c.b16 %v10072, %v10068
        %v10365 = vpack.c.b16 %v10073, %v10069
        %v10366 = vpack.c.b16 %v10074, %v10070
        %v10367 = vpack.c.b16 %v10075, %v10071
        %v10368 = vpack.c.b16 %v10080, %v10076
        %v10369 = vpack.c.b16 %v10081, %v10077
        %v10370 = vpack.c.b16 %v10082, %v10078
        %v10371 = vpack.c.b16 %v10083, %v10079
        %v10372 = vpack.c.b16 %v10088, %v10084
        %v10373 = vpack.c.b16 %v10089, %v10085
        %v10374 = vpack.c.b16 %v10090, %v10086
        %v10375 = vpack.c.b16 %v10091, %v10087
        %v10376 = vpack.c.b16 %v10096, %v10092
        %v10377 = vpack.c.b16 %v10097, %v10093
        %v10378 = vpack.c.b16 %v10098, %v10094
        %v10379 = vpack.c.b16 %v10099, %v10095
        %v10380 = vpack.c.b16 %v10104, %v10100
        %v10381 = vpack.c.b16 %v10105, %v10101
        %v10382 = vpack.c.b16 %v10106, %v10102
        %v10383 = vpack.c.b16 %v10107, %v10103
        %v10384 = vpack.c.b16 %v10112, %v10108
        %v10385 = vpack.c.b16 %v10113, %v10109
        %v10386 = vpack.c.b16 %v10114, %v10110
        %v10387 = vpack.c.b16 %v10115, %v10111
        %v10388 = vpack.c.b16 %v10120, %v10116
        %v10389 = vpack.c.b16 %v10121, %v10117
        %v10390 = vpack.c.b16 %v10122, %v10118
        %v10391 = vpack.c.b16 %v10123, %v10119
        %v10392 = vpack.c.b16 %v10128, %v10124
        %v10393 = vpack.c.b16 %v10129, %v10125
        %v10394 = vpack.c.b16 %v10130, %v10126
        %v10395 = vpack.c.b16 %v10131, %v10127
        %v10396 = vpack.c.b16 %v10136, %v10132
        %v10397 = vpack.c.b16 %v10137, %v10133
        %v10398 = vpack.c.b16 %v10138, %v10134
        %v10399 = vpack.c.b16 %v10139, %v10135
        %v10400 = vpack.c.b16 %v10144, %v10140
        %v10401 = vpack.c.b16 %v10145, %v10141
        %v10402 = vpack.c.b16 %v10146, %v10142
        %v10403 = vpack.c.b16 %v10147, %v10143
        %v10661 = vlaneseq
        %v10662 = vshrl.u32 %v10661, 7
        %v10663 = vsub.s32 0, %v10662
        %v10664 = vrot.slane %v9379, %v10663
        %v10665 = vlaneseq
        %v10666 = vshrl.u32 %v10665, 7
        %v10667 = vsub.s32 1, %v10666
        %v10668 = vrot.slane %v9379, %v10667
        %v10669 = vlaneseq
        %v10670 = vshrl.u32 %v10669, 7
        %v10671 = vsub.s32 2, %v10670
        %v10672 = vrot.slane %v9379, %v10671
        %v10673 = vlaneseq
        %v10674 = vshrl.u32 %v10673, 7
        %v10675 = vsub.s32 3, %v10674
        %v10676 = vrot.slane %v9379, %v10675
        %10681 = vmatprep.subr.bf16.mxu0 %v10177
        %10682 = vmatpush1.bf16.msra.mxu0 %v10176
        %10683 = vmatprep.subr.bf16.mxu0 %v10173
        %10684 = vmatpush1.bf16.msra.mxu0 %v10172
        %10685 = vmatprep.subr.bf16.mxu0 %v10169
        %10686 = vmatpush1.bf16.msra.mxu0 %v10168
        %10687 = vmatprep.subr.bf16.mxu0 %v10165
        %10688 = vmatpush1.bf16.msra.mxu0 %v10164
        %10689 = vmatprep.subr.bf16.mxu0 %v10161
        %10690 = vmatpush1.bf16.msra.mxu0 %v10160
        %10691 = vmatprep.subr.bf16.mxu0 %v10157
        %10692 = vmatpush1.bf16.msra.mxu0 %v10156
        %10693 = vmatprep.subr.bf16.mxu0 %v10153
        %10694 = vmatpush1.bf16.msra.mxu0 %v10152
        %10695 = vmatprep.subr.bf16.mxu0 %v10149
        %10696 = vmatpush1.bf16.msra.mxu0 %v10148
        %10697 = vmatprep.subr.bf16.mxu0 %v10209
        %10698 = vmatpush2.bf16.msra.mxu0 %v10208
        %10699 = vmatprep.subr.bf16.mxu0 %v10205
        %10700 = vmatpush2.bf16.msra.mxu0 %v10204
        %10701 = vmatprep.subr.bf16.mxu0 %v10201
        %10702 = vmatpush2.bf16.msra.mxu0 %v10200
        %10703 = vmatprep.subr.bf16.mxu0 %v10197
        %10704 = vmatpush2.bf16.msra.mxu0 %v10196
        %10705 = vmatprep.subr.bf16.mxu0 %v10193
        %10706 = vmatpush2.bf16.msra.mxu0 %v10192
        %10707 = vmatprep.subr.bf16.mxu0 %v10189
        %10708 = vmatpush2.bf16.msra.mxu0 %v10188
        %10709 = vmatprep.subr.bf16.mxu0 %v10185
        %10710 = vmatpush2.bf16.msra.mxu0 %v10184
        %10711 = vmatprep.subr.bf16.mxu0 %v10181
        %10712 = vmatpush2.bf16.msra.mxu0 %v10180
        %10713 = vmatprep.mubr.bf16.mxu0 %v9116
        %10714 = vmatmul.mubr.bf16.gmra.mxu0 %v9115
        %v10715 = vpop.f32.mrf.mxu0
        %v10716 = vadd.f32 %v10664, %v10715
        %v10717 = vpop.f32.mrf.mxu0
        %v10718 = vadd.f32 %v10668, %v10717
        %v10719 = vpop.f32.mrf.mxu0
        %v10720 = vpop.f32.mrf.mxu0
        %10721 = vdwg.mxu0
        %10722 = vmatprep.subr.bf16.mxu0 %v10241
        %10723 = vmatpush1.bf16.msra.mxu0 %v10240
        %10724 = vmatprep.subr.bf16.mxu0 %v10237
        %10725 = vmatpush1.bf16.msra.mxu0 %v10236
        %10726 = vmatprep.subr.bf16.mxu0 %v10233
        %10727 = vmatpush1.bf16.msra.mxu0 %v10232
        %10728 = vmatprep.subr.bf16.mxu0 %v10229
        %10729 = vmatpush1.bf16.msra.mxu0 %v10228
        %10730 = vmatprep.subr.bf16.mxu0 %v10225
        %10731 = vmatpush1.bf16.msra.mxu0 %v10224
        %10732 = vmatprep.subr.bf16.mxu0 %v10221
        %10733 = vmatpush1.bf16.msra.mxu0 %v10220
        %10734 = vmatprep.subr.bf16.mxu0 %v10217
        %10735 = vmatpush1.bf16.msra.mxu0 %v10216
        %10736 = vmatprep.subr.bf16.mxu0 %v10213
        %10737 = vmatpush1.bf16.msra.mxu0 %v10212
        %10738 = vmatprep.subr.bf16.mxu0 %v10273
        %10739 = vmatpush2.bf16.msra.mxu0 %v10272
        %10740 = vmatprep.subr.bf16.mxu0 %v10269
        %10741 = vmatpush2.bf16.msra.mxu0 %v10268
        %10742 = vmatprep.subr.bf16.mxu0 %v10265
        %10743 = vmatpush2.bf16.msra.mxu0 %v10264
        %10744 = vmatprep.subr.bf16.mxu0 %v10261
        %10745 = vmatpush2.bf16.msra.mxu0 %v10260
        %10746 = vmatprep.subr.bf16.mxu0 %v10257
        %10747 = vmatpush2.bf16.msra.mxu0 %v10256
        %10748 = vmatprep.subr.bf16.mxu0 %v10253
        %10749 = vmatpush2.bf16.msra.mxu0 %v10252
        %10750 = vmatprep.subr.bf16.mxu0 %v10249
        %10751 = vmatpush2.bf16.msra.mxu0 %v10248
        %10752 = vmatprep.subr.bf16.mxu0 %v10245
        %10753 = vmatpush2.bf16.msra.mxu0 %v10244
        %10754 = vmatprep.mubr.bf16.mxu0 %v9118
        %10755 = vmatmul.mubr.bf16.gmra.mxu0 %v9117
        %v10756 = vpop.f32.mrf.mxu0
        %v10757 = vadd.f32 %v10716, %v10756
        %v10758 = vpop.f32.mrf.mxu0
        %v10759 = vadd.f32 %v10718, %v10758
        %v10760 = vpop.f32.mrf.mxu0
        %v10761 = vpop.f32.mrf.mxu0
        %10762 = vdwg.mxu0
        %10763 = vmatprep.subr.bf16.mxu0 %v10305
        %10764 = vmatpush1.bf16.msra.mxu0 %v10304
        %10765 = vmatprep.subr.bf16.mxu0 %v10301
        %10766 = vmatpush1.bf16.msra.mxu0 %v10300
        %10767 = vmatprep.subr.bf16.mxu0 %v10297
        %10768 = vmatpush1.bf16.msra.mxu0 %v10296
        %10769 = vmatprep.subr.bf16.mxu0 %v10293
        %10770 = vmatpush1.bf16.msra.mxu0 %v10292
        %10771 = vmatprep.subr.bf16.mxu0 %v10289
        %10772 = vmatpush1.bf16.msra.mxu0 %v10288
        %10773 = vmatprep.subr.bf16.mxu0 %v10285
        %10774 = vmatpush1.bf16.msra.mxu0 %v10284
        %10775 = vmatprep.subr.bf16.mxu0 %v10281
        %10776 = vmatpush1.bf16.msra.mxu0 %v10280
        %10777 = vmatprep.subr.bf16.mxu0 %v10277
        %10778 = vmatpush1.bf16.msra.mxu0 %v10276
        %10779 = vmatprep.subr.bf16.mxu0 %v10337
        %10780 = vmatpush2.bf16.msra.mxu0 %v10336
        %10781 = vmatprep.subr.bf16.mxu0 %v10333
        %10782 = vmatpush2.bf16.msra.mxu0 %v10332
        %10783 = vmatprep.subr.bf16.mxu0 %v10329
        %10784 = vmatpush2.bf16.msra.mxu0 %v10328
        %10785 = vmatprep.subr.bf16.mxu0 %v10325
        %10786 = vmatpush2.bf16.msra.mxu0 %v10324
        %10787 = vmatprep.subr.bf16.mxu0 %v10321
        %10788 = vmatpush2.bf16.msra.mxu0 %v10320
        %10789 = vmatprep.subr.bf16.mxu0 %v10317
        %10790 = vmatpush2.bf16.msra.mxu0 %v10316
        %10791 = vmatprep.subr.bf16.mxu0 %v10313
        %10792 = vmatpush2.bf16.msra.mxu0 %v10312
        %10793 = vmatprep.subr.bf16.mxu0 %v10309
        %10794 = vmatpush2.bf16.msra.mxu0 %v10308
        %10795 = vmatprep.mubr.bf16.mxu0 %v9120
        %10796 = vmatmul.mubr.bf16.gmra.mxu0 %v9119
        %v10797 = vpop.f32.mrf.mxu0
        %v10798 = vadd.f32 %v10757, %v10797
        %v10799 = vpop.f32.mrf.mxu0
        %v10800 = vadd.f32 %v10759, %v10799
        %v10801 = vpop.f32.mrf.mxu0
        %v10802 = vpop.f32.mrf.mxu0
        %10803 = vdwg.mxu0
        %10804 = vmatprep.subr.bf16.mxu0 %v10369
        %10805 = vmatpush1.bf16.msra.mxu0 %v10368
        %10806 = vmatprep.subr.bf16.mxu0 %v10365
        %10807 = vmatpush1.bf16.msra.mxu0 %v10364
        %10808 = vmatprep.subr.bf16.mxu0 %v10361
        %10809 = vmatpush1.bf16.msra.mxu0 %v10360
        %10810 = vmatprep.subr.bf16.mxu0 %v10357
        %10811 = vmatpush1.bf16.msra.mxu0 %v10356
        %10812 = vmatprep.subr.bf16.mxu0 %v10353
        %10813 = vmatpush1.bf16.msra.mxu0 %v10352
        %10814 = vmatprep.subr.bf16.mxu0 %v10349
        %10815 = vmatpush1.bf16.msra.mxu0 %v10348
        %10816 = vmatprep.subr.bf16.mxu0 %v10345
        %10817 = vmatpush1.bf16.msra.mxu0 %v10344
        %10818 = vmatprep.subr.bf16.mxu0 %v10341
        %10819 = vmatpush1.bf16.msra.mxu0 %v10340
        %10820 = vmatprep.subr.bf16.mxu0 %v10401
        %10821 = vmatpush2.bf16.msra.mxu0 %v10400
        %10822 = vmatprep.subr.bf16.mxu0 %v10397
        %10823 = vmatpush2.bf16.msra.mxu0 %v10396
        %10824 = vmatprep.subr.bf16.mxu0 %v10393
        %10825 = vmatpush2.bf16.msra.mxu0 %v10392
        %10826 = vmatprep.subr.bf16.mxu0 %v10389
        %10827 = vmatpush2.bf16.msra.mxu0 %v10388
        %10828 = vmatprep.subr.bf16.mxu0 %v10385
        %10829 = vmatpush2.bf16.msra.mxu0 %v10384
        %10830 = vmatprep.subr.bf16.mxu0 %v10381
        %10831 = vmatpush2.bf16.msra.mxu0 %v10380
        %10832 = vmatprep.subr.bf16.mxu0 %v10377
        %10833 = vmatpush2.bf16.msra.mxu0 %v10376
        %10834 = vmatprep.subr.bf16.mxu0 %v10373
        %10835 = vmatpush2.bf16.msra.mxu0 %v10372
        %10836 = vmatprep.mubr.bf16.mxu0 %v9122
        %10837 = vmatmul.mubr.bf16.gmra.mxu0 %v9121
        %v10838 = vpop.f32.mrf.mxu0
        %v10839 = vadd.f32 %v10798, %v10838
        %v10840 = vpop.f32.mrf.mxu0
        %v10841 = vadd.f32 %v10800, %v10840
        %v10842 = vpop.f32.mrf.mxu0
        %v10843 = vpop.f32.mrf.mxu0
        %10844 = vdwg.mxu0
        %10845 = vmatprep.subr.bf16.mxu0 %v10179
        %10846 = vmatpush1.bf16.msra.mxu0 %v10178
        %10847 = vmatprep.subr.bf16.mxu0 %v10175
        %10848 = vmatpush1.bf16.msra.mxu0 %v10174
        %10849 = vmatprep.subr.bf16.mxu0 %v10171
        %10850 = vmatpush1.bf16.msra.mxu0 %v10170
        %10851 = vmatprep.subr.bf16.mxu0 %v10167
        %10852 = vmatpush1.bf16.msra.mxu0 %v10166
        %10853 = vmatprep.subr.bf16.mxu0 %v10163
        %10854 = vmatpush1.bf16.msra.mxu0 %v10162
        %10855 = vmatprep.subr.bf16.mxu0 %v10159
        %10856 = vmatpush1.bf16.msra.mxu0 %v10158
        %10857 = vmatprep.subr.bf16.mxu0 %v10155
        %10858 = vmatpush1.bf16.msra.mxu0 %v10154
        %10859 = vmatprep.subr.bf16.mxu0 %v10151
        %10860 = vmatpush1.bf16.msra.mxu0 %v10150
        %10861 = vmatprep.subr.bf16.mxu0 %v10211
        %10862 = vmatpush2.bf16.msra.mxu0 %v10210
        %10863 = vmatprep.subr.bf16.mxu0 %v10207
        %10864 = vmatpush2.bf16.msra.mxu0 %v10206
        %10865 = vmatprep.subr.bf16.mxu0 %v10203
        %10866 = vmatpush2.bf16.msra.mxu0 %v10202
        %10867 = vmatprep.subr.bf16.mxu0 %v10199
        %10868 = vmatpush2.bf16.msra.mxu0 %v10198
        %10869 = vmatprep.subr.bf16.mxu0 %v10195
        %10870 = vmatpush2.bf16.msra.mxu0 %v10194
        %10871 = vmatprep.subr.bf16.mxu0 %v10191
        %10872 = vmatpush2.bf16.msra.mxu0 %v10190
        %10873 = vmatprep.subr.bf16.mxu0 %v10187
        %10874 = vmatpush2.bf16.msra.mxu0 %v10186
        %10875 = vmatprep.subr.bf16.mxu0 %v10183
        %10876 = vmatpush2.bf16.msra.mxu0 %v10182
        %10877 = vmatprep.mubr.bf16.mxu0 %v9116
        %10878 = vmatmul.mubr.bf16.gmra.mxu0 %v9115
        %v10879 = vpop.f32.mrf.mxu0
        %v10880 = vadd.f32 %v10672, %v10879
        %v10881 = vpop.f32.mrf.mxu0
        %v10882 = vadd.f32 %v10676, %v10881
        %v10883 = vpop.f32.mrf.mxu0
        %v10884 = vpop.f32.mrf.mxu0
        %10885 = vdwg.mxu0
        %10886 = vmatprep.subr.bf16.mxu0 %v10243
        %10887 = vmatpush1.bf16.msra.mxu0 %v10242
        %10888 = vmatprep.subr.bf16.mxu0 %v10239
        %10889 = vmatpush1.bf16.msra.mxu0 %v10238
        %10890 = vmatprep.subr.bf16.mxu0 %v10235
        %10891 = vmatpush1.bf16.msra.mxu0 %v10234
        %10892 = vmatprep.subr.bf16.mxu0 %v10231
        %10893 = vmatpush1.bf16.msra.mxu0 %v10230
        %10894 = vmatprep.subr.bf16.mxu0 %v10227
        %10895 = vmatpush1.bf16.msra.mxu0 %v10226
        %10896 = vmatprep.subr.bf16.mxu0 %v10223
        %10897 = vmatpush1.bf16.msra.mxu0 %v10222
        %10898 = vmatprep.subr.bf16.mxu0 %v10219
        %10899 = vmatpush1.bf16.msra.mxu0 %v10218
        %10900 = vmatprep.subr.bf16.mxu0 %v10215
        %10901 = vmatpush1.bf16.msra.mxu0 %v10214
        %10902 = vmatprep.subr.bf16.mxu0 %v10275
        %10903 = vmatpush2.bf16.msra.mxu0 %v10274
        %10904 = vmatprep.subr.bf16.mxu0 %v10271
        %10905 = vmatpush2.bf16.msra.mxu0 %v10270
        %10906 = vmatprep.subr.bf16.mxu0 %v10267
        %10907 = vmatpush2.bf16.msra.mxu0 %v10266
        %10908 = vmatprep.subr.bf16.mxu0 %v10263
        %10909 = vmatpush2.bf16.msra.mxu0 %v10262
        %10910 = vmatprep.subr.bf16.mxu0 %v10259
        %10911 = vmatpush2.bf16.msra.mxu0 %v10258
        %10912 = vmatprep.subr.bf16.mxu0 %v10255
        %10913 = vmatpush2.bf16.msra.mxu0 %v10254
        %10914 = vmatprep.subr.bf16.mxu0 %v10251
        %10915 = vmatpush2.bf16.msra.mxu0 %v10250
        %10916 = vmatprep.subr.bf16.mxu0 %v10247
        %10917 = vmatpush2.bf16.msra.mxu0 %v10246
        %10918 = vmatprep.mubr.bf16.mxu0 %v9118
        %10919 = vmatmul.mubr.bf16.gmra.mxu0 %v9117
        %v10920 = vpop.f32.mrf.mxu0
        %v10921 = vadd.f32 %v10880, %v10920
        %v10922 = vpop.f32.mrf.mxu0
        %v10923 = vadd.f32 %v10882, %v10922
        %v10924 = vpop.f32.mrf.mxu0
        %v10925 = vpop.f32.mrf.mxu0
        %10926 = vdwg.mxu0
        %10927 = vmatprep.subr.bf16.mxu0 %v10307
        %10928 = vmatpush1.bf16.msra.mxu0 %v10306
        %10929 = vmatprep.subr.bf16.mxu0 %v10303
        %10930 = vmatpush1.bf16.msra.mxu0 %v10302
        %10931 = vmatprep.subr.bf16.mxu0 %v10299
        %10932 = vmatpush1.bf16.msra.mxu0 %v10298
        %10933 = vmatprep.subr.bf16.mxu0 %v10295
        %10934 = vmatpush1.bf16.msra.mxu0 %v10294
        %10935 = vmatprep.subr.bf16.mxu0 %v10291
        %10936 = vmatpush1.bf16.msra.mxu0 %v10290
        %10937 = vmatprep.subr.bf16.mxu0 %v10287
        %10938 = vmatpush1.bf16.msra.mxu0 %v10286
        %10939 = vmatprep.subr.bf16.mxu0 %v10283
        %10940 = vmatpush1.bf16.msra.mxu0 %v10282
        %10941 = vmatprep.subr.bf16.mxu0 %v10279
        %10942 = vmatpush1.bf16.msra.mxu0 %v10278
        %10943 = vmatprep.subr.bf16.mxu0 %v10339
        %10944 = vmatpush2.bf16.msra.mxu0 %v10338
        %10945 = vmatprep.subr.bf16.mxu0 %v10335
        %10946 = vmatpush2.bf16.msra.mxu0 %v10334
        %10947 = vmatprep.subr.bf16.mxu0 %v10331
        %10948 = vmatpush2.bf16.msra.mxu0 %v10330
        %10949 = vmatprep.subr.bf16.mxu0 %v10327
        %10950 = vmatpush2.bf16.msra.mxu0 %v10326
        %10951 = vmatprep.subr.bf16.mxu0 %v10323
        %10952 = vmatpush2.bf16.msra.mxu0 %v10322
        %10953 = vmatprep.subr.bf16.mxu0 %v10319
        %10954 = vmatpush2.bf16.msra.mxu0 %v10318
        %10955 = vmatprep.subr.bf16.mxu0 %v10315
        %10956 = vmatpush2.bf16.msra.mxu0 %v10314
        %10957 = vmatprep.subr.bf16.mxu0 %v10311
        %10958 = vmatpush2.bf16.msra.mxu0 %v10310
        %10959 = vmatprep.mubr.bf16.mxu0 %v9120
        %10960 = vmatmul.mubr.bf16.gmra.mxu0 %v9119
        %v10961 = vpop.f32.mrf.mxu0
        %v10962 = vadd.f32 %v10921, %v10961
        %v10963 = vpop.f32.mrf.mxu0
        %v10964 = vadd.f32 %v10923, %v10963
        %v10965 = vpop.f32.mrf.mxu0
        %v10966 = vpop.f32.mrf.mxu0
        %10967 = vdwg.mxu0
        %10968 = vmatprep.subr.bf16.mxu0 %v10371
        %10969 = vmatpush1.bf16.msra.mxu0 %v10370
        %10970 = vmatprep.subr.bf16.mxu0 %v10367
        %10971 = vmatpush1.bf16.msra.mxu0 %v10366
        %10972 = vmatprep.subr.bf16.mxu0 %v10363
        %10973 = vmatpush1.bf16.msra.mxu0 %v10362
        %10974 = vmatprep.subr.bf16.mxu0 %v10359
        %10975 = vmatpush1.bf16.msra.mxu0 %v10358
        %10976 = vmatprep.subr.bf16.mxu0 %v10355
        %10977 = vmatpush1.bf16.msra.mxu0 %v10354
        %10978 = vmatprep.subr.bf16.mxu0 %v10351
        %10979 = vmatpush1.bf16.msra.mxu0 %v10350
        %10980 = vmatprep.subr.bf16.mxu0 %v10347
        %10981 = vmatpush1.bf16.msra.mxu0 %v10346
        %10982 = vmatprep.subr.bf16.mxu0 %v10343
        %10983 = vmatpush1.bf16.msra.mxu0 %v10342
        %10984 = vmatprep.subr.bf16.mxu0 %v10403
        %10985 = vmatpush2.bf16.msra.mxu0 %v10402
        %10986 = vmatprep.subr.bf16.mxu0 %v10399
        %10987 = vmatpush2.bf16.msra.mxu0 %v10398
        %10988 = vmatprep.subr.bf16.mxu0 %v10395
        %10989 = vmatpush2.bf16.msra.mxu0 %v10394
        %10990 = vmatprep.subr.bf16.mxu0 %v10391
        %10991 = vmatpush2.bf16.msra.mxu0 %v10390
        %10992 = vmatprep.subr.bf16.mxu0 %v10387
        %10993 = vmatpush2.bf16.msra.mxu0 %v10386
        %10994 = vmatprep.subr.bf16.mxu0 %v10383
        %10995 = vmatpush2.bf16.msra.mxu0 %v10382
        %10996 = vmatprep.subr.bf16.mxu0 %v10379
        %10997 = vmatpush2.bf16.msra.mxu0 %v10378
        %10998 = vmatprep.subr.bf16.mxu0 %v10375
        %10999 = vmatpush2.bf16.msra.mxu0 %v10374
        %11000 = vmatprep.mubr.bf16.mxu0 %v9122
        %11001 = vmatmul.mubr.bf16.gmra.mxu0 %v9121
        %v11002 = vpop.f32.mrf.mxu0
        %v11003 = vadd.f32 %v10962, %v11002
        %v11004 = vpop.f32.mrf.mxu0
        %v11005 = vadd.f32 %v10964, %v11004
        %v11006 = vpop.f32.mrf.mxu0
        %v11007 = vpop.f32.mrf.mxu0
        %11008 = vdwg.mxu0
        %v11009 = vmax.f32 %v10839, 0.0
        %v11010 = vmax.f32 %v10841, 0.0
        %v11011 = vmax.f32 %v11003, 0.0
        %v11012 = vmax.f32 %v11005, 0.0
        %v11013 = vpack.c.bf16 %v11009, %v11009
        %v11014 = vpack.c.bf16 %v11010, %v11010
        %v11015 = vpack.c.bf16 %v11011, %v11011
        %v11016 = vpack.c.bf16 %v11012, %v11012
        %v11017 = vld [vmem:[%s9] sm:$0xff]
        %v11018 = vld [vmem:[%s9 + $0x8] sm:$0xff]
        %v11019 = vld [vmem:[%s9 + $0x10] sm:$0xff]
        %v11020 = vld [vmem:[%s9 + $0x18] sm:$0xff]
        %v11021 = vld [vmem:[%s9 + $0x20] sm:$0xff]
        %v11022 = vld [vmem:[%s9 + $0x28] sm:$0xff]
        %v11023 = vld [vmem:[%s9 + $0x30] sm:$0xff]
        %v11024 = vld [vmem:[%s9 + $0x38] sm:$0xff]
        %v11025 = vld [vmem:[%s9 + $0x40] sm:$0xff]
        %v11026 = vld [vmem:[%s9 + $0x48] sm:$0xff]
        %v11027 = vld [vmem:[%s9 + $0x50] sm:$0xff]
        %v11028 = vld [vmem:[%s9 + $0x58] sm:$0xff]
        %v11029 = vld [vmem:[%s9 + $0x60] sm:$0xff]
        %v11030 = vld [vmem:[%s9 + $0x68] sm:$0xff]
        %v11031 = vld [vmem:[%s9 + $0x70] sm:$0xff]
        %v11032 = vld [vmem:[%s9 + $0x78] sm:$0xff]
        %v11033 = vld [vmem:[%s9 + $0x80] sm:$0xff]
        %v11034 = vld [vmem:[%s9 + $0x88] sm:$0xff]
        %v11035 = vld [vmem:[%s9 + $0x90] sm:$0xff]
        %v11036 = vld [vmem:[%s9 + $0x98] sm:$0xff]
        %v11037 = vld [vmem:[%s9 + $0xa0] sm:$0xff]
        %v11038 = vld [vmem:[%s9 + $0xa8] sm:$0xff]
        %v11039 = vld [vmem:[%s9 + $0xb0] sm:$0xff]
        %v11040 = vld [vmem:[%s9 + $0xb8] sm:$0xff]
        %v11041 = vld [vmem:[%s9 + $0xc0] sm:$0xff]
        %v11042 = vld [vmem:[%s9 + $0xc8] sm:$0xff]
        %v11043 = vld [vmem:[%s9 + $0xd0] sm:$0xff]
        %v11044 = vld [vmem:[%s9 + $0xd8] sm:$0xff]
        %v11045 = vld [vmem:[%s9 + $0xe0] sm:$0xff]
        %v11046 = vld [vmem:[%s9 + $0xe8] sm:$0xff]
        %v11047 = vld [vmem:[%s9 + $0xf0] sm:$0xff]
        %v11048 = vld [vmem:[%s9 + $0xf8] sm:$0xff]
        %v11049 = vld [vmem:[%s9 + $0x100] sm:$0xff]
        %v11050 = vld [vmem:[%s9 + $0x108] sm:$0xff]
        %v11051 = vld [vmem:[%s9 + $0x110] sm:$0xff]
        %v11052 = vld [vmem:[%s9 + $0x118] sm:$0xff]
        %v11053 = vld [vmem:[%s9 + $0x120] sm:$0xff]
        %v11054 = vld [vmem:[%s9 + $0x128] sm:$0xff]
        %v11055 = vld [vmem:[%s9 + $0x130] sm:$0xff]
        %v11056 = vld [vmem:[%s9 + $0x138] sm:$0xff]
        %v11057 = vld [vmem:[%s9 + $0x140] sm:$0xff]
        %v11058 = vld [vmem:[%s9 + $0x148] sm:$0xff]
        %v11059 = vld [vmem:[%s9 + $0x150] sm:$0xff]
        %v11060 = vld [vmem:[%s9 + $0x158] sm:$0xff]
        %v11061 = vld [vmem:[%s9 + $0x160] sm:$0xff]
        %v11062 = vld [vmem:[%s9 + $0x168] sm:$0xff]
        %v11063 = vld [vmem:[%s9 + $0x170] sm:$0xff]
        %v11064 = vld [vmem:[%s9 + $0x178] sm:$0xff]
        %v11065 = vld [vmem:[%s9 + $0x180] sm:$0xff]
        %v11066 = vld [vmem:[%s9 + $0x188] sm:$0xff]
        %v11067 = vld [vmem:[%s9 + $0x190] sm:$0xff]
        %v11068 = vld [vmem:[%s9 + $0x198] sm:$0xff]
        %v11069 = vld [vmem:[%s9 + $0x1a0] sm:$0xff]
        %v11070 = vld [vmem:[%s9 + $0x1a8] sm:$0xff]
        %v11071 = vld [vmem:[%s9 + $0x1b0] sm:$0xff]
        %v11072 = vld [vmem:[%s9 + $0x1b8] sm:$0xff]
        %v11073 = vld [vmem:[%s9 + $0x1c0] sm:$0xff]
        %v11074 = vld [vmem:[%s9 + $0x1c8] sm:$0xff]
        %v11075 = vld [vmem:[%s9 + $0x1d0] sm:$0xff]
        %v11076 = vld [vmem:[%s9 + $0x1d8] sm:$0xff]
        %v11077 = vld [vmem:[%s9 + $0x1e0] sm:$0xff]
        %v11078 = vld [vmem:[%s9 + $0x1e8] sm:$0xff]
        %v11079 = vld [vmem:[%s9 + $0x1f0] sm:$0xff]
        %v11080 = vld [vmem:[%s9 + $0x1f8] sm:$0xff]
        %v11081 = vld [vmem:[%s10] sm:$0x3]
        %v11146 = vunpack.c.l.b16 %v11017
        %v11147 = vunpack.c.h.b16 %v11017
        %v11148 = vunpack.c.l.b16 %v11018
        %v11149 = vunpack.c.h.b16 %v11018
        %v11150 = vunpack.c.l.b16 %v11019
        %v11151 = vunpack.c.h.b16 %v11019
        %v11152 = vunpack.c.l.b16 %v11020
        %v11153 = vunpack.c.h.b16 %v11020
        %v11154 = vunpack.c.l.b16 %v11021
        %v11155 = vunpack.c.h.b16 %v11021
        %v11156 = vunpack.c.l.b16 %v11022
        %v11157 = vunpack.c.h.b16 %v11022
        %v11158 = vunpack.c.l.b16 %v11023
        %v11159 = vunpack.c.h.b16 %v11023
        %v11160 = vunpack.c.l.b16 %v11024
        %v11161 = vunpack.c.h.b16 %v11024
        %v11162 = vunpack.c.l.b16 %v11025
        %v11163 = vunpack.c.h.b16 %v11025
        %v11164 = vunpack.c.l.b16 %v11026
        %v11165 = vunpack.c.h.b16 %v11026
        %v11166 = vunpack.c.l.b16 %v11027
        %v11167 = vunpack.c.h.b16 %v11027
        %v11168 = vunpack.c.l.b16 %v11028
        %v11169 = vunpack.c.h.b16 %v11028
        %v11170 = vunpack.c.l.b16 %v11029
        %v11171 = vunpack.c.h.b16 %v11029
        %v11172 = vunpack.c.l.b16 %v11030
        %v11173 = vunpack.c.h.b16 %v11030
        %v11174 = vunpack.c.l.b16 %v11031
        %v11175 = vunpack.c.h.b16 %v11031
        %v11176 = vunpack.c.l.b16 %v11032
        %v11177 = vunpack.c.h.b16 %v11032
        %v11178 = vunpack.c.l.b16 %v11033
        %v11179 = vunpack.c.h.b16 %v11033
        %v11180 = vunpack.c.l.b16 %v11034
        %v11181 = vunpack.c.h.b16 %v11034
        %v11182 = vunpack.c.l.b16 %v11035
        %v11183 = vunpack.c.h.b16 %v11035
        %v11184 = vunpack.c.l.b16 %v11036
        %v11185 = vunpack.c.h.b16 %v11036
        %v11186 = vunpack.c.l.b16 %v11037
        %v11187 = vunpack.c.h.b16 %v11037
        %v11188 = vunpack.c.l.b16 %v11038
        %v11189 = vunpack.c.h.b16 %v11038
        %v11190 = vunpack.c.l.b16 %v11039
        %v11191 = vunpack.c.h.b16 %v11039
        %v11192 = vunpack.c.l.b16 %v11040
        %v11193 = vunpack.c.h.b16 %v11040
        %v11194 = vunpack.c.l.b16 %v11041
        %v11195 = vunpack.c.h.b16 %v11041
        %v11196 = vunpack.c.l.b16 %v11042
        %v11197 = vunpack.c.h.b16 %v11042
        %v11198 = vunpack.c.l.b16 %v11043
        %v11199 = vunpack.c.h.b16 %v11043
        %v11200 = vunpack.c.l.b16 %v11044
        %v11201 = vunpack.c.h.b16 %v11044
        %v11202 = vunpack.c.l.b16 %v11045
        %v11203 = vunpack.c.h.b16 %v11045
        %v11204 = vunpack.c.l.b16 %v11046
        %v11205 = vunpack.c.h.b16 %v11046
        %v11206 = vunpack.c.l.b16 %v11047
        %v11207 = vunpack.c.h.b16 %v11047
        %v11208 = vunpack.c.l.b16 %v11048
        %v11209 = vunpack.c.h.b16 %v11048
        %v11210 = vunpack.c.l.b16 %v11049
        %v11211 = vunpack.c.h.b16 %v11049
        %v11212 = vunpack.c.l.b16 %v11050
        %v11213 = vunpack.c.h.b16 %v11050
        %v11214 = vunpack.c.l.b16 %v11051
        %v11215 = vunpack.c.h.b16 %v11051
        %v11216 = vunpack.c.l.b16 %v11052
        %v11217 = vunpack.c.h.b16 %v11052
        %v11218 = vunpack.c.l.b16 %v11053
        %v11219 = vunpack.c.h.b16 %v11053
        %v11220 = vunpack.c.l.b16 %v11054
        %v11221 = vunpack.c.h.b16 %v11054
        %v11222 = vunpack.c.l.b16 %v11055
        %v11223 = vunpack.c.h.b16 %v11055
        %v11224 = vunpack.c.l.b16 %v11056
        %v11225 = vunpack.c.h.b16 %v11056
        %v11226 = vunpack.c.l.b16 %v11057
        %v11227 = vunpack.c.h.b16 %v11057
        %v11228 = vunpack.c.l.b16 %v11058
        %v11229 = vunpack.c.h.b16 %v11058
        %v11230 = vunpack.c.l.b16 %v11059
        %v11231 = vunpack.c.h.b16 %v11059
        %v11232 = vunpack.c.l.b16 %v11060
        %v11233 = vunpack.c.h.b16 %v11060
        %v11234 = vunpack.c.l.b16 %v11061
        %v11235 = vunpack.c.h.b16 %v11061
        %v11236 = vunpack.c.l.b16 %v11062
        %v11237 = vunpack.c.h.b16 %v11062
        %v11238 = vunpack.c.l.b16 %v11063
        %v11239 = vunpack.c.h.b16 %v11063
        %v11240 = vunpack.c.l.b16 %v11064
        %v11241 = vunpack.c.h.b16 %v11064
        %v11242 = vunpack.c.l.b16 %v11065
        %v11243 = vunpack.c.h.b16 %v11065
        %v11244 = vunpack.c.l.b16 %v11066
        %v11245 = vunpack.c.h.b16 %v11066
        %v11246 = vunpack.c.l.b16 %v11067
        %v11247 = vunpack.c.h.b16 %v11067
        %v11248 = vunpack.c.l.b16 %v11068
        %v11249 = vunpack.c.h.b16 %v11068
        %v11250 = vunpack.c.l.b16 %v11069
        %v11251 = vunpack.c.h.b16 %v11069
        %v11252 = vunpack.c.l.b16 %v11070
        %v11253 = vunpack.c.h.b16 %v11070
        %v11254 = vunpack.c.l.b16 %v11071
        %v11255 = vunpack.c.h.b16 %v11071
        %v11256 = vunpack.c.l.b16 %v11072
        %v11257 = vunpack.c.h.b16 %v11072
        %v11258 = vunpack.c.l.b16 %v11073
        %v11259 = vunpack.c.h.b16 %v11073
        %v11260 = vunpack.c.l.b16 %v11074
        %v11261 = vunpack.c.h.b16 %v11074
        %v11262 = vunpack.c.l.b16 %v11075
        %v11263 = vunpack.c.h.b16 %v11075
        %v11264 = vunpack.c.l.b16 %v11076
        %v11265 = vunpack.c.h.b16 %v11076
        %v11266 = vunpack.c.l.b16 %v11077
        %v11267 = vunpack.c.h.b16 %v11077
        %v11268 = vunpack.c.l.b16 %v11078
        %v11269 = vunpack.c.h.b16 %v11078
        %v11270 = vunpack.c.l.b16 %v11079
        %v11271 = vunpack.c.h.b16 %v11079
        %v11272 = vunpack.c.l.b16 %v11080
        %v11273 = vunpack.c.h.b16 %v11080
        %v11274 = vpack.c.b16 %v11148, %v11146
        %v11275 = vpack.c.b16 %v11149, %v11147
        %v11276 = vpack.c.b16 %v11152, %v11150
        %v11277 = vpack.c.b16 %v11153, %v11151
        %v11278 = vpack.c.b16 %v11156, %v11154
        %v11279 = vpack.c.b16 %v11157, %v11155
        %v11280 = vpack.c.b16 %v11160, %v11158
        %v11281 = vpack.c.b16 %v11161, %v11159
        %v11282 = vpack.c.b16 %v11164, %v11162
        %v11283 = vpack.c.b16 %v11165, %v11163
        %v11284 = vpack.c.b16 %v11168, %v11166
        %v11285 = vpack.c.b16 %v11169, %v11167
        %v11286 = vpack.c.b16 %v11172, %v11170
        %v11287 = vpack.c.b16 %v11173, %v11171
        %v11288 = vpack.c.b16 %v11176, %v11174
        %v11289 = vpack.c.b16 %v11177, %v11175
        %v11290 = vpack.c.b16 %v11180, %v11178
        %v11291 = vpack.c.b16 %v11181, %v11179
        %v11292 = vpack.c.b16 %v11184, %v11182
        %v11293 = vpack.c.b16 %v11185, %v11183
        %v11294 = vpack.c.b16 %v11188, %v11186
        %v11295 = vpack.c.b16 %v11189, %v11187
        %v11296 = vpack.c.b16 %v11192, %v11190
        %v11297 = vpack.c.b16 %v11193, %v11191
        %v11298 = vpack.c.b16 %v11196, %v11194
        %v11299 = vpack.c.b16 %v11197, %v11195
        %v11300 = vpack.c.b16 %v11200, %v11198
        %v11301 = vpack.c.b16 %v11201, %v11199
        %v11302 = vpack.c.b16 %v11204, %v11202
        %v11303 = vpack.c.b16 %v11205, %v11203
        %v11304 = vpack.c.b16 %v11208, %v11206
        %v11305 = vpack.c.b16 %v11209, %v11207
        %v11306 = vpack.c.b16 %v11212, %v11210
        %v11307 = vpack.c.b16 %v11213, %v11211
        %v11308 = vpack.c.b16 %v11216, %v11214
        %v11309 = vpack.c.b16 %v11217, %v11215
        %v11310 = vpack.c.b16 %v11220, %v11218
        %v11311 = vpack.c.b16 %v11221, %v11219
        %v11312 = vpack.c.b16 %v11224, %v11222
        %v11313 = vpack.c.b16 %v11225, %v11223
        %v11314 = vpack.c.b16 %v11228, %v11226
        %v11315 = vpack.c.b16 %v11229, %v11227
        %v11316 = vpack.c.b16 %v11232, %v11230
        %v11317 = vpack.c.b16 %v11233, %v11231
        %v11318 = vpack.c.b16 %v11236, %v11234
        %v11319 = vpack.c.b16 %v11237, %v11235
        %v11320 = vpack.c.b16 %v11240, %v11238
        %v11321 = vpack.c.b16 %v11241, %v11239
        %v11322 = vpack.c.b16 %v11244, %v11242
        %v11323 = vpack.c.b16 %v11245, %v11243
        %v11324 = vpack.c.b16 %v11248, %v11246
        %v11325 = vpack.c.b16 %v11249, %v11247
        %v11326 = vpack.c.b16 %v11252, %v11250
        %v11327 = vpack.c.b16 %v11253, %v11251
        %v11328 = vpack.c.b16 %v11256, %v11254
        %v11329 = vpack.c.b16 %v11257, %v11255
        %v11330 = vpack.c.b16 %v11260, %v11258
        %v11331 = vpack.c.b16 %v11261, %v11259
        %v11332 = vpack.c.b16 %v11264, %v11262
        %v11333 = vpack.c.b16 %v11265, %v11263
        %v11334 = vpack.c.b16 %v11268, %v11266
        %v11335 = vpack.c.b16 %v11269, %v11267
        %v11336 = vpack.c.b16 %v11272, %v11270
        %v11337 = vpack.c.b16 %v11273, %v11271
        %v11403 = vlaneseq
        %v11404 = vshrl.u32 %v11403, 7
        %v11405 = vsub.s32 0, %v11404
        %v11406 = vrot.slane %v11081, %v11405
        %v11407 = vlaneseq
        %v11408 = vshrl.u32 %v11407, 7
        %v11409 = vsub.s32 1, %v11408
        %v11410 = vrot.slane %v11081, %v11409
        %11413 = vmatprep.subr.bf16.mxu0 %v11289
        %11414 = vmatpush1.bf16.msra.mxu0 %v11288
        %11415 = vmatprep.subr.bf16.mxu0 %v11287
        %11416 = vmatpush1.bf16.msra.mxu0 %v11286
        %11417 = vmatprep.subr.bf16.mxu0 %v11285
        %11418 = vmatpush1.bf16.msra.mxu0 %v11284
        %11419 = vmatprep.subr.bf16.mxu0 %v11283
        %11420 = vmatpush1.bf16.msra.mxu0 %v11282
        %11421 = vmatprep.subr.bf16.mxu0 %v11281
        %11422 = vmatpush1.bf16.msra.mxu0 %v11280
        %11423 = vmatprep.subr.bf16.mxu0 %v11279
        %11424 = vmatpush1.bf16.msra.mxu0 %v11278
        %11425 = vmatprep.subr.bf16.mxu0 %v11277
        %11426 = vmatpush1.bf16.msra.mxu0 %v11276
        %11427 = vmatprep.subr.bf16.mxu0 %v11275
        %11428 = vmatpush1.bf16.msra.mxu0 %v11274
        %11429 = vmatprep.subr.bf16.mxu0 %v11305
        %11430 = vmatpush2.bf16.msra.mxu0 %v11304
        %11431 = vmatprep.subr.bf16.mxu0 %v11303
        %11432 = vmatpush2.bf16.msra.mxu0 %v11302
        %11433 = vmatprep.subr.bf16.mxu0 %v11301
        %11434 = vmatpush2.bf16.msra.mxu0 %v11300
        %11435 = vmatprep.subr.bf16.mxu0 %v11299
        %11436 = vmatpush2.bf16.msra.mxu0 %v11298
        %11437 = vmatprep.subr.bf16.mxu0 %v11297
        %11438 = vmatpush2.bf16.msra.mxu0 %v11296
        %11439 = vmatprep.subr.bf16.mxu0 %v11295
        %11440 = vmatpush2.bf16.msra.mxu0 %v11294
        %11441 = vmatprep.subr.bf16.mxu0 %v11293
        %11442 = vmatpush2.bf16.msra.mxu0 %v11292
        %11443 = vmatprep.subr.bf16.mxu0 %v11291
        %11444 = vmatpush2.bf16.msra.mxu0 %v11290
        %11445 = vmatprep.mubr.bf16.mxu0 %v11014
        %11446 = vmatmul.mubr.bf16.gmra.mxu0 %v11013
        %v11447 = vpop.f32.mrf.mxu0
        %v11448 = vadd.f32 %v11406, %v11447
        %v11449 = vpop.f32.mrf.mxu0
        %v11450 = vadd.f32 %v11410, %v11449
        %v11451 = vpop.f32.mrf.mxu0
        %v11452 = vpop.f32.mrf.mxu0
        %11453 = vdwg.mxu0
        %11454 = vmatprep.subr.bf16.mxu0 %v11321
        %11455 = vmatpush1.bf16.msra.mxu0 %v11320
        %11456 = vmatprep.subr.bf16.mxu0 %v11319
        %11457 = vmatpush1.bf16.msra.mxu0 %v11318
        %11458 = vmatprep.subr.bf16.mxu0 %v11317
        %11459 = vmatpush1.bf16.msra.mxu0 %v11316
        %11460 = vmatprep.subr.bf16.mxu0 %v11315
        %11461 = vmatpush1.bf16.msra.mxu0 %v11314
        %11462 = vmatprep.subr.bf16.mxu0 %v11313
        %11463 = vmatpush1.bf16.msra.mxu0 %v11312
        %11464 = vmatprep.subr.bf16.mxu0 %v11311
        %11465 = vmatpush1.bf16.msra.mxu0 %v11310
        %11466 = vmatprep.subr.bf16.mxu0 %v11309
        %11467 = vmatpush1.bf16.msra.mxu0 %v11308
        %11468 = vmatprep.subr.bf16.mxu0 %v11307
        %11469 = vmatpush1.bf16.msra.mxu0 %v11306
        %11470 = vmatprep.subr.bf16.mxu0 %v11337
        %11471 = vmatpush2.bf16.msra.mxu0 %v11336
        %11472 = vmatprep.subr.bf16.mxu0 %v11335
        %11473 = vmatpush2.bf16.msra.mxu0 %v11334
        %11474 = vmatprep.subr.bf16.mxu0 %v11333
        %11475 = vmatpush2.bf16.msra.mxu0 %v11332
        %11476 = vmatprep.subr.bf16.mxu0 %v11331
        %11477 = vmatpush2.bf16.msra.mxu0 %v11330
        %11478 = vmatprep.subr.bf16.mxu0 %v11329
        %11479 = vmatpush2.bf16.msra.mxu0 %v11328
        %11480 = vmatprep.subr.bf16.mxu0 %v11327
        %11481 = vmatpush2.bf16.msra.mxu0 %v11326
        %11482 = vmatprep.subr.bf16.mxu0 %v11325
        %11483 = vmatpush2.bf16.msra.mxu0 %v11324
        %11484 = vmatprep.subr.bf16.mxu0 %v11323
        %11485 = vmatpush2.bf16.msra.mxu0 %v11322
        %11486 = vmatprep.mubr.bf16.mxu0 %v11016
        %11487 = vmatmul.mubr.bf16.gmra.mxu0 %v11015
        %v11488 = vpop.f32.mrf.mxu0
        %v11489 = vadd.f32 %v11448, %v11488
        %v11490 = vpop.f32.mrf.mxu0
        %v11491 = vadd.f32 %v11450, %v11490
        %v11492 = vpop.f32.mrf.mxu0
        %v11493 = vpop.f32.mrf.mxu0
        %11494 = vdwg.mxu0
        %v11495 = vmax.f32 %v11489, 0.0
        %v11496 = vmax.f32 %v11491, 0.0
        %v11497 = vpack.c.bf16 %v11495, %v11495
        %v11498 = vpack.c.bf16 %v11496, %v11496
        %v11499 = vld [vmem:[%s11] sm:$0xf]
        %v11500 = vld [vmem:[%s11 + $0x4] sm:$0xf]
        %v11501 = vld [vmem:[%s11 + $0x8] sm:$0xf]
        %v11502 = vld [vmem:[%s11 + $0xc] sm:$0xf]
        %v11503 = vld [vmem:[%s11 + $0x10] sm:$0xf]
        %v11504 = vld [vmem:[%s11 + $0x14] sm:$0xf]
        %v11505 = vld [vmem:[%s11 + $0x18] sm:$0xf]
        %v11506 = vld [vmem:[%s11 + $0x1c] sm:$0xf]
        %v11507 = vld [vmem:[%s11 + $0x20] sm:$0xf]
        %v11508 = vld [vmem:[%s11 + $0x24] sm:$0xf]
        %v11509 = vld [vmem:[%s11 + $0x28] sm:$0xf]
        %v11510 = vld [vmem:[%s11 + $0x2c] sm:$0xf]
        %v11511 = vld [vmem:[%s11 + $0x30] sm:$0xf]
        %v11512 = vld [vmem:[%s11 + $0x34] sm:$0xf]
        %v11513 = vld [vmem:[%s11 + $0x38] sm:$0xf]
        %v11514 = vld [vmem:[%s11 + $0x3c] sm:$0xf]
        %v11515 = vld [vmem:[%s11 + $0x40] sm:$0xf]
        %v11516 = vld [vmem:[%s11 + $0x44] sm:$0xf]
        %v11517 = vld [vmem:[%s11 + $0x48] sm:$0xf]
        %v11518 = vld [vmem:[%s11 + $0x4c] sm:$0xf]
        %v11519 = vld [vmem:[%s11 + $0x50] sm:$0xf]
        %v11520 = vld [vmem:[%s11 + $0x54] sm:$0xf]
        %v11521 = vld [vmem:[%s11 + $0x58] sm:$0xf]
        %v11522 = vld [vmem:[%s11 + $0x5c] sm:$0xf]
        %v11523 = vld [vmem:[%s11 + $0x60] sm:$0xf]
        %v11524 = vld [vmem:[%s11 + $0x64] sm:$0xf]
        %v11525 = vld [vmem:[%s11 + $0x68] sm:$0xf]
        %v11526 = vld [vmem:[%s11 + $0x6c] sm:$0xf]
        %v11527 = vld [vmem:[%s11 + $0x70] sm:$0xf]
        %v11528 = vld [vmem:[%s11 + $0x74] sm:$0xf]
        %v11529 = vld [vmem:[%s11 + $0x78] sm:$0xf]
        %v11530 = vld [vmem:[%s11 + $0x7c] sm:$0xf]
        %v11531 = vld [vmem:[%s12] sm:$0x1]
        %v11564 = vunpack.c.l.b16 %v11499
        %v11565 = vunpack.c.l.b16 %v11500
        %v11566 = vunpack.c.l.b16 %v11501
        %v11567 = vunpack.c.l.b16 %v11502
        %v11568 = vunpack.c.l.b16 %v11503
        %v11569 = vunpack.c.l.b16 %v11504
        %v11570 = vunpack.c.l.b16 %v11505
        %v11571 = vunpack.c.l.b16 %v11506
        %v11572 = vunpack.c.l.b16 %v11507
        %v11573 = vunpack.c.l.b16 %v11508
        %v11574 = vunpack.c.l.b16 %v11509
        %v11575 = vunpack.c.l.b16 %v11510
        %v11576 = vunpack.c.l.b16 %v11511
        %v11577 = vunpack.c.l.b16 %v11512
        %v11578 = vunpack.c.l.b16 %v11513
        %v11579 = vunpack.c.l.b16 %v11514
        %v11580 = vunpack.c.l.b16 %v11515
        %v11581 = vunpack.c.l.b16 %v11516
        %v11582 = vunpack.c.l.b16 %v11517
        %v11583 = vunpack.c.l.b16 %v11518
        %v11584 = vunpack.c.l.b16 %v11519
        %v11585 = vunpack.c.l.b16 %v11520
        %v11586 = vunpack.c.l.b16 %v11521
        %v11587 = vunpack.c.l.b16 %v11522
        %v11588 = vunpack.c.l.b16 %v11523
        %v11589 = vunpack.c.l.b16 %v11524
        %v11590 = vunpack.c.l.b16 %v11525
        %v11591 = vunpack.c.l.b16 %v11526
        %v11592 = vunpack.c.l.b16 %v11527
        %v11593 = vunpack.c.l.b16 %v11528
        %v11594 = vunpack.c.l.b16 %v11529
        %v11595 = vunpack.c.l.b16 %v11530
        %v11596 = vpack.c.b16 %v11565, %v11564
        %v11597 = vpack.c.b16 %v11567, %v11566
        %v11598 = vpack.c.b16 %v11569, %v11568
        %v11599 = vpack.c.b16 %v11571, %v11570
        %v11600 = vpack.c.b16 %v11573, %v11572
        %v11601 = vpack.c.b16 %v11575, %v11574
        %v11602 = vpack.c.b16 %v11577, %v11576
        %v11603 = vpack.c.b16 %v11579, %v11578
        %v11604 = vpack.c.b16 %v11581, %v11580
        %v11605 = vpack.c.b16 %v11583, %v11582
        %v11606 = vpack.c.b16 %v11585, %v11584
        %v11607 = vpack.c.b16 %v11587, %v11586
        %v11608 = vpack.c.b16 %v11589, %v11588
        %v11609 = vpack.c.b16 %v11591, %v11590
        %v11610 = vpack.c.b16 %v11593, %v11592
        %v11611 = vpack.c.b16 %v11595, %v11594
        %11628 = vmatprep.subr.bf16.mxu0 0
        %11629 = vmatpush1.bf16.msra.mxu0 %v11603
        %11630 = vmatprep.subr.bf16.mxu0 0
        %11631 = vmatpush1.bf16.msra.mxu0 %v11602
        %11632 = vmatprep.subr.bf16.mxu0 0
        %11633 = vmatpush1.bf16.msra.mxu0 %v11601
        %11634 = vmatprep.subr.bf16.mxu0 0
        %11635 = vmatpush1.bf16.msra.mxu0 %v11600
        %11636 = vmatprep.subr.bf16.mxu0 0
        %11637 = vmatpush1.bf16.msra.mxu0 %v11599
        %11638 = vmatprep.subr.bf16.mxu0 0
        %11639 = vmatpush1.bf16.msra.mxu0 %v11598
        %11640 = vmatprep.subr.bf16.mxu0 0
        %11641 = vmatpush1.bf16.msra.mxu0 %v11597
        %11642 = vmatprep.subr.bf16.mxu0 0
        %11643 = vmatpush1.bf16.msra.mxu0 %v11596
        %11644 = vmatprep.subr.bf16.mxu0 0
        %11645 = vmatpush2.bf16.msra.mxu0 %v11611
        %11646 = vmatprep.subr.bf16.mxu0 0
        %11647 = vmatpush2.bf16.msra.mxu0 %v11610
        %11648 = vmatprep.subr.bf16.mxu0 0
        %11649 = vmatpush2.bf16.msra.mxu0 %v11609
        %11650 = vmatprep.subr.bf16.mxu0 0
        %11651 = vmatpush2.bf16.msra.mxu0 %v11608
        %11652 = vmatprep.subr.bf16.mxu0 0
        %11653 = vmatpush2.bf16.msra.mxu0 %v11607
        %11654 = vmatprep.subr.bf16.mxu0 0
        %11655 = vmatpush2.bf16.msra.mxu0 %v11606
        %11656 = vmatprep.subr.bf16.mxu0 0
        %11657 = vmatpush2.bf16.msra.mxu0 %v11605
        %11658 = vmatprep.subr.bf16.mxu0 0
        %11659 = vmatpush2.bf16.msra.mxu0 %v11604
        %11660 = vmatprep.mubr.bf16.mxu0 %v11498
        %11661 = vmatmul.mubr.bf16.gmra.mxu0 %v11497
        %v11662 = vpop.f32.mrf.mxu0
        %v11663 = vadd.f32 %v11531, %v11662
        %v11664 = vpop.f32.mrf.mxu0
        %v11665 = vpop.f32.mrf.mxu0
        %v11666 = vpop.f32.mrf.mxu0
        %11667 = vdwg.mxu0
        %11668 = vst [vmem:[%s464] sm:$0x1] %v11663
      $region80: #{stn3d_forward.1} parent=71 // pred_fallthru
        _
      %p11669 = scmp.lt.s32.totalorder %s28, 1
      %s11670 = scalar_select %p11669, %s28, 1
      %s11671 = scalar_lea.vmem %s13, %s11670
      // Predicated region
      $region81: #{stn3d_forward.1} parent=71 // pred_check
        %p11672 = pneg %p334
      $region82: #{stn3d_forward.1} parent=71 // pred_check_branch
        %11674 = sbr.rel (%p11672) target = $region84
      $region83: #{stn3d_forward.1} parent=71 // pred_region
        _
      $region84: #{stn3d_forward.1} parent=71 // pred_fallthru
        _
    $region72: #{stn3d_forward.1} parent=5 // pred_fallthru
      _
    %p11675 = scmp.le.s32.totalorder 2, %s19
    // Predicated region
    $region85: #{stn3d_forward.1} parent=5 // pred_check
      %p11676 = pneg %p11675
    $region86: #{stn3d_forward.1} parent=5 // pred_check_branch
      %11678 = sbr.rel (%p11676) target = $region88
    $region87: #{stn3d_forward.1} parent=5 // pred_region
      %s11679 = ssub.s32 %s19, 2
      // Predicated region
      $region89: #{stn3d_forward.1} parent=87 // pred_check
        %p11680 = pneg %p340
      $region90: #{stn3d_forward.1} parent=87 // pred_check_branch
        %11682 = sbr.rel (%p11680) target = $region92
      $region91: #{stn3d_forward.1} parent=87 // pred_region
        %p11683 = scmp.lt.s32.totalorder %s30, 1
        %s11684 = scalar_select %p11683, %s30, 1
        %s11685 = scalar_lea.vmem %s13, %s11684
      $region92: #{stn3d_forward.1} parent=87 // pred_fallthru
        _
    $region88: #{stn3d_forward.1} parent=5 // pred_fallthru
      _
  $region6: #{stn3d_forward.1} parent=0 // loop_footer
    %s23 = sadd.s32 1, %s19
  $region7: #{stn3d_forward.1} parent=0 // loop_footer_branch
    %18 = sbr.rel target = $region3
  $region8: #{stn3d_forward.1} parent=0 // loop_exit
    _

</llo_original>
